<compile_context>
chip_gen: v6e
topology: v6e:2x2x1
jax: 0.10.0
libtpu: 0.0.40
codegen_flags: <defaults>
</compile_context>

<pallas_src>
import math

import jax
import jax.numpy as jnp
from jax.experimental import pallas as pl
from jax.experimental.pallas import tpu as pltpu

# ----------------------------- model config (small, consistent with FCViT) ---
NUM_FRAGMENT = 9
SIZE_FRAGMENT = 11                       # small stand-in for 75
SIZE_PUZZLE = int(SIZE_FRAGMENT * math.isqrt(NUM_FRAGMENT))   # 33
IMG_SIZE = 32                            # small stand-in for the ViT's 224
MARGIN = SIZE_PUZZLE - IMG_SIZE          # 1 (matches 225 - 224 in the real model)
PATCH_SIZE = 8
GRID_P = IMG_SIZE // PATCH_SIZE          # 4 -> 16 patches
NUM_PATCH = GRID_P * GRID_P
NUM_TOKEN = NUM_PATCH + 1                # 17 = cls + patches
PATCH_DIM = 3 * PATCH_SIZE * PATCH_SIZE  # 192
EMBED_DIM = 32
NUM_HEADS = 4
HEAD_DIM = EMBED_DIM // NUM_HEADS
MLP_DIM = 4 * EMBED_DIM
NUM_CLASSES = 1000                       # timm head width (kept exact, zero-padded)
HEAD_PAD = 1024                          # 1000 padded to a lane multiple of 128
FC2_PAD = 128                            # 18 padded to one full lane tile


# ------------------------------------- Kernel: fused ViT + head + fc1 + fc2 --
def _fcvit_kernel(patch_ref, pe_w, pe_b, pos_ref,
                  ln1_g, ln1_b,
                  q_w, q_b, k_w, k_b, v_w, v_b,
                  proj_w, proj_b,
                  ln2_g, ln2_b, mlp_w1, mlp_b1, mlp_w2, mlp_b2,
                  lnf_g, lnf_b, head_w, head_b,
                  fc1_w, fc1_b, fc2_w, fc2_b,
                  o_ref):
    f32, bf16 = jnp.float32, jnp.bfloat16

    def mm(x, w_ref, b_ref):
        y = jnp.dot(x.astype(bf16), w_ref[...], preferred_element_type=f32)
        return y + b_ref[...]

    def ln(x, g_ref, b_ref):
        mu = jnp.mean(x, axis=-1, keepdims=True)
        var = jnp.mean((x - mu) ** 2, axis=-1, keepdims=True)
        return (x - mu) * jax.lax.rsqrt(var + 1e-6) * g_ref[...] + b_ref[...]

    # patch embed; row 0 of patch_ref is all-zero, and the wrapper folded
    # (cls_token - pe_b) into pos row 0, so row 0 of tok == cls_token + pos[0].
    tok = mm(patch_ref[0], pe_w, pe_b) + pos_ref[...]                 # (T, D) f32

    # ---------------- attention sub-block ----------------
    y = ln(tok, ln1_g, ln1_b)
    q_t = mm(y, q_w, q_b)                                             # (T, D)
    k_t = mm(y, k_w, k_b)
    v_t = mm(y, v_w, v_b)
    scale = 1.0 / math.sqrt(HEAD_DIM)
    # Multi-head attention via per-head lane masks: masking q (and v) to head h's
    # 8 lanes and contracting the full D dim gives exactly Q_h K_h^T (and P V_h
    # lands only in head h's columns), so the sum over heads reconstructs the
    # concatenated multi-head output without any in-kernel reshape/slice/concat.
    lane = jax.lax.broadcasted_iota(jnp.int32, (NUM_TOKEN, EMBED_DIM), 1)
    attn = jnp.zeros((NUM_TOKEN, EMBED_DIM), f32)
    for h in range(NUM_HEADS):
        mask = (lane >= h * HEAD_DIM) & (lane < (h + 1) * HEAD_DIM)
        qh = jnp.where(mask, q_t, 0.0)
        vh = jnp.where(mask, v_t, 0.0)
        s = jax.lax.dot_general(qh, k_t, (((1,), (1,)), ((), ())),
                                preferred_element_type=f32) * scale   # (T, T)
        s = s - jnp.max(s, axis=-1, keepdims=True)
        p = jnp.exp(s)
        p = p / jnp.sum(p, axis=-1, keepdims=True)
        attn = attn + jnp.dot(p, vh, preferred_element_type=f32)      # (T, D)
    tok = tok + mm(attn, proj_w, proj_b)

    # ---------------- MLP sub-block ----------------
    y = ln(tok, ln2_g, ln2_b)
    y = mm(y, mlp_w1, mlp_b1)
    # TODO(synk): timm ViT uses erf GELU; tanh approximation used here (Mosaic friendly).
    y = 0.5 * y * (1.0 + jnp.tanh(0.7978845608028654 * (y + 0.044715 * y * y * y)))
    tok = tok + mm(y, mlp_w2, mlp_b2)

    # -------- final norm + 1000-wide ViT head on the cls token --------
    cls = ln(tok[0:1, :], lnf_g, lnf_b)                               # (1, D)
    feat = mm(cls, head_w, head_b)                                    # (1, HEAD_PAD)

    # -------- FCViT regression head: fc1 + ReLU + fc2 --------
    hid = jnp.maximum(mm(feat, fc1_w, fc1_b), 0.0)                    # (1, HEAD_PAD)
    out = mm(hid, fc2_w, fc2_b)                                       # (1, FC2_PAD)
    o_ref[0] = out.astype(o_ref.dtype)


def fcvit_core(params, x):
    """Patch-embed + transformer block + ViT head + fc1/fc2, one pallas_call."""
    N = x.shape[0]
    D = EMBED_DIM
    # patchify NCHW -> (N, 16, 192) in (C, ph, pw) flattening order, then prepend
    # a zero "patch" so the cls token can be folded into the positional embedding.
    patches = x.reshape(N, 3, GRID_P, PATCH_SIZE, GRID_P, PATCH_SIZE)
    patches = patches.transpose(0, 2, 4, 1, 3, 5).reshape(N, NUM_PATCH, PATCH_DIM)
    patches = jnp.pad(patches, ((0, 0), (1, 0), (0, 0)))              # (N, 17, 192)
    # fold cls token into pos row 0 (row 0 of patches is all zeros):
    pos_adj = params["pos_embed"].at[0:1, :].add(params["cls_token"] - params["pe_b"])
    # split the fused qkv parameter into per-projection weights outside the kernel
    # (cheap XLA slice; avoids in-kernel lane slicing).
    q_w = params["qkv_w"][:, 0 * D:1 * D]
    k_w = params["qkv_w"][:, 1 * D:2 * D]
    v_w = params["qkv_w"][:, 2 * D:3 * D]
    q_b = params["qkv_b"][:, 0 * D:1 * D]
    k_b = params["qkv_b"][:, 1 * D:2 * D]
    v_b = params["qkv_b"][:, 2 * D:3 * D]

    def full(shape):
        # constant block index -> weight is DMA'd once and stays VMEM-resident
        return pl.BlockSpec(shape, lambda i: (0,) * len(shape))

    out = pl.pallas_call(
        _fcvit_kernel,
        out_shape=jax.ShapeDtypeStruct((N, 1, FC2_PAD), jnp.float32),
        grid=(N,),
        in_specs=[
            pl.BlockSpec((1, NUM_TOKEN, PATCH_DIM), lambda i: (i, 0, 0)),
            full((PATCH_DIM, D)), full((1, D)),
            full((NUM_TOKEN, D)),
            full((1, D)), full((1, D)),
            full((D, D)), full((1, D)),
            full((D, D)), full((1, D)),
            full((D, D)), full((1, D)),
            full((D, D)), full((1, D)),
            full((1, D)), full((1, D)),
            full((D, MLP_DIM)), full((1, MLP_DIM)),
            full((MLP_DIM, D)), full((1, D)),
            full((1, D)), full((1, D)),
            full((D, HEAD_PAD)), full((1, HEAD_PAD)),
            full((HEAD_PAD, HEAD_PAD)), full((1, HEAD_PAD)),
            full((HEAD_PAD, FC2_PAD)), full((1, FC2_PAD)),
        ],
        out_specs=pl.BlockSpec((1, 1, FC2_PAD), lambda i: (i, 0, 0)),
        compiler_params=pltpu.CompilerParams(
            dimension_semantics=("parallel",),
            vmem_limit_bytes=64 << 20),
    )(patches,
      params["pe_w"], params["pe_b"], pos_adj,
      params["ln1_g"], params["ln1_b"],
      q_w, q_b, k_w, k_b, v_w, v_b,
      params["proj_w"], params["proj_b"],
      params["ln2_g"], params["ln2_b"],
      params["mlp_w1"], params["mlp_b1"],
      params["mlp_w2"], params["mlp_b2"],
      params["norm_g"], params["norm_b"],
      params["head_w"], params["head_b"],
      params["fc1_w"], params["fc1_b"],
      params["fc2_w"], params["fc2_b"])
    return out.reshape(N, FC2_PAD)


# ------------------------------------------------------------ data shuffling --
def random_shuffle(x, key):
    """Equivalent of FCViT.random_shuffle (fragment permutation + coord_restore)."""
    N, C, H, W = x.shape
    p = SIZE_FRAGMENT
    n = math.isqrt(NUM_FRAGMENT)
    noise = jax.random.uniform(key, (N, NUM_FRAGMENT))
    ids_shuffle = jnp.argsort(noise, axis=1)
    ids_restore = jnp.argsort(ids_shuffle, axis=1)
    # row-major fragments: (N, C, n, p, n, p) -> (N, 9, C, p, p)
    frags = x.reshape(N, C, n, p, n, p).transpose(0, 2, 4, 1, 3, 5)
    frags = frags.reshape(N, NUM_FRAGMENT, C, p, p)
    shuf = jnp.take_along_axis(frags, ids_shuffle[:, :, None, None, None], axis=1)
    # TODO(synk): augment_fragment (RandomCrop / antialiased Resize / rgb_jittering /
    # fragment_norm) are stochastic torchvision transforms with no clean Pallas
    # equivalent; fragments are reassembled un-augmented.
    x_shuf = shuf.reshape(N, n, n, C, p, p).transpose(0, 3, 1, 4, 2, 5).reshape(N, C, H, W)
    mv = jnp.arange(0, n, dtype=jnp.float32)
    map_coord = jnp.stack(jnp.meshgrid(mv, mv, indexing="ij"), axis=-1).reshape(NUM_FRAGMENT, 2)
    coord_restore = map_coord[ids_restore]          # (N, 9, 2)
    return x_shuf, coord_restore


# ---------------------------------------------------------------- FCViT forward --
def fcvit_forward(params, x, key):
    x, target = random_shuffle(x, key)
    if MARGIN > 0:
        x = x[:, :, :-MARGIN, :-MARGIN]             # (N, 3, 32, 32)
    out = fcvit_core(params, x)                     # (N, 128); cols >= 18 are zero
    out = out[:, :NUM_FRAGMENT * 2].reshape(-1, NUM_FRAGMENT, 2)
    return out, target


# ---------------------------------------------------------------- parameters --
def init_params(key):
    ks = iter(jax.random.split(key, 32))
    std = 0.02
    D = EMBED_DIM

    def wf(shape):                                   # f32 random weight
        return std * jax.random.normal(next(ks), shape, jnp.float32)

    def w(shape):                                    # bf16 matmul weight
        return wf(shape).astype(jnp.bfloat16)

    def z(shape):
        return jnp.zeros(shape, jnp.float32)

    def ones(shape):
        return jnp.ones(shape, jnp.float32)

    # 1000-wide head / fc weights are generated at their true size then zero-padded
    # to lane-dense 1024 / 128 so all stores are unmasked; zero padding keeps the
    # computation numerically identical to the unpadded model.
    head_w = jnp.pad(wf((D, NUM_CLASSES)),
                     ((0, 0), (0, HEAD_PAD - NUM_CLASSES))).astype(jnp.bfloat16)
    fc1_w = jnp.pad(wf((NUM_CLASSES, NUM_CLASSES)),
                    ((0, HEAD_PAD - NUM_CLASSES), (0, HEAD_PAD - NUM_CLASSES))).astype(jnp.bfloat16)
    fc2_w = jnp.pad(wf((NUM_CLASSES, NUM_FRAGMENT * 2)),
                    ((0, HEAD_PAD - NUM_CLASSES), (0, FC2_PAD - NUM_FRAGMENT * 2))).astype(jnp.bfloat16)

    return {
        # matmul weights in bf16 (MXU-native, half the HBM traffic); biases,
        # LayerNorm params, cls/pos in f32 (added after f32 accumulation).
        "pe_w": w((PATCH_DIM, D)), "pe_b": z((1, D)),
        "cls_token": wf((1, D)),
        "pos_embed": wf((NUM_TOKEN, D)),
        "ln1_g": ones((1, D)), "ln1_b": z((1, D)),
        "qkv_w": w((D, 3 * D)), "qkv_b": z((1, 3 * D)),
        "proj_w": w((D, D)), "proj_b": z((1, D)),
        "ln2_g": ones((1, D)), "ln2_b": z((1, D)),
        "mlp_w1": w((D, MLP_DIM)), "mlp_b1": z((1, MLP_DIM)),
        "mlp_w2": w((MLP_DIM, D)), "mlp_b2": z((1, D)),
        "norm_g": ones((1, D)), "norm_b": z((1, D)),
        "head_w": head_w, "head_b": z((1, HEAD_PAD)),
        "fc1_w": fc1_w, "fc1_b": z((1, HEAD_PAD)),
        "fc2_w": fc2_w, "fc2_b": z((1, FC2_PAD)),
    }


# --------------------------------------------------------------------- main --
if __name__ == "__main__":
    root = jax.random.PRNGKey(0)
    k_param, k_data, k_shuffle = jax.random.split(root, 3)

    params = init_params(k_param)
    # synthetic "image" batch: N=2, NCHW, 0..255 range like raw pixels
    x = jax.random.uniform(k_data, (2, 3, SIZE_PUZZLE, SIZE_PUZZLE),
                           dtype=jnp.float32) * 255.0

    fwd = jax.jit(fcvit_forward)
    out, target = fwd(params, x, k_shuffle)
    jax.block_until_ready((out, target))

    assert out.shape == (2, NUM_FRAGMENT, 2)
    assert target.shape == (2, NUM_FRAGMENT, 2)
    print("KERNEL_OK")
</pallas_src>

<mosaic_0001>
module attributes {stable_mosaic.version = 11 : i64} {
  func.func @_fcvit_kernel(%arg0: i32, %arg1: memref<1x17x192xf32, #tpu.memory_space<vmem>>, %arg2: memref<192x32xbf16, #tpu.memory_space<vmem>>, %arg3: memref<1x32xf32, #tpu.memory_space<vmem>>, %arg4: memref<17x32xf32, #tpu.memory_space<vmem>>, %arg5: memref<1x32xf32, #tpu.memory_space<vmem>>, %arg6: memref<1x32xf32, #tpu.memory_space<vmem>>, %arg7: memref<32x32xbf16, #tpu.memory_space<vmem>>, %arg8: memref<1x32xf32, #tpu.memory_space<vmem>>, %arg9: memref<32x32xbf16, #tpu.memory_space<vmem>>, %arg10: memref<1x32xf32, #tpu.memory_space<vmem>>, %arg11: memref<32x32xbf16, #tpu.memory_space<vmem>>, %arg12: memref<1x32xf32, #tpu.memory_space<vmem>>, %arg13: memref<32x32xbf16, #tpu.memory_space<vmem>>, %arg14: memref<1x32xf32, #tpu.memory_space<vmem>>, %arg15: memref<1x32xf32, #tpu.memory_space<vmem>>, %arg16: memref<1x32xf32, #tpu.memory_space<vmem>>, %arg17: memref<32x128xbf16, #tpu.memory_space<vmem>>, %arg18: memref<1x128xf32, #tpu.memory_space<vmem>>, %arg19: memref<128x32xbf16, #tpu.memory_space<vmem>>, %arg20: memref<1x32xf32, #tpu.memory_space<vmem>>, %arg21: memref<1x32xf32, #tpu.memory_space<vmem>>, %arg22: memref<1x32xf32, #tpu.memory_space<vmem>>, %arg23: memref<32x1024xbf16, #tpu.memory_space<vmem>>, %arg24: memref<1x1024xf32, #tpu.memory_space<vmem>>, %arg25: memref<1024x1024xbf16, #tpu.memory_space<vmem>>, %arg26: memref<1x1024xf32, #tpu.memory_space<vmem>>, %arg27: memref<1024x128xbf16, #tpu.memory_space<vmem>>, %arg28: memref<1x128xf32, #tpu.memory_space<vmem>>, %arg29: memref<1x1x128xf32, #tpu.memory_space<vmem>>) attributes {dimension_semantics = [#tpu.dimension_semantics<parallel>], iteration_bounds = array<i64: 2>, scalar_prefetch = 0 : i64, scratch_operands = 0 : i64, tpu.core_type = #tpu.core_type<tc>, window_params = [{transform_indices = @transform_0, window_bounds = array<i64: 1, 17, 192>}, {pipeline_mode = #tpu.pipeline_mode<synchronous>, transform_indices = @transform_1, window_bounds = array<i64: 192, 32>}, {pipeline_mode = #tpu.pipeline_mode<synchronous>, transform_indices = @transform_2, window_bounds = array<i64: 1, 32>}, {pipeline_mode = #tpu.pipeline_mode<synchronous>, transform_indices = @transform_3, window_bounds = array<i64: 17, 32>}, {pipeline_mode = #tpu.pipeline_mode<synchronous>, transform_indices = @transform_4, window_bounds = array<i64: 1, 32>}, {pipeline_mode = #tpu.pipeline_mode<synchronous>, transform_indices = @transform_5, window_bounds = array<i64: 1, 32>}, {pipeline_mode = #tpu.pipeline_mode<synchronous>, transform_indices = @transform_6, window_bounds = array<i64: 32, 32>}, {pipeline_mode = #tpu.pipeline_mode<synchronous>, transform_indices = @transform_7, window_bounds = array<i64: 1, 32>}, {pipeline_mode = #tpu.pipeline_mode<synchronous>, transform_indices = @transform_8, window_bounds = array<i64: 32, 32>}, {pipeline_mode = #tpu.pipeline_mode<synchronous>, transform_indices = @transform_9, window_bounds = array<i64: 1, 32>}, {pipeline_mode = #tpu.pipeline_mode<synchronous>, transform_indices = @transform_10, window_bounds = array<i64: 32, 32>}, {pipeline_mode = #tpu.pipeline_mode<synchronous>, transform_indices = @transform_11, window_bounds = array<i64: 1, 32>}, {pipeline_mode = #tpu.pipeline_mode<synchronous>, transform_indices = @transform_12, window_bounds = array<i64: 32, 32>}, {pipeline_mode = #tpu.pipeline_mode<synchronous>, transform_indices = @transform_13, window_bounds = array<i64: 1, 32>}, {pipeline_mode = #tpu.pipeline_mode<synchronous>, transform_indices = @transform_14, window_bounds = array<i64: 1, 32>}, {pipeline_mode = #tpu.pipeline_mode<synchronous>, transform_indices = @transform_15, window_bounds = array<i64: 1, 32>}, {pipeline_mode = #tpu.pipeline_mode<synchronous>, transform_indices = @transform_16, window_bounds = array<i64: 32, 128>}, {pipeline_mode = #tpu.pipeline_mode<synchronous>, transform_indices = @transform_17, window_bounds = array<i64: 1, 128>}, {pipeline_mode = #tpu.pipeline_mode<synchronous>, transform_indices = @transform_18, window_bounds = array<i64: 128, 32>}, {pipeline_mode = #tpu.pipeline_mode<synchronous>, transform_indices = @transform_19, window_bounds = array<i64: 1, 32>}, {pipeline_mode = #tpu.pipeline_mode<synchronous>, transform_indices = @transform_20, window_bounds = array<i64: 1, 32>}, {pipeline_mode = #tpu.pipeline_mode<synchronous>, transform_indices = @transform_21, window_bounds = array<i64: 1, 32>}, {pipeline_mode = #tpu.pipeline_mode<synchronous>, transform_indices = @transform_22, window_bounds = array<i64: 32, 1024>}, {pipeline_mode = #tpu.pipeline_mode<synchronous>, transform_indices = @transform_23, window_bounds = array<i64: 1, 1024>}, {pipeline_mode = #tpu.pipeline_mode<synchronous>, transform_indices = @transform_24, window_bounds = array<i64: 1024, 1024>}, {pipeline_mode = #tpu.pipeline_mode<synchronous>, transform_indices = @transform_25, window_bounds = array<i64: 1, 1024>}, {pipeline_mode = #tpu.pipeline_mode<synchronous>, transform_indices = @transform_26, window_bounds = array<i64: 1024, 128>}, {pipeline_mode = #tpu.pipeline_mode<synchronous>, transform_indices = @transform_27, window_bounds = array<i64: 1, 128>}, {transform_indices = @transform_28, window_bounds = array<i64: 1, 1, 128>}]} {
    %c0 = arith.constant 0 : index
    %c0_0 = arith.constant 0 : index
    %c0_1 = arith.constant 0 : index
    %0 = vector.load %arg1[%c0, %c0_0, %c0_1] : memref<1x17x192xf32, #tpu.memory_space<vmem>>, vector<1x17x192xf32>
    %1 = vector.shape_cast %0 : vector<1x17x192xf32> to vector<17x192xf32>
    %2 = arith.truncf %1 : vector<17x192xf32> to vector<17x192xbf16>
    %c0_2 = arith.constant 0 : index
    %c0_3 = arith.constant 0 : index
    %3 = vector.load %arg2[%c0_2, %c0_3] : memref<192x32xbf16, #tpu.memory_space<vmem>>, vector<192x32xbf16>
    %cst = arith.constant dense<0.000000e+00> : vector<17x32xf32>
    %4 = tpu.matmul %2, %3, %cst {dimension_numbers = #tpu.dot_dimension_numbers<[1], [0], [0], [1], [0, 0, 1, 1], [], []>} : vector<17x192xbf16>, vector<192x32xbf16>, vector<17x32xf32> -> vector<17x32xf32>
    %c0_4 = arith.constant 0 : index
    %c0_5 = arith.constant 0 : index
    %5 = vector.load %arg3[%c0_4, %c0_5] : memref<1x32xf32, #tpu.memory_space<vmem>>, vector<1x32xf32>
    %6 = vector.broadcast %5 : vector<1x32xf32> to vector<17x32xf32>
    %7 = arith.addf %4, %6 : vector<17x32xf32>
    %c0_6 = arith.constant 0 : index
    %c0_7 = arith.constant 0 : index
    %8 = vector.load %arg4[%c0_6, %c0_7] : memref<17x32xf32, #tpu.memory_space<vmem>>, vector<17x32xf32>
    %9 = arith.addf %7, %8 : vector<17x32xf32>
    %cst_8 = arith.constant dense<0.000000e+00> : vector<17xf32>
    %10 = vector.multi_reduction <add>, %9, %cst_8 [1] : vector<17x32xf32> to vector<17xf32>
    %11 = vector.shape_cast %10 : vector<17xf32> to vector<17x1xf32>
    %cst_9 = arith.constant 3.200000e+01 : f32
    %12 = vector.broadcast %cst_9 : f32 to vector<17x1xf32>
    %13 = arith.divf %11, %12 : vector<17x1xf32>
    %14 = vector.broadcast %13 : vector<17x1xf32> to vector<17x32xf32>
    %15 = arith.subf %9, %14 : vector<17x32xf32>
    %16 = arith.mulf %15, %15 : vector<17x32xf32>
    %cst_10 = arith.constant dense<0.000000e+00> : vector<17xf32>
    %17 = vector.multi_reduction <add>, %16, %cst_10 [1] : vector<17x32xf32> to vector<17xf32>
    %18 = vector.shape_cast %17 : vector<17xf32> to vector<17x1xf32>
    %cst_11 = arith.constant 3.200000e+01 : f32
    %19 = vector.broadcast %cst_11 : f32 to vector<17x1xf32>
    %20 = arith.divf %18, %19 : vector<17x1xf32>
    %21 = vector.broadcast %13 : vector<17x1xf32> to vector<17x32xf32>
    %22 = arith.subf %9, %21 : vector<17x32xf32>
    %cst_12 = arith.constant 9.99999997E-7 : f32
    %23 = vector.broadcast %cst_12 : f32 to vector<17x1xf32>
    %24 = arith.addf %20, %23 : vector<17x1xf32>
    %25 = math.rsqrt %24 : vector<17x1xf32>
    %26 = vector.broadcast %25 : vector<17x1xf32> to vector<17x32xf32>
    %27 = arith.mulf %22, %26 : vector<17x32xf32>
    %c0_13 = arith.constant 0 : index
    %c0_14 = arith.constant 0 : index
    %28 = vector.load %arg5[%c0_13, %c0_14] : memref<1x32xf32, #tpu.memory_space<vmem>>, vector<1x32xf32>
    %29 = vector.broadcast %28 : vector<1x32xf32> to vector<17x32xf32>
    %30 = arith.mulf %27, %29 : vector<17x32xf32>
    %c0_15 = arith.constant 0 : index
    %c0_16 = arith.constant 0 : index
    %31 = vector.load %arg6[%c0_15, %c0_16] : memref<1x32xf32, #tpu.memory_space<vmem>>, vector<1x32xf32>
    %32 = vector.broadcast %31 : vector<1x32xf32> to vector<17x32xf32>
    %33 = arith.addf %30, %32 : vector<17x32xf32>
    %34 = arith.truncf %33 : vector<17x32xf32> to vector<17x32xbf16>
    %c0_17 = arith.constant 0 : index
    %c0_18 = arith.constant 0 : index
    %35 = vector.load %arg7[%c0_17, %c0_18] : memref<32x32xbf16, #tpu.memory_space<vmem>>, vector<32x32xbf16>
    %cst_19 = arith.constant dense<0.000000e+00> : vector<17x32xf32>
    %36 = tpu.matmul %34, %35, %cst_19 {dimension_numbers = #tpu.dot_dimension_numbers<[1], [0], [0], [1], [0, 0, 1, 1], [], []>} : vector<17x32xbf16>, vector<32x32xbf16>, vector<17x32xf32> -> vector<17x32xf32>
    %c0_20 = arith.constant 0 : index
    %c0_21 = arith.constant 0 : index
    %37 = vector.load %arg8[%c0_20, %c0_21] : memref<1x32xf32, #tpu.memory_space<vmem>>, vector<1x32xf32>
    %38 = vector.broadcast %37 : vector<1x32xf32> to vector<17x32xf32>
    %39 = arith.addf %36, %38 : vector<17x32xf32>
    %40 = arith.truncf %33 : vector<17x32xf32> to vector<17x32xbf16>
    %c0_22 = arith.constant 0 : index
    %c0_23 = arith.constant 0 : index
    %41 = vector.load %arg9[%c0_22, %c0_23] : memref<32x32xbf16, #tpu.memory_space<vmem>>, vector<32x32xbf16>
    %cst_24 = arith.constant dense<0.000000e+00> : vector<17x32xf32>
    %42 = tpu.matmul %40, %41, %cst_24 {dimension_numbers = #tpu.dot_dimension_numbers<[1], [0], [0], [1], [0, 0, 1, 1], [], []>} : vector<17x32xbf16>, vector<32x32xbf16>, vector<17x32xf32> -> vector<17x32xf32>
    %c0_25 = arith.constant 0 : index
    %c0_26 = arith.constant 0 : index
    %43 = vector.load %arg10[%c0_25, %c0_26] : memref<1x32xf32, #tpu.memory_space<vmem>>, vector<1x32xf32>
    %44 = vector.broadcast %43 : vector<1x32xf32> to vector<17x32xf32>
    %45 = arith.addf %42, %44 : vector<17x32xf32>
    %46 = arith.truncf %33 : vector<17x32xf32> to vector<17x32xbf16>
    %c0_27 = arith.constant 0 : index
    %c0_28 = arith.constant 0 : index
    %47 = vector.load %arg11[%c0_27, %c0_28] : memref<32x32xbf16, #tpu.memory_space<vmem>>, vector<32x32xbf16>
    %cst_29 = arith.constant dense<0.000000e+00> : vector<17x32xf32>
    %48 = tpu.matmul %46, %47, %cst_29 {dimension_numbers = #tpu.dot_dimension_numbers<[1], [0], [0], [1], [0, 0, 1, 1], [], []>} : vector<17x32xbf16>, vector<32x32xbf16>, vector<17x32xf32> -> vector<17x32xf32>
    %c0_30 = arith.constant 0 : index
    %c0_31 = arith.constant 0 : index
    %49 = vector.load %arg12[%c0_30, %c0_31] : memref<1x32xf32, #tpu.memory_space<vmem>>, vector<1x32xf32>
    %50 = vector.broadcast %49 : vector<1x32xf32> to vector<17x32xf32>
    %51 = arith.addf %48, %50 : vector<17x32xf32>
    %52 = tpu.iota {dimensions = array<i32: 1>} : vector<17x32xi32>
    %cst_32 = arith.constant 0.000000e+00 : f32
    %53 = vector.broadcast %cst_32 : f32 to vector<17x32xf32>
    %c0_i32 = arith.constant 0 : i32
    %54 = vector.broadcast %c0_i32 : i32 to vector<17x32xi32>
    %55 = arith.cmpi sge, %52, %54 : vector<17x32xi32>
    %c8_i32 = arith.constant 8 : i32
    %56 = vector.broadcast %c8_i32 : i32 to vector<17x32xi32>
    %57 = arith.cmpi slt, %52, %56 : vector<17x32xi32>
    %58 = arith.andi %55, %57 : vector<17x32xi1>
    %cst_33 = arith.constant 0.000000e+00 : f32
    %59 = vector.broadcast %cst_33 : f32 to vector<17x32xf32>
    %60 = arith.select %58, %39, %59 : vector<17x32xi1>, vector<17x32xf32>
    %cst_34 = arith.constant 0.000000e+00 : f32
    %61 = vector.broadcast %cst_34 : f32 to vector<17x32xf32>
    %62 = arith.select %58, %51, %61 : vector<17x32xi1>, vector<17x32xf32>
    %cst_35 = arith.constant dense<0.000000e+00> : vector<17x17xf32>
    %63 = tpu.matmul %60, %45, %cst_35 {dimension_numbers = #tpu.dot_dimension_numbers<[1], [1], [0], [0], [0, 0, 1, 0], [], []>} : vector<17x32xf32>, vector<17x32xf32>, vector<17x17xf32> -> vector<17x17xf32>
    %cst_36 = arith.constant 0.353553385 : f32
    %64 = vector.broadcast %cst_36 : f32 to vector<17x17xf32>
    %65 = arith.mulf %63, %64 : vector<17x17xf32>
    %cst_37 = arith.constant dense<0xFF800000> : vector<17xf32>
    %66 = vector.multi_reduction <maximumf>, %65, %cst_37 [1] : vector<17x17xf32> to vector<17xf32>
    %67 = vector.shape_cast %66 : vector<17xf32> to vector<17x1xf32>
    %68 = vector.broadcast %67 : vector<17x1xf32> to vector<17x17xf32>
    %69 = arith.subf %65, %68 : vector<17x17xf32>
    %70 = math.exp %69 : vector<17x17xf32>
    %cst_38 = arith.constant dense<0.000000e+00> : vector<17xf32>
    %71 = vector.multi_reduction <add>, %70, %cst_38 [1] : vector<17x17xf32> to vector<17xf32>
    %72 = vector.shape_cast %71 : vector<17xf32> to vector<17x1xf32>
    %73 = vector.broadcast %72 : vector<17x1xf32> to vector<17x17xf32>
    %74 = arith.divf %70, %73 : vector<17x17xf32>
    %cst_39 = arith.constant dense<0.000000e+00> : vector<17x32xf32>
    %75 = tpu.matmul %74, %62, %cst_39 {dimension_numbers = #tpu.dot_dimension_numbers<[1], [0], [0], [1], [0, 0, 1, 1], [], []>} : vector<17x17xf32>, vector<17x32xf32>, vector<17x32xf32> -> vector<17x32xf32>
    %76 = arith.addf %53, %75 : vector<17x32xf32>
    %c8_i32_40 = arith.constant 8 : i32
    %77 = vector.broadcast %c8_i32_40 : i32 to vector<17x32xi32>
    %78 = arith.cmpi sge, %52, %77 : vector<17x32xi32>
    %c16_i32 = arith.constant 16 : i32
    %79 = vector.broadcast %c16_i32 : i32 to vector<17x32xi32>
    %80 = arith.cmpi slt, %52, %79 : vector<17x32xi32>
    %81 = arith.andi %78, %80 : vector<17x32xi1>
    %cst_41 = arith.constant 0.000000e+00 : f32
    %82 = vector.broadcast %cst_41 : f32 to vector<17x32xf32>
    %83 = arith.select %81, %39, %82 : vector<17x32xi1>, vector<17x32xf32>
    %cst_42 = arith.constant 0.000000e+00 : f32
    %84 = vector.broadcast %cst_42 : f32 to vector<17x32xf32>
    %85 = arith.select %81, %51, %84 : vector<17x32xi1>, vector<17x32xf32>
    %cst_43 = arith.constant dense<0.000000e+00> : vector<17x17xf32>
    %86 = tpu.matmul %83, %45, %cst_43 {dimension_numbers = #tpu.dot_dimension_numbers<[1], [1], [0], [0], [0, 0, 1, 0], [], []>} : vector<17x32xf32>, vector<17x32xf32>, vector<17x17xf32> -> vector<17x17xf32>
    %cst_44 = arith.constant 0.353553385 : f32
    %87 = vector.broadcast %cst_44 : f32 to vector<17x17xf32>
    %88 = arith.mulf %86, %87 : vector<17x17xf32>
    %cst_45 = arith.constant dense<0xFF800000> : vector<17xf32>
    %89 = vector.multi_reduction <maximumf>, %88, %cst_45 [1] : vector<17x17xf32> to vector<17xf32>
    %90 = vector.shape_cast %89 : vector<17xf32> to vector<17x1xf32>
    %91 = vector.broadcast %90 : vector<17x1xf32> to vector<17x17xf32>
    %92 = arith.subf %88, %91 : vector<17x17xf32>
    %93 = math.exp %92 : vector<17x17xf32>
    %cst_46 = arith.constant dense<0.000000e+00> : vector<17xf32>
    %94 = vector.multi_reduction <add>, %93, %cst_46 [1] : vector<17x17xf32> to vector<17xf32>
    %95 = vector.shape_cast %94 : vector<17xf32> to vector<17x1xf32>
    %96 = vector.broadcast %95 : vector<17x1xf32> to vector<17x17xf32>
    %97 = arith.divf %93, %96 : vector<17x17xf32>
    %cst_47 = arith.constant dense<0.000000e+00> : vector<17x32xf32>
    %98 = tpu.matmul %97, %85, %cst_47 {dimension_numbers = #tpu.dot_dimension_numbers<[1], [0], [0], [1], [0, 0, 1, 1], [], []>} : vector<17x17xf32>, vector<17x32xf32>, vector<17x32xf32> -> vector<17x32xf32>
    %99 = arith.addf %76, %98 : vector<17x32xf32>
    %c16_i32_48 = arith.constant 16 : i32
    %100 = vector.broadcast %c16_i32_48 : i32 to vector<17x32xi32>
    %101 = arith.cmpi sge, %52, %100 : vector<17x32xi32>
    %c24_i32 = arith.constant 24 : i32
    %102 = vector.broadcast %c24_i32 : i32 to vector<17x32xi32>
    %103 = arith.cmpi slt, %52, %102 : vector<17x32xi32>
    %104 = arith.andi %101, %103 : vector<17x32xi1>
    %cst_49 = arith.constant 0.000000e+00 : f32
    %105 = vector.broadcast %cst_49 : f32 to vector<17x32xf32>
    %106 = arith.select %104, %39, %105 : vector<17x32xi1>, vector<17x32xf32>
    %cst_50 = arith.constant 0.000000e+00 : f32
    %107 = vector.broadcast %cst_50 : f32 to vector<17x32xf32>
    %108 = arith.select %104, %51, %107 : vector<17x32xi1>, vector<17x32xf32>
    %cst_51 = arith.constant dense<0.000000e+00> : vector<17x17xf32>
    %109 = tpu.matmul %106, %45, %cst_51 {dimension_numbers = #tpu.dot_dimension_numbers<[1], [1], [0], [0], [0, 0, 1, 0], [], []>} : vector<17x32xf32>, vector<17x32xf32>, vector<17x17xf32> -> vector<17x17xf32>
    %cst_52 = arith.constant 0.353553385 : f32
    %110 = vector.broadcast %cst_52 : f32 to vector<17x17xf32>
    %111 = arith.mulf %109, %110 : vector<17x17xf32>
    %cst_53 = arith.constant dense<0xFF800000> : vector<17xf32>
    %112 = vector.multi_reduction <maximumf>, %111, %cst_53 [1] : vector<17x17xf32> to vector<17xf32>
    %113 = vector.shape_cast %112 : vector<17xf32> to vector<17x1xf32>
    %114 = vector.broadcast %113 : vector<17x1xf32> to vector<17x17xf32>
    %115 = arith.subf %111, %114 : vector<17x17xf32>
    %116 = math.exp %115 : vector<17x17xf32>
    %cst_54 = arith.constant dense<0.000000e+00> : vector<17xf32>
    %117 = vector.multi_reduction <add>, %116, %cst_54 [1] : vector<17x17xf32> to vector<17xf32>
    %118 = vector.shape_cast %117 : vector<17xf32> to vector<17x1xf32>
    %119 = vector.broadcast %118 : vector<17x1xf32> to vector<17x17xf32>
    %120 = arith.divf %116, %119 : vector<17x17xf32>
    %cst_55 = arith.constant dense<0.000000e+00> : vector<17x32xf32>
    %121 = tpu.matmul %120, %108, %cst_55 {dimension_numbers = #tpu.dot_dimension_numbers<[1], [0], [0], [1], [0, 0, 1, 1], [], []>} : vector<17x17xf32>, vector<17x32xf32>, vector<17x32xf32> -> vector<17x32xf32>
    %122 = arith.addf %99, %121 : vector<17x32xf32>
    %c24_i32_56 = arith.constant 24 : i32
    %123 = vector.broadcast %c24_i32_56 : i32 to vector<17x32xi32>
    %124 = arith.cmpi sge, %52, %123 : vector<17x32xi32>
    %c32_i32 = arith.constant 32 : i32
    %125 = vector.broadcast %c32_i32 : i32 to vector<17x32xi32>
    %126 = arith.cmpi slt, %52, %125 : vector<17x32xi32>
    %127 = arith.andi %124, %126 : vector<17x32xi1>
    %cst_57 = arith.constant 0.000000e+00 : f32
    %128 = vector.broadcast %cst_57 : f32 to vector<17x32xf32>
    %129 = arith.select %127, %39, %128 : vector<17x32xi1>, vector<17x32xf32>
    %cst_58 = arith.constant 0.000000e+00 : f32
    %130 = vector.broadcast %cst_58 : f32 to vector<17x32xf32>
    %131 = arith.select %127, %51, %130 : vector<17x32xi1>, vector<17x32xf32>
    %cst_59 = arith.constant dense<0.000000e+00> : vector<17x17xf32>
    %132 = tpu.matmul %129, %45, %cst_59 {dimension_numbers = #tpu.dot_dimension_numbers<[1], [1], [0], [0], [0, 0, 1, 0], [], []>} : vector<17x32xf32>, vector<17x32xf32>, vector<17x17xf32> -> vector<17x17xf32>
    %cst_60 = arith.constant 0.353553385 : f32
    %133 = vector.broadcast %cst_60 : f32 to vector<17x17xf32>
    %134 = arith.mulf %132, %133 : vector<17x17xf32>
    %cst_61 = arith.constant dense<0xFF800000> : vector<17xf32>
    %135 = vector.multi_reduction <maximumf>, %134, %cst_61 [1] : vector<17x17xf32> to vector<17xf32>
    %136 = vector.shape_cast %135 : vector<17xf32> to vector<17x1xf32>
    %137 = vector.broadcast %136 : vector<17x1xf32> to vector<17x17xf32>
    %138 = arith.subf %134, %137 : vector<17x17xf32>
    %139 = math.exp %138 : vector<17x17xf32>
    %cst_62 = arith.constant dense<0.000000e+00> : vector<17xf32>
    %140 = vector.multi_reduction <add>, %139, %cst_62 [1] : vector<17x17xf32> to vector<17xf32>
    %141 = vector.shape_cast %140 : vector<17xf32> to vector<17x1xf32>
    %142 = vector.broadcast %141 : vector<17x1xf32> to vector<17x17xf32>
    %143 = arith.divf %139, %142 : vector<17x17xf32>
    %cst_63 = arith.constant dense<0.000000e+00> : vector<17x32xf32>
    %144 = tpu.matmul %143, %131, %cst_63 {dimension_numbers = #tpu.dot_dimension_numbers<[1], [0], [0], [1], [0, 0, 1, 1], [], []>} : vector<17x17xf32>, vector<17x32xf32>, vector<17x32xf32> -> vector<17x32xf32>
    %145 = arith.addf %122, %144 : vector<17x32xf32>
    %146 = arith.truncf %145 : vector<17x32xf32> to vector<17x32xbf16>
    %c0_64 = arith.constant 0 : index
    %c0_65 = arith.constant 0 : index
    %147 = vector.load %arg13[%c0_64, %c0_65] : memref<32x32xbf16, #tpu.memory_space<vmem>>, vector<32x32xbf16>
    %cst_66 = arith.constant dense<0.000000e+00> : vector<17x32xf32>
    %148 = tpu.matmul %146, %147, %cst_66 {dimension_numbers = #tpu.dot_dimension_numbers<[1], [0], [0], [1], [0, 0, 1, 1], [], []>} : vector<17x32xbf16>, vector<32x32xbf16>, vector<17x32xf32> -> vector<17x32xf32>
    %c0_67 = arith.constant 0 : index
    %c0_68 = arith.constant 0 : index
    %149 = vector.load %arg14[%c0_67, %c0_68] : memref<1x32xf32, #tpu.memory_space<vmem>>, vector<1x32xf32>
    %150 = vector.broadcast %149 : vector<1x32xf32> to vector<17x32xf32>
    %151 = arith.addf %148, %150 : vector<17x32xf32>
    %152 = arith.addf %9, %151 : vector<17x32xf32>
    %cst_69 = arith.constant dense<0.000000e+00> : vector<17xf32>
    %153 = vector.multi_reduction <add>, %152, %cst_69 [1] : vector<17x32xf32> to vector<17xf32>
    %154 = vector.shape_cast %153 : vector<17xf32> to vector<17x1xf32>
    %cst_70 = arith.constant 3.200000e+01 : f32
    %155 = vector.broadcast %cst_70 : f32 to vector<17x1xf32>
    %156 = arith.divf %154, %155 : vector<17x1xf32>
    %157 = vector.broadcast %156 : vector<17x1xf32> to vector<17x32xf32>
    %158 = arith.subf %152, %157 : vector<17x32xf32>
    %159 = arith.mulf %158, %158 : vector<17x32xf32>
    %cst_71 = arith.constant dense<0.000000e+00> : vector<17xf32>
    %160 = vector.multi_reduction <add>, %159, %cst_71 [1] : vector<17x32xf32> to vector<17xf32>
    %161 = vector.shape_cast %160 : vector<17xf32> to vector<17x1xf32>
    %cst_72 = arith.constant 3.200000e+01 : f32
    %162 = vector.broadcast %cst_72 : f32 to vector<17x1xf32>
    %163 = arith.divf %161, %162 : vector<17x1xf32>
    %164 = vector.broadcast %156 : vector<17x1xf32> to vector<17x32xf32>
    %165 = arith.subf %152, %164 : vector<17x32xf32>
    %cst_73 = arith.constant 9.99999997E-7 : f32
    %166 = vector.broadcast %cst_73 : f32 to vector<17x1xf32>
    %167 = arith.addf %163, %166 : vector<17x1xf32>
    %168 = math.rsqrt %167 : vector<17x1xf32>
    %169 = vector.broadcast %168 : vector<17x1xf32> to vector<17x32xf32>
    %170 = arith.mulf %165, %169 : vector<17x32xf32>
    %c0_74 = arith.constant 0 : index
    %c0_75 = arith.constant 0 : index
    %171 = vector.load %arg15[%c0_74, %c0_75] : memref<1x32xf32, #tpu.memory_space<vmem>>, vector<1x32xf32>
    %172 = vector.broadcast %171 : vector<1x32xf32> to vector<17x32xf32>
    %173 = arith.mulf %170, %172 : vector<17x32xf32>
    %c0_76 = arith.constant 0 : index
    %c0_77 = arith.constant 0 : index
    %174 = vector.load %arg16[%c0_76, %c0_77] : memref<1x32xf32, #tpu.memory_space<vmem>>, vector<1x32xf32>
    %175 = vector.broadcast %174 : vector<1x32xf32> to vector<17x32xf32>
    %176 = arith.addf %173, %175 : vector<17x32xf32>
    %177 = arith.truncf %176 : vector<17x32xf32> to vector<17x32xbf16>
    %c0_78 = arith.constant 0 : index
    %c0_79 = arith.constant 0 : index
    %178 = vector.load %arg17[%c0_78, %c0_79] : memref<32x128xbf16, #tpu.memory_space<vmem>>, vector<32x128xbf16>
    %cst_80 = arith.constant dense<0.000000e+00> : vector<17x128xf32>
    %179 = tpu.matmul %177, %178, %cst_80 {dimension_numbers = #tpu.dot_dimension_numbers<[1], [0], [0], [1], [0, 0, 1, 1], [], []>} : vector<17x32xbf16>, vector<32x128xbf16>, vector<17x128xf32> -> vector<17x128xf32>
    %c0_81 = arith.constant 0 : index
    %c0_82 = arith.constant 0 : index
    %180 = vector.load %arg18[%c0_81, %c0_82] : memref<1x128xf32, #tpu.memory_space<vmem>>, vector<1x128xf32>
    %181 = vector.broadcast %180 : vector<1x128xf32> to vector<17x128xf32>
    %182 = arith.addf %179, %181 : vector<17x128xf32>
    %cst_83 = arith.constant 5.000000e-01 : f32
    %183 = vector.broadcast %cst_83 : f32 to vector<17x128xf32>
    %184 = arith.mulf %183, %182 : vector<17x128xf32>
    %cst_84 = arith.constant 4.471500e-02 : f32
    %185 = vector.broadcast %cst_84 : f32 to vector<17x128xf32>
    %186 = arith.mulf %185, %182 : vector<17x128xf32>
    %187 = arith.mulf %186, %182 : vector<17x128xf32>
    %188 = arith.mulf %187, %182 : vector<17x128xf32>
    %189 = arith.addf %182, %188 : vector<17x128xf32>
    %cst_85 = arith.constant 0.797884583 : f32
    %190 = vector.broadcast %cst_85 : f32 to vector<17x128xf32>
    %191 = arith.mulf %190, %189 : vector<17x128xf32>
    %192 = math.tanh %191 : vector<17x128xf32>
    %cst_86 = arith.constant 1.000000e+00 : f32
    %193 = vector.broadcast %cst_86 : f32 to vector<17x128xf32>
    %194 = arith.addf %193, %192 : vector<17x128xf32>
    %195 = arith.mulf %184, %194 : vector<17x128xf32>
    %196 = arith.truncf %195 : vector<17x128xf32> to vector<17x128xbf16>
    %c0_87 = arith.constant 0 : index
    %c0_88 = arith.constant 0 : index
    %197 = vector.load %arg19[%c0_87, %c0_88] : memref<128x32xbf16, #tpu.memory_space<vmem>>, vector<128x32xbf16>
    %cst_89 = arith.constant dense<0.000000e+00> : vector<17x32xf32>
    %198 = tpu.matmul %196, %197, %cst_89 {dimension_numbers = #tpu.dot_dimension_numbers<[1], [0], [0], [1], [0, 0, 1, 1], [], []>} : vector<17x128xbf16>, vector<128x32xbf16>, vector<17x32xf32> -> vector<17x32xf32>
    %c0_90 = arith.constant 0 : index
    %c0_91 = arith.constant 0 : index
    %199 = vector.load %arg20[%c0_90, %c0_91] : memref<1x32xf32, #tpu.memory_space<vmem>>, vector<1x32xf32>
    %200 = vector.broadcast %199 : vector<1x32xf32> to vector<17x32xf32>
    %201 = arith.addf %198, %200 : vector<17x32xf32>
    %202 = arith.addf %152, %201 : vector<17x32xf32>
    %203 = vector.extract_strided_slice %202 {offsets = [0, 0], sizes = [1, 32], strides = [1, 1]} : vector<17x32xf32> to vector<1x32xf32>
    %cst_92 = arith.constant dense<0.000000e+00> : vector<1xf32>
    %204 = vector.multi_reduction <add>, %203, %cst_92 [1] : vector<1x32xf32> to vector<1xf32>
    %205 = vector.shape_cast %204 : vector<1xf32> to vector<1x1xf32>
    %cst_93 = arith.constant 3.200000e+01 : f32
    %206 = vector.broadcast %cst_93 : f32 to vector<1x1xf32>
    %207 = arith.divf %205, %206 : vector<1x1xf32>
    %208 = vector.broadcast %207 : vector<1x1xf32> to vector<1x32xf32>
    %209 = arith.subf %203, %208 : vector<1x32xf32>
    %210 = arith.mulf %209, %209 : vector<1x32xf32>
    %cst_94 = arith.constant dense<0.000000e+00> : vector<1xf32>
    %211 = vector.multi_reduction <add>, %210, %cst_94 [1] : vector<1x32xf32> to vector<1xf32>
    %212 = vector.shape_cast %211 : vector<1xf32> to vector<1x1xf32>
    %cst_95 = arith.constant 3.200000e+01 : f32
    %213 = vector.broadcast %cst_95 : f32 to vector<1x1xf32>
    %214 = arith.divf %212, %213 : vector<1x1xf32>
    %215 = vector.broadcast %207 : vector<1x1xf32> to vector<1x32xf32>
    %216 = arith.subf %203, %215 : vector<1x32xf32>
    %cst_96 = arith.constant 9.99999997E-7 : f32
    %217 = vector.broadcast %cst_96 : f32 to vector<1x1xf32>
    %218 = arith.addf %214, %217 : vector<1x1xf32>
    %219 = math.rsqrt %218 : vector<1x1xf32>
    %220 = vector.broadcast %219 : vector<1x1xf32> to vector<1x32xf32>
    %221 = arith.mulf %216, %220 : vector<1x32xf32>
    %c0_97 = arith.constant 0 : index
    %c0_98 = arith.constant 0 : index
    %222 = vector.load %arg21[%c0_97, %c0_98] : memref<1x32xf32, #tpu.memory_space<vmem>>, vector<1x32xf32>
    %223 = arith.mulf %221, %222 : vector<1x32xf32>
    %c0_99 = arith.constant 0 : index
    %c0_100 = arith.constant 0 : index
    %224 = vector.load %arg22[%c0_99, %c0_100] : memref<1x32xf32, #tpu.memory_space<vmem>>, vector<1x32xf32>
    %225 = arith.addf %223, %224 : vector<1x32xf32>
    %226 = arith.truncf %225 : vector<1x32xf32> to vector<1x32xbf16>
    %c0_101 = arith.constant 0 : index
    %c0_102 = arith.constant 0 : index
    %227 = vector.load %arg23[%c0_101, %c0_102] : memref<32x1024xbf16, #tpu.memory_space<vmem>>, vector<32x1024xbf16>
    %cst_103 = arith.constant dense<0.000000e+00> : vector<1x1024xf32>
    %228 = tpu.matmul %226, %227, %cst_103 {dimension_numbers = #tpu.dot_dimension_numbers<[1], [0], [0], [1], [0, 0, 1, 1], [], []>} : vector<1x32xbf16>, vector<32x1024xbf16>, vector<1x1024xf32> -> vector<1x1024xf32>
    %c0_104 = arith.constant 0 : index
    %c0_105 = arith.constant 0 : index
    %229 = vector.load %arg24[%c0_104, %c0_105] : memref<1x1024xf32, #tpu.memory_space<vmem>>, vector<1x1024xf32>
    %230 = arith.addf %228, %229 : vector<1x1024xf32>
    %231 = arith.truncf %230 : vector<1x1024xf32> to vector<1x1024xbf16>
    %c0_106 = arith.constant 0 : index
    %c0_107 = arith.constant 0 : index
    %232 = vector.load %arg25[%c0_106, %c0_107] : memref<1024x1024xbf16, #tpu.memory_space<vmem>>, vector<1024x1024xbf16>
    %cst_108 = arith.constant dense<0.000000e+00> : vector<1x1024xf32>
    %233 = tpu.matmul %231, %232, %cst_108 {dimension_numbers = #tpu.dot_dimension_numbers<[1], [0], [0], [1], [0, 0, 1, 1], [], []>} : vector<1x1024xbf16>, vector<1024x1024xbf16>, vector<1x1024xf32> -> vector<1x1024xf32>
    %c0_109 = arith.constant 0 : index
    %c0_110 = arith.constant 0 : index
    %234 = vector.load %arg26[%c0_109, %c0_110] : memref<1x1024xf32, #tpu.memory_space<vmem>>, vector<1x1024xf32>
    %235 = arith.addf %233, %234 : vector<1x1024xf32>
    %cst_111 = arith.constant 0.000000e+00 : f32
    %236 = vector.broadcast %cst_111 : f32 to vector<1x1024xf32>
    %237 = arith.maximumf %235, %236 : vector<1x1024xf32>
    %238 = arith.truncf %237 : vector<1x1024xf32> to vector<1x1024xbf16>
    %c0_112 = arith.constant 0 : index
    %c0_113 = arith.constant 0 : index
    %239 = vector.load %arg27[%c0_112, %c0_113] : memref<1024x128xbf16, #tpu.memory_space<vmem>>, vector<1024x128xbf16>
    %cst_114 = arith.constant dense<0.000000e+00> : vector<1x128xf32>
    %240 = tpu.matmul %238, %239, %cst_114 {dimension_numbers = #tpu.dot_dimension_numbers<[1], [0], [0], [1], [0, 0, 1, 1], [], []>} : vector<1x1024xbf16>, vector<1024x128xbf16>, vector<1x128xf32> -> vector<1x128xf32>
    %c0_115 = arith.constant 0 : index
    %c0_116 = arith.constant 0 : index
    %241 = vector.load %arg28[%c0_115, %c0_116] : memref<1x128xf32, #tpu.memory_space<vmem>>, vector<1x128xf32>
    %242 = arith.addf %240, %241 : vector<1x128xf32>
    %c0_117 = arith.constant 0 : index
    %c0_118 = arith.constant 0 : index
    %c0_119 = arith.constant 0 : index
    %243 = vector.load %arg29[%c0_117, %c0_118, %c0_119] : memref<1x1x128xf32, #tpu.memory_space<vmem>>, vector<1x1x128xf32>
    %244 = vector.shape_cast %243 : vector<1x1x128xf32> to vector<1x128xf32>
    %245 = vector.shape_cast %242 : vector<1x128xf32> to vector<1x1x128xf32>
    tpu.vector_store %arg29[%c0_117, %c0_118, %c0_119], %245 {strides = array<i32>} : memref<1x1x128xf32, #tpu.memory_space<vmem>>, vector<1x1x128xf32>,
    return
  }
  func.func @transform_0(%arg0: i32) -> (i32, i32, i32) {
    %c0_i32 = arith.constant 0 : i32
    %c0_i32_0 = arith.constant 0 : i32
    %c0_i32_1 = arith.constant 0 : i32
    return %arg0, %c0_i32, %c0_i32_0 : i32, i32, i32
  }
  func.func @transform_1(%arg0: i32) -> (i32, i32) {
    %c0_i32 = arith.constant 0 : i32
    %c0_i32_0 = arith.constant 0 : i32
    %c0_i32_1 = arith.constant 0 : i32
    return %c0_i32, %c0_i32_0 : i32, i32
  }
  func.func @transform_2(%arg0: i32) -> (i32, i32) {
    %c0_i32 = arith.constant 0 : i32
    %c0_i32_0 = arith.constant 0 : i32
    %c0_i32_1 = arith.constant 0 : i32
    return %c0_i32, %c0_i32_0 : i32, i32
  }
  func.func @transform_3(%arg0: i32) -> (i32, i32) {
    %c0_i32 = arith.constant 0 : i32
    %c0_i32_0 = arith.constant 0 : i32
    %c0_i32_1 = arith.constant 0 : i32
    return %c0_i32, %c0_i32_0 : i32, i32
  }
  func.func @transform_4(%arg0: i32) -> (i32, i32) {
    %c0_i32 = arith.constant 0 : i32
    %c0_i32_0 = arith.constant 0 : i32
    %c0_i32_1 = arith.constant 0 : i32
    return %c0_i32, %c0_i32_0 : i32, i32
  }
  func.func @transform_5(%arg0: i32) -> (i32, i32) {
    %c0_i32 = arith.constant 0 : i32
    %c0_i32_0 = arith.constant 0 : i32
    %c0_i32_1 = arith.constant 0 : i32
    return %c0_i32, %c0_i32_0 : i32, i32
  }
  func.func @transform_6(%arg0: i32) -> (i32, i32) {
    %c0_i32 = arith.constant 0 : i32
    %c0_i32_0 = arith.constant 0 : i32
    %c0_i32_1 = arith.constant 0 : i32
    return %c0_i32, %c0_i32_0 : i32, i32
  }
  func.func @transform_7(%arg0: i32) -> (i32, i32) {
    %c0_i32 = arith.constant 0 : i32
    %c0_i32_0 = arith.constant 0 : i32
    %c0_i32_1 = arith.constant 0 : i32
    return %c0_i32, %c0_i32_0 : i32, i32
  }
  func.func @transform_8(%arg0: i32) -> (i32, i32) {
    %c0_i32 = arith.constant 0 : i32
    %c0_i32_0 = arith.constant 0 : i32
    %c0_i32_1 = arith.constant 0 : i32
    return %c0_i32, %c0_i32_0 : i32, i32
  }
  func.func @transform_9(%arg0: i32) -> (i32, i32) {
    %c0_i32 = arith.constant 0 : i32
    %c0_i32_0 = arith.constant 0 : i32
    %c0_i32_1 = arith.constant 0 : i32
    return %c0_i32, %c0_i32_0 : i32, i32
  }
  func.func @transform_10(%arg0: i32) -> (i32, i32) {
    %c0_i32 = arith.constant 0 : i32
    %c0_i32_0 = arith.constant 0 : i32
    %c0_i32_1 = arith.constant 0 : i32
    return %c0_i32, %c0_i32_0 : i32, i32
  }
  func.func @transform_11(%arg0: i32) -> (i32, i32) {
    %c0_i32 = arith.constant 0 : i32
    %c0_i32_0 = arith.constant 0 : i32
    %c0_i32_1 = arith.constant 0 : i32
    return %c0_i32, %c0_i32_0 : i32, i32
  }
  func.func @transform_12(%arg0: i32) -> (i32, i32) {
    %c0_i32 = arith.constant 0 : i32
    %c0_i32_0 = arith.constant 0 : i32
    %c0_i32_1 = arith.constant 0 : i32
    return %c0_i32, %c0_i32_0 : i32, i32
  }
  func.func @transform_13(%arg0: i32) -> (i32, i32) {
    %c0_i32 = arith.constant 0 : i32
    %c0_i32_0 = arith.constant 0 : i32
    %c0_i32_1 = arith.constant 0 : i32
    return %c0_i32, %c0_i32_0 : i32, i32
  }
  func.func @transform_14(%arg0: i32) -> (i32, i32) {
    %c0_i32 = arith.constant 0 : i32
    %c0_i32_0 = arith.constant 0 : i32
    %c0_i32_1 = arith.constant 0 : i32
    return %c0_i32, %c0_i32_0 : i32, i32
  }
  func.func @transform_15(%arg0: i32) -> (i32, i32) {
    %c0_i32 = arith.constant 0 : i32
    %c0_i32_0 = arith.constant 0 : i32
    %c0_i32_1 = arith.constant 0 : i32
    return %c0_i32, %c0_i32_0 : i32, i32
  }
  func.func @transform_16(%arg0: i32) -> (i32, i32) {
    %c0_i32 = arith.constant 0 : i32
    %c0_i32_0 = arith.constant 0 : i32
    %c0_i32_1 = arith.constant 0 : i32
    return %c0_i32, %c0_i32_0 : i32, i32
  }
  func.func @transform_17(%arg0: i32) -> (i32, i32) {
    %c0_i32 = arith.constant 0 : i32
    %c0_i32_0 = arith.constant 0 : i32
    %c0_i32_1 = arith.constant 0 : i32
    return %c0_i32, %c0_i32_0 : i32, i32
  }
  func.func @transform_18(%arg0: i32) -> (i32, i32) {
    %c0_i32 = arith.constant 0 : i32
    %c0_i32_0 = arith.constant 0 : i32
    %c0_i32_1 = arith.constant 0 : i32
    return %c0_i32, %c0_i32_0 : i32, i32
  }
  func.func @transform_19(%arg0: i32) -> (i32, i32) {
    %c0_i32 = arith.constant 0 : i32
    %c0_i32_0 = arith.constant 0 : i32
    %c0_i32_1 = arith.constant 0 : i32
    return %c0_i32, %c0_i32_0 : i32, i32
  }
  func.func @transform_20(%arg0: i32) -> (i32, i32) {
    %c0_i32 = arith.constant 0 : i32
    %c0_i32_0 = arith.constant 0 : i32
    %c0_i32_1 = arith.constant 0 : i32
    return %c0_i32, %c0_i32_0 : i32, i32
  }
  func.func @transform_21(%arg0: i32) -> (i32, i32) {
    %c0_i32 = arith.constant 0 : i32
    %c0_i32_0 = arith.constant 0 : i32
    %c0_i32_1 = arith.constant 0 : i32
    return %c0_i32, %c0_i32_0 : i32, i32
  }
  func.func @transform_22(%arg0: i32) -> (i32, i32) {
    %c0_i32 = arith.constant 0 : i32
    %c0_i32_0 = arith.constant 0 : i32
    %c0_i32_1 = arith.constant 0 : i32
    return %c0_i32, %c0_i32_0 : i32, i32
  }
  func.func @transform_23(%arg0: i32) -> (i32, i32) {
    %c0_i32 = arith.constant 0 : i32
    %c0_i32_0 = arith.constant 0 : i32
    %c0_i32_1 = arith.constant 0 : i32
    return %c0_i32, %c0_i32_0 : i32, i32
  }
  func.func @transform_24(%arg0: i32) -> (i32, i32) {
    %c0_i32 = arith.constant 0 : i32
    %c0_i32_0 = arith.constant 0 : i32
    %c0_i32_1 = arith.constant 0 : i32
    return %c0_i32, %c0_i32_0 : i32, i32
  }
  func.func @transform_25(%arg0: i32) -> (i32, i32) {
    %c0_i32 = arith.constant 0 : i32
    %c0_i32_0 = arith.constant 0 : i32
    %c0_i32_1 = arith.constant 0 : i32
    return %c0_i32, %c0_i32_0 : i32, i32
  }
  func.func @transform_26(%arg0: i32) -> (i32, i32) {
    %c0_i32 = arith.constant 0 : i32
    %c0_i32_0 = arith.constant 0 : i32
    %c0_i32_1 = arith.constant 0 : i32
    return %c0_i32, %c0_i32_0 : i32, i32
  }
  func.func @transform_27(%arg0: i32) -> (i32, i32) {
    %c0_i32 = arith.constant 0 : i32
    %c0_i32_0 = arith.constant 0 : i32
    %c0_i32_1 = arith.constant 0 : i32
    return %c0_i32, %c0_i32_0 : i32, i32
  }
  func.func @transform_28(%arg0: i32) -> (i32, i32, i32) {
    %c0_i32 = arith.constant 0 : i32
    %c0_i32_0 = arith.constant 0 : i32
    %c0_i32_1 = arith.constant 0 : i32
    return %arg0, %c0_i32, %c0_i32_0 : i32, i32, i32
  }
}

</mosaic_0001>

<llo_original>
// kernel: fcvit_forward.1
$region0: #{fcvit_forward.1}
  #allocation0 [shape = 'u32[]', space=smem, size = 0x4, offset = 0x4, fixed_abs, tag = 'smem constant byte address 0x4 - core index']
  #allocation1 [shape = 'u32[144,128]{1,0:T(1,128)}', space=vmem, size = 0x12000, scoped, tag = 'internal scratch']
  %s0 = inlined_call_operand.vmem [shape: f32[2,17,192], index: 0, kind: input, shape index: {}]
  %s1 = inlined_call_operand.vmem [shape: bf16[192,32], index: 1, kind: input, shape index: {}]
  %s2 = inlined_call_operand.vmem [shape: f32[1,32], index: 2, kind: input, shape index: {}]
  %s3 = inlined_call_operand.vmem [shape: f32[17,32], index: 3, kind: input, shape index: {}]
  %s4 = inlined_call_operand.vmem [shape: f32[1,32], index: 4, kind: input, shape index: {}]
  %s5 = inlined_call_operand.vmem [shape: f32[1,32], index: 5, kind: input, shape index: {}]
  %s6 = inlined_call_operand.vmem [shape: bf16[32,32], index: 6, kind: input, shape index: {}]
  %s7 = inlined_call_operand.vmem [shape: f32[1,32], index: 7, kind: input, shape index: {}]
  %s8 = inlined_call_operand.vmem [shape: bf16[32,32], index: 8, kind: input, shape index: {}]
  %s9 = inlined_call_operand.vmem [shape: f32[1,32], index: 9, kind: input, shape index: {}]
  %s10 = inlined_call_operand.vmem [shape: bf16[32,32], index: 10, kind: input, shape index: {}]
  %s11 = inlined_call_operand.vmem [shape: f32[1,32], index: 11, kind: input, shape index: {}]
  %s12 = inlined_call_operand.vmem [shape: bf16[32,32], index: 12, kind: input, shape index: {}]
  %s13 = inlined_call_operand.vmem [shape: f32[1,32], index: 13, kind: input, shape index: {}]
  %s14 = inlined_call_operand.vmem [shape: f32[1,32], index: 14, kind: input, shape index: {}]
  %s15 = inlined_call_operand.vmem [shape: f32[1,32], index: 15, kind: input, shape index: {}]
  %s16 = inlined_call_operand.vmem [shape: bf16[32,128], index: 16, kind: input, shape index: {}]
  %s17 = inlined_call_operand.vmem [shape: f32[1,128], index: 17, kind: input, shape index: {}]
  %s18 = inlined_call_operand.vmem [shape: bf16[128,32], index: 18, kind: input, shape index: {}]
  %s19 = inlined_call_operand.vmem [shape: f32[1,32], index: 19, kind: input, shape index: {}]
  %s20 = inlined_call_operand.vmem [shape: f32[1,32], index: 20, kind: input, shape index: {}]
  %s21 = inlined_call_operand.vmem [shape: f32[1,32], index: 21, kind: input, shape index: {}]
  %s22 = inlined_call_operand.vmem [shape: bf16[32,1024], index: 22, kind: input, shape index: {}]
  %s23 = inlined_call_operand.vmem [shape: f32[1,1024], index: 23, kind: input, shape index: {}]
  %s24 = inlined_call_operand.vmem [shape: bf16[1024,1024], index: 24, kind: input, shape index: {}]
  %s25 = inlined_call_operand.vmem [shape: f32[1,1024], index: 25, kind: input, shape index: {}]
  %s26 = inlined_call_operand.vmem [shape: bf16[1024,128], index: 26, kind: input, shape index: {}]
  %s27 = inlined_call_operand.vmem [shape: f32[1,128], index: 27, kind: input, shape index: {}]
  %s28 = inlined_call_operand.vmem [shape: f32[2,1,128], index: 28, kind: output, shape index: {}]
  %s29 = sld [smem:[#allocation0]]
  $region145: #{fcvit_forward.1} parent=0
    _
  %s31 = ssub.s32 1, %s29
  %s32 = scalar_select 0, %s31, %s29
  loop: start=0, step=1, limit=4
  $region2: #{fcvit_forward.1} parent=0 // loop_pre_header
    _
  $region3: #{fcvit_forward.1} parent=0 // loop_header
    %s34 = sphi 0, %s38
    %p35 = scmp.ge.s32.totalorder %s34, 4
    %s44 = sphi 0, %s46
    %s47 = sphi 0, %s44
    %s48 = sphi 0, %s47
    %s64 = sphi 0, %s48
    %s68 = sphi 0, %s68
    %s70 = sphi 0, %s68
    %s71 = sphi 0, %s70
    %s85 = sphi 0, %s71
    %s89 = sphi 0, %s89
    %s91 = sphi 0, %s89
    %s92 = sphi 0, %s91
    %s106 = sphi 0, %s92
    %s110 = sphi 0, %s110
    %s112 = sphi 0, %s110
    %s113 = sphi 0, %s112
    %s127 = sphi 0, %s113
    %s131 = sphi 0, %s131
    %s133 = sphi 0, %s131
    %s134 = sphi 0, %s133
    %s148 = sphi 0, %s134
    %s152 = sphi 0, %s152
    %s154 = sphi 0, %s152
    %s155 = sphi 0, %s154
    %s169 = sphi 0, %s155
    %s173 = sphi 0, %s173
    %s175 = sphi 0, %s173
    %s176 = sphi 0, %s175
    %s190 = sphi 0, %s176
    %s194 = sphi 0, %s194
    %s196 = sphi 0, %s194
    %s197 = sphi 0, %s196
    %s211 = sphi 0, %s197
    %s215 = sphi 0, %s215
    %s217 = sphi 0, %s215
    %s218 = sphi 0, %s217
    %s232 = sphi 0, %s218
    %s236 = sphi 0, %s236
    %s238 = sphi 0, %s236
    %s239 = sphi 0, %s238
    %s253 = sphi 0, %s239
    %s257 = sphi 0, %s257
    %s259 = sphi 0, %s257
    %s260 = sphi 0, %s259
    %s274 = sphi 0, %s260
    %s278 = sphi 0, %s278
    %s280 = sphi 0, %s278
    %s281 = sphi 0, %s280
    %s295 = sphi 0, %s281
    %s299 = sphi 0, %s299
    %s301 = sphi 0, %s299
    %s302 = sphi 0, %s301
    %s316 = sphi 0, %s302
    %s320 = sphi 0, %s320
    %s322 = sphi 0, %s320
    %s323 = sphi 0, %s322
    %s337 = sphi 0, %s323
    %s341 = sphi 0, %s341
    %s343 = sphi 0, %s341
    %s344 = sphi 0, %s343
    %s358 = sphi 0, %s344
    %s362 = sphi 0, %s362
    %s364 = sphi 0, %s362
    %s365 = sphi 0, %s364
    %s379 = sphi 0, %s365
    %s383 = sphi 0, %s383
    %s385 = sphi 0, %s383
    %s386 = sphi 0, %s385
    %s400 = sphi 0, %s386
    %s404 = sphi 0, %s404
    %s406 = sphi 0, %s404
    %s407 = sphi 0, %s406
    %s421 = sphi 0, %s407
    %s425 = sphi 0, %s425
    %s427 = sphi 0, %s425
    %s428 = sphi 0, %s427
    %s442 = sphi 0, %s428
    %s446 = sphi 0, %s446
    %s448 = sphi 0, %s446
    %s449 = sphi 0, %s448
    %s463 = sphi 0, %s449
    %s467 = sphi 0, %s467
    %s469 = sphi 0, %s467
    %s470 = sphi 0, %s469
    %s484 = sphi 0, %s470
    %s488 = sphi 0, %s488
    %s490 = sphi 0, %s488
    %s491 = sphi 0, %s490
    %s505 = sphi 0, %s491
    %s509 = sphi 0, %s509
    %s511 = sphi 0, %s509
    %s512 = sphi 0, %s511
    %s526 = sphi 0, %s512
    %s530 = sphi 0, %s530
    %s532 = sphi 0, %s530
    %s533 = sphi 0, %s532
    %s547 = sphi 0, %s533
    %s551 = sphi 0, %s551
    %s553 = sphi 0, %s551
    %s554 = sphi 0, %s553
    %s568 = sphi 0, %s554
    %s572 = sphi 0, %s572
    %s574 = sphi 0, %s572
    %s575 = sphi 0, %s574
    %s589 = sphi 0, %s575
    %s593 = sphi 0, %s593
    %s595 = sphi 0, %s593
    %s596 = sphi 0, %s595
    %s610 = sphi 0, %s596
    %s614 = sphi 0, %s614
    %s616 = sphi 0, %s614
    %s617 = sphi 0, %s616
    %s631 = sphi 0, %s617
    %s637 = sphi 0, %s639
    %s640 = sphi 0, %s637
    %s641 = sphi 0, %s640
    %s657 = sphi 0, %s641
  $region4: #{fcvit_forward.1} parent=0 // loop_header_branch
    %37 = sbr.rel (%p35) target = $region8
  $region5: #{fcvit_forward.1} parent=0 // loop_body
    %s39 = ssub.s32 %s34, 1
    %s40 = ssub.s32 %s34, 2
    %s41 = sadd.s32 %s34, 1
    %s42 = ssub.s32 %s34, %s41
    %p43 = scmp.eq.s32.totalorder %s42, 0
    %s45 = sadd.s32 %s44, 1
    %s46 = scalar_select %p43, %s44, %s45
    %p49 = pneg %p43
    %p50 = scmp.eq.s32.totalorder %s34, 1
    %p51 = por %p49, %p50
    %p52 = scmp.ne.s32.totalorder %s44, %s47
    %p53 = scmp.eq.s32.totalorder %s34, 0
    %p54 = por %p52, %p53
    %p55 = scmp.ne.s32.totalorder %s44, %s47
    %p56 = scmp.eq.s32.totalorder %s39, 1
    %p57 = por %p55, %p56
    %p58 = scmp.ne.s32.totalorder %s47, %s48
    %p59 = scmp.eq.s32.totalorder %s39, 0
    %p60 = por %p58, %p59
    %p61 = scmp.ne.s32.totalorder %s47, %s48
    %p62 = scmp.eq.s32.totalorder %s40, 1
    %p63 = por %p61, %p62
    %p65 = scmp.ne.s32.totalorder %s48, %s64
    %p66 = scmp.eq.s32.totalorder %s40, 0
    %p67 = por %p65, %p66
    %s69 = sadd.s32 %s68, 1
    %p72 = scmp.eq.s32.totalorder %s34, 1
    %p73 = scmp.ne.s32.totalorder %s68, %s70
    %p74 = scmp.eq.s32.totalorder %s34, 0
    %p75 = por %p73, %p74
    %p76 = scmp.ne.s32.totalorder %s68, %s70
    %p77 = scmp.eq.s32.totalorder %s39, 1
    %p78 = por %p76, %p77
    %p79 = scmp.ne.s32.totalorder %s70, %s71
    %p80 = scmp.eq.s32.totalorder %s39, 0
    %p81 = por %p79, %p80
    %p82 = scmp.ne.s32.totalorder %s70, %s71
    %p83 = scmp.eq.s32.totalorder %s40, 1
    %p84 = por %p82, %p83
    %p86 = scmp.ne.s32.totalorder %s71, %s85
    %p87 = scmp.eq.s32.totalorder %s40, 0
    %p88 = por %p86, %p87
    %s90 = sadd.s32 %s89, 1
    %p93 = scmp.eq.s32.totalorder %s34, 1
    %p94 = scmp.ne.s32.totalorder %s89, %s91
    %p95 = scmp.eq.s32.totalorder %s34, 0
    %p96 = por %p94, %p95
    %p97 = scmp.ne.s32.totalorder %s89, %s91
    %p98 = scmp.eq.s32.totalorder %s39, 1
    %p99 = por %p97, %p98
    %p100 = scmp.ne.s32.totalorder %s91, %s92
    %p101 = scmp.eq.s32.totalorder %s39, 0
    %p102 = por %p100, %p101
    %p103 = scmp.ne.s32.totalorder %s91, %s92
    %p104 = scmp.eq.s32.totalorder %s40, 1
    %p105 = por %p103, %p104
    %p107 = scmp.ne.s32.totalorder %s92, %s106
    %p108 = scmp.eq.s32.totalorder %s40, 0
    %p109 = por %p107, %p108
    %s111 = sadd.s32 %s110, 1
    %p114 = scmp.eq.s32.totalorder %s34, 1
    %p115 = scmp.ne.s32.totalorder %s110, %s112
    %p116 = scmp.eq.s32.totalorder %s34, 0
    %p117 = por %p115, %p116
    %p118 = scmp.ne.s32.totalorder %s110, %s112
    %p119 = scmp.eq.s32.totalorder %s39, 1
    %p120 = por %p118, %p119
    %p121 = scmp.ne.s32.totalorder %s112, %s113
    %p122 = scmp.eq.s32.totalorder %s39, 0
    %p123 = por %p121, %p122
    %p124 = scmp.ne.s32.totalorder %s112, %s113
    %p125 = scmp.eq.s32.totalorder %s40, 1
    %p126 = por %p124, %p125
    %p128 = scmp.ne.s32.totalorder %s113, %s127
    %p129 = scmp.eq.s32.totalorder %s40, 0
    %p130 = por %p128, %p129
    %s132 = sadd.s32 %s131, 1
    %p135 = scmp.eq.s32.totalorder %s34, 1
    %p136 = scmp.ne.s32.totalorder %s131, %s133
    %p137 = scmp.eq.s32.totalorder %s34, 0
    %p138 = por %p136, %p137
    %p139 = scmp.ne.s32.totalorder %s131, %s133
    %p140 = scmp.eq.s32.totalorder %s39, 1
    %p141 = por %p139, %p140
    %p142 = scmp.ne.s32.totalorder %s133, %s134
    %p143 = scmp.eq.s32.totalorder %s39, 0
    %p144 = por %p142, %p143
    %p145 = scmp.ne.s32.totalorder %s133, %s134
    %p146 = scmp.eq.s32.totalorder %s40, 1
    %p147 = por %p145, %p146
    %p149 = scmp.ne.s32.totalorder %s134, %s148
    %p150 = scmp.eq.s32.totalorder %s40, 0
    %p151 = por %p149, %p150
    %s153 = sadd.s32 %s152, 1
    %p156 = scmp.eq.s32.totalorder %s34, 1
    %p157 = scmp.ne.s32.totalorder %s152, %s154
    %p158 = scmp.eq.s32.totalorder %s34, 0
    %p159 = por %p157, %p158
    %p160 = scmp.ne.s32.totalorder %s152, %s154
    %p161 = scmp.eq.s32.totalorder %s39, 1
    %p162 = por %p160, %p161
    %p163 = scmp.ne.s32.totalorder %s154, %s155
    %p164 = scmp.eq.s32.totalorder %s39, 0
    %p165 = por %p163, %p164
    %p166 = scmp.ne.s32.totalorder %s154, %s155
    %p167 = scmp.eq.s32.totalorder %s40, 1
    %p168 = por %p166, %p167
    %p170 = scmp.ne.s32.totalorder %s155, %s169
    %p171 = scmp.eq.s32.totalorder %s40, 0
    %p172 = por %p170, %p171
    %s174 = sadd.s32 %s173, 1
    %p177 = scmp.eq.s32.totalorder %s34, 1
    %p178 = scmp.ne.s32.totalorder %s173, %s175
    %p179 = scmp.eq.s32.totalorder %s34, 0
    %p180 = por %p178, %p179
    %p181 = scmp.ne.s32.totalorder %s173, %s175
    %p182 = scmp.eq.s32.totalorder %s39, 1
    %p183 = por %p181, %p182
    %p184 = scmp.ne.s32.totalorder %s175, %s176
    %p185 = scmp.eq.s32.totalorder %s39, 0
    %p186 = por %p184, %p185
    %p187 = scmp.ne.s32.totalorder %s175, %s176
    %p188 = scmp.eq.s32.totalorder %s40, 1
    %p189 = por %p187, %p188
    %p191 = scmp.ne.s32.totalorder %s176, %s190
    %p192 = scmp.eq.s32.totalorder %s40, 0
    %p193 = por %p191, %p192
    %s195 = sadd.s32 %s194, 1
    %p198 = scmp.eq.s32.totalorder %s34, 1
    %p199 = scmp.ne.s32.totalorder %s194, %s196
    %p200 = scmp.eq.s32.totalorder %s34, 0
    %p201 = por %p199, %p200
    %p202 = scmp.ne.s32.totalorder %s194, %s196
    %p203 = scmp.eq.s32.totalorder %s39, 1
    %p204 = por %p202, %p203
    %p205 = scmp.ne.s32.totalorder %s196, %s197
    %p206 = scmp.eq.s32.totalorder %s39, 0
    %p207 = por %p205, %p206
    %p208 = scmp.ne.s32.totalorder %s196, %s197
    %p209 = scmp.eq.s32.totalorder %s40, 1
    %p210 = por %p208, %p209
    %p212 = scmp.ne.s32.totalorder %s197, %s211
    %p213 = scmp.eq.s32.totalorder %s40, 0
    %p214 = por %p212, %p213
    %s216 = sadd.s32 %s215, 1
    %p219 = scmp.eq.s32.totalorder %s34, 1
    %p220 = scmp.ne.s32.totalorder %s215, %s217
    %p221 = scmp.eq.s32.totalorder %s34, 0
    %p222 = por %p220, %p221
    %p223 = scmp.ne.s32.totalorder %s215, %s217
    %p224 = scmp.eq.s32.totalorder %s39, 1
    %p225 = por %p223, %p224
    %p226 = scmp.ne.s32.totalorder %s217, %s218
    %p227 = scmp.eq.s32.totalorder %s39, 0
    %p228 = por %p226, %p227
    %p229 = scmp.ne.s32.totalorder %s217, %s218
    %p230 = scmp.eq.s32.totalorder %s40, 1
    %p231 = por %p229, %p230
    %p233 = scmp.ne.s32.totalorder %s218, %s232
    %p234 = scmp.eq.s32.totalorder %s40, 0
    %p235 = por %p233, %p234
    %s237 = sadd.s32 %s236, 1
    %p240 = scmp.eq.s32.totalorder %s34, 1
    %p241 = scmp.ne.s32.totalorder %s236, %s238
    %p242 = scmp.eq.s32.totalorder %s34, 0
    %p243 = por %p241, %p242
    %p244 = scmp.ne.s32.totalorder %s236, %s238
    %p245 = scmp.eq.s32.totalorder %s39, 1
    %p246 = por %p244, %p245
    %p247 = scmp.ne.s32.totalorder %s238, %s239
    %p248 = scmp.eq.s32.totalorder %s39, 0
    %p249 = por %p247, %p248
    %p250 = scmp.ne.s32.totalorder %s238, %s239
    %p251 = scmp.eq.s32.totalorder %s40, 1
    %p252 = por %p250, %p251
    %p254 = scmp.ne.s32.totalorder %s239, %s253
    %p255 = scmp.eq.s32.totalorder %s40, 0
    %p256 = por %p254, %p255
    %s258 = sadd.s32 %s257, 1
    %p261 = scmp.eq.s32.totalorder %s34, 1
    %p262 = scmp.ne.s32.totalorder %s257, %s259
    %p263 = scmp.eq.s32.totalorder %s34, 0
    %p264 = por %p262, %p263
    %p265 = scmp.ne.s32.totalorder %s257, %s259
    %p266 = scmp.eq.s32.totalorder %s39, 1
    %p267 = por %p265, %p266
    %p268 = scmp.ne.s32.totalorder %s259, %s260
    %p269 = scmp.eq.s32.totalorder %s39, 0
    %p270 = por %p268, %p269
    %p271 = scmp.ne.s32.totalorder %s259, %s260
    %p272 = scmp.eq.s32.totalorder %s40, 1
    %p273 = por %p271, %p272
    %p275 = scmp.ne.s32.totalorder %s260, %s274
    %p276 = scmp.eq.s32.totalorder %s40, 0
    %p277 = por %p275, %p276
    %s279 = sadd.s32 %s278, 1
    %p282 = scmp.eq.s32.totalorder %s34, 1
    %p283 = scmp.ne.s32.totalorder %s278, %s280
    %p284 = scmp.eq.s32.totalorder %s34, 0
    %p285 = por %p283, %p284
    %p286 = scmp.ne.s32.totalorder %s278, %s280
    %p287 = scmp.eq.s32.totalorder %s39, 1
    %p288 = por %p286, %p287
    %p289 = scmp.ne.s32.totalorder %s280, %s281
    %p290 = scmp.eq.s32.totalorder %s39, 0
    %p291 = por %p289, %p290
    %p292 = scmp.ne.s32.totalorder %s280, %s281
    %p293 = scmp.eq.s32.totalorder %s40, 1
    %p294 = por %p292, %p293
    %p296 = scmp.ne.s32.totalorder %s281, %s295
    %p297 = scmp.eq.s32.totalorder %s40, 0
    %p298 = por %p296, %p297
    %s300 = sadd.s32 %s299, 1
    %p303 = scmp.eq.s32.totalorder %s34, 1
    %p304 = scmp.ne.s32.totalorder %s299, %s301
    %p305 = scmp.eq.s32.totalorder %s34, 0
    %p306 = por %p304, %p305
    %p307 = scmp.ne.s32.totalorder %s299, %s301
    %p308 = scmp.eq.s32.totalorder %s39, 1
    %p309 = por %p307, %p308
    %p310 = scmp.ne.s32.totalorder %s301, %s302
    %p311 = scmp.eq.s32.totalorder %s39, 0
    %p312 = por %p310, %p311
    %p313 = scmp.ne.s32.totalorder %s301, %s302
    %p314 = scmp.eq.s32.totalorder %s40, 1
    %p315 = por %p313, %p314
    %p317 = scmp.ne.s32.totalorder %s302, %s316
    %p318 = scmp.eq.s32.totalorder %s40, 0
    %p319 = por %p317, %p318
    %s321 = sadd.s32 %s320, 1
    %p324 = scmp.eq.s32.totalorder %s34, 1
    %p325 = scmp.ne.s32.totalorder %s320, %s322
    %p326 = scmp.eq.s32.totalorder %s34, 0
    %p327 = por %p325, %p326
    %p328 = scmp.ne.s32.totalorder %s320, %s322
    %p329 = scmp.eq.s32.totalorder %s39, 1
    %p330 = por %p328, %p329
    %p331 = scmp.ne.s32.totalorder %s322, %s323
    %p332 = scmp.eq.s32.totalorder %s39, 0
    %p333 = por %p331, %p332
    %p334 = scmp.ne.s32.totalorder %s322, %s323
    %p335 = scmp.eq.s32.totalorder %s40, 1
    %p336 = por %p334, %p335
    %p338 = scmp.ne.s32.totalorder %s323, %s337
    %p339 = scmp.eq.s32.totalorder %s40, 0
    %p340 = por %p338, %p339
    %s342 = sadd.s32 %s341, 1
    %p345 = scmp.eq.s32.totalorder %s34, 1
    %p346 = scmp.ne.s32.totalorder %s341, %s343
    %p347 = scmp.eq.s32.totalorder %s34, 0
    %p348 = por %p346, %p347
    %p349 = scmp.ne.s32.totalorder %s341, %s343
    %p350 = scmp.eq.s32.totalorder %s39, 1
    %p351 = por %p349, %p350
    %p352 = scmp.ne.s32.totalorder %s343, %s344
    %p353 = scmp.eq.s32.totalorder %s39, 0
    %p354 = por %p352, %p353
    %p355 = scmp.ne.s32.totalorder %s343, %s344
    %p356 = scmp.eq.s32.totalorder %s40, 1
    %p357 = por %p355, %p356
    %p359 = scmp.ne.s32.totalorder %s344, %s358
    %p360 = scmp.eq.s32.totalorder %s40, 0
    %p361 = por %p359, %p360
    %s363 = sadd.s32 %s362, 1
    %p366 = scmp.eq.s32.totalorder %s34, 1
    %p367 = scmp.ne.s32.totalorder %s362, %s364
    %p368 = scmp.eq.s32.totalorder %s34, 0
    %p369 = por %p367, %p368
    %p370 = scmp.ne.s32.totalorder %s362, %s364
    %p371 = scmp.eq.s32.totalorder %s39, 1
    %p372 = por %p370, %p371
    %p373 = scmp.ne.s32.totalorder %s364, %s365
    %p374 = scmp.eq.s32.totalorder %s39, 0
    %p375 = por %p373, %p374
    %p376 = scmp.ne.s32.totalorder %s364, %s365
    %p377 = scmp.eq.s32.totalorder %s40, 1
    %p378 = por %p376, %p377
    %p380 = scmp.ne.s32.totalorder %s365, %s379
    %p381 = scmp.eq.s32.totalorder %s40, 0
    %p382 = por %p380, %p381
    %s384 = sadd.s32 %s383, 1
    %p387 = scmp.eq.s32.totalorder %s34, 1
    %p388 = scmp.ne.s32.totalorder %s383, %s385
    %p389 = scmp.eq.s32.totalorder %s34, 0
    %p390 = por %p388, %p389
    %p391 = scmp.ne.s32.totalorder %s383, %s385
    %p392 = scmp.eq.s32.totalorder %s39, 1
    %p393 = por %p391, %p392
    %p394 = scmp.ne.s32.totalorder %s385, %s386
    %p395 = scmp.eq.s32.totalorder %s39, 0
    %p396 = por %p394, %p395
    %p397 = scmp.ne.s32.totalorder %s385, %s386
    %p398 = scmp.eq.s32.totalorder %s40, 1
    %p399 = por %p397, %p398
    %p401 = scmp.ne.s32.totalorder %s386, %s400
    %p402 = scmp.eq.s32.totalorder %s40, 0
    %p403 = por %p401, %p402
    %s405 = sadd.s32 %s404, 1
    %p408 = scmp.eq.s32.totalorder %s34, 1
    %p409 = scmp.ne.s32.totalorder %s404, %s406
    %p410 = scmp.eq.s32.totalorder %s34, 0
    %p411 = por %p409, %p410
    %p412 = scmp.ne.s32.totalorder %s404, %s406
    %p413 = scmp.eq.s32.totalorder %s39, 1
    %p414 = por %p412, %p413
    %p415 = scmp.ne.s32.totalorder %s406, %s407
    %p416 = scmp.eq.s32.totalorder %s39, 0
    %p417 = por %p415, %p416
    %p418 = scmp.ne.s32.totalorder %s406, %s407
    %p419 = scmp.eq.s32.totalorder %s40, 1
    %p420 = por %p418, %p419
    %p422 = scmp.ne.s32.totalorder %s407, %s421
    %p423 = scmp.eq.s32.totalorder %s40, 0
    %p424 = por %p422, %p423
    %s426 = sadd.s32 %s425, 1
    %p429 = scmp.eq.s32.totalorder %s34, 1
    %p430 = scmp.ne.s32.totalorder %s425, %s427
    %p431 = scmp.eq.s32.totalorder %s34, 0
    %p432 = por %p430, %p431
    %p433 = scmp.ne.s32.totalorder %s425, %s427
    %p434 = scmp.eq.s32.totalorder %s39, 1
    %p435 = por %p433, %p434
    %p436 = scmp.ne.s32.totalorder %s427, %s428
    %p437 = scmp.eq.s32.totalorder %s39, 0
    %p438 = por %p436, %p437
    %p439 = scmp.ne.s32.totalorder %s427, %s428
    %p440 = scmp.eq.s32.totalorder %s40, 1
    %p441 = por %p439, %p440
    %p443 = scmp.ne.s32.totalorder %s428, %s442
    %p444 = scmp.eq.s32.totalorder %s40, 0
    %p445 = por %p443, %p444
    %s447 = sadd.s32 %s446, 1
    %p450 = scmp.eq.s32.totalorder %s34, 1
    %p451 = scmp.ne.s32.totalorder %s446, %s448
    %p452 = scmp.eq.s32.totalorder %s34, 0
    %p453 = por %p451, %p452
    %p454 = scmp.ne.s32.totalorder %s446, %s448
    %p455 = scmp.eq.s32.totalorder %s39, 1
    %p456 = por %p454, %p455
    %p457 = scmp.ne.s32.totalorder %s448, %s449
    %p458 = scmp.eq.s32.totalorder %s39, 0
    %p459 = por %p457, %p458
    %p460 = scmp.ne.s32.totalorder %s448, %s449
    %p461 = scmp.eq.s32.totalorder %s40, 1
    %p462 = por %p460, %p461
    %p464 = scmp.ne.s32.totalorder %s449, %s463
    %p465 = scmp.eq.s32.totalorder %s40, 0
    %p466 = por %p464, %p465
    %s468 = sadd.s32 %s467, 1
    %p471 = scmp.eq.s32.totalorder %s34, 1
    %p472 = scmp.ne.s32.totalorder %s467, %s469
    %p473 = scmp.eq.s32.totalorder %s34, 0
    %p474 = por %p472, %p473
    %p475 = scmp.ne.s32.totalorder %s467, %s469
    %p476 = scmp.eq.s32.totalorder %s39, 1
    %p477 = por %p475, %p476
    %p478 = scmp.ne.s32.totalorder %s469, %s470
    %p479 = scmp.eq.s32.totalorder %s39, 0
    %p480 = por %p478, %p479
    %p481 = scmp.ne.s32.totalorder %s469, %s470
    %p482 = scmp.eq.s32.totalorder %s40, 1
    %p483 = por %p481, %p482
    %p485 = scmp.ne.s32.totalorder %s470, %s484
    %p486 = scmp.eq.s32.totalorder %s40, 0
    %p487 = por %p485, %p486
    %s489 = sadd.s32 %s488, 1
    %p492 = scmp.eq.s32.totalorder %s34, 1
    %p493 = scmp.ne.s32.totalorder %s488, %s490
    %p494 = scmp.eq.s32.totalorder %s34, 0
    %p495 = por %p493, %p494
    %p496 = scmp.ne.s32.totalorder %s488, %s490
    %p497 = scmp.eq.s32.totalorder %s39, 1
    %p498 = por %p496, %p497
    %p499 = scmp.ne.s32.totalorder %s490, %s491
    %p500 = scmp.eq.s32.totalorder %s39, 0
    %p501 = por %p499, %p500
    %p502 = scmp.ne.s32.totalorder %s490, %s491
    %p503 = scmp.eq.s32.totalorder %s40, 1
    %p504 = por %p502, %p503
    %p506 = scmp.ne.s32.totalorder %s491, %s505
    %p507 = scmp.eq.s32.totalorder %s40, 0
    %p508 = por %p506, %p507
    %s510 = sadd.s32 %s509, 1
    %p513 = scmp.eq.s32.totalorder %s34, 1
    %p514 = scmp.ne.s32.totalorder %s509, %s511
    %p515 = scmp.eq.s32.totalorder %s34, 0
    %p516 = por %p514, %p515
    %p517 = scmp.ne.s32.totalorder %s509, %s511
    %p518 = scmp.eq.s32.totalorder %s39, 1
    %p519 = por %p517, %p518
    %p520 = scmp.ne.s32.totalorder %s511, %s512
    %p521 = scmp.eq.s32.totalorder %s39, 0
    %p522 = por %p520, %p521
    %p523 = scmp.ne.s32.totalorder %s511, %s512
    %p524 = scmp.eq.s32.totalorder %s40, 1
    %p525 = por %p523, %p524
    %p527 = scmp.ne.s32.totalorder %s512, %s526
    %p528 = scmp.eq.s32.totalorder %s40, 0
    %p529 = por %p527, %p528
    %s531 = sadd.s32 %s530, 1
    %p534 = scmp.eq.s32.totalorder %s34, 1
    %p535 = scmp.ne.s32.totalorder %s530, %s532
    %p536 = scmp.eq.s32.totalorder %s34, 0
    %p537 = por %p535, %p536
    %p538 = scmp.ne.s32.totalorder %s530, %s532
    %p539 = scmp.eq.s32.totalorder %s39, 1
    %p540 = por %p538, %p539
    %p541 = scmp.ne.s32.totalorder %s532, %s533
    %p542 = scmp.eq.s32.totalorder %s39, 0
    %p543 = por %p541, %p542
    %p544 = scmp.ne.s32.totalorder %s532, %s533
    %p545 = scmp.eq.s32.totalorder %s40, 1
    %p546 = por %p544, %p545
    %p548 = scmp.ne.s32.totalorder %s533, %s547
    %p549 = scmp.eq.s32.totalorder %s40, 0
    %p550 = por %p548, %p549
    %s552 = sadd.s32 %s551, 1
    %p555 = scmp.eq.s32.totalorder %s34, 1
    %p556 = scmp.ne.s32.totalorder %s551, %s553
    %p557 = scmp.eq.s32.totalorder %s34, 0
    %p558 = por %p556, %p557
    %p559 = scmp.ne.s32.totalorder %s551, %s553
    %p560 = scmp.eq.s32.totalorder %s39, 1
    %p561 = por %p559, %p560
    %p562 = scmp.ne.s32.totalorder %s553, %s554
    %p563 = scmp.eq.s32.totalorder %s39, 0
    %p564 = por %p562, %p563
    %p565 = scmp.ne.s32.totalorder %s553, %s554
    %p566 = scmp.eq.s32.totalorder %s40, 1
    %p567 = por %p565, %p566
    %p569 = scmp.ne.s32.totalorder %s554, %s568
    %p570 = scmp.eq.s32.totalorder %s40, 0
    %p571 = por %p569, %p570
    %s573 = sadd.s32 %s572, 1
    %p576 = scmp.eq.s32.totalorder %s34, 1
    %p577 = scmp.ne.s32.totalorder %s572, %s574
    %p578 = scmp.eq.s32.totalorder %s34, 0
    %p579 = por %p577, %p578
    %p580 = scmp.ne.s32.totalorder %s572, %s574
    %p581 = scmp.eq.s32.totalorder %s39, 1
    %p582 = por %p580, %p581
    %p583 = scmp.ne.s32.totalorder %s574, %s575
    %p584 = scmp.eq.s32.totalorder %s39, 0
    %p585 = por %p583, %p584
    %p586 = scmp.ne.s32.totalorder %s574, %s575
    %p587 = scmp.eq.s32.totalorder %s40, 1
    %p588 = por %p586, %p587
    %p590 = scmp.ne.s32.totalorder %s575, %s589
    %p591 = scmp.eq.s32.totalorder %s40, 0
    %p592 = por %p590, %p591
    %s594 = sadd.s32 %s593, 1
    %p597 = scmp.eq.s32.totalorder %s34, 1
    %p598 = scmp.ne.s32.totalorder %s593, %s595
    %p599 = scmp.eq.s32.totalorder %s34, 0
    %p600 = por %p598, %p599
    %p601 = scmp.ne.s32.totalorder %s593, %s595
    %p602 = scmp.eq.s32.totalorder %s39, 1
    %p603 = por %p601, %p602
    %p604 = scmp.ne.s32.totalorder %s595, %s596
    %p605 = scmp.eq.s32.totalorder %s39, 0
    %p606 = por %p604, %p605
    %p607 = scmp.ne.s32.totalorder %s595, %s596
    %p608 = scmp.eq.s32.totalorder %s40, 1
    %p609 = por %p607, %p608
    %p611 = scmp.ne.s32.totalorder %s596, %s610
    %p612 = scmp.eq.s32.totalorder %s40, 0
    %p613 = por %p611, %p612
    %s615 = sadd.s32 %s614, 1
    %p618 = scmp.eq.s32.totalorder %s34, 1
    %p619 = scmp.ne.s32.totalorder %s614, %s616
    %p620 = scmp.eq.s32.totalorder %s34, 0
    %p621 = por %p619, %p620
    %p622 = scmp.ne.s32.totalorder %s614, %s616
    %p623 = scmp.eq.s32.totalorder %s39, 1
    %p624 = por %p622, %p623
    %p625 = scmp.ne.s32.totalorder %s616, %s617
    %p626 = scmp.eq.s32.totalorder %s39, 0
    %p627 = por %p625, %p626
    %p628 = scmp.ne.s32.totalorder %s616, %s617
    %p629 = scmp.eq.s32.totalorder %s40, 1
    %p630 = por %p628, %p629
    %p632 = scmp.ne.s32.totalorder %s617, %s631
    %p633 = scmp.eq.s32.totalorder %s40, 0
    %p634 = por %p632, %p633
    %s635 = ssub.s32 %s34, %s41
    %p636 = scmp.eq.s32.totalorder %s635, 0
    %s638 = sadd.s32 %s637, 1
    %s639 = scalar_select %p636, %s637, %s638
    %p642 = pneg %p636
    %p643 = scmp.eq.s32.totalorder %s34, 1
    %p644 = por %p642, %p643
    %p645 = scmp.ne.s32.totalorder %s637, %s640
    %p646 = scmp.eq.s32.totalorder %s34, 0
    %p647 = por %p645, %p646
    %p648 = scmp.ne.s32.totalorder %s637, %s640
    %p649 = scmp.eq.s32.totalorder %s39, 1
    %p650 = por %p648, %p649
    %p651 = scmp.ne.s32.totalorder %s640, %s641
    %p652 = scmp.eq.s32.totalorder %s39, 0
    %p653 = por %p651, %p652
    %p654 = scmp.ne.s32.totalorder %s640, %s641
    %p655 = scmp.eq.s32.totalorder %s40, 1
    %p656 = por %p654, %p655
    %p658 = scmp.ne.s32.totalorder %s641, %s657
    %p659 = scmp.eq.s32.totalorder %s40, 0
    %p660 = por %p658, %p659
    %p661 = scmp.le.s32.totalorder 1, %s34
    %p662 = scmp.lt.s32.totalorder %s34, 3
    %p663 = pnand %p661, %p662
    %p664 = pneg %p663
    // Predicated region
    $region9: #{fcvit_forward.1} parent=5 // pred_check
      _
    $region10: #{fcvit_forward.1} parent=5 // pred_check_branch
      %666 = sbr.rel (%p663) target = $region12
    $region11: #{fcvit_forward.1} parent=5 // pred_region
      %s667 = ssub.s32 %s34, 1
      // Predicated region
      $region13: #{fcvit_forward.1} parent=11 // pred_check
        %p668 = pneg %p81
      $region14: #{fcvit_forward.1} parent=11 // pred_check_branch
        %670 = sbr.rel (%p668) target = $region16
      $region15: #{fcvit_forward.1} parent=11 // pred_region
        _
      $region16: #{fcvit_forward.1} parent=11 // pred_fallthru
        _
      // Predicated region
      $region17: #{fcvit_forward.1} parent=11 // pred_check
        %p671 = pneg %p102
      $region18: #{fcvit_forward.1} parent=11 // pred_check_branch
        %673 = sbr.rel (%p671) target = $region20
      $region19: #{fcvit_forward.1} parent=11 // pred_region
        _
      $region20: #{fcvit_forward.1} parent=11 // pred_fallthru
        _
      // Predicated region
      $region21: #{fcvit_forward.1} parent=11 // pred_check
        %p674 = pneg %p123
      $region22: #{fcvit_forward.1} parent=11 // pred_check_branch
        %676 = sbr.rel (%p674) target = $region24
      $region23: #{fcvit_forward.1} parent=11 // pred_region
        _
      $region24: #{fcvit_forward.1} parent=11 // pred_fallthru
        _
      // Predicated region
      $region25: #{fcvit_forward.1} parent=11 // pred_check
        %p677 = pneg %p144
      $region26: #{fcvit_forward.1} parent=11 // pred_check_branch
        %679 = sbr.rel (%p677) target = $region28
      $region27: #{fcvit_forward.1} parent=11 // pred_region
        _
      $region28: #{fcvit_forward.1} parent=11 // pred_fallthru
        _
      // Predicated region
      $region29: #{fcvit_forward.1} parent=11 // pred_check
        %p680 = pneg %p165
      $region30: #{fcvit_forward.1} parent=11 // pred_check_branch
        %682 = sbr.rel (%p680) target = $region32
      $region31: #{fcvit_forward.1} parent=11 // pred_region
        _
      $region32: #{fcvit_forward.1} parent=11 // pred_fallthru
        _
      // Predicated region
      $region33: #{fcvit_forward.1} parent=11 // pred_check
        %p683 = pneg %p186
      $region34: #{fcvit_forward.1} parent=11 // pred_check_branch
        %685 = sbr.rel (%p683) target = $region36
      $region35: #{fcvit_forward.1} parent=11 // pred_region
        _
      $region36: #{fcvit_forward.1} parent=11 // pred_fallthru
        _
      // Predicated region
      $region37: #{fcvit_forward.1} parent=11 // pred_check
        %p686 = pneg %p207
      $region38: #{fcvit_forward.1} parent=11 // pred_check_branch
        %688 = sbr.rel (%p686) target = $region40
      $region39: #{fcvit_forward.1} parent=11 // pred_region
        _
      $region40: #{fcvit_forward.1} parent=11 // pred_fallthru
        _
      // Predicated region
      $region41: #{fcvit_forward.1} parent=11 // pred_check
        %p689 = pneg %p228
      $region42: #{fcvit_forward.1} parent=11 // pred_check_branch
        %691 = sbr.rel (%p689) target = $region44
      $region43: #{fcvit_forward.1} parent=11 // pred_region
        _
      $region44: #{fcvit_forward.1} parent=11 // pred_fallthru
        _
      // Predicated region
      $region45: #{fcvit_forward.1} parent=11 // pred_check
        %p692 = pneg %p249
      $region46: #{fcvit_forward.1} parent=11 // pred_check_branch
        %694 = sbr.rel (%p692) target = $region48
      $region47: #{fcvit_forward.1} parent=11 // pred_region
        _
      $region48: #{fcvit_forward.1} parent=11 // pred_fallthru
        _
      // Predicated region
      $region49: #{fcvit_forward.1} parent=11 // pred_check
        %p695 = pneg %p270
      $region50: #{fcvit_forward.1} parent=11 // pred_check_branch
        %697 = sbr.rel (%p695) target = $region52
      $region51: #{fcvit_forward.1} parent=11 // pred_region
        _
      $region52: #{fcvit_forward.1} parent=11 // pred_fallthru
        _
      // Predicated region
      $region53: #{fcvit_forward.1} parent=11 // pred_check
        %p698 = pneg %p291
      $region54: #{fcvit_forward.1} parent=11 // pred_check_branch
        %700 = sbr.rel (%p698) target = $region56
      $region55: #{fcvit_forward.1} parent=11 // pred_region
        _
      $region56: #{fcvit_forward.1} parent=11 // pred_fallthru
        _
      // Predicated region
      $region57: #{fcvit_forward.1} parent=11 // pred_check
        %p701 = pneg %p312
      $region58: #{fcvit_forward.1} parent=11 // pred_check_branch
        %703 = sbr.rel (%p701) target = $region60
      $region59: #{fcvit_forward.1} parent=11 // pred_region
        _
      $region60: #{fcvit_forward.1} parent=11 // pred_fallthru
        _
      // Predicated region
      $region61: #{fcvit_forward.1} parent=11 // pred_check
        %p704 = pneg %p333
      $region62: #{fcvit_forward.1} parent=11 // pred_check_branch
        %706 = sbr.rel (%p704) target = $region64
      $region63: #{fcvit_forward.1} parent=11 // pred_region
        _
      $region64: #{fcvit_forward.1} parent=11 // pred_fallthru
        _
      // Predicated region
      $region65: #{fcvit_forward.1} parent=11 // pred_check
        %p707 = pneg %p354
      $region66: #{fcvit_forward.1} parent=11 // pred_check_branch
        %709 = sbr.rel (%p707) target = $region68
      $region67: #{fcvit_forward.1} parent=11 // pred_region
        _
      $region68: #{fcvit_forward.1} parent=11 // pred_fallthru
        _
      // Predicated region
      $region69: #{fcvit_forward.1} parent=11 // pred_check
        %p710 = pneg %p375
      $region70: #{fcvit_forward.1} parent=11 // pred_check_branch
        %712 = sbr.rel (%p710) target = $region72
      $region71: #{fcvit_forward.1} parent=11 // pred_region
        _
      $region72: #{fcvit_forward.1} parent=11 // pred_fallthru
        _
      // Predicated region
      $region73: #{fcvit_forward.1} parent=11 // pred_check
        %p713 = pneg %p396
      $region74: #{fcvit_forward.1} parent=11 // pred_check_branch
        %715 = sbr.rel (%p713) target = $region76
      $region75: #{fcvit_forward.1} parent=11 // pred_region
        _
      $region76: #{fcvit_forward.1} parent=11 // pred_fallthru
        _
      // Predicated region
      $region77: #{fcvit_forward.1} parent=11 // pred_check
        %p716 = pneg %p417
      $region78: #{fcvit_forward.1} parent=11 // pred_check_branch
        %718 = sbr.rel (%p716) target = $region80
      $region79: #{fcvit_forward.1} parent=11 // pred_region
        _
      $region80: #{fcvit_forward.1} parent=11 // pred_fallthru
        _
      // Predicated region
      $region81: #{fcvit_forward.1} parent=11 // pred_check
        %p719 = pneg %p438
      $region82: #{fcvit_forward.1} parent=11 // pred_check_branch
        %721 = sbr.rel (%p719) target = $region84
      $region83: #{fcvit_forward.1} parent=11 // pred_region
        _
      $region84: #{fcvit_forward.1} parent=11 // pred_fallthru
        _
      // Predicated region
      $region85: #{fcvit_forward.1} parent=11 // pred_check
        %p722 = pneg %p459
      $region86: #{fcvit_forward.1} parent=11 // pred_check_branch
        %724 = sbr.rel (%p722) target = $region88
      $region87: #{fcvit_forward.1} parent=11 // pred_region
        _
      $region88: #{fcvit_forward.1} parent=11 // pred_fallthru
        _
      // Predicated region
      $region89: #{fcvit_forward.1} parent=11 // pred_check
        %p725 = pneg %p480
      $region90: #{fcvit_forward.1} parent=11 // pred_check_branch
        %727 = sbr.rel (%p725) target = $region92
      $region91: #{fcvit_forward.1} parent=11 // pred_region
        _
      $region92: #{fcvit_forward.1} parent=11 // pred_fallthru
        _
      // Predicated region
      $region93: #{fcvit_forward.1} parent=11 // pred_check
        %p728 = pneg %p501
      $region94: #{fcvit_forward.1} parent=11 // pred_check_branch
        %730 = sbr.rel (%p728) target = $region96
      $region95: #{fcvit_forward.1} parent=11 // pred_region
        _
      $region96: #{fcvit_forward.1} parent=11 // pred_fallthru
        _
      // Predicated region
      $region97: #{fcvit_forward.1} parent=11 // pred_check
        %p731 = pneg %p522
      $region98: #{fcvit_forward.1} parent=11 // pred_check_branch
        %733 = sbr.rel (%p731) target = $region100
      $region99: #{fcvit_forward.1} parent=11 // pred_region
        _
      $region100: #{fcvit_forward.1} parent=11 // pred_fallthru
        _
      // Predicated region
      $region101: #{fcvit_forward.1} parent=11 // pred_check
        %p734 = pneg %p543
      $region102: #{fcvit_forward.1} parent=11 // pred_check_branch
        %736 = sbr.rel (%p734) target = $region104
      $region103: #{fcvit_forward.1} parent=11 // pred_region
        _
      $region104: #{fcvit_forward.1} parent=11 // pred_fallthru
        _
      // Predicated region
      $region105: #{fcvit_forward.1} parent=11 // pred_check
        %p737 = pneg %p564
      $region106: #{fcvit_forward.1} parent=11 // pred_check_branch
        %739 = sbr.rel (%p737) target = $region108
      $region107: #{fcvit_forward.1} parent=11 // pred_region
        _
      $region108: #{fcvit_forward.1} parent=11 // pred_fallthru
        _
      // Predicated region
      $region109: #{fcvit_forward.1} parent=11 // pred_check
        %p740 = pneg %p585
      $region110: #{fcvit_forward.1} parent=11 // pred_check_branch
        %742 = sbr.rel (%p740) target = $region112
      $region111: #{fcvit_forward.1} parent=11 // pred_region
        _
      $region112: #{fcvit_forward.1} parent=11 // pred_fallthru
        _
      // Predicated region
      $region113: #{fcvit_forward.1} parent=11 // pred_check
        %p743 = pneg %p606
      $region114: #{fcvit_forward.1} parent=11 // pred_check_branch
        %745 = sbr.rel (%p743) target = $region116
      $region115: #{fcvit_forward.1} parent=11 // pred_region
        _
      $region116: #{fcvit_forward.1} parent=11 // pred_fallthru
        _
      // Predicated region
      $region117: #{fcvit_forward.1} parent=11 // pred_check
        %p746 = pneg %p627
      $region118: #{fcvit_forward.1} parent=11 // pred_check_branch
        %748 = sbr.rel (%p746) target = $region120
      $region119: #{fcvit_forward.1} parent=11 // pred_region
        _
      $region120: #{fcvit_forward.1} parent=11 // pred_fallthru
        _
    $region12: #{fcvit_forward.1} parent=5 // pred_fallthru
      _
    %p749 = scmp.lt.s32.totalorder %s34, 2
    // Predicated region
    $region121: #{fcvit_forward.1} parent=5 // pred_check
      %p750 = pneg %p749
    $region122: #{fcvit_forward.1} parent=5 // pred_check_branch
      %752 = sbr.rel (%p750) target = $region124
    $region123: #{fcvit_forward.1} parent=5 // pred_region
      // Predicated region
      $region125: #{fcvit_forward.1} parent=123 // pred_check
        %p753 = pneg %p54
      $region126: #{fcvit_forward.1} parent=123 // pred_check_branch
        %755 = sbr.rel (%p753) target = $region128
      $region127: #{fcvit_forward.1} parent=123 // pred_region
        %p756 = scmp.lt.s32.totalorder %s34, 1
        %s757 = scalar_select %p756, %s34, 1
        %s758 = smul.addr %s757, 6
        %s759 = smul.addr %s758, 8
        %s760 = scalar_lea.vmem %s0, %s759
      $region128: #{fcvit_forward.1} parent=123 // pred_fallthru
        _
    $region124: #{fcvit_forward.1} parent=5 // pred_fallthru
      _
    %p761 = scmp.le.s32.totalorder 1, %s34
    %p762 = scmp.lt.s32.totalorder %s34, 3
    %p763 = pnand %p761, %p762
    %p764 = pneg %p763
    // Predicated region
    $region129: #{fcvit_forward.1} parent=5 // pred_check
      _
    $region130: #{fcvit_forward.1} parent=5 // pred_check_branch
      %766 = sbr.rel (%p763) target = $region132
    $region131: #{fcvit_forward.1} parent=5 // pred_region
      %s767 = ssub.s32 %s34, 1
      %p768 = scmp.lt.s32.totalorder %s39, 1
      %s769 = scalar_select %p768, %s39, 1
      %s770 = smul.addr %s769, 6
      %s771 = smul.addr %s770, 8
      %s772 = scalar_lea.vmem %s0, %s771
      %p773 = pneg %p60
      %p774 = pneg %p57
      %p775 = pneg %p81
      %p776 = pneg %p78
      %p777 = pneg %p102
      %p778 = pneg %p99
      %p779 = pneg %p123
      %p780 = pneg %p120
      %p781 = pneg %p144
      %p782 = pneg %p141
      %p783 = pneg %p165
      %p784 = pneg %p162
      %p785 = pneg %p186
      %p786 = pneg %p183
      %p787 = pneg %p207
      %p788 = pneg %p204
      %p789 = pneg %p228
      %p790 = pneg %p225
      %p791 = pneg %p249
      %p792 = pneg %p246
      %p793 = pneg %p270
      %p794 = pneg %p267
      %p795 = pneg %p291
      %p796 = pneg %p288
      %p797 = pneg %p312
      %p798 = pneg %p309
      %p799 = pneg %p333
      %p800 = pneg %p330
      %p801 = pneg %p354
      %p802 = pneg %p351
      %p803 = pneg %p375
      %p804 = pneg %p372
      %p805 = pneg %p396
      %p806 = pneg %p393
      %p807 = pneg %p417
      %p808 = pneg %p414
      %p809 = pneg %p438
      %p810 = pneg %p435
      %p811 = pneg %p459
      %p812 = pneg %p456
      %p813 = pneg %p480
      %p814 = pneg %p477
      %p815 = pneg %p501
      %p816 = pneg %p498
      %p817 = pneg %p522
      %p818 = pneg %p519
      %p819 = pneg %p543
      %p820 = pneg %p540
      %p821 = pneg %p564
      %p822 = pneg %p561
      %p823 = pneg %p585
      %p824 = pneg %p582
      %p825 = pneg %p606
      %p826 = pneg %p603
      %p827 = pneg %p627
      %p828 = pneg %p624
      %p829 = pneg %p653
      %p830 = pneg %p650
      %p831 = scmp.lt.s32.totalorder %s39, 1
      %s832 = scalar_select %p831, %s39, 1
      %s833 = scalar_lea.vmem %s28, %s832
      %p834 = scmp.lt.s32.totalorder %s39, 1
      %s835 = scalar_select %p834, %s39, 1
      %s836 = smul.addr %s835, 6
      %s837 = smul.addr %s836, 8
      %s838 = scalar_lea.vmem %s0, %s837
      %p839 = scmp.lt.s32.totalorder %s39, 1
      %s840 = scalar_select %p839, %s39, 1
      %s841 = scalar_lea.vmem %s28, %s840
      %v843 = vld [vmem:[%s838] sm:$0xff]
      %v844 = vld [vmem:[%s838 + $0x8] sm:$0xff]
      %v845 = vld [vmem:[%s838 + $0x10] sm:$0xff]
      %v846 = vld [vmem:[%s838 + $0x18] sm:$0xff]
      %v847 = vld [vmem:[%s838 + $0x20] sm:$0x1]
      %v848 = vld [vmem:[%s838 + $0x28] sm:$0x1]
      %v849 = vpack.c.bf16 %v845, %v843
      %v850 = vpack.c.bf16 %v846, %v844
      %v851 = vpack.c.bf16 %v847, %v847
      %v852 = vpack.c.bf16 %v848, %v848
      %v853 = vld [vmem:[%s1] sm:$0xf]
      %v854 = vld [vmem:[%s1 + $0x4] sm:$0xf]
      %v855 = vld [vmem:[%s1 + $0x8] sm:$0xf]
      %v856 = vld [vmem:[%s1 + $0xc] sm:$0xf]
      %v857 = vld [vmem:[%s1 + $0x10] sm:$0xf]
      %v858 = vld [vmem:[%s1 + $0x14] sm:$0xf]
      %v859 = vld [vmem:[%s1 + $0x18] sm:$0xf]
      %v860 = vld [vmem:[%s1 + $0x1c] sm:$0xf]
      %v861 = vld [vmem:[%s1 + $0x20] sm:$0xf]
      %v862 = vld [vmem:[%s1 + $0x24] sm:$0xf]
      %v863 = vld [vmem:[%s1 + $0x28] sm:$0xf]
      %v864 = vld [vmem:[%s1 + $0x2c] sm:$0xf]
      %v865 = vld [vmem:[%s1 + $0x30] sm:$0xf]
      %v866 = vld [vmem:[%s1 + $0x34] sm:$0xf]
      %v867 = vld [vmem:[%s1 + $0x38] sm:$0xf]
      %v868 = vld [vmem:[%s1 + $0x3c] sm:$0xf]
      %v869 = vld [vmem:[%s1 + $0x40] sm:$0xf]
      %v870 = vld [vmem:[%s1 + $0x44] sm:$0xf]
      %v871 = vld [vmem:[%s1 + $0x48] sm:$0xf]
      %v872 = vld [vmem:[%s1 + $0x4c] sm:$0xf]
      %v873 = vld [vmem:[%s1 + $0x50] sm:$0xf]
      %v874 = vld [vmem:[%s1 + $0x54] sm:$0xf]
      %v875 = vld [vmem:[%s1 + $0x58] sm:$0xf]
      %v876 = vld [vmem:[%s1 + $0x5c] sm:$0xf]
      %v877 = vld [vmem:[%s2] sm:$0x1]
      %v879 = vlaneseq
      %v880 = vshrl.u32 %v879, 7
      %v881 = vsub.s32 0, %v880
      %v882 = vrot.slane %v877, %v881
      %v908 = vunpack.c.l.b16 %v853
      %v909 = vunpack.c.l.b16 %v854
      %v910 = vunpack.c.l.b16 %v855
      %v911 = vunpack.c.l.b16 %v856
      %v912 = vunpack.c.l.b16 %v857
      %v913 = vunpack.c.l.b16 %v858
      %v914 = vunpack.c.l.b16 %v859
      %v915 = vunpack.c.l.b16 %v860
      %v916 = vunpack.c.l.b16 %v861
      %v917 = vunpack.c.l.b16 %v862
      %v918 = vunpack.c.l.b16 %v863
      %v919 = vunpack.c.l.b16 %v864
      %v920 = vunpack.c.l.b16 %v865
      %v921 = vunpack.c.l.b16 %v866
      %v922 = vunpack.c.l.b16 %v867
      %v923 = vunpack.c.l.b16 %v868
      %v924 = vunpack.c.l.b16 %v869
      %v925 = vunpack.c.l.b16 %v870
      %v926 = vunpack.c.l.b16 %v871
      %v927 = vunpack.c.l.b16 %v872
      %v928 = vunpack.c.l.b16 %v873
      %v929 = vunpack.c.l.b16 %v874
      %v930 = vunpack.c.l.b16 %v875
      %v931 = vunpack.c.l.b16 %v876
      %v932 = vpack.c.b16 %v909, %v908
      %v933 = vpack.c.b16 %v911, %v910
      %v934 = vpack.c.b16 %v913, %v912
      %v935 = vpack.c.b16 %v915, %v914
      %v936 = vpack.c.b16 %v917, %v916
      %v937 = vpack.c.b16 %v919, %v918
      %v938 = vpack.c.b16 %v921, %v920
      %v939 = vpack.c.b16 %v923, %v922
      %v940 = vpack.c.b16 %v925, %v924
      %v941 = vpack.c.b16 %v927, %v926
      %v942 = vpack.c.b16 %v929, %v928
      %v943 = vpack.c.b16 %v931, %v930
      %vm956 = vcmask 523264
      %v958 = vsel %vm956, %v850, 0
      %v961 = vsel %vm956, %v852, 0
      %963 = vmatprep.subr.bf16.mxu0 0
      %964 = vmatpush1.bf16.msra.mxu0 %v939
      %965 = vmatprep.subr.bf16.mxu0 0
      %966 = vmatpush1.bf16.msra.mxu0 %v938
      %967 = vmatprep.subr.bf16.mxu0 0
      %968 = vmatpush1.bf16.msra.mxu0 %v937
      %969 = vmatprep.subr.bf16.mxu0 0
      %970 = vmatpush1.bf16.msra.mxu0 %v936
      %971 = vmatprep.subr.bf16.mxu0 0
      %972 = vmatpush1.bf16.msra.mxu0 %v935
      %973 = vmatprep.subr.bf16.mxu0 0
      %974 = vmatpush1.bf16.msra.mxu0 %v934
      %975 = vmatprep.subr.bf16.mxu0 0
      %976 = vmatpush1.bf16.msra.mxu0 %v933
      %977 = vmatprep.subr.bf16.mxu0 0
      %978 = vmatpush1.bf16.msra.mxu0 %v932
      %979 = vmatprep.subr.bf16.mxu0 0
      %980 = vmatpush2.bf16.msra.mxu0 0
      %981 = vmatprep.subr.bf16.mxu0 0
      %982 = vmatpush2.bf16.msra.mxu0 0
      %983 = vmatprep.subr.bf16.mxu0 0
      %984 = vmatpush2.bf16.msra.mxu0 0
      %985 = vmatprep.subr.bf16.mxu0 0
      %986 = vmatpush2.bf16.msra.mxu0 0
      %987 = vmatprep.subr.bf16.mxu0 0
      %988 = vmatpush2.bf16.msra.mxu0 %v943
      %989 = vmatprep.subr.bf16.mxu0 0
      %990 = vmatpush2.bf16.msra.mxu0 %v942
      %991 = vmatprep.subr.bf16.mxu0 0
      %992 = vmatpush2.bf16.msra.mxu0 %v941
      %993 = vmatprep.subr.bf16.mxu0 0
      %994 = vmatpush2.bf16.msra.mxu0 %v940
      %995 = vmatprep.mubr.bf16.mxu0 %v958
      %996 = vmatmul.mubr.bf16.gmra.mxu0 %v849
      %v997 = vpop.f32.mrf.mxu0
      %v998 = vadd.f32 %v882, %v997
      %v999 = vpop.f32.mrf.mxu0
      %v1000 = vpop.f32.mrf.mxu0
      %v1001 = vadd.f32 %v882, %v1000
      %v1002 = vpop.f32.mrf.mxu0
      %1003 = vmatprep.mubr.bf16.mxu0 %v961
      %1004 = vmatmul.mubr.bf16.gmra.mxu0 %v851
      %v1005 = vpop.f32.mrf.mxu0
      %v1006 = vadd.f32 %v882, %v1005
      %v1007 = vpop.f32.mrf.mxu0
      %v1008 = vpop.f32.mrf.mxu0
      %v1009 = vpop.f32.mrf.mxu0
      %1010 = vdwg.mxu0
      %v1011 = vld [vmem:[%s3] sm:$0xff]
      %v1012 = vld [vmem:[%s3 + $0x8] sm:$0xff]
      %v1013 = vld [vmem:[%s3 + $0x10] sm:$0x1]
      %v1014 = vadd.f32 %v998, %v1011
      %v1015 = vadd.f32 %v1001, %v1012
      %v1016 = vadd.f32 %v1006, %v1013
      %vm1017 = vcmask 261120
      %v1018 = vsel %vm1017, %v1014, 0.0
      %1019 = vadd.xlane.f32.xlu0 %v1018
      %v1020 = vpop.xlane.xlu0 %1019
      %v1021 = vsel %vm1017, %v1015, 0.0
      %1022 = vadd.xlane.f32.xlu0 %v1021
      %v1023 = vpop.xlane.xlu0 %1022
      %vm1024 = vcmask 253952
      %v1025 = vsel %vm1024, %v1016, 0.0
      %1026 = vadd.xlane.f32.xlu0 %v1025
      %v1027 = vpop.xlane.xlu0 %1026
      %v1028 = vrcp.pop 32.0
      %v1029 = vmul.f32 %v1020, %v1028
      %v1030 = vmul.f32 %v1023, %v1028
      %v1031 = vmul.f32 %v1027, %v1028
      %v1032 = vsub.f32 %v1014, %v1029
      %v1033 = vsub.f32 %v1015, %v1030
      %v1034 = vsub.f32 %v1016, %v1031
      %v1035 = vmul.f32 %v1032, %v1032
      %v1036 = vmul.f32 %v1033, %v1033
      %v1037 = vmul.f32 %v1034, %v1034
      %v1038 = vsel %vm1017, %v1035, 0.0
      %1039 = vadd.xlane.f32.xlu0 %v1038
      %v1040 = vpop.xlane.xlu0 %1039
      %v1041 = vsel %vm1017, %v1036, 0.0
      %1042 = vadd.xlane.f32.xlu0 %v1041
      %v1043 = vpop.xlane.xlu0 %1042
      %v1044 = vsel %vm1024, %v1037, 0.0
      %1045 = vadd.xlane.f32.xlu0 %v1044
      %v1046 = vpop.xlane.xlu0 %1045
      %v1047 = vmul.f32 %v1040, %v1028
      %v1048 = vmul.f32 %v1043, %v1028
      %v1049 = vmul.f32 %v1046, %v1028
      %v1050 = vadd.f32 %v1047, 1e-06
      %v1051 = vadd.f32 %v1048, 1e-06
      %v1052 = vadd.f32 %v1049, 1e-06
      %v1053 = vrsqrt.pop %v1050
      %v1054 = vrsqrt.pop %v1051
      %v1055 = vrsqrt.pop %v1052
      %v1056 = vmul.f32 %v1032, %v1053
      %v1057 = vmul.f32 %v1033, %v1054
      %v1058 = vmul.f32 %v1034, %v1055
      %v1059 = vld [vmem:[%s4] sm:$0x1]
      %v1061 = vlaneseq
      %v1062 = vshrl.u32 %v1061, 7
      %v1063 = vsub.s32 0, %v1062
      %v1064 = vrot.slane %v1059, %v1063
      %v1066 = vmul.f32 %v1056, %v1064
      %v1067 = vmul.f32 %v1057, %v1064
      %v1068 = vmul.f32 %v1058, %v1064
      %v1069 = vld [vmem:[%s5] sm:$0x1]
      %v1071 = vlaneseq
      %v1072 = vshrl.u32 %v1071, 7
      %v1073 = vsub.s32 0, %v1072
      %v1074 = vrot.slane %v1069, %v1073
      %v1076 = vadd.f32 %v1066, %v1074
      %v1077 = vadd.f32 %v1067, %v1074
      %v1078 = vadd.f32 %v1068, %v1074
      %v1079 = vpack.c.bf16 %v1077, %v1076
      %v1080 = vpack.c.bf16 %v1078, %v1078
      %v1081 = vld [vmem:[%s6] sm:$0xf]
      %v1082 = vld [vmem:[%s6 + $0x4] sm:$0xf]
      %v1083 = vld [vmem:[%s6 + $0x8] sm:$0xf]
      %v1084 = vld [vmem:[%s6 + $0xc] sm:$0xf]
      %v1085 = vld [vmem:[%s7] sm:$0x1]
      %v1087 = vlaneseq
      %v1088 = vshrl.u32 %v1087, 7
      %v1089 = vsub.s32 0, %v1088
      %v1090 = vrot.slane %v1085, %v1089
      %v1096 = vunpack.c.l.b16 %v1081
      %v1097 = vunpack.c.l.b16 %v1082
      %v1098 = vunpack.c.l.b16 %v1083
      %v1099 = vunpack.c.l.b16 %v1084
      %v1100 = vpack.c.b16 %v1097, %v1096
      %v1101 = vpack.c.b16 %v1099, %v1098
      %v1105 = vsel %vm1017, %v1079, 0
      %v1108 = vsel %vm1017, %v1080, 0
      %1110 = vmatprep.subr.bf16.mxu0 0
      %1111 = vmatpush1.bf16.msra.mxu0 0
      %1112 = vmatprep.subr.bf16.mxu0 0
      %1113 = vmatpush1.bf16.msra.mxu0 0
      %1114 = vmatprep.subr.bf16.mxu0 0
      %1115 = vmatpush1.bf16.msra.mxu0 0
      %1116 = vmatprep.subr.bf16.mxu0 0
      %1117 = vmatpush1.bf16.msra.mxu0 0
      %1118 = vmatprep.subr.bf16.mxu0 0
      %1119 = vmatpush1.bf16.msra.mxu0 0
      %1120 = vmatprep.subr.bf16.mxu0 0
      %1121 = vmatpush1.bf16.msra.mxu0 0
      %1122 = vmatprep.subr.bf16.mxu0 0
      %1123 = vmatpush1.bf16.msra.mxu0 %v1101
      %1124 = vmatprep.subr.bf16.mxu0 0
      %1125 = vmatpush1.bf16.msra.mxu0 %v1100
      %1126 = vmatprep.subr.bf16.mxu0 0
      %1127 = vmatpush2.bf16.msra.mxu0 0
      %1128 = vmatprep.subr.bf16.mxu0 0
      %1129 = vmatpush2.bf16.msra.mxu0 0
      %1130 = vmatprep.subr.bf16.mxu0 0
      %1131 = vmatpush2.bf16.msra.mxu0 0
      %1132 = vmatprep.subr.bf16.mxu0 0
      %1133 = vmatpush2.bf16.msra.mxu0 0
      %1134 = vmatprep.subr.bf16.mxu0 0
      %1135 = vmatpush2.bf16.msra.mxu0 0
      %1136 = vmatprep.subr.bf16.mxu0 0
      %1137 = vmatpush2.bf16.msra.mxu0 0
      %1138 = vmatprep.subr.bf16.mxu0 0
      %1139 = vmatpush2.bf16.msra.mxu0 0
      %1140 = vmatprep.subr.bf16.mxu0 0
      %1141 = vmatpush2.bf16.msra.mxu0 0
      %1142 = vmatprep.mubr.bf16.mxu0 0
      %1143 = vmatmul.mubr.bf16.gmra.mxu0 %v1105
      %v1144 = vpop.f32.mrf.mxu0
      %v1145 = vadd.f32 %v1090, %v1144
      %v1146 = vpop.f32.mrf.mxu0
      %v1147 = vpop.f32.mrf.mxu0
      %v1148 = vadd.f32 %v1090, %v1147
      %v1149 = vpop.f32.mrf.mxu0
      %1150 = vmatprep.mubr.bf16.mxu0 0
      %1151 = vmatmul.mubr.bf16.gmra.mxu0 %v1108
      %v1152 = vpop.f32.mrf.mxu0
      %v1153 = vadd.f32 %v1090, %v1152
      %v1154 = vpop.f32.mrf.mxu0
      %v1155 = vpop.f32.mrf.mxu0
      %v1156 = vpop.f32.mrf.mxu0
      %1157 = vdwg.mxu0
      %v1158 = vld [vmem:[%s8] sm:$0xf]
      %v1159 = vld [vmem:[%s8 + $0x4] sm:$0xf]
      %v1160 = vld [vmem:[%s8 + $0x8] sm:$0xf]
      %v1161 = vld [vmem:[%s8 + $0xc] sm:$0xf]
      %v1162 = vld [vmem:[%s9] sm:$0x1]
      %v1164 = vlaneseq
      %v1165 = vshrl.u32 %v1164, 7
      %v1166 = vsub.s32 0, %v1165
      %v1167 = vrot.slane %v1162, %v1166
      %v1173 = vunpack.c.l.b16 %v1158
      %v1174 = vunpack.c.l.b16 %v1159
      %v1175 = vunpack.c.l.b16 %v1160
      %v1176 = vunpack.c.l.b16 %v1161
      %v1177 = vpack.c.b16 %v1174, %v1173
      %v1178 = vpack.c.b16 %v1176, %v1175
      %1181 = vmatprep.subr.bf16.mxu0 0
      %1182 = vmatpush1.bf16.msra.mxu0 0
      %1183 = vmatprep.subr.bf16.mxu0 0
      %1184 = vmatpush1.bf16.msra.mxu0 0
      %1185 = vmatprep.subr.bf16.mxu0 0
      %1186 = vmatpush1.bf16.msra.mxu0 0
      %1187 = vmatprep.subr.bf16.mxu0 0
      %1188 = vmatpush1.bf16.msra.mxu0 0
      %1189 = vmatprep.subr.bf16.mxu0 0
      %1190 = vmatpush1.bf16.msra.mxu0 0
      %1191 = vmatprep.subr.bf16.mxu0 0
      %1192 = vmatpush1.bf16.msra.mxu0 0
      %1193 = vmatprep.subr.bf16.mxu0 0
      %1194 = vmatpush1.bf16.msra.mxu0 %v1178
      %1195 = vmatprep.subr.bf16.mxu0 0
      %1196 = vmatpush1.bf16.msra.mxu0 %v1177
      %1197 = vmatprep.subr.bf16.mxu0 0
      %1198 = vmatpush2.bf16.msra.mxu0 0
      %1199 = vmatprep.subr.bf16.mxu0 0
      %1200 = vmatpush2.bf16.msra.mxu0 0
      %1201 = vmatprep.subr.bf16.mxu0 0
      %1202 = vmatpush2.bf16.msra.mxu0 0
      %1203 = vmatprep.subr.bf16.mxu0 0
      %1204 = vmatpush2.bf16.msra.mxu0 0
      %1205 = vmatprep.subr.bf16.mxu0 0
      %1206 = vmatpush2.bf16.msra.mxu0 0
      %1207 = vmatprep.subr.bf16.mxu0 0
      %1208 = vmatpush2.bf16.msra.mxu0 0
      %1209 = vmatprep.subr.bf16.mxu0 0
      %1210 = vmatpush2.bf16.msra.mxu0 0
      %1211 = vmatprep.subr.bf16.mxu0 0
      %1212 = vmatpush2.bf16.msra.mxu0 0
      %1213 = vmatprep.mubr.bf16.mxu0 0
      %1214 = vmatmul.mubr.bf16.gmra.mxu0 %v1105
      %v1215 = vpop.f32.mrf.mxu0
      %v1216 = vadd.f32 %v1167, %v1215
      %v1217 = vpop.f32.mrf.mxu0
      %v1218 = vpop.f32.mrf.mxu0
      %v1219 = vadd.f32 %v1167, %v1218
      %v1220 = vpop.f32.mrf.mxu0
      %1221 = vmatprep.mubr.bf16.mxu0 0
      %1222 = vmatmul.mubr.bf16.gmra.mxu0 %v1108
      %v1223 = vpop.f32.mrf.mxu0
      %v1224 = vadd.f32 %v1167, %v1223
      %v1225 = vpop.f32.mrf.mxu0
      %v1226 = vpop.f32.mrf.mxu0
      %v1227 = vpop.f32.mrf.mxu0
      %1228 = vdwg.mxu0
      %v1229 = vld [vmem:[%s10] sm:$0xf]
      %v1230 = vld [vmem:[%s10 + $0x4] sm:$0xf]
      %v1231 = vld [vmem:[%s10 + $0x8] sm:$0xf]
      %v1232 = vld [vmem:[%s10 + $0xc] sm:$0xf]
      %v1233 = vld [vmem:[%s11] sm:$0x1]
      %v1235 = vlaneseq
      %v1236 = vshrl.u32 %v1235, 7
      %v1237 = vsub.s32 0, %v1236
      %v1238 = vrot.slane %v1233, %v1237
      %v1244 = vunpack.c.l.b16 %v1229
      %v1245 = vunpack.c.l.b16 %v1230
      %v1246 = vunpack.c.l.b16 %v1231
      %v1247 = vunpack.c.l.b16 %v1232
      %v1248 = vpack.c.b16 %v1245, %v1244
      %v1249 = vpack.c.b16 %v1247, %v1246
      %1252 = vmatprep.subr.bf16.mxu0 0
      %1253 = vmatpush1.bf16.msra.mxu0 0
      %1254 = vmatprep.subr.bf16.mxu0 0
      %1255 = vmatpush1.bf16.msra.mxu0 0
      %1256 = vmatprep.subr.bf16.mxu0 0
      %1257 = vmatpush1.bf16.msra.mxu0 0
      %1258 = vmatprep.subr.bf16.mxu0 0
      %1259 = vmatpush1.bf16.msra.mxu0 0
      %1260 = vmatprep.subr.bf16.mxu0 0
      %1261 = vmatpush1.bf16.msra.mxu0 0
      %1262 = vmatprep.subr.bf16.mxu0 0
      %1263 = vmatpush1.bf16.msra.mxu0 0
      %1264 = vmatprep.subr.bf16.mxu0 0
      %1265 = vmatpush1.bf16.msra.mxu0 %v1249
      %1266 = vmatprep.subr.bf16.mxu0 0
      %1267 = vmatpush1.bf16.msra.mxu0 %v1248
      %1268 = vmatprep.subr.bf16.mxu0 0
      %1269 = vmatpush2.bf16.msra.mxu0 0
      %1270 = vmatprep.subr.bf16.mxu0 0
      %1271 = vmatpush2.bf16.msra.mxu0 0
      %1272 = vmatprep.subr.bf16.mxu0 0
      %1273 = vmatpush2.bf16.msra.mxu0 0
      %1274 = vmatprep.subr.bf16.mxu0 0
      %1275 = vmatpush2.bf16.msra.mxu0 0
      %1276 = vmatprep.subr.bf16.mxu0 0
      %1277 = vmatpush2.bf16.msra.mxu0 0
      %1278 = vmatprep.subr.bf16.mxu0 0
      %1279 = vmatpush2.bf16.msra.mxu0 0
      %1280 = vmatprep.subr.bf16.mxu0 0
      %1281 = vmatpush2.bf16.msra.mxu0 0
      %1282 = vmatprep.subr.bf16.mxu0 0
      %1283 = vmatpush2.bf16.msra.mxu0 0
      %1284 = vmatprep.mubr.bf16.mxu0 0
      %1285 = vmatmul.mubr.bf16.gmra.mxu0 %v1105
      %v1286 = vpop.f32.mrf.mxu0
      %v1287 = vadd.f32 %v1238, %v1286
      %v1288 = vpop.f32.mrf.mxu0
      %v1289 = vpop.f32.mrf.mxu0
      %v1290 = vadd.f32 %v1238, %v1289
      %v1291 = vpop.f32.mrf.mxu0
      %1292 = vmatprep.mubr.bf16.mxu0 0
      %1293 = vmatmul.mubr.bf16.gmra.mxu0 %v1108
      %v1294 = vpop.f32.mrf.mxu0
      %v1295 = vadd.f32 %v1238, %v1294
      %v1296 = vpop.f32.mrf.mxu0
      %v1297 = vpop.f32.mrf.mxu0
      %v1298 = vpop.f32.mrf.mxu0
      %1299 = vdwg.mxu0
      %v1300 = vlaneseq
      %v1301 = vand.u32 %v1300, 127
      %vm1302 = vcmp.ge.s32.totalorder %v1301, 0
      %vm1303 = vcmp.lt.s32.totalorder %v1301, 8
      %vm1304 = vmand %vm1302, %vm1303
      %v1305 = vsel %vm1304, %v1145, 0.0
      %v1306 = vsel %vm1304, %v1148, 0.0
      %v1307 = vsel %vm1304, %v1153, 0.0
      %v1308 = vsel %vm1304, %v1287, 0.0
      %v1309 = vsel %vm1304, %v1290, 0.0
      %v1310 = vsel %vm1304, %v1295, 0.0
      %v1312 = vsel %vm1017, %v1305, 0
      %v1315 = vsel %vm1017, %v1306, 0
      %v1318 = vsel %vm1017, %v1307, 0
      %v1321 = vsel %vm1017, %v1216, 0
      %v1324 = vsel %vm1017, %v1219, 0
      %v1327 = vsel %vm1017, %v1224, 0
      %1329 = vmatprep.subr.mxu0 0.0
      %1330 = vmatpush1.xpose.msra.mxu0 0.0
      %1331 = vmatprep.subr.mxu0 0.0
      %1332 = vmatpush1.xpose.msra.mxu0 0.0
      %1333 = vmatprep.subr.mxu0 0.0
      %1334 = vmatpush1.xpose.msra.mxu0 0.0
      %1335 = vmatprep.subr.mxu0 0.0
      %1336 = vmatpush1.xpose.msra.mxu0 0.0
      %1337 = vmatprep.subr.mxu0 0.0
      %1338 = vmatpush1.xpose.msra.mxu0 0.0
      %1339 = vmatprep.subr.mxu0 0.0
      %1340 = vmatpush1.xpose.msra.mxu0 0.0
      %1341 = vmatprep.subr.mxu0 0.0
      %1342 = vmatpush1.xpose.msra.mxu0 0.0
      %1343 = vmatprep.subr.mxu0 0.0
      %1344 = vmatpush1.xpose.msra.mxu0 0.0
      %1345 = vmatprep.subr.mxu0 0.0
      %1346 = vmatpush1.xpose.msra.mxu0 0.0
      %1347 = vmatprep.subr.mxu0 0.0
      %1348 = vmatpush1.xpose.msra.mxu0 0.0
      %1349 = vmatprep.subr.mxu0 0.0
      %1350 = vmatpush1.xpose.msra.mxu0 0.0
      %1351 = vmatprep.subr.mxu0 0.0
      %1352 = vmatpush1.xpose.msra.mxu0 0.0
      %1353 = vmatprep.subr.mxu0 0.0
      %1354 = vmatpush1.xpose.msra.mxu0 0.0
      %1355 = vmatprep.subr.mxu0 0.0
      %1356 = vmatpush1.xpose.msra.mxu0 %v1327
      %1357 = vmatprep.subr.mxu0 0.0
      %1358 = vmatpush1.xpose.msra.mxu0 %v1324
      %1359 = vmatprep.subr.mxu0 0.0
      %1360 = vmatpush1.xpose.msra.mxu0 %v1321
      %1361 = vmatprep.subr.mxu0 0.0
      %1362 = vmatpush2.xpose.msra.mxu0 0.0
      %1363 = vmatprep.subr.mxu0 0.0
      %1364 = vmatpush2.xpose.msra.mxu0 0.0
      %1365 = vmatprep.subr.mxu0 0.0
      %1366 = vmatpush2.xpose.msra.mxu0 0.0
      %1367 = vmatprep.subr.mxu0 0.0
      %1368 = vmatpush2.xpose.msra.mxu0 0.0
      %1369 = vmatprep.subr.mxu0 0.0
      %1370 = vmatpush2.xpose.msra.mxu0 0.0
      %1371 = vmatprep.subr.mxu0 0.0
      %1372 = vmatpush2.xpose.msra.mxu0 0.0
      %1373 = vmatprep.subr.mxu0 0.0
      %1374 = vmatpush2.xpose.msra.mxu0 0.0
      %1375 = vmatprep.subr.mxu0 0.0
      %1376 = vmatpush2.xpose.msra.mxu0 0.0
      %1377 = vmatprep.subr.mxu0 0.0
      %1378 = vmatpush2.xpose.msra.mxu0 0.0
      %1379 = vmatprep.subr.mxu0 0.0
      %1380 = vmatpush2.xpose.msra.mxu0 0.0
      %1381 = vmatprep.subr.mxu0 0.0
      %1382 = vmatpush2.xpose.msra.mxu0 0.0
      %1383 = vmatprep.subr.mxu0 0.0
      %1384 = vmatpush2.xpose.msra.mxu0 0.0
      %1385 = vmatprep.subr.mxu0 0.0
      %1386 = vmatpush2.xpose.msra.mxu0 0.0
      %1387 = vmatprep.subr.mxu0 0.0
      %1388 = vmatpush2.xpose.msra.mxu0 0.0
      %1389 = vmatprep.subr.mxu0 0.0
      %1390 = vmatpush2.xpose.msra.mxu0 0.0
      %1391 = vmatprep.subr.mxu0 0.0
      %1392 = vmatpush2.xpose.msra.mxu0 0.0
      %1393 = vmatprep.mubr.f32.mxu0 0.0
      %1394 = vmatmul.mubr.f32.gmra.mxu0 %v1312
      %v1395 = vpop.f32.mrf.mxu0
      %v1396 = vadd.f32 0.0, %v1395
      %v1397 = vpop.f32.mrf.mxu0
      %1398 = vmatprep.mubr.f32.mxu0 0.0
      %1399 = vmatmul.mubr.f32.gmra.mxu0 %v1315
      %v1400 = vpop.f32.mrf.mxu0
      %v1401 = vadd.f32 0.0, %v1400
      %v1402 = vpop.f32.mrf.mxu0
      %1403 = vmatprep.mubr.f32.mxu0 0.0
      %1404 = vmatmul.mubr.f32.gmra.mxu0 %v1318
      %v1405 = vpop.f32.mrf.mxu0
      %v1406 = vadd.f32 0.0, %v1405
      %v1407 = vpop.f32.mrf.mxu0
      %1408 = vdwg.mxu0
      %v1409 = vmul.f32 %v1396, 0.35355338
      %v1410 = vmul.f32 %v1401, 0.35355338
      %v1411 = vmul.f32 %v1406, 0.35355338
      %vm1412 = vcmask 138240
      %v1413 = vsel %vm1412, %v1409, -inf
      %1414 = vmax.xlane.f32.xlu0 %v1413
      %v1415 = vpop.xlane.xlu0 %1414
      %v1416 = vsel %vm1412, %v1410, -inf
      %1417 = vmax.xlane.f32.xlu0 %v1416
      %v1418 = vpop.xlane.xlu0 %1417
      %vm1419 = vcmask 131072
      %v1420 = vsel %vm1419, %v1411, -inf
      %1421 = vmax.xlane.f32.xlu0 %v1420
      %v1422 = vpop.xlane.xlu0 %1421
      %v1423 = vsub.f32 %v1409, %v1415
      %v1424 = vsub.f32 %v1410, %v1418
      %v1425 = vsub.f32 %v1411, %v1422
      %v1426 = vmul.f32 %v1423, 1.442695
      %v1427 = vpow.pop %v1426
      %v1428 = vmul.f32 %v1424, 1.442695
      %v1429 = vpow.pop %v1428
      %v1430 = vmul.f32 %v1425, 1.442695
      %v1431 = vpow.pop %v1430
      %v1432 = vsel %vm1412, %v1427, 0.0
      %1433 = vadd.xlane.f32.xlu0 %v1432
      %v1434 = vpop.xlane.xlu0 %1433
      %v1435 = vsel %vm1412, %v1429, 0.0
      %1436 = vadd.xlane.f32.xlu0 %v1435
      %v1437 = vpop.xlane.xlu0 %1436
      %v1438 = vsel %vm1419, %v1431, 0.0
      %1439 = vadd.xlane.f32.xlu0 %v1438
      %v1440 = vpop.xlane.xlu0 %1439
      %v1441 = vrcp.pop %v1434
      %v1442 = vmul.f32 %v1427, %v1441
      %v1443 = vrcp.pop %v1437
      %v1444 = vmul.f32 %v1429, %v1443
      %v1445 = vrcp.pop %v1440
      %v1446 = vmul.f32 %v1431, %v1445
      %vm1447 = vcmp.ge.s32.totalorder %v1301, 8
      %vm1448 = vcmp.lt.s32.totalorder %v1301, 16
      %vm1449 = vmand %vm1447, %vm1448
      %v1450 = vsel %vm1449, %v1145, 0.0
      %v1451 = vsel %vm1449, %v1148, 0.0
      %v1452 = vsel %vm1449, %v1153, 0.0
      %v1453 = vsel %vm1449, %v1287, 0.0
      %v1454 = vsel %vm1449, %v1290, 0.0
      %v1455 = vsel %vm1449, %v1295, 0.0
      %v1457 = vsel %vm1017, %v1450, 0
      %v1460 = vsel %vm1017, %v1451, 0
      %v1463 = vsel %vm1017, %v1452, 0
      %1465 = vmatprep.subr.mxu0 0.0
      %1466 = vmatpush1.xpose.msra.mxu0 0.0
      %1467 = vmatprep.subr.mxu0 0.0
      %1468 = vmatpush1.xpose.msra.mxu0 0.0
      %1469 = vmatprep.subr.mxu0 0.0
      %1470 = vmatpush1.xpose.msra.mxu0 0.0
      %1471 = vmatprep.subr.mxu0 0.0
      %1472 = vmatpush1.xpose.msra.mxu0 0.0
      %1473 = vmatprep.subr.mxu0 0.0
      %1474 = vmatpush1.xpose.msra.mxu0 0.0
      %1475 = vmatprep.subr.mxu0 0.0
      %1476 = vmatpush1.xpose.msra.mxu0 0.0
      %1477 = vmatprep.subr.mxu0 0.0
      %1478 = vmatpush1.xpose.msra.mxu0 0.0
      %1479 = vmatprep.subr.mxu0 0.0
      %1480 = vmatpush1.xpose.msra.mxu0 0.0
      %1481 = vmatprep.subr.mxu0 0.0
      %1482 = vmatpush1.xpose.msra.mxu0 0.0
      %1483 = vmatprep.subr.mxu0 0.0
      %1484 = vmatpush1.xpose.msra.mxu0 0.0
      %1485 = vmatprep.subr.mxu0 0.0
      %1486 = vmatpush1.xpose.msra.mxu0 0.0
      %1487 = vmatprep.subr.mxu0 0.0
      %1488 = vmatpush1.xpose.msra.mxu0 0.0
      %1489 = vmatprep.subr.mxu0 0.0
      %1490 = vmatpush1.xpose.msra.mxu0 0.0
      %1491 = vmatprep.subr.mxu0 0.0
      %1492 = vmatpush1.xpose.msra.mxu0 %v1327
      %1493 = vmatprep.subr.mxu0 0.0
      %1494 = vmatpush1.xpose.msra.mxu0 %v1324
      %1495 = vmatprep.subr.mxu0 0.0
      %1496 = vmatpush1.xpose.msra.mxu0 %v1321
      %1497 = vmatprep.subr.mxu0 0.0
      %1498 = vmatpush2.xpose.msra.mxu0 0.0
      %1499 = vmatprep.subr.mxu0 0.0
      %1500 = vmatpush2.xpose.msra.mxu0 0.0
      %1501 = vmatprep.subr.mxu0 0.0
      %1502 = vmatpush2.xpose.msra.mxu0 0.0
      %1503 = vmatprep.subr.mxu0 0.0
      %1504 = vmatpush2.xpose.msra.mxu0 0.0
      %1505 = vmatprep.subr.mxu0 0.0
      %1506 = vmatpush2.xpose.msra.mxu0 0.0
      %1507 = vmatprep.subr.mxu0 0.0
      %1508 = vmatpush2.xpose.msra.mxu0 0.0
      %1509 = vmatprep.subr.mxu0 0.0
      %1510 = vmatpush2.xpose.msra.mxu0 0.0
      %1511 = vmatprep.subr.mxu0 0.0
      %1512 = vmatpush2.xpose.msra.mxu0 0.0
      %1513 = vmatprep.subr.mxu0 0.0
      %1514 = vmatpush2.xpose.msra.mxu0 0.0
      %1515 = vmatprep.subr.mxu0 0.0
      %1516 = vmatpush2.xpose.msra.mxu0 0.0
      %1517 = vmatprep.subr.mxu0 0.0
      %1518 = vmatpush2.xpose.msra.mxu0 0.0
      %1519 = vmatprep.subr.mxu0 0.0
      %1520 = vmatpush2.xpose.msra.mxu0 0.0
      %1521 = vmatprep.subr.mxu0 0.0
      %1522 = vmatpush2.xpose.msra.mxu0 0.0
      %1523 = vmatprep.subr.mxu0 0.0
      %1524 = vmatpush2.xpose.msra.mxu0 0.0
      %1525 = vmatprep.subr.mxu0 0.0
      %1526 = vmatpush2.xpose.msra.mxu0 0.0
      %1527 = vmatprep.subr.mxu0 0.0
      %1528 = vmatpush2.xpose.msra.mxu0 0.0
      %1529 = vmatprep.mubr.f32.mxu0 0.0
      %1530 = vmatmul.mubr.f32.gmra.mxu0 %v1457
      %v1531 = vpop.f32.mrf.mxu0
      %v1532 = vadd.f32 0.0, %v1531
      %v1533 = vpop.f32.mrf.mxu0
      %1534 = vmatprep.mubr.f32.mxu0 0.0
      %1535 = vmatmul.mubr.f32.gmra.mxu0 %v1460
      %v1536 = vpop.f32.mrf.mxu0
      %v1537 = vadd.f32 0.0, %v1536
      %v1538 = vpop.f32.mrf.mxu0
      %1539 = vmatprep.mubr.f32.mxu0 0.0
      %1540 = vmatmul.mubr.f32.gmra.mxu0 %v1463
      %v1541 = vpop.f32.mrf.mxu0
      %v1542 = vadd.f32 0.0, %v1541
      %v1543 = vpop.f32.mrf.mxu0
      %1544 = vdwg.mxu0
      %v1545 = vmul.f32 %v1532, 0.35355338
      %v1546 = vmul.f32 %v1537, 0.35355338
      %v1547 = vmul.f32 %v1542, 0.35355338
      %v1548 = vsel %vm1412, %v1545, -inf
      %1549 = vmax.xlane.f32.xlu0 %v1548
      %v1550 = vpop.xlane.xlu0 %1549
      %v1551 = vsel %vm1412, %v1546, -inf
      %1552 = vmax.xlane.f32.xlu0 %v1551
      %v1553 = vpop.xlane.xlu0 %1552
      %v1554 = vsel %vm1419, %v1547, -inf
      %1555 = vmax.xlane.f32.xlu0 %v1554
      %v1556 = vpop.xlane.xlu0 %1555
      %v1557 = vsub.f32 %v1545, %v1550
      %v1558 = vsub.f32 %v1546, %v1553
      %v1559 = vsub.f32 %v1547, %v1556
      %v1560 = vmul.f32 %v1557, 1.442695
      %v1561 = vpow.pop %v1560
      %v1562 = vmul.f32 %v1558, 1.442695
      %v1563 = vpow.pop %v1562
      %v1564 = vmul.f32 %v1559, 1.442695
      %v1565 = vpow.pop %v1564
      %v1566 = vsel %vm1412, %v1561, 0.0
      %1567 = vadd.xlane.f32.xlu0 %v1566
      %v1568 = vpop.xlane.xlu0 %1567
      %v1569 = vsel %vm1412, %v1563, 0.0
      %1570 = vadd.xlane.f32.xlu0 %v1569
      %v1571 = vpop.xlane.xlu0 %1570
      %v1572 = vsel %vm1419, %v1565, 0.0
      %1573 = vadd.xlane.f32.xlu0 %v1572
      %v1574 = vpop.xlane.xlu0 %1573
      %v1575 = vrcp.pop %v1568
      %v1576 = vmul.f32 %v1561, %v1575
      %v1577 = vrcp.pop %v1571
      %v1578 = vmul.f32 %v1563, %v1577
      %v1579 = vrcp.pop %v1574
      %v1580 = vmul.f32 %v1565, %v1579
      %v1582 = vsel %vm1412, %v1576, 0
      %v1585 = vsel %vm1412, %v1578, 0
      %v1588 = vsel %vm1412, %v1580, 0
      %vm1590 = vcmask 1040384
      %v1592 = vsel %vm1590, %v1455, 0
      %1594 = vmatprep.subr.mxu0 0.0
      %1595 = vmatpush1.msra.mxu0 0.0
      %1596 = vmatprep.subr.mxu0 0.0
      %1597 = vmatpush1.msra.mxu0 0.0
      %1598 = vmatprep.subr.mxu0 0.0
      %1599 = vmatpush1.msra.mxu0 0.0
      %1600 = vmatprep.subr.mxu0 0.0
      %1601 = vmatpush1.msra.mxu0 0.0
      %1602 = vmatprep.subr.mxu0 0.0
      %1603 = vmatpush1.msra.mxu0 0.0
      %1604 = vmatprep.subr.mxu0 0.0
      %1605 = vmatpush1.msra.mxu0 0.0
      %1606 = vmatprep.subr.mxu0 0.0
      %1607 = vmatpush1.msra.mxu0 0.0
      %1608 = vmatprep.subr.mxu0 0.0
      %1609 = vmatpush1.msra.mxu0 0.0
      %1610 = vmatprep.subr.mxu0 0.0
      %1611 = vmatpush1.msra.mxu0 0.0
      %1612 = vmatprep.subr.mxu0 0.0
      %1613 = vmatpush1.msra.mxu0 0.0
      %1614 = vmatprep.subr.mxu0 0.0
      %1615 = vmatpush1.msra.mxu0 0.0
      %1616 = vmatprep.subr.mxu0 0.0
      %1617 = vmatpush1.msra.mxu0 0.0
      %1618 = vmatprep.subr.mxu0 0.0
      %1619 = vmatpush1.msra.mxu0 0.0
      %1620 = vmatprep.subr.mxu0 0.0
      %1621 = vmatpush1.msra.mxu0 %v1592
      %1622 = vmatprep.subr.mxu0 0.0
      %1623 = vmatpush1.msra.mxu0 %v1454
      %1624 = vmatprep.subr.mxu0 0.0
      %1625 = vmatpush1.msra.mxu0 %v1453
      %1626 = vmatprep.subr.mxu0 0.0
      %1627 = vmatpush2.msra.mxu0 0.0
      %1628 = vmatprep.subr.mxu0 0.0
      %1629 = vmatpush2.msra.mxu0 0.0
      %1630 = vmatprep.subr.mxu0 0.0
      %1631 = vmatpush2.msra.mxu0 0.0
      %1632 = vmatprep.subr.mxu0 0.0
      %1633 = vmatpush2.msra.mxu0 0.0
      %1634 = vmatprep.subr.mxu0 0.0
      %1635 = vmatpush2.msra.mxu0 0.0
      %1636 = vmatprep.subr.mxu0 0.0
      %1637 = vmatpush2.msra.mxu0 0.0
      %1638 = vmatprep.subr.mxu0 0.0
      %1639 = vmatpush2.msra.mxu0 0.0
      %1640 = vmatprep.subr.mxu0 0.0
      %1641 = vmatpush2.msra.mxu0 0.0
      %1642 = vmatprep.subr.mxu0 0.0
      %1643 = vmatpush2.msra.mxu0 0.0
      %1644 = vmatprep.subr.mxu0 0.0
      %1645 = vmatpush2.msra.mxu0 0.0
      %1646 = vmatprep.subr.mxu0 0.0
      %1647 = vmatpush2.msra.mxu0 0.0
      %1648 = vmatprep.subr.mxu0 0.0
      %1649 = vmatpush2.msra.mxu0 0.0
      %1650 = vmatprep.subr.mxu0 0.0
      %1651 = vmatpush2.msra.mxu0 0.0
      %1652 = vmatprep.subr.mxu0 0.0
      %1653 = vmatpush2.msra.mxu0 0.0
      %1654 = vmatprep.subr.mxu0 0.0
      %1655 = vmatpush2.msra.mxu0 0.0
      %1656 = vmatprep.subr.mxu0 0.0
      %1657 = vmatpush2.msra.mxu0 0.0
      %1658 = vmatprep.mubr.f32.mxu0 0.0
      %1659 = vmatmul.mubr.f32.gmra.mxu0 %v1582
      %v1660 = vpop.f32.mrf.mxu0
      %v1661 = vadd.f32 0.0, %v1660
      %v1662 = vpop.f32.mrf.mxu0
      %1663 = vmatprep.mubr.f32.mxu0 0.0
      %1664 = vmatmul.mubr.f32.gmra.mxu0 %v1585
      %v1665 = vpop.f32.mrf.mxu0
      %v1666 = vadd.f32 0.0, %v1665
      %v1667 = vpop.f32.mrf.mxu0
      %1668 = vmatprep.mubr.f32.mxu0 0.0
      %1669 = vmatmul.mubr.f32.gmra.mxu0 %v1588
      %v1670 = vpop.f32.mrf.mxu0
      %v1671 = vadd.f32 0.0, %v1670
      %v1672 = vpop.f32.mrf.mxu0
      %1673 = vdwg.mxu0
      %v1675 = vsel %vm1412, %v1442, 0
      %v1678 = vsel %vm1412, %v1444, 0
      %v1681 = vsel %vm1412, %v1446, 0
      %v1684 = vsel %vm1590, %v1310, 0
      %1686 = vmatprep.subr.mxu0 0.0
      %1687 = vmatpush1.msra.mxu0 0.0
      %1688 = vmatprep.subr.mxu0 0.0
      %1689 = vmatpush1.msra.mxu0 0.0
      %1690 = vmatprep.subr.mxu0 0.0
      %1691 = vmatpush1.msra.mxu0 0.0
      %1692 = vmatprep.subr.mxu0 0.0
      %1693 = vmatpush1.msra.mxu0 0.0
      %1694 = vmatprep.subr.mxu0 0.0
      %1695 = vmatpush1.msra.mxu0 0.0
      %1696 = vmatprep.subr.mxu0 0.0
      %1697 = vmatpush1.msra.mxu0 0.0
      %1698 = vmatprep.subr.mxu0 0.0
      %1699 = vmatpush1.msra.mxu0 0.0
      %1700 = vmatprep.subr.mxu0 0.0
      %1701 = vmatpush1.msra.mxu0 0.0
      %1702 = vmatprep.subr.mxu0 0.0
      %1703 = vmatpush1.msra.mxu0 0.0
      %1704 = vmatprep.subr.mxu0 0.0
      %1705 = vmatpush1.msra.mxu0 0.0
      %1706 = vmatprep.subr.mxu0 0.0
      %1707 = vmatpush1.msra.mxu0 0.0
      %1708 = vmatprep.subr.mxu0 0.0
      %1709 = vmatpush1.msra.mxu0 0.0
      %1710 = vmatprep.subr.mxu0 0.0
      %1711 = vmatpush1.msra.mxu0 0.0
      %1712 = vmatprep.subr.mxu0 0.0
      %1713 = vmatpush1.msra.mxu0 %v1684
      %1714 = vmatprep.subr.mxu0 0.0
      %1715 = vmatpush1.msra.mxu0 %v1309
      %1716 = vmatprep.subr.mxu0 0.0
      %1717 = vmatpush1.msra.mxu0 %v1308
      %1718 = vmatprep.subr.mxu0 0.0
      %1719 = vmatpush2.msra.mxu0 0.0
      %1720 = vmatprep.subr.mxu0 0.0
      %1721 = vmatpush2.msra.mxu0 0.0
      %1722 = vmatprep.subr.mxu0 0.0
      %1723 = vmatpush2.msra.mxu0 0.0
      %1724 = vmatprep.subr.mxu0 0.0
      %1725 = vmatpush2.msra.mxu0 0.0
      %1726 = vmatprep.subr.mxu0 0.0
      %1727 = vmatpush2.msra.mxu0 0.0
      %1728 = vmatprep.subr.mxu0 0.0
      %1729 = vmatpush2.msra.mxu0 0.0
      %1730 = vmatprep.subr.mxu0 0.0
      %1731 = vmatpush2.msra.mxu0 0.0
      %1732 = vmatprep.subr.mxu0 0.0
      %1733 = vmatpush2.msra.mxu0 0.0
      %1734 = vmatprep.subr.mxu0 0.0
      %1735 = vmatpush2.msra.mxu0 0.0
      %1736 = vmatprep.subr.mxu0 0.0
      %1737 = vmatpush2.msra.mxu0 0.0
      %1738 = vmatprep.subr.mxu0 0.0
      %1739 = vmatpush2.msra.mxu0 0.0
      %1740 = vmatprep.subr.mxu0 0.0
      %1741 = vmatpush2.msra.mxu0 0.0
      %1742 = vmatprep.subr.mxu0 0.0
      %1743 = vmatpush2.msra.mxu0 0.0
      %1744 = vmatprep.subr.mxu0 0.0
      %1745 = vmatpush2.msra.mxu0 0.0
      %1746 = vmatprep.subr.mxu0 0.0
      %1747 = vmatpush2.msra.mxu0 0.0
      %1748 = vmatprep.subr.mxu0 0.0
      %1749 = vmatpush2.msra.mxu0 0.0
      %1750 = vmatprep.mubr.f32.mxu0 0.0
      %1751 = vmatmul.mubr.f32.gmra.mxu0 %v1675
      %v1752 = vpop.f32.mrf.mxu0
      %v1753 = vadd.f32 %v1661, %v1752
      %v1754 = vpop.f32.mrf.mxu0
      %1755 = vmatprep.mubr.f32.mxu0 0.0
      %1756 = vmatmul.mubr.f32.gmra.mxu0 %v1678
      %v1757 = vpop.f32.mrf.mxu0
      %v1758 = vadd.f32 %v1666, %v1757
      %v1759 = vpop.f32.mrf.mxu0
      %1760 = vmatprep.mubr.f32.mxu0 0.0
      %1761 = vmatmul.mubr.f32.gmra.mxu0 %v1681
      %v1762 = vpop.f32.mrf.mxu0
      %v1763 = vadd.f32 %v1671, %v1762
      %v1764 = vpop.f32.mrf.mxu0
      %1765 = vdwg.mxu0
      %vm1766 = vcmp.ge.s32.totalorder %v1301, 16
      %vm1767 = vcmp.lt.s32.totalorder %v1301, 24
      %vm1768 = vmand %vm1766, %vm1767
      %v1769 = vsel %vm1768, %v1145, 0.0
      %v1770 = vsel %vm1768, %v1148, 0.0
      %v1771 = vsel %vm1768, %v1153, 0.0
      %v1772 = vsel %vm1768, %v1287, 0.0
      %v1773 = vsel %vm1768, %v1290, 0.0
      %v1774 = vsel %vm1768, %v1295, 0.0
      %v1776 = vsel %vm1017, %v1769, 0
      %v1779 = vsel %vm1017, %v1770, 0
      %v1782 = vsel %vm1017, %v1771, 0
      %1784 = vmatprep.subr.mxu0 0.0
      %1785 = vmatpush1.xpose.msra.mxu0 0.0
      %1786 = vmatprep.subr.mxu0 0.0
      %1787 = vmatpush1.xpose.msra.mxu0 0.0
      %1788 = vmatprep.subr.mxu0 0.0
      %1789 = vmatpush1.xpose.msra.mxu0 0.0
      %1790 = vmatprep.subr.mxu0 0.0
      %1791 = vmatpush1.xpose.msra.mxu0 0.0
      %1792 = vmatprep.subr.mxu0 0.0
      %1793 = vmatpush1.xpose.msra.mxu0 0.0
      %1794 = vmatprep.subr.mxu0 0.0
      %1795 = vmatpush1.xpose.msra.mxu0 0.0
      %1796 = vmatprep.subr.mxu0 0.0
      %1797 = vmatpush1.xpose.msra.mxu0 0.0
      %1798 = vmatprep.subr.mxu0 0.0
      %1799 = vmatpush1.xpose.msra.mxu0 0.0
      %1800 = vmatprep.subr.mxu0 0.0
      %1801 = vmatpush1.xpose.msra.mxu0 0.0
      %1802 = vmatprep.subr.mxu0 0.0
      %1803 = vmatpush1.xpose.msra.mxu0 0.0
      %1804 = vmatprep.subr.mxu0 0.0
      %1805 = vmatpush1.xpose.msra.mxu0 0.0
      %1806 = vmatprep.subr.mxu0 0.0
      %1807 = vmatpush1.xpose.msra.mxu0 0.0
      %1808 = vmatprep.subr.mxu0 0.0
      %1809 = vmatpush1.xpose.msra.mxu0 0.0
      %1810 = vmatprep.subr.mxu0 0.0
      %1811 = vmatpush1.xpose.msra.mxu0 %v1327
      %1812 = vmatprep.subr.mxu0 0.0
      %1813 = vmatpush1.xpose.msra.mxu0 %v1324
      %1814 = vmatprep.subr.mxu0 0.0
      %1815 = vmatpush1.xpose.msra.mxu0 %v1321
      %1816 = vmatprep.subr.mxu0 0.0
      %1817 = vmatpush2.xpose.msra.mxu0 0.0
      %1818 = vmatprep.subr.mxu0 0.0
      %1819 = vmatpush2.xpose.msra.mxu0 0.0
      %1820 = vmatprep.subr.mxu0 0.0
      %1821 = vmatpush2.xpose.msra.mxu0 0.0
      %1822 = vmatprep.subr.mxu0 0.0
      %1823 = vmatpush2.xpose.msra.mxu0 0.0
      %1824 = vmatprep.subr.mxu0 0.0
      %1825 = vmatpush2.xpose.msra.mxu0 0.0
      %1826 = vmatprep.subr.mxu0 0.0
      %1827 = vmatpush2.xpose.msra.mxu0 0.0
      %1828 = vmatprep.subr.mxu0 0.0
      %1829 = vmatpush2.xpose.msra.mxu0 0.0
      %1830 = vmatprep.subr.mxu0 0.0
      %1831 = vmatpush2.xpose.msra.mxu0 0.0
      %1832 = vmatprep.subr.mxu0 0.0
      %1833 = vmatpush2.xpose.msra.mxu0 0.0
      %1834 = vmatprep.subr.mxu0 0.0
      %1835 = vmatpush2.xpose.msra.mxu0 0.0
      %1836 = vmatprep.subr.mxu0 0.0
      %1837 = vmatpush2.xpose.msra.mxu0 0.0
      %1838 = vmatprep.subr.mxu0 0.0
      %1839 = vmatpush2.xpose.msra.mxu0 0.0
      %1840 = vmatprep.subr.mxu0 0.0
      %1841 = vmatpush2.xpose.msra.mxu0 0.0
      %1842 = vmatprep.subr.mxu0 0.0
      %1843 = vmatpush2.xpose.msra.mxu0 0.0
      %1844 = vmatprep.subr.mxu0 0.0
      %1845 = vmatpush2.xpose.msra.mxu0 0.0
      %1846 = vmatprep.subr.mxu0 0.0
      %1847 = vmatpush2.xpose.msra.mxu0 0.0
      %1848 = vmatprep.mubr.f32.mxu0 0.0
      %1849 = vmatmul.mubr.f32.gmra.mxu0 %v1776
      %v1850 = vpop.f32.mrf.mxu0
      %v1851 = vadd.f32 0.0, %v1850
      %v1852 = vpop.f32.mrf.mxu0
      %1853 = vmatprep.mubr.f32.mxu0 0.0
      %1854 = vmatmul.mubr.f32.gmra.mxu0 %v1779
      %v1855 = vpop.f32.mrf.mxu0
      %v1856 = vadd.f32 0.0, %v1855
      %v1857 = vpop.f32.mrf.mxu0
      %1858 = vmatprep.mubr.f32.mxu0 0.0
      %1859 = vmatmul.mubr.f32.gmra.mxu0 %v1782
      %v1860 = vpop.f32.mrf.mxu0
      %v1861 = vadd.f32 0.0, %v1860
      %v1862 = vpop.f32.mrf.mxu0
      %1863 = vdwg.mxu0
      %v1864 = vmul.f32 %v1851, 0.35355338
      %v1865 = vmul.f32 %v1856, 0.35355338
      %v1866 = vmul.f32 %v1861, 0.35355338
      %v1867 = vsel %vm1412, %v1864, -inf
      %1868 = vmax.xlane.f32.xlu0 %v1867
      %v1869 = vpop.xlane.xlu0 %1868
      %v1870 = vsel %vm1412, %v1865, -inf
      %1871 = vmax.xlane.f32.xlu0 %v1870
      %v1872 = vpop.xlane.xlu0 %1871
      %v1873 = vsel %vm1419, %v1866, -inf
      %1874 = vmax.xlane.f32.xlu0 %v1873
      %v1875 = vpop.xlane.xlu0 %1874
      %v1876 = vsub.f32 %v1864, %v1869
      %v1877 = vsub.f32 %v1865, %v1872
      %v1878 = vsub.f32 %v1866, %v1875
      %v1879 = vmul.f32 %v1876, 1.442695
      %v1880 = vpow.pop %v1879
      %v1881 = vmul.f32 %v1877, 1.442695
      %v1882 = vpow.pop %v1881
      %v1883 = vmul.f32 %v1878, 1.442695
      %v1884 = vpow.pop %v1883
      %v1885 = vsel %vm1412, %v1880, 0.0
      %1886 = vadd.xlane.f32.xlu0 %v1885
      %v1887 = vpop.xlane.xlu0 %1886
      %v1888 = vsel %vm1412, %v1882, 0.0
      %1889 = vadd.xlane.f32.xlu0 %v1888
      %v1890 = vpop.xlane.xlu0 %1889
      %v1891 = vsel %vm1419, %v1884, 0.0
      %1892 = vadd.xlane.f32.xlu0 %v1891
      %v1893 = vpop.xlane.xlu0 %1892
      %v1894 = vrcp.pop %v1887
      %v1895 = vmul.f32 %v1880, %v1894
      %v1896 = vrcp.pop %v1890
      %v1897 = vmul.f32 %v1882, %v1896
      %v1898 = vrcp.pop %v1893
      %v1899 = vmul.f32 %v1884, %v1898
      %v1901 = vsel %vm1412, %v1895, 0
      %v1904 = vsel %vm1412, %v1897, 0
      %v1907 = vsel %vm1412, %v1899, 0
      %v1910 = vsel %vm1590, %v1774, 0
      %1912 = vmatprep.subr.mxu0 0.0
      %1913 = vmatpush1.msra.mxu0 0.0
      %1914 = vmatprep.subr.mxu0 0.0
      %1915 = vmatpush1.msra.mxu0 0.0
      %1916 = vmatprep.subr.mxu0 0.0
      %1917 = vmatpush1.msra.mxu0 0.0
      %1918 = vmatprep.subr.mxu0 0.0
      %1919 = vmatpush1.msra.mxu0 0.0
      %1920 = vmatprep.subr.mxu0 0.0
      %1921 = vmatpush1.msra.mxu0 0.0
      %1922 = vmatprep.subr.mxu0 0.0
      %1923 = vmatpush1.msra.mxu0 0.0
      %1924 = vmatprep.subr.mxu0 0.0
      %1925 = vmatpush1.msra.mxu0 0.0
      %1926 = vmatprep.subr.mxu0 0.0
      %1927 = vmatpush1.msra.mxu0 0.0
      %1928 = vmatprep.subr.mxu0 0.0
      %1929 = vmatpush1.msra.mxu0 0.0
      %1930 = vmatprep.subr.mxu0 0.0
      %1931 = vmatpush1.msra.mxu0 0.0
      %1932 = vmatprep.subr.mxu0 0.0
      %1933 = vmatpush1.msra.mxu0 0.0
      %1934 = vmatprep.subr.mxu0 0.0
      %1935 = vmatpush1.msra.mxu0 0.0
      %1936 = vmatprep.subr.mxu0 0.0
      %1937 = vmatpush1.msra.mxu0 0.0
      %1938 = vmatprep.subr.mxu0 0.0
      %1939 = vmatpush1.msra.mxu0 %v1910
      %1940 = vmatprep.subr.mxu0 0.0
      %1941 = vmatpush1.msra.mxu0 %v1773
      %1942 = vmatprep.subr.mxu0 0.0
      %1943 = vmatpush1.msra.mxu0 %v1772
      %1944 = vmatprep.subr.mxu0 0.0
      %1945 = vmatpush2.msra.mxu0 0.0
      %1946 = vmatprep.subr.mxu0 0.0
      %1947 = vmatpush2.msra.mxu0 0.0
      %1948 = vmatprep.subr.mxu0 0.0
      %1949 = vmatpush2.msra.mxu0 0.0
      %1950 = vmatprep.subr.mxu0 0.0
      %1951 = vmatpush2.msra.mxu0 0.0
      %1952 = vmatprep.subr.mxu0 0.0
      %1953 = vmatpush2.msra.mxu0 0.0
      %1954 = vmatprep.subr.mxu0 0.0
      %1955 = vmatpush2.msra.mxu0 0.0
      %1956 = vmatprep.subr.mxu0 0.0
      %1957 = vmatpush2.msra.mxu0 0.0
      %1958 = vmatprep.subr.mxu0 0.0
      %1959 = vmatpush2.msra.mxu0 0.0
      %1960 = vmatprep.subr.mxu0 0.0
      %1961 = vmatpush2.msra.mxu0 0.0
      %1962 = vmatprep.subr.mxu0 0.0
      %1963 = vmatpush2.msra.mxu0 0.0
      %1964 = vmatprep.subr.mxu0 0.0
      %1965 = vmatpush2.msra.mxu0 0.0
      %1966 = vmatprep.subr.mxu0 0.0
      %1967 = vmatpush2.msra.mxu0 0.0
      %1968 = vmatprep.subr.mxu0 0.0
      %1969 = vmatpush2.msra.mxu0 0.0
      %1970 = vmatprep.subr.mxu0 0.0
      %1971 = vmatpush2.msra.mxu0 0.0
      %1972 = vmatprep.subr.mxu0 0.0
      %1973 = vmatpush2.msra.mxu0 0.0
      %1974 = vmatprep.subr.mxu0 0.0
      %1975 = vmatpush2.msra.mxu0 0.0
      %1976 = vmatprep.mubr.f32.mxu0 0.0
      %1977 = vmatmul.mubr.f32.gmra.mxu0 %v1901
      %v1978 = vpop.f32.mrf.mxu0
      %v1979 = vadd.f32 0.0, %v1978
      %v1980 = vpop.f32.mrf.mxu0
      %1981 = vmatprep.mubr.f32.mxu0 0.0
      %1982 = vmatmul.mubr.f32.gmra.mxu0 %v1904
      %v1983 = vpop.f32.mrf.mxu0
      %v1984 = vadd.f32 0.0, %v1983
      %v1985 = vpop.f32.mrf.mxu0
      %1986 = vmatprep.mubr.f32.mxu0 0.0
      %1987 = vmatmul.mubr.f32.gmra.mxu0 %v1907
      %v1988 = vpop.f32.mrf.mxu0
      %v1989 = vadd.f32 0.0, %v1988
      %v1990 = vpop.f32.mrf.mxu0
      %1991 = vdwg.mxu0
      %v1992 = vadd.f32 %v1753, %v1979
      %v1993 = vadd.f32 %v1758, %v1984
      %v1994 = vadd.f32 %v1763, %v1989
      %vm1995 = vcmp.ge.s32.totalorder %v1301, 24
      %vm1996 = vcmp.lt.s32.totalorder %v1301, 32
      %vm1997 = vmand %vm1995, %vm1996
      %v1998 = vsel %vm1997, %v1145, 0.0
      %v1999 = vsel %vm1997, %v1148, 0.0
      %v2000 = vsel %vm1997, %v1153, 0.0
      %v2001 = vsel %vm1997, %v1287, 0.0
      %v2002 = vsel %vm1997, %v1290, 0.0
      %v2003 = vsel %vm1997, %v1295, 0.0
      %v2005 = vsel %vm1017, %v1998, 0
      %v2008 = vsel %vm1017, %v1999, 0
      %v2011 = vsel %vm1017, %v2000, 0
      %2013 = vmatprep.subr.mxu0 0.0
      %2014 = vmatpush1.xpose.msra.mxu0 0.0
      %2015 = vmatprep.subr.mxu0 0.0
      %2016 = vmatpush1.xpose.msra.mxu0 0.0
      %2017 = vmatprep.subr.mxu0 0.0
      %2018 = vmatpush1.xpose.msra.mxu0 0.0
      %2019 = vmatprep.subr.mxu0 0.0
      %2020 = vmatpush1.xpose.msra.mxu0 0.0
      %2021 = vmatprep.subr.mxu0 0.0
      %2022 = vmatpush1.xpose.msra.mxu0 0.0
      %2023 = vmatprep.subr.mxu0 0.0
      %2024 = vmatpush1.xpose.msra.mxu0 0.0
      %2025 = vmatprep.subr.mxu0 0.0
      %2026 = vmatpush1.xpose.msra.mxu0 0.0
      %2027 = vmatprep.subr.mxu0 0.0
      %2028 = vmatpush1.xpose.msra.mxu0 0.0
      %2029 = vmatprep.subr.mxu0 0.0
      %2030 = vmatpush1.xpose.msra.mxu0 0.0
      %2031 = vmatprep.subr.mxu0 0.0
      %2032 = vmatpush1.xpose.msra.mxu0 0.0
      %2033 = vmatprep.subr.mxu0 0.0
      %2034 = vmatpush1.xpose.msra.mxu0 0.0
      %2035 = vmatprep.subr.mxu0 0.0
      %2036 = vmatpush1.xpose.msra.mxu0 0.0
      %2037 = vmatprep.subr.mxu0 0.0
      %2038 = vmatpush1.xpose.msra.mxu0 0.0
      %2039 = vmatprep.subr.mxu0 0.0
      %2040 = vmatpush1.xpose.msra.mxu0 %v1327
      %2041 = vmatprep.subr.mxu0 0.0
      %2042 = vmatpush1.xpose.msra.mxu0 %v1324
      %2043 = vmatprep.subr.mxu0 0.0
      %2044 = vmatpush1.xpose.msra.mxu0 %v1321
      %2045 = vmatprep.subr.mxu0 0.0
      %2046 = vmatpush2.xpose.msra.mxu0 0.0
      %2047 = vmatprep.subr.mxu0 0.0
      %2048 = vmatpush2.xpose.msra.mxu0 0.0
      %2049 = vmatprep.subr.mxu0 0.0
      %2050 = vmatpush2.xpose.msra.mxu0 0.0
      %2051 = vmatprep.subr.mxu0 0.0
      %2052 = vmatpush2.xpose.msra.mxu0 0.0
      %2053 = vmatprep.subr.mxu0 0.0
      %2054 = vmatpush2.xpose.msra.mxu0 0.0
      %2055 = vmatprep.subr.mxu0 0.0
      %2056 = vmatpush2.xpose.msra.mxu0 0.0
      %2057 = vmatprep.subr.mxu0 0.0
      %2058 = vmatpush2.xpose.msra.mxu0 0.0
      %2059 = vmatprep.subr.mxu0 0.0
      %2060 = vmatpush2.xpose.msra.mxu0 0.0
      %2061 = vmatprep.subr.mxu0 0.0
      %2062 = vmatpush2.xpose.msra.mxu0 0.0
      %2063 = vmatprep.subr.mxu0 0.0
      %2064 = vmatpush2.xpose.msra.mxu0 0.0
      %2065 = vmatprep.subr.mxu0 0.0
      %2066 = vmatpush2.xpose.msra.mxu0 0.0
      %2067 = vmatprep.subr.mxu0 0.0
      %2068 = vmatpush2.xpose.msra.mxu0 0.0
      %2069 = vmatprep.subr.mxu0 0.0
      %2070 = vmatpush2.xpose.msra.mxu0 0.0
      %2071 = vmatprep.subr.mxu0 0.0
      %2072 = vmatpush2.xpose.msra.mxu0 0.0
      %2073 = vmatprep.subr.mxu0 0.0
      %2074 = vmatpush2.xpose.msra.mxu0 0.0
      %2075 = vmatprep.subr.mxu0 0.0
      %2076 = vmatpush2.xpose.msra.mxu0 0.0
      %2077 = vmatprep.mubr.f32.mxu0 0.0
      %2078 = vmatmul.mubr.f32.gmra.mxu0 %v2005
      %v2079 = vpop.f32.mrf.mxu0
      %v2080 = vadd.f32 0.0, %v2079
      %v2081 = vpop.f32.mrf.mxu0
      %2082 = vmatprep.mubr.f32.mxu0 0.0
      %2083 = vmatmul.mubr.f32.gmra.mxu0 %v2008
      %v2084 = vpop.f32.mrf.mxu0
      %v2085 = vadd.f32 0.0, %v2084
      %v2086 = vpop.f32.mrf.mxu0
      %2087 = vmatprep.mubr.f32.mxu0 0.0
      %2088 = vmatmul.mubr.f32.gmra.mxu0 %v2011
      %v2089 = vpop.f32.mrf.mxu0
      %v2090 = vadd.f32 0.0, %v2089
      %v2091 = vpop.f32.mrf.mxu0
      %2092 = vdwg.mxu0
      %v2093 = vmul.f32 %v2080, 0.35355338
      %v2094 = vmul.f32 %v2085, 0.35355338
      %v2095 = vmul.f32 %v2090, 0.35355338
      %v2096 = vsel %vm1412, %v2093, -inf
      %2097 = vmax.xlane.f32.xlu0 %v2096
      %v2098 = vpop.xlane.xlu0 %2097
      %v2099 = vsel %vm1412, %v2094, -inf
      %2100 = vmax.xlane.f32.xlu0 %v2099
      %v2101 = vpop.xlane.xlu0 %2100
      %v2102 = vsel %vm1419, %v2095, -inf
      %2103 = vmax.xlane.f32.xlu0 %v2102
      %v2104 = vpop.xlane.xlu0 %2103
      %v2105 = vsub.f32 %v2093, %v2098
      %v2106 = vsub.f32 %v2094, %v2101
      %v2107 = vsub.f32 %v2095, %v2104
      %v2108 = vmul.f32 %v2105, 1.442695
      %v2109 = vpow.pop %v2108
      %v2110 = vmul.f32 %v2106, 1.442695
      %v2111 = vpow.pop %v2110
      %v2112 = vmul.f32 %v2107, 1.442695
      %v2113 = vpow.pop %v2112
      %v2114 = vsel %vm1412, %v2109, 0.0
      %2115 = vadd.xlane.f32.xlu0 %v2114
      %v2116 = vpop.xlane.xlu0 %2115
      %v2117 = vsel %vm1412, %v2111, 0.0
      %2118 = vadd.xlane.f32.xlu0 %v2117
      %v2119 = vpop.xlane.xlu0 %2118
      %v2120 = vsel %vm1419, %v2113, 0.0
      %2121 = vadd.xlane.f32.xlu0 %v2120
      %v2122 = vpop.xlane.xlu0 %2121
      %v2123 = vrcp.pop %v2116
      %v2124 = vmul.f32 %v2109, %v2123
      %v2125 = vrcp.pop %v2119
      %v2126 = vmul.f32 %v2111, %v2125
      %v2127 = vrcp.pop %v2122
      %v2128 = vmul.f32 %v2113, %v2127
      %v2130 = vsel %vm1412, %v2124, 0
      %v2133 = vsel %vm1412, %v2126, 0
      %v2136 = vsel %vm1412, %v2128, 0
      %v2139 = vsel %vm1590, %v2003, 0
      %2141 = vmatprep.subr.mxu0 0.0
      %2142 = vmatpush1.msra.mxu0 0.0
      %2143 = vmatprep.subr.mxu0 0.0
      %2144 = vmatpush1.msra.mxu0 0.0
      %2145 = vmatprep.subr.mxu0 0.0
      %2146 = vmatpush1.msra.mxu0 0.0
      %2147 = vmatprep.subr.mxu0 0.0
      %2148 = vmatpush1.msra.mxu0 0.0
      %2149 = vmatprep.subr.mxu0 0.0
      %2150 = vmatpush1.msra.mxu0 0.0
      %2151 = vmatprep.subr.mxu0 0.0
      %2152 = vmatpush1.msra.mxu0 0.0
      %2153 = vmatprep.subr.mxu0 0.0
      %2154 = vmatpush1.msra.mxu0 0.0
      %2155 = vmatprep.subr.mxu0 0.0
      %2156 = vmatpush1.msra.mxu0 0.0
      %2157 = vmatprep.subr.mxu0 0.0
      %2158 = vmatpush1.msra.mxu0 0.0
      %2159 = vmatprep.subr.mxu0 0.0
      %2160 = vmatpush1.msra.mxu0 0.0
      %2161 = vmatprep.subr.mxu0 0.0
      %2162 = vmatpush1.msra.mxu0 0.0
      %2163 = vmatprep.subr.mxu0 0.0
      %2164 = vmatpush1.msra.mxu0 0.0
      %2165 = vmatprep.subr.mxu0 0.0
      %2166 = vmatpush1.msra.mxu0 0.0
      %2167 = vmatprep.subr.mxu0 0.0
      %2168 = vmatpush1.msra.mxu0 %v2139
      %2169 = vmatprep.subr.mxu0 0.0
      %2170 = vmatpush1.msra.mxu0 %v2002
      %2171 = vmatprep.subr.mxu0 0.0
      %2172 = vmatpush1.msra.mxu0 %v2001
      %2173 = vmatprep.subr.mxu0 0.0
      %2174 = vmatpush2.msra.mxu0 0.0
      %2175 = vmatprep.subr.mxu0 0.0
      %2176 = vmatpush2.msra.mxu0 0.0
      %2177 = vmatprep.subr.mxu0 0.0
      %2178 = vmatpush2.msra.mxu0 0.0
      %2179 = vmatprep.subr.mxu0 0.0
      %2180 = vmatpush2.msra.mxu0 0.0
      %2181 = vmatprep.subr.mxu0 0.0
      %2182 = vmatpush2.msra.mxu0 0.0
      %2183 = vmatprep.subr.mxu0 0.0
      %2184 = vmatpush2.msra.mxu0 0.0
      %2185 = vmatprep.subr.mxu0 0.0
      %2186 = vmatpush2.msra.mxu0 0.0
      %2187 = vmatprep.subr.mxu0 0.0
      %2188 = vmatpush2.msra.mxu0 0.0
      %2189 = vmatprep.subr.mxu0 0.0
      %2190 = vmatpush2.msra.mxu0 0.0
      %2191 = vmatprep.subr.mxu0 0.0
      %2192 = vmatpush2.msra.mxu0 0.0
      %2193 = vmatprep.subr.mxu0 0.0
      %2194 = vmatpush2.msra.mxu0 0.0
      %2195 = vmatprep.subr.mxu0 0.0
      %2196 = vmatpush2.msra.mxu0 0.0
      %2197 = vmatprep.subr.mxu0 0.0
      %2198 = vmatpush2.msra.mxu0 0.0
      %2199 = vmatprep.subr.mxu0 0.0
      %2200 = vmatpush2.msra.mxu0 0.0
      %2201 = vmatprep.subr.mxu0 0.0
      %2202 = vmatpush2.msra.mxu0 0.0
      %2203 = vmatprep.subr.mxu0 0.0
      %2204 = vmatpush2.msra.mxu0 0.0
      %2205 = vmatprep.mubr.f32.mxu0 0.0
      %2206 = vmatmul.mubr.f32.gmra.mxu0 %v2130
      %v2207 = vpop.f32.mrf.mxu0
      %v2208 = vadd.f32 0.0, %v2207
      %v2209 = vpop.f32.mrf.mxu0
      %2210 = vmatprep.mubr.f32.mxu0 0.0
      %2211 = vmatmul.mubr.f32.gmra.mxu0 %v2133
      %v2212 = vpop.f32.mrf.mxu0
      %v2213 = vadd.f32 0.0, %v2212
      %v2214 = vpop.f32.mrf.mxu0
      %2215 = vmatprep.mubr.f32.mxu0 0.0
      %2216 = vmatmul.mubr.f32.gmra.mxu0 %v2136
      %v2217 = vpop.f32.mrf.mxu0
      %v2218 = vadd.f32 0.0, %v2217
      %v2219 = vpop.f32.mrf.mxu0
      %2220 = vdwg.mxu0
      %v2221 = vadd.f32 %v1992, %v2208
      %v2222 = vadd.f32 %v1993, %v2213
      %v2223 = vadd.f32 %v1994, %v2218
      %v2224 = vpack.c.bf16 %v2222, %v2221
      %v2225 = vpack.c.bf16 %v2223, %v2223
      %v2226 = vld [vmem:[%s12] sm:$0xf]
      %v2227 = vld [vmem:[%s12 + $0x4] sm:$0xf]
      %v2228 = vld [vmem:[%s12 + $0x8] sm:$0xf]
      %v2229 = vld [vmem:[%s12 + $0xc] sm:$0xf]
      %v2230 = vld [vmem:[%s13] sm:$0x1]
      %v2232 = vlaneseq
      %v2233 = vshrl.u32 %v2232, 7
      %v2234 = vsub.s32 0, %v2233
      %v2235 = vrot.slane %v2230, %v2234
      %v2241 = vunpack.c.l.b16 %v2226
      %v2242 = vunpack.c.l.b16 %v2227
      %v2243 = vunpack.c.l.b16 %v2228
      %v2244 = vunpack.c.l.b16 %v2229
      %v2245 = vpack.c.b16 %v2242, %v2241
      %v2246 = vpack.c.b16 %v2244, %v2243
      %v2250 = vsel %vm1017, %v2224, 0
      %v2253 = vsel %vm1017, %v2225, 0
      %2255 = vmatprep.subr.bf16.mxu0 0
      %2256 = vmatpush1.bf16.msra.mxu0 0
      %2257 = vmatprep.subr.bf16.mxu0 0
      %2258 = vmatpush1.bf16.msra.mxu0 0
      %2259 = vmatprep.subr.bf16.mxu0 0
      %2260 = vmatpush1.bf16.msra.mxu0 0
      %2261 = vmatprep.subr.bf16.mxu0 0
      %2262 = vmatpush1.bf16.msra.mxu0 0
      %2263 = vmatprep.subr.bf16.mxu0 0
      %2264 = vmatpush1.bf16.msra.mxu0 0
      %2265 = vmatprep.subr.bf16.mxu0 0
      %2266 = vmatpush1.bf16.msra.mxu0 0
      %2267 = vmatprep.subr.bf16.mxu0 0
      %2268 = vmatpush1.bf16.msra.mxu0 %v2246
      %2269 = vmatprep.subr.bf16.mxu0 0
      %2270 = vmatpush1.bf16.msra.mxu0 %v2245
      %2271 = vmatprep.subr.bf16.mxu0 0
      %2272 = vmatpush2.bf16.msra.mxu0 0
      %2273 = vmatprep.subr.bf16.mxu0 0
      %2274 = vmatpush2.bf16.msra.mxu0 0
      %2275 = vmatprep.subr.bf16.mxu0 0
      %2276 = vmatpush2.bf16.msra.mxu0 0
      %2277 = vmatprep.subr.bf16.mxu0 0
      %2278 = vmatpush2.bf16.msra.mxu0 0
      %2279 = vmatprep.subr.bf16.mxu0 0
      %2280 = vmatpush2.bf16.msra.mxu0 0
      %2281 = vmatprep.subr.bf16.mxu0 0
      %2282 = vmatpush2.bf16.msra.mxu0 0
      %2283 = vmatprep.subr.bf16.mxu0 0
      %2284 = vmatpush2.bf16.msra.mxu0 0
      %2285 = vmatprep.subr.bf16.mxu0 0
      %2286 = vmatpush2.bf16.msra.mxu0 0
      %2287 = vmatprep.mubr.bf16.mxu0 0
      %2288 = vmatmul.mubr.bf16.gmra.mxu0 %v2250
      %v2289 = vpop.f32.mrf.mxu0
      %v2290 = vadd.f32 %v2235, %v2289
      %v2291 = vpop.f32.mrf.mxu0
      %v2292 = vpop.f32.mrf.mxu0
      %v2293 = vadd.f32 %v2235, %v2292
      %v2294 = vpop.f32.mrf.mxu0
      %2295 = vmatprep.mubr.bf16.mxu0 0
      %2296 = vmatmul.mubr.bf16.gmra.mxu0 %v2253
      %v2297 = vpop.f32.mrf.mxu0
      %v2298 = vadd.f32 %v2235, %v2297
      %v2299 = vpop.f32.mrf.mxu0
      %v2300 = vpop.f32.mrf.mxu0
      %v2301 = vpop.f32.mrf.mxu0
      %2302 = vdwg.mxu0
      %v2303 = vadd.f32 %v1014, %v2290
      %v2304 = vadd.f32 %v1015, %v2293
      %v2305 = vadd.f32 %v1016, %v2298
      %v2306 = vsel %vm1017, %v2303, 0.0
      %2307 = vadd.xlane.f32.xlu0 %v2306
      %v2308 = vpop.xlane.xlu0 %2307
      %v2309 = vsel %vm1017, %v2304, 0.0
      %2310 = vadd.xlane.f32.xlu0 %v2309
      %v2311 = vpop.xlane.xlu0 %2310
      %v2312 = vsel %vm1024, %v2305, 0.0
      %2313 = vadd.xlane.f32.xlu0 %v2312
      %v2314 = vpop.xlane.xlu0 %2313
      %v2315 = vmul.f32 %v2308, %v1028
      %v2316 = vmul.f32 %v2311, %v1028
      %v2317 = vmul.f32 %v2314, %v1028
      %v2318 = vsub.f32 %v2303, %v2315
      %v2319 = vsub.f32 %v2304, %v2316
      %v2320 = vsub.f32 %v2305, %v2317
      %v2321 = vmul.f32 %v2318, %v2318
      %v2322 = vmul.f32 %v2319, %v2319
      %v2323 = vmul.f32 %v2320, %v2320
      %v2324 = vsel %vm1017, %v2321, 0.0
      %2325 = vadd.xlane.f32.xlu0 %v2324
      %v2326 = vpop.xlane.xlu0 %2325
      %v2327 = vsel %vm1017, %v2322, 0.0
      %2328 = vadd.xlane.f32.xlu0 %v2327
      %v2329 = vpop.xlane.xlu0 %2328
      %v2330 = vsel %vm1024, %v2323, 0.0
      %2331 = vadd.xlane.f32.xlu0 %v2330
      %v2332 = vpop.xlane.xlu0 %2331
      %v2333 = vmul.f32 %v2326, %v1028
      %v2334 = vmul.f32 %v2329, %v1028
      %v2335 = vmul.f32 %v2332, %v1028
      %v2336 = vadd.f32 %v2333, 1e-06
      %v2337 = vadd.f32 %v2334, 1e-06
      %v2338 = vadd.f32 %v2335, 1e-06
      %v2339 = vrsqrt.pop %v2336
      %v2340 = vrsqrt.pop %v2337
      %v2341 = vrsqrt.pop %v2338
      %v2342 = vmul.f32 %v2318, %v2339
      %v2343 = vmul.f32 %v2319, %v2340
      %v2344 = vmul.f32 %v2320, %v2341
      %v2345 = vld [vmem:[%s14] sm:$0x1]
      %v2347 = vlaneseq
      %v2348 = vshrl.u32 %v2347, 7
      %v2349 = vsub.s32 0, %v2348
      %v2350 = vrot.slane %v2345, %v2349
      %v2352 = vmul.f32 %v2342, %v2350
      %v2353 = vmul.f32 %v2343, %v2350
      %v2354 = vmul.f32 %v2344, %v2350
      %v2355 = vld [vmem:[%s15] sm:$0x1]
      %v2357 = vlaneseq
      %v2358 = vshrl.u32 %v2357, 7
      %v2359 = vsub.s32 0, %v2358
      %v2360 = vrot.slane %v2355, %v2359
      %v2362 = vadd.f32 %v2352, %v2360
      %v2363 = vadd.f32 %v2353, %v2360
      %v2364 = vadd.f32 %v2354, %v2360
      %v2365 = vpack.c.bf16 %v2363, %v2362
      %v2366 = vpack.c.bf16 %v2364, %v2364
      %v2367 = vld [vmem:[%s16] sm:$0xf]
      %v2368 = vld [vmem:[%s16 + $0x4] sm:$0xf]
      %v2369 = vld [vmem:[%s16 + $0x8] sm:$0xf]
      %v2370 = vld [vmem:[%s16 + $0xc] sm:$0xf]
      %v2371 = vld [vmem:[%s17] sm:$0x1]
      %v2373 = vlaneseq
      %v2374 = vshrl.u32 %v2373, 7
      %v2375 = vsub.s32 0, %v2374
      %v2376 = vrot.slane %v2371, %v2375
      %v2382 = vunpack.c.l.b16 %v2367
      %v2383 = vunpack.c.l.b16 %v2368
      %v2384 = vunpack.c.l.b16 %v2369
      %v2385 = vunpack.c.l.b16 %v2370
      %v2386 = vpack.c.b16 %v2383, %v2382
      %v2387 = vpack.c.b16 %v2385, %v2384
      %v2391 = vsel %vm1017, %v2365, 0
      %v2394 = vsel %vm1017, %v2366, 0
      %2396 = vmatprep.subr.bf16.mxu0 0
      %2397 = vmatpush1.bf16.msra.mxu0 0
      %2398 = vmatprep.subr.bf16.mxu0 0
      %2399 = vmatpush1.bf16.msra.mxu0 0
      %2400 = vmatprep.subr.bf16.mxu0 0
      %2401 = vmatpush1.bf16.msra.mxu0 0
      %2402 = vmatprep.subr.bf16.mxu0 0
      %2403 = vmatpush1.bf16.msra.mxu0 0
      %2404 = vmatprep.subr.bf16.mxu0 0
      %2405 = vmatpush1.bf16.msra.mxu0 0
      %2406 = vmatprep.subr.bf16.mxu0 0
      %2407 = vmatpush1.bf16.msra.mxu0 0
      %2408 = vmatprep.subr.bf16.mxu0 0
      %2409 = vmatpush1.bf16.msra.mxu0 %v2387
      %2410 = vmatprep.subr.bf16.mxu0 0
      %2411 = vmatpush1.bf16.msra.mxu0 %v2386
      %2412 = vmatprep.subr.bf16.mxu0 0
      %2413 = vmatpush2.bf16.msra.mxu0 0
      %2414 = vmatprep.subr.bf16.mxu0 0
      %2415 = vmatpush2.bf16.msra.mxu0 0
      %2416 = vmatprep.subr.bf16.mxu0 0
      %2417 = vmatpush2.bf16.msra.mxu0 0
      %2418 = vmatprep.subr.bf16.mxu0 0
      %2419 = vmatpush2.bf16.msra.mxu0 0
      %2420 = vmatprep.subr.bf16.mxu0 0
      %2421 = vmatpush2.bf16.msra.mxu0 0
      %2422 = vmatprep.subr.bf16.mxu0 0
      %2423 = vmatpush2.bf16.msra.mxu0 0
      %2424 = vmatprep.subr.bf16.mxu0 0
      %2425 = vmatpush2.bf16.msra.mxu0 0
      %2426 = vmatprep.subr.bf16.mxu0 0
      %2427 = vmatpush2.bf16.msra.mxu0 0
      %2428 = vmatprep.mubr.bf16.mxu0 0
      %2429 = vmatmul.mubr.bf16.gmra.mxu0 %v2391
      %v2430 = vpop.f32.mrf.mxu0
      %v2431 = vadd.f32 %v2376, %v2430
      %v2432 = vpop.f32.mrf.mxu0
      %v2433 = vpop.f32.mrf.mxu0
      %v2434 = vadd.f32 %v2376, %v2433
      %v2435 = vpop.f32.mrf.mxu0
      %2436 = vmatprep.mubr.bf16.mxu0 0
      %2437 = vmatmul.mubr.bf16.gmra.mxu0 %v2394
      %v2438 = vpop.f32.mrf.mxu0
      %v2439 = vadd.f32 %v2376, %v2438
      %v2440 = vpop.f32.mrf.mxu0
      %v2441 = vpop.f32.mrf.mxu0
      %v2442 = vpop.f32.mrf.mxu0
      %2443 = vdwg.mxu0
      %v2444 = vmul.f32 %v2431, 0.5
      %v2445 = vmul.f32 %v2434, 0.5
      %v2446 = vmul.f32 %v2439, 0.5
      %v2447 = vmul.f32 %v2431, 0.044715
      %v2448 = vmul.f32 %v2434, 0.044715
      %v2449 = vmul.f32 %v2439, 0.044715
      %v2450 = vmul.f32 %v2447, %v2431
      %v2451 = vmul.f32 %v2448, %v2434
      %v2452 = vmul.f32 %v2449, %v2439
      %v2453 = vmul.f32 %v2450, %v2431
      %v2454 = vmul.f32 %v2451, %v2434
      %v2455 = vmul.f32 %v2452, %v2439
      %v2456 = vadd.f32 %v2431, %v2453
      %v2457 = vadd.f32 %v2434, %v2454
      %v2458 = vadd.f32 %v2439, %v2455
      %v2459 = vmul.f32 %v2456, 0.7978846
      %v2460 = vmul.f32 %v2457, 0.7978846
      %v2461 = vmul.f32 %v2458, 0.7978846
      %v2462 = vtanh.pop %v2459
      %v2463 = vtanh.pop %v2460
      %v2464 = vtanh.pop %v2461
      %v2465 = vadd.f32 %v2462, 1.0
      %v2466 = vadd.f32 %v2463, 1.0
      %v2467 = vadd.f32 %v2464, 1.0
      %v2468 = vmul.f32 %v2444, %v2465
      %v2469 = vmul.f32 %v2445, %v2466
      %v2470 = vmul.f32 %v2446, %v2467
      %v2471 = vpack.c.bf16 %v2469, %v2468
      %v2472 = vpack.c.bf16 %v2470, %v2470
      %v2473 = vld [vmem:[%s18] sm:$0xf]
      %v2474 = vld [vmem:[%s18 + $0x4] sm:$0xf]
      %v2475 = vld [vmem:[%s18 + $0x8] sm:$0xf]
      %v2476 = vld [vmem:[%s18 + $0xc] sm:$0xf]
      %v2477 = vld [vmem:[%s18 + $0x10] sm:$0xf]
      %v2478 = vld [vmem:[%s18 + $0x14] sm:$0xf]
      %v2479 = vld [vmem:[%s18 + $0x18] sm:$0xf]
      %v2480 = vld [vmem:[%s18 + $0x1c] sm:$0xf]
      %v2481 = vld [vmem:[%s18 + $0x20] sm:$0xf]
      %v2482 = vld [vmem:[%s18 + $0x24] sm:$0xf]
      %v2483 = vld [vmem:[%s18 + $0x28] sm:$0xf]
      %v2484 = vld [vmem:[%s18 + $0x2c] sm:$0xf]
      %v2485 = vld [vmem:[%s18 + $0x30] sm:$0xf]
      %v2486 = vld [vmem:[%s18 + $0x34] sm:$0xf]
      %v2487 = vld [vmem:[%s18 + $0x38] sm:$0xf]
      %v2488 = vld [vmem:[%s18 + $0x3c] sm:$0xf]
      %v2489 = vld [vmem:[%s19] sm:$0x1]
      %v2491 = vlaneseq
      %v2492 = vshrl.u32 %v2491, 7
      %v2493 = vsub.s32 0, %v2492
      %v2494 = vrot.slane %v2489, %v2493
      %v2512 = vunpack.c.l.b16 %v2473
      %v2513 = vunpack.c.l.b16 %v2474
      %v2514 = vunpack.c.l.b16 %v2475
      %v2515 = vunpack.c.l.b16 %v2476
      %v2516 = vunpack.c.l.b16 %v2477
      %v2517 = vunpack.c.l.b16 %v2478
      %v2518 = vunpack.c.l.b16 %v2479
      %v2519 = vunpack.c.l.b16 %v2480
      %v2520 = vunpack.c.l.b16 %v2481
      %v2521 = vunpack.c.l.b16 %v2482
      %v2522 = vunpack.c.l.b16 %v2483
      %v2523 = vunpack.c.l.b16 %v2484
      %v2524 = vunpack.c.l.b16 %v2485
      %v2525 = vunpack.c.l.b16 %v2486
      %v2526 = vunpack.c.l.b16 %v2487
      %v2527 = vunpack.c.l.b16 %v2488
      %v2528 = vpack.c.b16 %v2513, %v2512
      %v2529 = vpack.c.b16 %v2515, %v2514
      %v2530 = vpack.c.b16 %v2517, %v2516
      %v2531 = vpack.c.b16 %v2519, %v2518
      %v2532 = vpack.c.b16 %v2521, %v2520
      %v2533 = vpack.c.b16 %v2523, %v2522
      %v2534 = vpack.c.b16 %v2525, %v2524
      %v2535 = vpack.c.b16 %v2527, %v2526
      %2544 = vmatprep.subr.bf16.mxu0 0
      %2545 = vmatpush1.bf16.msra.mxu0 %v2535
      %2546 = vmatprep.subr.bf16.mxu0 0
      %2547 = vmatpush1.bf16.msra.mxu0 %v2534
      %2548 = vmatprep.subr.bf16.mxu0 0
      %2549 = vmatpush1.bf16.msra.mxu0 %v2533
      %2550 = vmatprep.subr.bf16.mxu0 0
      %2551 = vmatpush1.bf16.msra.mxu0 %v2532
      %2552 = vmatprep.subr.bf16.mxu0 0
      %2553 = vmatpush1.bf16.msra.mxu0 %v2531
      %2554 = vmatprep.subr.bf16.mxu0 0
      %2555 = vmatpush1.bf16.msra.mxu0 %v2530
      %2556 = vmatprep.subr.bf16.mxu0 0
      %2557 = vmatpush1.bf16.msra.mxu0 %v2529
      %2558 = vmatprep.subr.bf16.mxu0 0
      %2559 = vmatpush1.bf16.msra.mxu0 %v2528
      %2560 = vmatprep.subr.bf16.mxu0 0
      %2561 = vmatpush2.bf16.msra.mxu0 0
      %2562 = vmatprep.subr.bf16.mxu0 0
      %2563 = vmatpush2.bf16.msra.mxu0 0
      %2564 = vmatprep.subr.bf16.mxu0 0
      %2565 = vmatpush2.bf16.msra.mxu0 0
      %2566 = vmatprep.subr.bf16.mxu0 0
      %2567 = vmatpush2.bf16.msra.mxu0 0
      %2568 = vmatprep.subr.bf16.mxu0 0
      %2569 = vmatpush2.bf16.msra.mxu0 0
      %2570 = vmatprep.subr.bf16.mxu0 0
      %2571 = vmatpush2.bf16.msra.mxu0 0
      %2572 = vmatprep.subr.bf16.mxu0 0
      %2573 = vmatpush2.bf16.msra.mxu0 0
      %2574 = vmatprep.subr.bf16.mxu0 0
      %2575 = vmatpush2.bf16.msra.mxu0 0
      %2576 = vmatprep.mubr.bf16.mxu0 0
      %2577 = vmatmul.mubr.bf16.gmra.mxu0 %v2471
      %v2578 = vpop.f32.mrf.mxu0
      %v2579 = vadd.f32 %v2494, %v2578
      %v2580 = vpop.f32.mrf.mxu0
      %v2581 = vpop.f32.mrf.mxu0
      %v2582 = vpop.f32.mrf.mxu0
      %2583 = vmatprep.mubr.bf16.mxu0 0
      %2584 = vmatmul.mubr.bf16.gmra.mxu0 %v2472
      %v2585 = vpop.f32.mrf.mxu0
      %v2586 = vpop.f32.mrf.mxu0
      %v2587 = vpop.f32.mrf.mxu0
      %v2588 = vpop.f32.mrf.mxu0
      %2589 = vdwg.mxu0
      %v2590 = vadd.f32 %v2303, %v2579
      %v2591 = vsel %vm1024, %v2590, 0.0
      %2592 = vadd.xlane.f32.xlu0 %v2591
      %v2593 = vpop.xlane.xlu0 %2592
      %v2594 = vmul.f32 %v2593, %v1028
      %v2595 = vsub.f32 %v2590, %v2594
      %v2596 = vmul.f32 %v2595, %v2595
      %v2597 = vsel %vm1024, %v2596, 0.0
      %2598 = vadd.xlane.f32.xlu0 %v2597
      %v2599 = vpop.xlane.xlu0 %2598
      %v2600 = vmul.f32 %v2599, %v1028
      %v2601 = vadd.f32 %v2600, 1e-06
      %v2602 = vrsqrt.pop %v2601
      %v2603 = vmul.f32 %v2595, %v2602
      %v2604 = vld [vmem:[%s20] sm:$0x1]
      %v2605 = vmul.f32 %v2603, %v2604
      %v2606 = vld [vmem:[%s21] sm:$0x1]
      %v2607 = vadd.f32 %v2605, %v2606
      %v2608 = vpack.c.bf16 %v2607, %v2607
      %v2609 = vld [vmem:[%s22] sm:$0xff]
      %v2610 = vld [vmem:[%s22 + $0x8] sm:$0xff]
      %v2611 = vld [vmem:[%s22 + $0x10] sm:$0xff]
      %v2612 = vld [vmem:[%s22 + $0x18] sm:$0xff]
      %v2613 = vld [vmem:[%s22 + $0x20] sm:$0xff]
      %v2614 = vld [vmem:[%s22 + $0x28] sm:$0xff]
      %v2615 = vld [vmem:[%s22 + $0x30] sm:$0xff]
      %v2616 = vld [vmem:[%s22 + $0x38] sm:$0xff]
      %v2617 = vld [vmem:[%s22 + $0x40] sm:$0xff]
      %v2618 = vld [vmem:[%s22 + $0x48] sm:$0xff]
      %v2619 = vld [vmem:[%s22 + $0x50] sm:$0xff]
      %v2620 = vld [vmem:[%s22 + $0x58] sm:$0xff]
      %v2621 = vld [vmem:[%s22 + $0x60] sm:$0xff]
      %v2622 = vld [vmem:[%s22 + $0x68] sm:$0xff]
      %v2623 = vld [vmem:[%s22 + $0x70] sm:$0xff]
      %v2624 = vld [vmem:[%s22 + $0x78] sm:$0xff]
      %v2625 = vld [vmem:[%s23] sm:$0xff]
      %v2642 = vunpack.c.l.b16 %v2609
      %v2643 = vunpack.c.h.b16 %v2609
      %v2644 = vunpack.c.l.b16 %v2610
      %v2645 = vunpack.c.h.b16 %v2610
      %v2646 = vunpack.c.l.b16 %v2611
      %v2647 = vunpack.c.h.b16 %v2611
      %v2648 = vunpack.c.l.b16 %v2612
      %v2649 = vunpack.c.h.b16 %v2612
      %v2650 = vunpack.c.l.b16 %v2613
      %v2651 = vunpack.c.h.b16 %v2613
      %v2652 = vunpack.c.l.b16 %v2614
      %v2653 = vunpack.c.h.b16 %v2614
      %v2654 = vunpack.c.l.b16 %v2615
      %v2655 = vunpack.c.h.b16 %v2615
      %v2656 = vunpack.c.l.b16 %v2616
      %v2657 = vunpack.c.h.b16 %v2616
      %v2658 = vunpack.c.l.b16 %v2617
      %v2659 = vunpack.c.h.b16 %v2617
      %v2660 = vunpack.c.l.b16 %v2618
      %v2661 = vunpack.c.h.b16 %v2618
      %v2662 = vunpack.c.l.b16 %v2619
      %v2663 = vunpack.c.h.b16 %v2619
      %v2664 = vunpack.c.l.b16 %v2620
      %v2665 = vunpack.c.h.b16 %v2620
      %v2666 = vunpack.c.l.b16 %v2621
      %v2667 = vunpack.c.h.b16 %v2621
      %v2668 = vunpack.c.l.b16 %v2622
      %v2669 = vunpack.c.h.b16 %v2622
      %v2670 = vunpack.c.l.b16 %v2623
      %v2671 = vunpack.c.h.b16 %v2623
      %v2672 = vunpack.c.l.b16 %v2624
      %v2673 = vunpack.c.h.b16 %v2624
      %v2674 = vpack.c.b16 %v2650, %v2642
      %v2675 = vpack.c.b16 %v2651, %v2643
      %v2676 = vpack.c.b16 %v2652, %v2644
      %v2677 = vpack.c.b16 %v2653, %v2645
      %v2678 = vpack.c.b16 %v2654, %v2646
      %v2679 = vpack.c.b16 %v2655, %v2647
      %v2680 = vpack.c.b16 %v2656, %v2648
      %v2681 = vpack.c.b16 %v2657, %v2649
      %v2682 = vpack.c.b16 %v2666, %v2658
      %v2683 = vpack.c.b16 %v2667, %v2659
      %v2684 = vpack.c.b16 %v2668, %v2660
      %v2685 = vpack.c.b16 %v2669, %v2661
      %v2686 = vpack.c.b16 %v2670, %v2662
      %v2687 = vpack.c.b16 %v2671, %v2663
      %v2688 = vpack.c.b16 %v2672, %v2664
      %v2689 = vpack.c.b16 %v2673, %v2665
      %v2707 = vlaneseq
      %v2708 = vshrl.u32 %v2707, 7
      %v2709 = vsub.s32 0, %v2708
      %v2710 = vrot.slane %v2625, %v2709
      %v2711 = vlaneseq
      %v2712 = vshrl.u32 %v2711, 7
      %v2713 = vsub.s32 1, %v2712
      %v2714 = vrot.slane %v2625, %v2713
      %v2715 = vlaneseq
      %v2716 = vshrl.u32 %v2715, 7
      %v2717 = vsub.s32 2, %v2716
      %v2718 = vrot.slane %v2625, %v2717
      %v2719 = vlaneseq
      %v2720 = vshrl.u32 %v2719, 7
      %v2721 = vsub.s32 3, %v2720
      %v2722 = vrot.slane %v2625, %v2721
      %v2723 = vlaneseq
      %v2724 = vshrl.u32 %v2723, 7
      %v2725 = vsub.s32 4, %v2724
      %v2726 = vrot.slane %v2625, %v2725
      %v2727 = vlaneseq
      %v2728 = vshrl.u32 %v2727, 7
      %v2729 = vsub.s32 5, %v2728
      %v2730 = vrot.slane %v2625, %v2729
      %v2731 = vlaneseq
      %v2732 = vshrl.u32 %v2731, 7
      %v2733 = vsub.s32 6, %v2732
      %v2734 = vrot.slane %v2625, %v2733
      %v2735 = vlaneseq
      %v2736 = vshrl.u32 %v2735, 7
      %v2737 = vsub.s32 7, %v2736
      %v2738 = vrot.slane %v2625, %v2737
      %v2748 = vsel %vm1017, %v2608, 0
      %2750 = vmatprep.subr.bf16.mxu0 0
      %2751 = vmatpush1.bf16.msra.mxu0 0
      %2752 = vmatprep.subr.bf16.mxu0 0
      %2753 = vmatpush1.bf16.msra.mxu0 0
      %2754 = vmatprep.subr.bf16.mxu0 0
      %2755 = vmatpush1.bf16.msra.mxu0 0
      %2756 = vmatprep.subr.bf16.mxu0 0
      %2757 = vmatpush1.bf16.msra.mxu0 0
      %2758 = vmatprep.subr.bf16.mxu0 0
      %2759 = vmatpush1.bf16.msra.mxu0 0
      %2760 = vmatprep.subr.bf16.mxu0 0
      %2761 = vmatpush1.bf16.msra.mxu0 0
      %2762 = vmatprep.subr.bf16.mxu0 %v2683
      %2763 = vmatpush1.bf16.msra.mxu0 %v2682
      %2764 = vmatprep.subr.bf16.mxu0 %v2675
      %2765 = vmatpush1.bf16.msra.mxu0 %v2674
      %2766 = vmatprep.subr.bf16.mxu0 0
      %2767 = vmatpush2.bf16.msra.mxu0 0
      %2768 = vmatprep.subr.bf16.mxu0 0
      %2769 = vmatpush2.bf16.msra.mxu0 0
      %2770 = vmatprep.subr.bf16.mxu0 0
      %2771 = vmatpush2.bf16.msra.mxu0 0
      %2772 = vmatprep.subr.bf16.mxu0 0
      %2773 = vmatpush2.bf16.msra.mxu0 0
      %2774 = vmatprep.subr.bf16.mxu0 0
      %2775 = vmatpush2.bf16.msra.mxu0 0
      %2776 = vmatprep.subr.bf16.mxu0 0
      %2777 = vmatpush2.bf16.msra.mxu0 0
      %2778 = vmatprep.subr.bf16.mxu0 0
      %2779 = vmatpush2.bf16.msra.mxu0 0
      %2780 = vmatprep.subr.bf16.mxu0 0
      %2781 = vmatpush2.bf16.msra.mxu0 0
      %2782 = vmatprep.mubr.bf16.mxu0 0
      %2783 = vmatmul.mubr.bf16.gmra.mxu0 %v2748
      %v2784 = vpop.f32.mrf.mxu0
      %v2785 = vadd.f32 %v2710, %v2784
      %v2786 = vpop.f32.mrf.mxu0
      %v2787 = vadd.f32 %v2714, %v2786
      %v2788 = vpop.f32.mrf.mxu0
      %v2789 = vpop.f32.mrf.mxu0
      %2790 = vdwg.mxu0
      %2791 = vmatprep.subr.bf16.mxu0 0
      %2792 = vmatpush1.bf16.msra.mxu0 0
      %2793 = vmatprep.subr.bf16.mxu0 0
      %2794 = vmatpush1.bf16.msra.mxu0 0
      %2795 = vmatprep.subr.bf16.mxu0 0
      %2796 = vmatpush1.bf16.msra.mxu0 0
      %2797 = vmatprep.subr.bf16.mxu0 0
      %2798 = vmatpush1.bf16.msra.mxu0 0
      %2799 = vmatprep.subr.bf16.mxu0 0
      %2800 = vmatpush1.bf16.msra.mxu0 0
      %2801 = vmatprep.subr.bf16.mxu0 0
      %2802 = vmatpush1.bf16.msra.mxu0 0
      %2803 = vmatprep.subr.bf16.mxu0 %v2685
      %2804 = vmatpush1.bf16.msra.mxu0 %v2684
      %2805 = vmatprep.subr.bf16.mxu0 %v2677
      %2806 = vmatpush1.bf16.msra.mxu0 %v2676
      %2807 = vmatprep.subr.bf16.mxu0 0
      %2808 = vmatpush2.bf16.msra.mxu0 0
      %2809 = vmatprep.subr.bf16.mxu0 0
      %2810 = vmatpush2.bf16.msra.mxu0 0
      %2811 = vmatprep.subr.bf16.mxu0 0
      %2812 = vmatpush2.bf16.msra.mxu0 0
      %2813 = vmatprep.subr.bf16.mxu0 0
      %2814 = vmatpush2.bf16.msra.mxu0 0
      %2815 = vmatprep.subr.bf16.mxu0 0
      %2816 = vmatpush2.bf16.msra.mxu0 0
      %2817 = vmatprep.subr.bf16.mxu0 0
      %2818 = vmatpush2.bf16.msra.mxu0 0
      %2819 = vmatprep.subr.bf16.mxu0 0
      %2820 = vmatpush2.bf16.msra.mxu0 0
      %2821 = vmatprep.subr.bf16.mxu0 0
      %2822 = vmatpush2.bf16.msra.mxu0 0
      %2823 = vmatprep.mubr.bf16.mxu0 0
      %2824 = vmatmul.mubr.bf16.gmra.mxu0 %v2748
      %v2825 = vpop.f32.mrf.mxu0
      %v2826 = vadd.f32 %v2718, %v2825
      %v2827 = vpop.f32.mrf.mxu0
      %v2828 = vadd.f32 %v2722, %v2827
      %v2829 = vpop.f32.mrf.mxu0
      %v2830 = vpop.f32.mrf.mxu0
      %2831 = vdwg.mxu0
      %2832 = vmatprep.subr.bf16.mxu0 0
      %2833 = vmatpush1.bf16.msra.mxu0 0
      %2834 = vmatprep.subr.bf16.mxu0 0
      %2835 = vmatpush1.bf16.msra.mxu0 0
      %2836 = vmatprep.subr.bf16.mxu0 0
      %2837 = vmatpush1.bf16.msra.mxu0 0
      %2838 = vmatprep.subr.bf16.mxu0 0
      %2839 = vmatpush1.bf16.msra.mxu0 0
      %2840 = vmatprep.subr.bf16.mxu0 0
      %2841 = vmatpush1.bf16.msra.mxu0 0
      %2842 = vmatprep.subr.bf16.mxu0 0
      %2843 = vmatpush1.bf16.msra.mxu0 0
      %2844 = vmatprep.subr.bf16.mxu0 %v2687
      %2845 = vmatpush1.bf16.msra.mxu0 %v2686
      %2846 = vmatprep.subr.bf16.mxu0 %v2679
      %2847 = vmatpush1.bf16.msra.mxu0 %v2678
      %2848 = vmatprep.subr.bf16.mxu0 0
      %2849 = vmatpush2.bf16.msra.mxu0 0
      %2850 = vmatprep.subr.bf16.mxu0 0
      %2851 = vmatpush2.bf16.msra.mxu0 0
      %2852 = vmatprep.subr.bf16.mxu0 0
      %2853 = vmatpush2.bf16.msra.mxu0 0
      %2854 = vmatprep.subr.bf16.mxu0 0
      %2855 = vmatpush2.bf16.msra.mxu0 0
      %2856 = vmatprep.subr.bf16.mxu0 0
      %2857 = vmatpush2.bf16.msra.mxu0 0
      %2858 = vmatprep.subr.bf16.mxu0 0
      %2859 = vmatpush2.bf16.msra.mxu0 0
      %2860 = vmatprep.subr.bf16.mxu0 0
      %2861 = vmatpush2.bf16.msra.mxu0 0
      %2862 = vmatprep.subr.bf16.mxu0 0
      %2863 = vmatpush2.bf16.msra.mxu0 0
      %2864 = vmatprep.mubr.bf16.mxu0 0
      %2865 = vmatmul.mubr.bf16.gmra.mxu0 %v2748
      %v2866 = vpop.f32.mrf.mxu0
      %v2867 = vadd.f32 %v2726, %v2866
      %v2868 = vpop.f32.mrf.mxu0
      %v2869 = vadd.f32 %v2730, %v2868
      %v2870 = vpop.f32.mrf.mxu0
      %v2871 = vpop.f32.mrf.mxu0
      %2872 = vdwg.mxu0
      %2873 = vmatprep.subr.bf16.mxu0 0
      %2874 = vmatpush1.bf16.msra.mxu0 0
      %2875 = vmatprep.subr.bf16.mxu0 0
      %2876 = vmatpush1.bf16.msra.mxu0 0
      %2877 = vmatprep.subr.bf16.mxu0 0
      %2878 = vmatpush1.bf16.msra.mxu0 0
      %2879 = vmatprep.subr.bf16.mxu0 0
      %2880 = vmatpush1.bf16.msra.mxu0 0
      %2881 = vmatprep.subr.bf16.mxu0 0
      %2882 = vmatpush1.bf16.msra.mxu0 0
      %2883 = vmatprep.subr.bf16.mxu0 0
      %2884 = vmatpush1.bf16.msra.mxu0 0
      %2885 = vmatprep.subr.bf16.mxu0 %v2689
      %2886 = vmatpush1.bf16.msra.mxu0 %v2688
      %2887 = vmatprep.subr.bf16.mxu0 %v2681
      %2888 = vmatpush1.bf16.msra.mxu0 %v2680
      %2889 = vmatprep.subr.bf16.mxu0 0
      %2890 = vmatpush2.bf16.msra.mxu0 0
      %2891 = vmatprep.subr.bf16.mxu0 0
      %2892 = vmatpush2.bf16.msra.mxu0 0
      %2893 = vmatprep.subr.bf16.mxu0 0
      %2894 = vmatpush2.bf16.msra.mxu0 0
      %2895 = vmatprep.subr.bf16.mxu0 0
      %2896 = vmatpush2.bf16.msra.mxu0 0
      %2897 = vmatprep.subr.bf16.mxu0 0
      %2898 = vmatpush2.bf16.msra.mxu0 0
      %2899 = vmatprep.subr.bf16.mxu0 0
      %2900 = vmatpush2.bf16.msra.mxu0 0
      %2901 = vmatprep.subr.bf16.mxu0 0
      %2902 = vmatpush2.bf16.msra.mxu0 0
      %2903 = vmatprep.subr.bf16.mxu0 0
      %2904 = vmatpush2.bf16.msra.mxu0 0
      %2905 = vmatprep.mubr.bf16.mxu0 0
      %2906 = vmatmul.mubr.bf16.gmra.mxu0 %v2748
      %v2907 = vpop.f32.mrf.mxu0
      %v2908 = vadd.f32 %v2734, %v2907
      %v2909 = vpop.f32.mrf.mxu0
      %v2910 = vadd.f32 %v2738, %v2909
      %v2911 = vpop.f32.mrf.mxu0
      %v2912 = vpop.f32.mrf.mxu0
      %2913 = vdwg.mxu0
      %v2914 = vpack.c.bf16 %v2785, %v2785
      %v2915 = vpack.c.bf16 %v2787, %v2787
      %v2916 = vpack.c.bf16 %v2826, %v2826
      %v2917 = vpack.c.bf16 %v2828, %v2828
      %v2918 = vpack.c.bf16 %v2867, %v2867
      %v2919 = vpack.c.bf16 %v2869, %v2869
      %v2920 = vpack.c.bf16 %v2908, %v2908
      %v2921 = vpack.c.bf16 %v2910, %v2910
      %v2922 = vld [vmem:[%s24] sm:$0xff]
      %v2923 = vld [vmem:[%s24 + $0x8] sm:$0xff]
      %v2924 = vld [vmem:[%s24 + $0x10] sm:$0xff]
      %v2925 = vld [vmem:[%s24 + $0x18] sm:$0xff]
      %v2926 = vld [vmem:[%s24 + $0x20] sm:$0xff]
      %v2927 = vld [vmem:[%s24 + $0x28] sm:$0xff]
      %v2928 = vld [vmem:[%s24 + $0x30] sm:$0xff]
      %v2929 = vld [vmem:[%s24 + $0x38] sm:$0xff]
      %v2930 = vld [vmem:[%s24 + $0x40] sm:$0xff]
      %v2931 = vld [vmem:[%s24 + $0x48] sm:$0xff]
      %v2932 = vld [vmem:[%s24 + $0x50] sm:$0xff]
      %v2933 = vld [vmem:[%s24 + $0x58] sm:$0xff]
      %v2934 = vld [vmem:[%s24 + $0x60] sm:$0xff]
      %v2935 = vld [vmem:[%s24 + $0x68] sm:$0xff]
      %v2936 = vld [vmem:[%s24 + $0x70] sm:$0xff]
      %v2937 = vld [vmem:[%s24 + $0x78] sm:$0xff]
      %v2938 = vld [vmem:[%s24 + $0x80] sm:$0xff]
      %v2939 = vld [vmem:[%s24 + $0x88] sm:$0xff]
      %v2940 = vld [vmem:[%s24 + $0x90] sm:$0xff]
      %v2941 = vld [vmem:[%s24 + $0x98] sm:$0xff]
      %v2942 = vld [vmem:[%s24 + $0xa0] sm:$0xff]
      %v2943 = vld [vmem:[%s24 + $0xa8] sm:$0xff]
      %v2944 = vld [vmem:[%s24 + $0xb0] sm:$0xff]
      %v2945 = vld [vmem:[%s24 + $0xb8] sm:$0xff]
      %v2946 = vld [vmem:[%s24 + $0xc0] sm:$0xff]
      %v2947 = vld [vmem:[%s24 + $0xc8] sm:$0xff]
      %v2948 = vld [vmem:[%s24 + $0xd0] sm:$0xff]
      %v2949 = vld [vmem:[%s24 + $0xd8] sm:$0xff]
      %v2950 = vld [vmem:[%s24 + $0xe0] sm:$0xff]
      %v2951 = vld [vmem:[%s24 + $0xe8] sm:$0xff]
      %v2952 = vld [vmem:[%s24 + $0xf0] sm:$0xff]
      %v2953 = vld [vmem:[%s24 + $0xf8] sm:$0xff]
      %v2954 = vld [vmem:[%s24 + $0x100] sm:$0xff]
      %v2955 = vld [vmem:[%s24 + $0x108] sm:$0xff]
      %v2956 = vld [vmem:[%s24 + $0x110] sm:$0xff]
      %v2957 = vld [vmem:[%s24 + $0x118] sm:$0xff]
      %v2958 = vld [vmem:[%s24 + $0x120] sm:$0xff]
      %v2959 = vld [vmem:[%s24 + $0x128] sm:$0xff]
      %v2960 = vld [vmem:[%s24 + $0x130] sm:$0xff]
      %v2961 = vld [vmem:[%s24 + $0x138] sm:$0xff]
      %v2962 = vld [vmem:[%s24 + $0x140] sm:$0xff]
      %v2963 = vld [vmem:[%s24 + $0x148] sm:$0xff]
      %v2964 = vld [vmem:[%s24 + $0x150] sm:$0xff]
      %v2965 = vld [vmem:[%s24 + $0x158] sm:$0xff]
      %v2966 = vld [vmem:[%s24 + $0x160] sm:$0xff]
      %v2967 = vld [vmem:[%s24 + $0x168] sm:$0xff]
      %v2968 = vld [vmem:[%s24 + $0x170] sm:$0xff]
      %v2969 = vld [vmem:[%s24 + $0x178] sm:$0xff]
      %v2970 = vld [vmem:[%s24 + $0x180] sm:$0xff]
      %v2971 = vld [vmem:[%s24 + $0x188] sm:$0xff]
      %v2972 = vld [vmem:[%s24 + $0x190] sm:$0xff]
      %v2973 = vld [vmem:[%s24 + $0x198] sm:$0xff]
      %v2974 = vld [vmem:[%s24 + $0x1a0] sm:$0xff]
      %v2975 = vld [vmem:[%s24 + $0x1a8] sm:$0xff]
      %v2976 = vld [vmem:[%s24 + $0x1b0] sm:$0xff]
      %v2977 = vld [vmem:[%s24 + $0x1b8] sm:$0xff]
      %v2978 = vld [vmem:[%s24 + $0x1c0] sm:$0xff]
      %v2979 = vld [vmem:[%s24 + $0x1c8] sm:$0xff]
      %v2980 = vld [vmem:[%s24 + $0x1d0] sm:$0xff]
      %v2981 = vld [vmem:[%s24 + $0x1d8] sm:$0xff]
      %v2982 = vld [vmem:[%s24 + $0x1e0] sm:$0xff]
      %v2983 = vld [vmem:[%s24 + $0x1e8] sm:$0xff]
      %v2984 = vld [vmem:[%s24 + $0x1f0] sm:$0xff]
      %v2985 = vld [vmem:[%s24 + $0x1f8] sm:$0xff]
      %v2986 = vld [vmem:[%s24 + $0x200] sm:$0xff]
      %v2987 = vld [vmem:[%s24 + $0x208] sm:$0xff]
      %v2988 = vld [vmem:[%s24 + $0x210] sm:$0xff]
      %v2989 = vld [vmem:[%s24 + $0x218] sm:$0xff]
      %v2990 = vld [vmem:[%s24 + $0x220] sm:$0xff]
      %v2991 = vld [vmem:[%s24 + $0x228] sm:$0xff]
      %v2992 = vld [vmem:[%s24 + $0x230] sm:$0xff]
      %v2993 = vld [vmem:[%s24 + $0x238] sm:$0xff]
      %v2994 = vld [vmem:[%s24 + $0x240] sm:$0xff]
      %v2995 = vld [vmem:[%s24 + $0x248] sm:$0xff]
      %v2996 = vld [vmem:[%s24 + $0x250] sm:$0xff]
      %v2997 = vld [vmem:[%s24 + $0x258] sm:$0xff]
      %v2998 = vld [vmem:[%s24 + $0x260] sm:$0xff]
      %v2999 = vld [vmem:[%s24 + $0x268] sm:$0xff]
      %v3000 = vld [vmem:[%s24 + $0x270] sm:$0xff]
      %v3001 = vld [vmem:[%s24 + $0x278] sm:$0xff]
      %v3002 = vld [vmem:[%s24 + $0x280] sm:$0xff]
      %v3003 = vld [vmem:[%s24 + $0x288] sm:$0xff]
      %v3004 = vld [vmem:[%s24 + $0x290] sm:$0xff]
      %v3005 = vld [vmem:[%s24 + $0x298] sm:$0xff]
      %v3006 = vld [vmem:[%s24 + $0x2a0] sm:$0xff]
      %v3007 = vld [vmem:[%s24 + $0x2a8] sm:$0xff]
      %v3008 = vld [vmem:[%s24 + $0x2b0] sm:$0xff]
      %v3009 = vld [vmem:[%s24 + $0x2b8] sm:$0xff]
      %v3010 = vld [vmem:[%s24 + $0x2c0] sm:$0xff]
      %v3011 = vld [vmem:[%s24 + $0x2c8] sm:$0xff]
      %v3012 = vld [vmem:[%s24 + $0x2d0] sm:$0xff]
      %v3013 = vld [vmem:[%s24 + $0x2d8] sm:$0xff]
      %v3014 = vld [vmem:[%s24 + $0x2e0] sm:$0xff]
      %v3015 = vld [vmem:[%s24 + $0x2e8] sm:$0xff]
      %v3016 = vld [vmem:[%s24 + $0x2f0] sm:$0xff]
      %v3017 = vld [vmem:[%s24 + $0x2f8] sm:$0xff]
      %v3018 = vld [vmem:[%s24 + $0x300] sm:$0xff]
      %v3019 = vld [vmem:[%s24 + $0x308] sm:$0xff]
      %v3020 = vld [vmem:[%s24 + $0x310] sm:$0xff]
      %v3021 = vld [vmem:[%s24 + $0x318] sm:$0xff]
      %v3022 = vld [vmem:[%s24 + $0x320] sm:$0xff]
      %v3023 = vld [vmem:[%s24 + $0x328] sm:$0xff]
      %v3024 = vld [vmem:[%s24 + $0x330] sm:$0xff]
      %v3025 = vld [vmem:[%s24 + $0x338] sm:$0xff]
      %v3026 = vld [vmem:[%s24 + $0x340] sm:$0xff]
      %v3027 = vld [vmem:[%s24 + $0x348] sm:$0xff]
      %v3028 = vld [vmem:[%s24 + $0x350] sm:$0xff]
      %v3029 = vld [vmem:[%s24 + $0x358] sm:$0xff]
      %v3030 = vld [vmem:[%s24 + $0x360] sm:$0xff]
      %v3031 = vld [vmem:[%s24 + $0x368] sm:$0xff]
      %v3032 = vld [vmem:[%s24 + $0x370] sm:$0xff]
      %v3033 = vld [vmem:[%s24 + $0x378] sm:$0xff]
      %v3034 = vld [vmem:[%s24 + $0x380] sm:$0xff]
      %v3035 = vld [vmem:[%s24 + $0x388] sm:$0xff]
      %v3036 = vld [vmem:[%s24 + $0x390] sm:$0xff]
      %v3037 = vld [vmem:[%s24 + $0x398] sm:$0xff]
      %v3038 = vld [vmem:[%s24 + $0x3a0] sm:$0xff]
      %v3039 = vld [vmem:[%s24 + $0x3a8] sm:$0xff]
      %v3040 = vld [vmem:[%s24 + $0x3b0] sm:$0xff]
      %v3041 = vld [vmem:[%s24 + $0x3b8] sm:$0xff]
      %v3042 = vld [vmem:[%s24 + $0x3c0] sm:$0xff]
      %v3043 = vld [vmem:[%s24 + $0x3c8] sm:$0xff]
      %v3044 = vld [vmem:[%s24 + $0x3d0] sm:$0xff]
      %v3045 = vld [vmem:[%s24 + $0x3d8] sm:$0xff]
      %v3046 = vld [vmem:[%s24 + $0x3e0] sm:$0xff]
      %v3047 = vld [vmem:[%s24 + $0x3e8] sm:$0xff]
      %v3048 = vld [vmem:[%s24 + $0x3f0] sm:$0xff]
      %v3049 = vld [vmem:[%s24 + $0x3f8] sm:$0xff]
      %v3050 = vld [vmem:[%s24 + $0x400] sm:$0xff]
      %v3051 = vld [vmem:[%s24 + $0x408] sm:$0xff]
      %v3052 = vld [vmem:[%s24 + $0x410] sm:$0xff]
      %v3053 = vld [vmem:[%s24 + $0x418] sm:$0xff]
      %v3054 = vld [vmem:[%s24 + $0x420] sm:$0xff]
      %v3055 = vld [vmem:[%s24 + $0x428] sm:$0xff]
      %v3056 = vld [vmem:[%s24 + $0x430] sm:$0xff]
      %v3057 = vld [vmem:[%s24 + $0x438] sm:$0xff]
      %v3058 = vld [vmem:[%s24 + $0x440] sm:$0xff]
      %v3059 = vld [vmem:[%s24 + $0x448] sm:$0xff]
      %v3060 = vld [vmem:[%s24 + $0x450] sm:$0xff]
      %v3061 = vld [vmem:[%s24 + $0x458] sm:$0xff]
      %v3062 = vld [vmem:[%s24 + $0x460] sm:$0xff]
      %v3063 = vld [vmem:[%s24 + $0x468] sm:$0xff]
      %v3064 = vld [vmem:[%s24 + $0x470] sm:$0xff]
      %v3065 = vld [vmem:[%s24 + $0x478] sm:$0xff]
      %v3066 = vld [vmem:[%s24 + $0x480] sm:$0xff]
      %v3067 = vld [vmem:[%s24 + $0x488] sm:$0xff]
      %v3068 = vld [vmem:[%s24 + $0x490] sm:$0xff]
      %v3069 = vld [vmem:[%s24 + $0x498] sm:$0xff]
      %v3070 = vld [vmem:[%s24 + $0x4a0] sm:$0xff]
      %v3071 = vld [vmem:[%s24 + $0x4a8] sm:$0xff]
      %v3072 = vld [vmem:[%s24 + $0x4b0] sm:$0xff]
      %v3073 = vld [vmem:[%s24 + $0x4b8] sm:$0xff]
      %v3074 = vld [vmem:[%s24 + $0x4c0] sm:$0xff]
      %v3075 = vld [vmem:[%s24 + $0x4c8] sm:$0xff]
      %v3076 = vld [vmem:[%s24 + $0x4d0] sm:$0xff]
      %v3077 = vld [vmem:[%s24 + $0x4d8] sm:$0xff]
      %v3078 = vld [vmem:[%s24 + $0x4e0] sm:$0xff]
      %v3079 = vld [vmem:[%s24 + $0x4e8] sm:$0xff]
      %v3080 = vld [vmem:[%s24 + $0x4f0] sm:$0xff]
      %v3081 = vld [vmem:[%s24 + $0x4f8] sm:$0xff]
      %v3082 = vld [vmem:[%s24 + $0x500] sm:$0xff]
      %v3083 = vld [vmem:[%s24 + $0x508] sm:$0xff]
      %v3084 = vld [vmem:[%s24 + $0x510] sm:$0xff]
      %v3085 = vld [vmem:[%s24 + $0x518] sm:$0xff]
      %v3086 = vld [vmem:[%s24 + $0x520] sm:$0xff]
      %v3087 = vld [vmem:[%s24 + $0x528] sm:$0xff]
      %v3088 = vld [vmem:[%s24 + $0x530] sm:$0xff]
      %v3089 = vld [vmem:[%s24 + $0x538] sm:$0xff]
      %v3090 = vld [vmem:[%s24 + $0x540] sm:$0xff]
      %v3091 = vld [vmem:[%s24 + $0x548] sm:$0xff]
      %v3092 = vld [vmem:[%s24 + $0x550] sm:$0xff]
      %v3093 = vld [vmem:[%s24 + $0x558] sm:$0xff]
      %v3094 = vld [vmem:[%s24 + $0x560] sm:$0xff]
      %v3095 = vld [vmem:[%s24 + $0x568] sm:$0xff]
      %v3096 = vld [vmem:[%s24 + $0x570] sm:$0xff]
      %v3097 = vld [vmem:[%s24 + $0x578] sm:$0xff]
      %v3098 = vld [vmem:[%s24 + $0x580] sm:$0xff]
      %v3099 = vld [vmem:[%s24 + $0x588] sm:$0xff]
      %v3100 = vld [vmem:[%s24 + $0x590] sm:$0xff]
      %v3101 = vld [vmem:[%s24 + $0x598] sm:$0xff]
      %v3102 = vld [vmem:[%s24 + $0x5a0] sm:$0xff]
      %v3103 = vld [vmem:[%s24 + $0x5a8] sm:$0xff]
      %v3104 = vld [vmem:[%s24 + $0x5b0] sm:$0xff]
      %v3105 = vld [vmem:[%s24 + $0x5b8] sm:$0xff]
      %v3106 = vld [vmem:[%s24 + $0x5c0] sm:$0xff]
      %v3107 = vld [vmem:[%s24 + $0x5c8] sm:$0xff]
      %v3108 = vld [vmem:[%s24 + $0x5d0] sm:$0xff]
      %v3109 = vld [vmem:[%s24 + $0x5d8] sm:$0xff]
      %v3110 = vld [vmem:[%s24 + $0x5e0] sm:$0xff]
      %v3111 = vld [vmem:[%s24 + $0x5e8] sm:$0xff]
      %v3112 = vld [vmem:[%s24 + $0x5f0] sm:$0xff]
      %v3113 = vld [vmem:[%s24 + $0x5f8] sm:$0xff]
      %v3114 = vld [vmem:[%s24 + $0x600] sm:$0xff]
      %v3115 = vld [vmem:[%s24 + $0x608] sm:$0xff]
      %v3116 = vld [vmem:[%s24 + $0x610] sm:$0xff]
      %v3117 = vld [vmem:[%s24 + $0x618] sm:$0xff]
      %v3118 = vld [vmem:[%s24 + $0x620] sm:$0xff]
      %v3119 = vld [vmem:[%s24 + $0x628] sm:$0xff]
      %v3120 = vld [vmem:[%s24 + $0x630] sm:$0xff]
      %v3121 = vld [vmem:[%s24 + $0x638] sm:$0xff]
      %v3122 = vld [vmem:[%s24 + $0x640] sm:$0xff]
      %v3123 = vld [vmem:[%s24 + $0x648] sm:$0xff]
      %v3124 = vld [vmem:[%s24 + $0x650] sm:$0xff]
      %v3125 = vld [vmem:[%s24 + $0x658] sm:$0xff]
      %v3126 = vld [vmem:[%s24 + $0x660] sm:$0xff]
      %v3127 = vld [vmem:[%s24 + $0x668] sm:$0xff]
      %v3128 = vld [vmem:[%s24 + $0x670] sm:$0xff]
      %v3129 = vld [vmem:[%s24 + $0x678] sm:$0xff]
      %v3130 = vld [vmem:[%s24 + $0x680] sm:$0xff]
      %v3131 = vld [vmem:[%s24 + $0x688] sm:$0xff]
      %v3132 = vld [vmem:[%s24 + $0x690] sm:$0xff]
      %v3133 = vld [vmem:[%s24 + $0x698] sm:$0xff]
      %v3134 = vld [vmem:[%s24 + $0x6a0] sm:$0xff]
      %v3135 = vld [vmem:[%s24 + $0x6a8] sm:$0xff]
      %v3136 = vld [vmem:[%s24 + $0x6b0] sm:$0xff]
      %v3137 = vld [vmem:[%s24 + $0x6b8] sm:$0xff]
      %v3138 = vld [vmem:[%s24 + $0x6c0] sm:$0xff]
      %v3139 = vld [vmem:[%s24 + $0x6c8] sm:$0xff]
      %v3140 = vld [vmem:[%s24 + $0x6d0] sm:$0xff]
      %v3141 = vld [vmem:[%s24 + $0x6d8] sm:$0xff]
      %v3142 = vld [vmem:[%s24 + $0x6e0] sm:$0xff]
      %v3143 = vld [vmem:[%s24 + $0x6e8] sm:$0xff]
      %v3144 = vld [vmem:[%s24 + $0x6f0] sm:$0xff]
      %v3145 = vld [vmem:[%s24 + $0x6f8] sm:$0xff]
      %v3146 = vld [vmem:[%s24 + $0x700] sm:$0xff]
      %v3147 = vld [vmem:[%s24 + $0x708] sm:$0xff]
      %v3148 = vld [vmem:[%s24 + $0x710] sm:$0xff]
      %v3149 = vld [vmem:[%s24 + $0x718] sm:$0xff]
      %v3150 = vld [vmem:[%s24 + $0x720] sm:$0xff]
      %v3151 = vld [vmem:[%s24 + $0x728] sm:$0xff]
      %v3152 = vld [vmem:[%s24 + $0x730] sm:$0xff]
      %v3153 = vld [vmem:[%s24 + $0x738] sm:$0xff]
      %v3154 = vld [vmem:[%s24 + $0x740] sm:$0xff]
      %v3155 = vld [vmem:[%s24 + $0x748] sm:$0xff]
      %v3156 = vld [vmem:[%s24 + $0x750] sm:$0xff]
      %v3157 = vld [vmem:[%s24 + $0x758] sm:$0xff]
      %v3158 = vld [vmem:[%s24 + $0x760] sm:$0xff]
      %v3159 = vld [vmem:[%s24 + $0x768] sm:$0xff]
      %v3160 = vld [vmem:[%s24 + $0x770] sm:$0xff]
      %v3161 = vld [vmem:[%s24 + $0x778] sm:$0xff]
      %v3162 = vld [vmem:[%s24 + $0x780] sm:$0xff]
      %v3163 = vld [vmem:[%s24 + $0x788] sm:$0xff]
      %v3164 = vld [vmem:[%s24 + $0x790] sm:$0xff]
      %v3165 = vld [vmem:[%s24 + $0x798] sm:$0xff]
      %v3166 = vld [vmem:[%s24 + $0x7a0] sm:$0xff]
      %v3167 = vld [vmem:[%s24 + $0x7a8] sm:$0xff]
      %v3168 = vld [vmem:[%s24 + $0x7b0] sm:$0xff]
      %v3169 = vld [vmem:[%s24 + $0x7b8] sm:$0xff]
      %v3170 = vld [vmem:[%s24 + $0x7c0] sm:$0xff]
      %v3171 = vld [vmem:[%s24 + $0x7c8] sm:$0xff]
      %v3172 = vld [vmem:[%s24 + $0x7d0] sm:$0xff]
      %v3173 = vld [vmem:[%s24 + $0x7d8] sm:$0xff]
      %v3174 = vld [vmem:[%s24 + $0x7e0] sm:$0xff]
      %v3175 = vld [vmem:[%s24 + $0x7e8] sm:$0xff]
      %v3176 = vld [vmem:[%s24 + $0x7f0] sm:$0xff]
      %v3177 = vld [vmem:[%s24 + $0x7f8] sm:$0xff]
      %v3178 = vld [vmem:[%s24 + $0x800] sm:$0xff]
      %v3179 = vld [vmem:[%s24 + $0x808] sm:$0xff]
      %v3180 = vld [vmem:[%s24 + $0x810] sm:$0xff]
      %v3181 = vld [vmem:[%s24 + $0x818] sm:$0xff]
      %v3182 = vld [vmem:[%s24 + $0x820] sm:$0xff]
      %v3183 = vld [vmem:[%s24 + $0x828] sm:$0xff]
      %v3184 = vld [vmem:[%s24 + $0x830] sm:$0xff]
      %v3185 = vld [vmem:[%s24 + $0x838] sm:$0xff]
      %v3186 = vld [vmem:[%s24 + $0x840] sm:$0xff]
      %v3187 = vld [vmem:[%s24 + $0x848] sm:$0xff]
      %v3188 = vld [vmem:[%s24 + $0x850] sm:$0xff]
      %v3189 = vld [vmem:[%s24 + $0x858] sm:$0xff]
      %v3190 = vld [vmem:[%s24 + $0x860] sm:$0xff]
      %v3191 = vld [vmem:[%s24 + $0x868] sm:$0xff]
      %v3192 = vld [vmem:[%s24 + $0x870] sm:$0xff]
      %v3193 = vld [vmem:[%s24 + $0x878] sm:$0xff]
      %v3194 = vld [vmem:[%s24 + $0x880] sm:$0xff]
      %v3195 = vld [vmem:[%s24 + $0x888] sm:$0xff]
      %v3196 = vld [vmem:[%s24 + $0x890] sm:$0xff]
      %v3197 = vld [vmem:[%s24 + $0x898] sm:$0xff]
      %v3198 = vld [vmem:[%s24 + $0x8a0] sm:$0xff]
      %v3199 = vld [vmem:[%s24 + $0x8a8] sm:$0xff]
      %v3200 = vld [vmem:[%s24 + $0x8b0] sm:$0xff]
      %v3201 = vld [vmem:[%s24 + $0x8b8] sm:$0xff]
      %v3202 = vld [vmem:[%s24 + $0x8c0] sm:$0xff]
      %v3203 = vld [vmem:[%s24 + $0x8c8] sm:$0xff]
      %v3204 = vld [vmem:[%s24 + $0x8d0] sm:$0xff]
      %v3205 = vld [vmem:[%s24 + $0x8d8] sm:$0xff]
      %v3206 = vld [vmem:[%s24 + $0x8e0] sm:$0xff]
      %v3207 = vld [vmem:[%s24 + $0x8e8] sm:$0xff]
      %v3208 = vld [vmem:[%s24 + $0x8f0] sm:$0xff]
      %v3209 = vld [vmem:[%s24 + $0x8f8] sm:$0xff]
      %v3210 = vld [vmem:[%s24 + $0x900] sm:$0xff]
      %v3211 = vld [vmem:[%s24 + $0x908] sm:$0xff]
      %v3212 = vld [vmem:[%s24 + $0x910] sm:$0xff]
      %v3213 = vld [vmem:[%s24 + $0x918] sm:$0xff]
      %v3214 = vld [vmem:[%s24 + $0x920] sm:$0xff]
      %v3215 = vld [vmem:[%s24 + $0x928] sm:$0xff]
      %v3216 = vld [vmem:[%s24 + $0x930] sm:$0xff]
      %v3217 = vld [vmem:[%s24 + $0x938] sm:$0xff]
      %v3218 = vld [vmem:[%s24 + $0x940] sm:$0xff]
      %v3219 = vld [vmem:[%s24 + $0x948] sm:$0xff]
      %v3220 = vld [vmem:[%s24 + $0x950] sm:$0xff]
      %v3221 = vld [vmem:[%s24 + $0x958] sm:$0xff]
      %v3222 = vld [vmem:[%s24 + $0x960] sm:$0xff]
      %v3223 = vld [vmem:[%s24 + $0x968] sm:$0xff]
      %v3224 = vld [vmem:[%s24 + $0x970] sm:$0xff]
      %v3225 = vld [vmem:[%s24 + $0x978] sm:$0xff]
      %v3226 = vld [vmem:[%s24 + $0x980] sm:$0xff]
      %v3227 = vld [vmem:[%s24 + $0x988] sm:$0xff]
      %v3228 = vld [vmem:[%s24 + $0x990] sm:$0xff]
      %v3229 = vld [vmem:[%s24 + $0x998] sm:$0xff]
      %v3230 = vld [vmem:[%s24 + $0x9a0] sm:$0xff]
      %v3231 = vld [vmem:[%s24 + $0x9a8] sm:$0xff]
      %v3232 = vld [vmem:[%s24 + $0x9b0] sm:$0xff]
      %v3233 = vld [vmem:[%s24 + $0x9b8] sm:$0xff]
      %v3234 = vld [vmem:[%s24 + $0x9c0] sm:$0xff]
      %v3235 = vld [vmem:[%s24 + $0x9c8] sm:$0xff]
      %v3236 = vld [vmem:[%s24 + $0x9d0] sm:$0xff]
      %v3237 = vld [vmem:[%s24 + $0x9d8] sm:$0xff]
      %v3238 = vld [vmem:[%s24 + $0x9e0] sm:$0xff]
      %v3239 = vld [vmem:[%s24 + $0x9e8] sm:$0xff]
      %v3240 = vld [vmem:[%s24 + $0x9f0] sm:$0xff]
      %v3241 = vld [vmem:[%s24 + $0x9f8] sm:$0xff]
      %v3242 = vld [vmem:[%s24 + $0xa00] sm:$0xff]
      %v3243 = vld [vmem:[%s24 + $0xa08] sm:$0xff]
      %v3244 = vld [vmem:[%s24 + $0xa10] sm:$0xff]
      %v3245 = vld [vmem:[%s24 + $0xa18] sm:$0xff]
      %v3246 = vld [vmem:[%s24 + $0xa20] sm:$0xff]
      %v3247 = vld [vmem:[%s24 + $0xa28] sm:$0xff]
      %v3248 = vld [vmem:[%s24 + $0xa30] sm:$0xff]
      %v3249 = vld [vmem:[%s24 + $0xa38] sm:$0xff]
      %v3250 = vld [vmem:[%s24 + $0xa40] sm:$0xff]
      %v3251 = vld [vmem:[%s24 + $0xa48] sm:$0xff]
      %v3252 = vld [vmem:[%s24 + $0xa50] sm:$0xff]
      %v3253 = vld [vmem:[%s24 + $0xa58] sm:$0xff]
      %v3254 = vld [vmem:[%s24 + $0xa60] sm:$0xff]
      %v3255 = vld [vmem:[%s24 + $0xa68] sm:$0xff]
      %v3256 = vld [vmem:[%s24 + $0xa70] sm:$0xff]
      %v3257 = vld [vmem:[%s24 + $0xa78] sm:$0xff]
      %v3258 = vld [vmem:[%s24 + $0xa80] sm:$0xff]
      %v3259 = vld [vmem:[%s24 + $0xa88] sm:$0xff]
      %v3260 = vld [vmem:[%s24 + $0xa90] sm:$0xff]
      %v3261 = vld [vmem:[%s24 + $0xa98] sm:$0xff]
      %v3262 = vld [vmem:[%s24 + $0xaa0] sm:$0xff]
      %v3263 = vld [vmem:[%s24 + $0xaa8] sm:$0xff]
      %v3264 = vld [vmem:[%s24 + $0xab0] sm:$0xff]
      %v3265 = vld [vmem:[%s24 + $0xab8] sm:$0xff]
      %v3266 = vld [vmem:[%s24 + $0xac0] sm:$0xff]
      %v3267 = vld [vmem:[%s24 + $0xac8] sm:$0xff]
      %v3268 = vld [vmem:[%s24 + $0xad0] sm:$0xff]
      %v3269 = vld [vmem:[%s24 + $0xad8] sm:$0xff]
      %v3270 = vld [vmem:[%s24 + $0xae0] sm:$0xff]
      %v3271 = vld [vmem:[%s24 + $0xae8] sm:$0xff]
      %v3272 = vld [vmem:[%s24 + $0xaf0] sm:$0xff]
      %v3273 = vld [vmem:[%s24 + $0xaf8] sm:$0xff]
      %v3274 = vld [vmem:[%s24 + $0xb00] sm:$0xff]
      %v3275 = vld [vmem:[%s24 + $0xb08] sm:$0xff]
      %v3276 = vld [vmem:[%s24 + $0xb10] sm:$0xff]
      %v3277 = vld [vmem:[%s24 + $0xb18] sm:$0xff]
      %v3278 = vld [vmem:[%s24 + $0xb20] sm:$0xff]
      %v3279 = vld [vmem:[%s24 + $0xb28] sm:$0xff]
      %v3280 = vld [vmem:[%s24 + $0xb30] sm:$0xff]
      %v3281 = vld [vmem:[%s24 + $0xb38] sm:$0xff]
      %v3282 = vld [vmem:[%s24 + $0xb40] sm:$0xff]
      %v3283 = vld [vmem:[%s24 + $0xb48] sm:$0xff]
      %v3284 = vld [vmem:[%s24 + $0xb50] sm:$0xff]
      %v3285 = vld [vmem:[%s24 + $0xb58] sm:$0xff]
      %v3286 = vld [vmem:[%s24 + $0xb60] sm:$0xff]
      %v3287 = vld [vmem:[%s24 + $0xb68] sm:$0xff]
      %v3288 = vld [vmem:[%s24 + $0xb70] sm:$0xff]
      %v3289 = vld [vmem:[%s24 + $0xb78] sm:$0xff]
      %v3290 = vld [vmem:[%s24 + $0xb80] sm:$0xff]
      %v3291 = vld [vmem:[%s24 + $0xb88] sm:$0xff]
      %v3292 = vld [vmem:[%s24 + $0xb90] sm:$0xff]
      %v3293 = vld [vmem:[%s24 + $0xb98] sm:$0xff]
      %v3294 = vld [vmem:[%s24 + $0xba0] sm:$0xff]
      %v3295 = vld [vmem:[%s24 + $0xba8] sm:$0xff]
      %v3296 = vld [vmem:[%s24 + $0xbb0] sm:$0xff]
      %v3297 = vld [vmem:[%s24 + $0xbb8] sm:$0xff]
      %v3298 = vld [vmem:[%s24 + $0xbc0] sm:$0xff]
      %v3299 = vld [vmem:[%s24 + $0xbc8] sm:$0xff]
      %v3300 = vld [vmem:[%s24 + $0xbd0] sm:$0xff]
      %v3301 = vld [vmem:[%s24 + $0xbd8] sm:$0xff]
      %v3302 = vld [vmem:[%s24 + $0xbe0] sm:$0xff]
      %v3303 = vld [vmem:[%s24 + $0xbe8] sm:$0xff]
      %v3304 = vld [vmem:[%s24 + $0xbf0] sm:$0xff]
      %v3305 = vld [vmem:[%s24 + $0xbf8] sm:$0xff]
      %v3306 = vld [vmem:[%s24 + $0xc00] sm:$0xff]
      %v3307 = vld [vmem:[%s24 + $0xc08] sm:$0xff]
      %v3308 = vld [vmem:[%s24 + $0xc10] sm:$0xff]
      %v3309 = vld [vmem:[%s24 + $0xc18] sm:$0xff]
      %v3310 = vld [vmem:[%s24 + $0xc20] sm:$0xff]
      %v3311 = vld [vmem:[%s24 + $0xc28] sm:$0xff]
      %v3312 = vld [vmem:[%s24 + $0xc30] sm:$0xff]
      %v3313 = vld [vmem:[%s24 + $0xc38] sm:$0xff]
      %v3314 = vld [vmem:[%s24 + $0xc40] sm:$0xff]
      %v3315 = vld [vmem:[%s24 + $0xc48] sm:$0xff]
      %v3316 = vld [vmem:[%s24 + $0xc50] sm:$0xff]
      %v3317 = vld [vmem:[%s24 + $0xc58] sm:$0xff]
      %v3318 = vld [vmem:[%s24 + $0xc60] sm:$0xff]
      %v3319 = vld [vmem:[%s24 + $0xc68] sm:$0xff]
      %v3320 = vld [vmem:[%s24 + $0xc70] sm:$0xff]
      %v3321 = vld [vmem:[%s24 + $0xc78] sm:$0xff]
      %v3322 = vld [vmem:[%s24 + $0xc80] sm:$0xff]
      %v3323 = vld [vmem:[%s24 + $0xc88] sm:$0xff]
      %v3324 = vld [vmem:[%s24 + $0xc90] sm:$0xff]
      %v3325 = vld [vmem:[%s24 + $0xc98] sm:$0xff]
      %v3326 = vld [vmem:[%s24 + $0xca0] sm:$0xff]
      %v3327 = vld [vmem:[%s24 + $0xca8] sm:$0xff]
      %v3328 = vld [vmem:[%s24 + $0xcb0] sm:$0xff]
      %v3329 = vld [vmem:[%s24 + $0xcb8] sm:$0xff]
      %v3330 = vld [vmem:[%s24 + $0xcc0] sm:$0xff]
      %v3331 = vld [vmem:[%s24 + $0xcc8] sm:$0xff]
      %v3332 = vld [vmem:[%s24 + $0xcd0] sm:$0xff]
      %v3333 = vld [vmem:[%s24 + $0xcd8] sm:$0xff]
      %v3334 = vld [vmem:[%s24 + $0xce0] sm:$0xff]
      %v3335 = vld [vmem:[%s24 + $0xce8] sm:$0xff]
      %v3336 = vld [vmem:[%s24 + $0xcf0] sm:$0xff]
      %v3337 = vld [vmem:[%s24 + $0xcf8] sm:$0xff]
      %v3338 = vld [vmem:[%s24 + $0xd00] sm:$0xff]
      %v3339 = vld [vmem:[%s24 + $0xd08] sm:$0xff]
      %v3340 = vld [vmem:[%s24 + $0xd10] sm:$0xff]
      %v3341 = vld [vmem:[%s24 + $0xd18] sm:$0xff]
      %v3342 = vld [vmem:[%s24 + $0xd20] sm:$0xff]
      %v3343 = vld [vmem:[%s24 + $0xd28] sm:$0xff]
      %v3344 = vld [vmem:[%s24 + $0xd30] sm:$0xff]
      %v3345 = vld [vmem:[%s24 + $0xd38] sm:$0xff]
      %v3346 = vld [vmem:[%s24 + $0xd40] sm:$0xff]
      %v3347 = vld [vmem:[%s24 + $0xd48] sm:$0xff]
      %v3348 = vld [vmem:[%s24 + $0xd50] sm:$0xff]
      %v3349 = vld [vmem:[%s24 + $0xd58] sm:$0xff]
      %v3350 = vld [vmem:[%s24 + $0xd60] sm:$0xff]
      %v3351 = vld [vmem:[%s24 + $0xd68] sm:$0xff]
      %v3352 = vld [vmem:[%s24 + $0xd70] sm:$0xff]
      %v3353 = vld [vmem:[%s24 + $0xd78] sm:$0xff]
      %v3354 = vld [vmem:[%s24 + $0xd80] sm:$0xff]
      %v3355 = vld [vmem:[%s24 + $0xd88] sm:$0xff]
      %v3356 = vld [vmem:[%s24 + $0xd90] sm:$0xff]
      %v3357 = vld [vmem:[%s24 + $0xd98] sm:$0xff]
      %v3358 = vld [vmem:[%s24 + $0xda0] sm:$0xff]
      %v3359 = vld [vmem:[%s24 + $0xda8] sm:$0xff]
      %v3360 = vld [vmem:[%s24 + $0xdb0] sm:$0xff]
      %v3361 = vld [vmem:[%s24 + $0xdb8] sm:$0xff]
      %v3362 = vld [vmem:[%s24 + $0xdc0] sm:$0xff]
      %v3363 = vld [vmem:[%s24 + $0xdc8] sm:$0xff]
      %v3364 = vld [vmem:[%s24 + $0xdd0] sm:$0xff]
      %v3365 = vld [vmem:[%s24 + $0xdd8] sm:$0xff]
      %v3366 = vld [vmem:[%s24 + $0xde0] sm:$0xff]
      %v3367 = vld [vmem:[%s24 + $0xde8] sm:$0xff]
      %v3368 = vld [vmem:[%s24 + $0xdf0] sm:$0xff]
      %v3369 = vld [vmem:[%s24 + $0xdf8] sm:$0xff]
      %v3370 = vld [vmem:[%s24 + $0xe00] sm:$0xff]
      %v3371 = vld [vmem:[%s24 + $0xe08] sm:$0xff]
      %v3372 = vld [vmem:[%s24 + $0xe10] sm:$0xff]
      %v3373 = vld [vmem:[%s24 + $0xe18] sm:$0xff]
      %v3374 = vld [vmem:[%s24 + $0xe20] sm:$0xff]
      %v3375 = vld [vmem:[%s24 + $0xe28] sm:$0xff]
      %v3376 = vld [vmem:[%s24 + $0xe30] sm:$0xff]
      %v3377 = vld [vmem:[%s24 + $0xe38] sm:$0xff]
      %v3378 = vld [vmem:[%s24 + $0xe40] sm:$0xff]
      %v3379 = vld [vmem:[%s24 + $0xe48] sm:$0xff]
      %v3380 = vld [vmem:[%s24 + $0xe50] sm:$0xff]
      %v3381 = vld [vmem:[%s24 + $0xe58] sm:$0xff]
      %v3382 = vld [vmem:[%s24 + $0xe60] sm:$0xff]
      %v3383 = vld [vmem:[%s24 + $0xe68] sm:$0xff]
      %v3384 = vld [vmem:[%s24 + $0xe70] sm:$0xff]
      %v3385 = vld [vmem:[%s24 + $0xe78] sm:$0xff]
      %v3386 = vld [vmem:[%s24 + $0xe80] sm:$0xff]
      %v3387 = vld [vmem:[%s24 + $0xe88] sm:$0xff]
      %v3388 = vld [vmem:[%s24 + $0xe90] sm:$0xff]
      %v3389 = vld [vmem:[%s24 + $0xe98] sm:$0xff]
      %v3390 = vld [vmem:[%s24 + $0xea0] sm:$0xff]
      %v3391 = vld [vmem:[%s24 + $0xea8] sm:$0xff]
      %v3392 = vld [vmem:[%s24 + $0xeb0] sm:$0xff]
      %v3393 = vld [vmem:[%s24 + $0xeb8] sm:$0xff]
      %v3394 = vld [vmem:[%s24 + $0xec0] sm:$0xff]
      %v3395 = vld [vmem:[%s24 + $0xec8] sm:$0xff]
      %v3396 = vld [vmem:[%s24 + $0xed0] sm:$0xff]
      %v3397 = vld [vmem:[%s24 + $0xed8] sm:$0xff]
      %v3398 = vld [vmem:[%s24 + $0xee0] sm:$0xff]
      %v3399 = vld [vmem:[%s24 + $0xee8] sm:$0xff]
      %v3400 = vld [vmem:[%s24 + $0xef0] sm:$0xff]
      %v3401 = vld [vmem:[%s24 + $0xef8] sm:$0xff]
      %v3402 = vld [vmem:[%s24 + $0xf00] sm:$0xff]
      %v3403 = vld [vmem:[%s24 + $0xf08] sm:$0xff]
      %v3404 = vld [vmem:[%s24 + $0xf10] sm:$0xff]
      %v3405 = vld [vmem:[%s24 + $0xf18] sm:$0xff]
      %v3406 = vld [vmem:[%s24 + $0xf20] sm:$0xff]
      %v3407 = vld [vmem:[%s24 + $0xf28] sm:$0xff]
      %v3408 = vld [vmem:[%s24 + $0xf30] sm:$0xff]
      %v3409 = vld [vmem:[%s24 + $0xf38] sm:$0xff]
      %v3410 = vld [vmem:[%s24 + $0xf40] sm:$0xff]
      %v3411 = vld [vmem:[%s24 + $0xf48] sm:$0xff]
      %v3412 = vld [vmem:[%s24 + $0xf50] sm:$0xff]
      %v3413 = vld [vmem:[%s24 + $0xf58] sm:$0xff]
      %v3414 = vld [vmem:[%s24 + $0xf60] sm:$0xff]
      %v3415 = vld [vmem:[%s24 + $0xf68] sm:$0xff]
      %v3416 = vld [vmem:[%s24 + $0xf70] sm:$0xff]
      %v3417 = vld [vmem:[%s24 + $0xf78] sm:$0xff]
      %v3418 = vld [vmem:[%s24 + $0xf80] sm:$0xff]
      %v3419 = vld [vmem:[%s24 + $0xf88] sm:$0xff]
      %v3420 = vld [vmem:[%s24 + $0xf90] sm:$0xff]
      %v3421 = vld [vmem:[%s24 + $0xf98] sm:$0xff]
      %v3422 = vld [vmem:[%s24 + $0xfa0] sm:$0xff]
      %v3423 = vld [vmem:[%s24 + $0xfa8] sm:$0xff]
      %v3424 = vld [vmem:[%s24 + $0xfb0] sm:$0xff]
      %v3425 = vld [vmem:[%s24 + $0xfb8] sm:$0xff]
      %v3426 = vld [vmem:[%s24 + $0xfc0] sm:$0xff]
      %v3427 = vld [vmem:[%s24 + $0xfc8] sm:$0xff]
      %v3428 = vld [vmem:[%s24 + $0xfd0] sm:$0xff]
      %v3429 = vld [vmem:[%s24 + $0xfd8] sm:$0xff]
      %v3430 = vld [vmem:[%s24 + $0xfe0] sm:$0xff]
      %v3431 = vld [vmem:[%s24 + $0xfe8] sm:$0xff]
      %v3432 = vld [vmem:[%s24 + $0xff0] sm:$0xff]
      %v3433 = vld [vmem:[%s24 + $0xff8] sm:$0xff]
      %v3434 = vld [vmem:[%s25] sm:$0xff]
      %v3947 = vunpack.c.l.b16 %v2922
      %v3948 = vunpack.c.h.b16 %v2922
      %v3949 = vunpack.c.l.b16 %v2923
      %v3950 = vunpack.c.h.b16 %v2923
      %v3951 = vunpack.c.l.b16 %v2924
      %v3952 = vunpack.c.h.b16 %v2924
      %v3953 = vunpack.c.l.b16 %v2925
      %v3954 = vunpack.c.h.b16 %v2925
      %v3955 = vunpack.c.l.b16 %v2926
      %v3956 = vunpack.c.h.b16 %v2926
      %v3957 = vunpack.c.l.b16 %v2927
      %v3958 = vunpack.c.h.b16 %v2927
      %v3959 = vunpack.c.l.b16 %v2928
      %v3960 = vunpack.c.h.b16 %v2928
      %v3961 = vunpack.c.l.b16 %v2929
      %v3962 = vunpack.c.h.b16 %v2929
      %v3963 = vunpack.c.l.b16 %v2930
      %v3964 = vunpack.c.h.b16 %v2930
      %v3965 = vunpack.c.l.b16 %v2931
      %v3966 = vunpack.c.h.b16 %v2931
      %v3967 = vunpack.c.l.b16 %v2932
      %v3968 = vunpack.c.h.b16 %v2932
      %v3969 = vunpack.c.l.b16 %v2933
      %v3970 = vunpack.c.h.b16 %v2933
      %v3971 = vunpack.c.l.b16 %v2934
      %v3972 = vunpack.c.h.b16 %v2934
      %v3973 = vunpack.c.l.b16 %v2935
      %v3974 = vunpack.c.h.b16 %v2935
      %v3975 = vunpack.c.l.b16 %v2936
      %v3976 = vunpack.c.h.b16 %v2936
      %v3977 = vunpack.c.l.b16 %v2937
      %v3978 = vunpack.c.h.b16 %v2937
      %v3979 = vunpack.c.l.b16 %v2938
      %v3980 = vunpack.c.h.b16 %v2938
      %v3981 = vunpack.c.l.b16 %v2939
      %v3982 = vunpack.c.h.b16 %v2939
      %v3983 = vunpack.c.l.b16 %v2940
      %v3984 = vunpack.c.h.b16 %v2940
      %v3985 = vunpack.c.l.b16 %v2941
      %v3986 = vunpack.c.h.b16 %v2941
      %v3987 = vunpack.c.l.b16 %v2942
      %v3988 = vunpack.c.h.b16 %v2942
      %v3989 = vunpack.c.l.b16 %v2943
      %v3990 = vunpack.c.h.b16 %v2943
      %v3991 = vunpack.c.l.b16 %v2944
      %v3992 = vunpack.c.h.b16 %v2944
      %v3993 = vunpack.c.l.b16 %v2945
      %v3994 = vunpack.c.h.b16 %v2945
      %v3995 = vunpack.c.l.b16 %v2946
      %v3996 = vunpack.c.h.b16 %v2946
      %v3997 = vunpack.c.l.b16 %v2947
      %v3998 = vunpack.c.h.b16 %v2947
      %v3999 = vunpack.c.l.b16 %v2948
      %v4000 = vunpack.c.h.b16 %v2948
      %v4001 = vunpack.c.l.b16 %v2949
      %v4002 = vunpack.c.h.b16 %v2949
      %v4003 = vunpack.c.l.b16 %v2950
      %v4004 = vunpack.c.h.b16 %v2950
      %v4005 = vunpack.c.l.b16 %v2951
      %v4006 = vunpack.c.h.b16 %v2951
      %v4007 = vunpack.c.l.b16 %v2952
      %v4008 = vunpack.c.h.b16 %v2952
      %v4009 = vunpack.c.l.b16 %v2953
      %v4010 = vunpack.c.h.b16 %v2953
      %v4011 = vunpack.c.l.b16 %v2954
      %v4012 = vunpack.c.h.b16 %v2954
      %v4013 = vunpack.c.l.b16 %v2955
      %v4014 = vunpack.c.h.b16 %v2955
      %v4015 = vunpack.c.l.b16 %v2956
      %v4016 = vunpack.c.h.b16 %v2956
      %v4017 = vunpack.c.l.b16 %v2957
      %v4018 = vunpack.c.h.b16 %v2957
      %v4019 = vunpack.c.l.b16 %v2958
      %v4020 = vunpack.c.h.b16 %v2958
      %v4021 = vunpack.c.l.b16 %v2959
      %v4022 = vunpack.c.h.b16 %v2959
      %v4023 = vunpack.c.l.b16 %v2960
      %v4024 = vunpack.c.h.b16 %v2960
      %v4025 = vunpack.c.l.b16 %v2961
      %v4026 = vunpack.c.h.b16 %v2961
      %v4027 = vunpack.c.l.b16 %v2962
      %v4028 = vunpack.c.h.b16 %v2962
      %v4029 = vunpack.c.l.b16 %v2963
      %v4030 = vunpack.c.h.b16 %v2963
      %v4031 = vunpack.c.l.b16 %v2964
      %v4032 = vunpack.c.h.b16 %v2964
      %v4033 = vunpack.c.l.b16 %v2965
      %v4034 = vunpack.c.h.b16 %v2965
      %v4035 = vunpack.c.l.b16 %v2966
      %v4036 = vunpack.c.h.b16 %v2966
      %v4037 = vunpack.c.l.b16 %v2967
      %v4038 = vunpack.c.h.b16 %v2967
      %v4039 = vunpack.c.l.b16 %v2968
      %v4040 = vunpack.c.h.b16 %v2968
      %v4041 = vunpack.c.l.b16 %v2969
      %v4042 = vunpack.c.h.b16 %v2969
      %v4043 = vunpack.c.l.b16 %v2970
      %v4044 = vunpack.c.h.b16 %v2970
      %v4045 = vunpack.c.l.b16 %v2971
      %v4046 = vunpack.c.h.b16 %v2971
      %v4047 = vunpack.c.l.b16 %v2972
      %v4048 = vunpack.c.h.b16 %v2972
      %v4049 = vunpack.c.l.b16 %v2973
      %v4050 = vunpack.c.h.b16 %v2973
      %v4051 = vunpack.c.l.b16 %v2974
      %v4052 = vunpack.c.h.b16 %v2974
      %v4053 = vunpack.c.l.b16 %v2975
      %v4054 = vunpack.c.h.b16 %v2975
      %v4055 = vunpack.c.l.b16 %v2976
      %v4056 = vunpack.c.h.b16 %v2976
      %v4057 = vunpack.c.l.b16 %v2977
      %v4058 = vunpack.c.h.b16 %v2977
      %v4059 = vunpack.c.l.b16 %v2978
      %v4060 = vunpack.c.h.b16 %v2978
      %v4061 = vunpack.c.l.b16 %v2979
      %v4062 = vunpack.c.h.b16 %v2979
      %v4063 = vunpack.c.l.b16 %v2980
      %v4064 = vunpack.c.h.b16 %v2980
      %v4065 = vunpack.c.l.b16 %v2981
      %v4066 = vunpack.c.h.b16 %v2981
      %v4067 = vunpack.c.l.b16 %v2982
      %v4068 = vunpack.c.h.b16 %v2982
      %v4069 = vunpack.c.l.b16 %v2983
      %v4070 = vunpack.c.h.b16 %v2983
      %v4071 = vunpack.c.l.b16 %v2984
      %v4072 = vunpack.c.h.b16 %v2984
      %v4073 = vunpack.c.l.b16 %v2985
      %v4074 = vunpack.c.h.b16 %v2985
      %v4075 = vunpack.c.l.b16 %v2986
      %v4076 = vunpack.c.h.b16 %v2986
      %v4077 = vunpack.c.l.b16 %v2987
      %v4078 = vunpack.c.h.b16 %v2987
      %v4079 = vunpack.c.l.b16 %v2988
      %v4080 = vunpack.c.h.b16 %v2988
      %v4081 = vunpack.c.l.b16 %v2989
      %v4082 = vunpack.c.h.b16 %v2989
      %v4083 = vunpack.c.l.b16 %v2990
      %v4084 = vunpack.c.h.b16 %v2990
      %v4085 = vunpack.c.l.b16 %v2991
      %v4086 = vunpack.c.h.b16 %v2991
      %v4087 = vunpack.c.l.b16 %v2992
      %v4088 = vunpack.c.h.b16 %v2992
      %v4089 = vunpack.c.l.b16 %v2993
      %v4090 = vunpack.c.h.b16 %v2993
      %v4091 = vunpack.c.l.b16 %v2994
      %v4092 = vunpack.c.h.b16 %v2994
      %v4093 = vunpack.c.l.b16 %v2995
      %v4094 = vunpack.c.h.b16 %v2995
      %v4095 = vunpack.c.l.b16 %v2996
      %v4096 = vunpack.c.h.b16 %v2996
      %v4097 = vunpack.c.l.b16 %v2997
      %v4098 = vunpack.c.h.b16 %v2997
      %v4099 = vunpack.c.l.b16 %v2998
      %v4100 = vunpack.c.h.b16 %v2998
      %v4101 = vunpack.c.l.b16 %v2999
      %v4102 = vunpack.c.h.b16 %v2999
      %v4103 = vunpack.c.l.b16 %v3000
      %v4104 = vunpack.c.h.b16 %v3000
      %v4105 = vunpack.c.l.b16 %v3001
      %v4106 = vunpack.c.h.b16 %v3001
      %v4107 = vunpack.c.l.b16 %v3002
      %v4108 = vunpack.c.h.b16 %v3002
      %v4109 = vunpack.c.l.b16 %v3003
      %v4110 = vunpack.c.h.b16 %v3003
      %v4111 = vunpack.c.l.b16 %v3004
      %v4112 = vunpack.c.h.b16 %v3004
      %v4113 = vunpack.c.l.b16 %v3005
      %v4114 = vunpack.c.h.b16 %v3005
      %v4115 = vunpack.c.l.b16 %v3006
      %v4116 = vunpack.c.h.b16 %v3006
      %v4117 = vunpack.c.l.b16 %v3007
      %v4118 = vunpack.c.h.b16 %v3007
      %v4119 = vunpack.c.l.b16 %v3008
      %v4120 = vunpack.c.h.b16 %v3008
      %v4121 = vunpack.c.l.b16 %v3009
      %v4122 = vunpack.c.h.b16 %v3009
      %v4123 = vunpack.c.l.b16 %v3010
      %v4124 = vunpack.c.h.b16 %v3010
      %v4125 = vunpack.c.l.b16 %v3011
      %v4126 = vunpack.c.h.b16 %v3011
      %v4127 = vunpack.c.l.b16 %v3012
      %v4128 = vunpack.c.h.b16 %v3012
      %v4129 = vunpack.c.l.b16 %v3013
      %v4130 = vunpack.c.h.b16 %v3013
      %v4131 = vunpack.c.l.b16 %v3014
      %v4132 = vunpack.c.h.b16 %v3014
      %v4133 = vunpack.c.l.b16 %v3015
      %v4134 = vunpack.c.h.b16 %v3015
      %v4135 = vunpack.c.l.b16 %v3016
      %v4136 = vunpack.c.h.b16 %v3016
      %v4137 = vunpack.c.l.b16 %v3017
      %v4138 = vunpack.c.h.b16 %v3017
      %v4139 = vunpack.c.l.b16 %v3018
      %v4140 = vunpack.c.h.b16 %v3018
      %v4141 = vunpack.c.l.b16 %v3019
      %v4142 = vunpack.c.h.b16 %v3019
      %v4143 = vunpack.c.l.b16 %v3020
      %v4144 = vunpack.c.h.b16 %v3020
      %v4145 = vunpack.c.l.b16 %v3021
      %v4146 = vunpack.c.h.b16 %v3021
      %v4147 = vunpack.c.l.b16 %v3022
      %v4148 = vunpack.c.h.b16 %v3022
      %v4149 = vunpack.c.l.b16 %v3023
      %v4150 = vunpack.c.h.b16 %v3023
      %v4151 = vunpack.c.l.b16 %v3024
      %v4152 = vunpack.c.h.b16 %v3024
      %v4153 = vunpack.c.l.b16 %v3025
      %v4154 = vunpack.c.h.b16 %v3025
      %v4155 = vunpack.c.l.b16 %v3026
      %v4156 = vunpack.c.h.b16 %v3026
      %v4157 = vunpack.c.l.b16 %v3027
      %v4158 = vunpack.c.h.b16 %v3027
      %v4159 = vunpack.c.l.b16 %v3028
      %v4160 = vunpack.c.h.b16 %v3028
      %v4161 = vunpack.c.l.b16 %v3029
      %v4162 = vunpack.c.h.b16 %v3029
      %v4163 = vunpack.c.l.b16 %v3030
      %v4164 = vunpack.c.h.b16 %v3030
      %v4165 = vunpack.c.l.b16 %v3031
      %v4166 = vunpack.c.h.b16 %v3031
      %v4167 = vunpack.c.l.b16 %v3032
      %v4168 = vunpack.c.h.b16 %v3032
      %v4169 = vunpack.c.l.b16 %v3033
      %v4170 = vunpack.c.h.b16 %v3033
      %v4171 = vunpack.c.l.b16 %v3034
      %v4172 = vunpack.c.h.b16 %v3034
      %v4173 = vunpack.c.l.b16 %v3035
      %v4174 = vunpack.c.h.b16 %v3035
      %v4175 = vunpack.c.l.b16 %v3036
      %v4176 = vunpack.c.h.b16 %v3036
      %v4177 = vunpack.c.l.b16 %v3037
      %v4178 = vunpack.c.h.b16 %v3037
      %v4179 = vunpack.c.l.b16 %v3038
      %v4180 = vunpack.c.h.b16 %v3038
      %v4181 = vunpack.c.l.b16 %v3039
      %v4182 = vunpack.c.h.b16 %v3039
      %v4183 = vunpack.c.l.b16 %v3040
      %v4184 = vunpack.c.h.b16 %v3040
      %v4185 = vunpack.c.l.b16 %v3041
      %v4186 = vunpack.c.h.b16 %v3041
      %v4187 = vunpack.c.l.b16 %v3042
      %v4188 = vunpack.c.h.b16 %v3042
      %v4189 = vunpack.c.l.b16 %v3043
      %v4190 = vunpack.c.h.b16 %v3043
      %v4191 = vunpack.c.l.b16 %v3044
      %v4192 = vunpack.c.h.b16 %v3044
      %v4193 = vunpack.c.l.b16 %v3045
      %v4194 = vunpack.c.h.b16 %v3045
      %v4195 = vunpack.c.l.b16 %v3046
      %v4196 = vunpack.c.h.b16 %v3046
      %v4197 = vunpack.c.l.b16 %v3047
      %v4198 = vunpack.c.h.b16 %v3047
      %v4199 = vunpack.c.l.b16 %v3048
      %v4200 = vunpack.c.h.b16 %v3048
      %v4201 = vunpack.c.l.b16 %v3049
      %v4202 = vunpack.c.h.b16 %v3049
      %v4203 = vunpack.c.l.b16 %v3050
      %v4204 = vunpack.c.h.b16 %v3050
      %v4205 = vunpack.c.l.b16 %v3051
      %v4206 = vunpack.c.h.b16 %v3051
      %v4207 = vunpack.c.l.b16 %v3052
      %v4208 = vunpack.c.h.b16 %v3052
      %v4209 = vunpack.c.l.b16 %v3053
      %v4210 = vunpack.c.h.b16 %v3053
      %v4211 = vunpack.c.l.b16 %v3054
      %v4212 = vunpack.c.h.b16 %v3054
      %v4213 = vunpack.c.l.b16 %v3055
      %v4214 = vunpack.c.h.b16 %v3055
      %v4215 = vunpack.c.l.b16 %v3056
      %v4216 = vunpack.c.h.b16 %v3056
      %v4217 = vunpack.c.l.b16 %v3057
      %v4218 = vunpack.c.h.b16 %v3057
      %v4219 = vunpack.c.l.b16 %v3058
      %v4220 = vunpack.c.h.b16 %v3058
      %v4221 = vunpack.c.l.b16 %v3059
      %v4222 = vunpack.c.h.b16 %v3059
      %v4223 = vunpack.c.l.b16 %v3060
      %v4224 = vunpack.c.h.b16 %v3060
      %v4225 = vunpack.c.l.b16 %v3061
      %v4226 = vunpack.c.h.b16 %v3061
      %v4227 = vunpack.c.l.b16 %v3062
      %v4228 = vunpack.c.h.b16 %v3062
      %v4229 = vunpack.c.l.b16 %v3063
      %v4230 = vunpack.c.h.b16 %v3063
      %v4231 = vunpack.c.l.b16 %v3064
      %v4232 = vunpack.c.h.b16 %v3064
      %v4233 = vunpack.c.l.b16 %v3065
      %v4234 = vunpack.c.h.b16 %v3065
      %v4235 = vunpack.c.l.b16 %v3066
      %v4236 = vunpack.c.h.b16 %v3066
      %v4237 = vunpack.c.l.b16 %v3067
      %v4238 = vunpack.c.h.b16 %v3067
      %v4239 = vunpack.c.l.b16 %v3068
      %v4240 = vunpack.c.h.b16 %v3068
      %v4241 = vunpack.c.l.b16 %v3069
      %v4242 = vunpack.c.h.b16 %v3069
      %v4243 = vunpack.c.l.b16 %v3070
      %v4244 = vunpack.c.h.b16 %v3070
      %v4245 = vunpack.c.l.b16 %v3071
      %v4246 = vunpack.c.h.b16 %v3071
      %v4247 = vunpack.c.l.b16 %v3072
      %v4248 = vunpack.c.h.b16 %v3072
      %v4249 = vunpack.c.l.b16 %v3073
      %v4250 = vunpack.c.h.b16 %v3073
      %v4251 = vunpack.c.l.b16 %v3074
      %v4252 = vunpack.c.h.b16 %v3074
      %v4253 = vunpack.c.l.b16 %v3075
      %v4254 = vunpack.c.h.b16 %v3075
      %v4255 = vunpack.c.l.b16 %v3076
      %v4256 = vunpack.c.h.b16 %v3076
      %v4257 = vunpack.c.l.b16 %v3077
      %v4258 = vunpack.c.h.b16 %v3077
      %v4259 = vunpack.c.l.b16 %v3078
      %v4260 = vunpack.c.h.b16 %v3078
      %v4261 = vunpack.c.l.b16 %v3079
      %v4262 = vunpack.c.h.b16 %v3079
      %v4263 = vunpack.c.l.b16 %v3080
      %v4264 = vunpack.c.h.b16 %v3080
      %v4265 = vunpack.c.l.b16 %v3081
      %v4266 = vunpack.c.h.b16 %v3081
      %v4267 = vunpack.c.l.b16 %v3082
      %v4268 = vunpack.c.h.b16 %v3082
      %v4269 = vunpack.c.l.b16 %v3083
      %v4270 = vunpack.c.h.b16 %v3083
      %v4271 = vunpack.c.l.b16 %v3084
      %v4272 = vunpack.c.h.b16 %v3084
      %v4273 = vunpack.c.l.b16 %v3085
      %v4274 = vunpack.c.h.b16 %v3085
      %v4275 = vunpack.c.l.b16 %v3086
      %v4276 = vunpack.c.h.b16 %v3086
      %v4277 = vunpack.c.l.b16 %v3087
      %v4278 = vunpack.c.h.b16 %v3087
      %v4279 = vunpack.c.l.b16 %v3088
      %v4280 = vunpack.c.h.b16 %v3088
      %v4281 = vunpack.c.l.b16 %v3089
      %v4282 = vunpack.c.h.b16 %v3089
      %v4283 = vunpack.c.l.b16 %v3090
      %v4284 = vunpack.c.h.b16 %v3090
      %v4285 = vunpack.c.l.b16 %v3091
      %v4286 = vunpack.c.h.b16 %v3091
      %v4287 = vunpack.c.l.b16 %v3092
      %v4288 = vunpack.c.h.b16 %v3092
      %v4289 = vunpack.c.l.b16 %v3093
      %v4290 = vunpack.c.h.b16 %v3093
      %v4291 = vunpack.c.l.b16 %v3094
      %v4292 = vunpack.c.h.b16 %v3094
      %v4293 = vunpack.c.l.b16 %v3095
      %v4294 = vunpack.c.h.b16 %v3095
      %v4295 = vunpack.c.l.b16 %v3096
      %v4296 = vunpack.c.h.b16 %v3096
      %v4297 = vunpack.c.l.b16 %v3097
      %v4298 = vunpack.c.h.b16 %v3097
      %v4299 = vunpack.c.l.b16 %v3098
      %v4300 = vunpack.c.h.b16 %v3098
      %v4301 = vunpack.c.l.b16 %v3099
      %v4302 = vunpack.c.h.b16 %v3099
      %v4303 = vunpack.c.l.b16 %v3100
      %v4304 = vunpack.c.h.b16 %v3100
      %v4305 = vunpack.c.l.b16 %v3101
      %v4306 = vunpack.c.h.b16 %v3101
      %v4307 = vunpack.c.l.b16 %v3102
      %v4308 = vunpack.c.h.b16 %v3102
      %v4309 = vunpack.c.l.b16 %v3103
      %v4310 = vunpack.c.h.b16 %v3103
      %v4311 = vunpack.c.l.b16 %v3104
      %v4312 = vunpack.c.h.b16 %v3104
      %v4313 = vunpack.c.l.b16 %v3105
      %v4314 = vunpack.c.h.b16 %v3105
      %v4315 = vunpack.c.l.b16 %v3106
      %v4316 = vunpack.c.h.b16 %v3106
      %v4317 = vunpack.c.l.b16 %v3107
      %v4318 = vunpack.c.h.b16 %v3107
      %v4319 = vunpack.c.l.b16 %v3108
      %v4320 = vunpack.c.h.b16 %v3108
      %v4321 = vunpack.c.l.b16 %v3109
      %v4322 = vunpack.c.h.b16 %v3109
      %v4323 = vunpack.c.l.b16 %v3110
      %v4324 = vunpack.c.h.b16 %v3110
      %v4325 = vunpack.c.l.b16 %v3111
      %v4326 = vunpack.c.h.b16 %v3111
      %v4327 = vunpack.c.l.b16 %v3112
      %v4328 = vunpack.c.h.b16 %v3112
      %v4329 = vunpack.c.l.b16 %v3113
      %v4330 = vunpack.c.h.b16 %v3113
      %v4331 = vunpack.c.l.b16 %v3114
      %v4332 = vunpack.c.h.b16 %v3114
      %v4333 = vunpack.c.l.b16 %v3115
      %v4334 = vunpack.c.h.b16 %v3115
      %v4335 = vunpack.c.l.b16 %v3116
      %v4336 = vunpack.c.h.b16 %v3116
      %v4337 = vunpack.c.l.b16 %v3117
      %v4338 = vunpack.c.h.b16 %v3117
      %v4339 = vunpack.c.l.b16 %v3118
      %v4340 = vunpack.c.h.b16 %v3118
      %v4341 = vunpack.c.l.b16 %v3119
      %v4342 = vunpack.c.h.b16 %v3119
      %v4343 = vunpack.c.l.b16 %v3120
      %v4344 = vunpack.c.h.b16 %v3120
      %v4345 = vunpack.c.l.b16 %v3121
      %v4346 = vunpack.c.h.b16 %v3121
      %v4347 = vunpack.c.l.b16 %v3122
      %v4348 = vunpack.c.h.b16 %v3122
      %v4349 = vunpack.c.l.b16 %v3123
      %v4350 = vunpack.c.h.b16 %v3123
      %v4351 = vunpack.c.l.b16 %v3124
      %v4352 = vunpack.c.h.b16 %v3124
      %v4353 = vunpack.c.l.b16 %v3125
      %v4354 = vunpack.c.h.b16 %v3125
      %v4355 = vunpack.c.l.b16 %v3126
      %v4356 = vunpack.c.h.b16 %v3126
      %v4357 = vunpack.c.l.b16 %v3127
      %v4358 = vunpack.c.h.b16 %v3127
      %v4359 = vunpack.c.l.b16 %v3128
      %v4360 = vunpack.c.h.b16 %v3128
      %v4361 = vunpack.c.l.b16 %v3129
      %v4362 = vunpack.c.h.b16 %v3129
      %v4363 = vunpack.c.l.b16 %v3130
      %v4364 = vunpack.c.h.b16 %v3130
      %v4365 = vunpack.c.l.b16 %v3131
      %v4366 = vunpack.c.h.b16 %v3131
      %v4367 = vunpack.c.l.b16 %v3132
      %v4368 = vunpack.c.h.b16 %v3132
      %v4369 = vunpack.c.l.b16 %v3133
      %v4370 = vunpack.c.h.b16 %v3133
      %v4371 = vunpack.c.l.b16 %v3134
      %v4372 = vunpack.c.h.b16 %v3134
      %v4373 = vunpack.c.l.b16 %v3135
      %v4374 = vunpack.c.h.b16 %v3135
      %v4375 = vunpack.c.l.b16 %v3136
      %v4376 = vunpack.c.h.b16 %v3136
      %v4377 = vunpack.c.l.b16 %v3137
      %v4378 = vunpack.c.h.b16 %v3137
      %v4379 = vunpack.c.l.b16 %v3138
      %v4380 = vunpack.c.h.b16 %v3138
      %v4381 = vunpack.c.l.b16 %v3139
      %v4382 = vunpack.c.h.b16 %v3139
      %v4383 = vunpack.c.l.b16 %v3140
      %v4384 = vunpack.c.h.b16 %v3140
      %v4385 = vunpack.c.l.b16 %v3141
      %v4386 = vunpack.c.h.b16 %v3141
      %v4387 = vunpack.c.l.b16 %v3142
      %v4388 = vunpack.c.h.b16 %v3142
      %v4389 = vunpack.c.l.b16 %v3143
      %v4390 = vunpack.c.h.b16 %v3143
      %v4391 = vunpack.c.l.b16 %v3144
      %v4392 = vunpack.c.h.b16 %v3144
      %v4393 = vunpack.c.l.b16 %v3145
      %v4394 = vunpack.c.h.b16 %v3145
      %v4395 = vunpack.c.l.b16 %v3146
      %v4396 = vunpack.c.h.b16 %v3146
      %v4397 = vunpack.c.l.b16 %v3147
      %v4398 = vunpack.c.h.b16 %v3147
      %v4399 = vunpack.c.l.b16 %v3148
      %v4400 = vunpack.c.h.b16 %v3148
      %v4401 = vunpack.c.l.b16 %v3149
      %v4402 = vunpack.c.h.b16 %v3149
      %v4403 = vunpack.c.l.b16 %v3150
      %v4404 = vunpack.c.h.b16 %v3150
      %v4405 = vunpack.c.l.b16 %v3151
      %v4406 = vunpack.c.h.b16 %v3151
      %v4407 = vunpack.c.l.b16 %v3152
      %v4408 = vunpack.c.h.b16 %v3152
      %v4409 = vunpack.c.l.b16 %v3153
      %v4410 = vunpack.c.h.b16 %v3153
      %v4411 = vunpack.c.l.b16 %v3154
      %v4412 = vunpack.c.h.b16 %v3154
      %v4413 = vunpack.c.l.b16 %v3155
      %v4414 = vunpack.c.h.b16 %v3155
      %v4415 = vunpack.c.l.b16 %v3156
      %v4416 = vunpack.c.h.b16 %v3156
      %v4417 = vunpack.c.l.b16 %v3157
      %v4418 = vunpack.c.h.b16 %v3157
      %v4419 = vunpack.c.l.b16 %v3158
      %v4420 = vunpack.c.h.b16 %v3158
      %v4421 = vunpack.c.l.b16 %v3159
      %v4422 = vunpack.c.h.b16 %v3159
      %v4423 = vunpack.c.l.b16 %v3160
      %v4424 = vunpack.c.h.b16 %v3160
      %v4425 = vunpack.c.l.b16 %v3161
      %v4426 = vunpack.c.h.b16 %v3161
      %v4427 = vunpack.c.l.b16 %v3162
      %v4428 = vunpack.c.h.b16 %v3162
      %v4429 = vunpack.c.l.b16 %v3163
      %v4430 = vunpack.c.h.b16 %v3163
      %v4431 = vunpack.c.l.b16 %v3164
      %v4432 = vunpack.c.h.b16 %v3164
      %v4433 = vunpack.c.l.b16 %v3165
      %v4434 = vunpack.c.h.b16 %v3165
      %v4435 = vunpack.c.l.b16 %v3166
      %v4436 = vunpack.c.h.b16 %v3166
      %v4437 = vunpack.c.l.b16 %v3167
      %v4438 = vunpack.c.h.b16 %v3167
      %v4439 = vunpack.c.l.b16 %v3168
      %v4440 = vunpack.c.h.b16 %v3168
      %v4441 = vunpack.c.l.b16 %v3169
      %v4442 = vunpack.c.h.b16 %v3169
      %v4443 = vunpack.c.l.b16 %v3170
      %v4444 = vunpack.c.h.b16 %v3170
      %v4445 = vunpack.c.l.b16 %v3171
      %v4446 = vunpack.c.h.b16 %v3171
      %v4447 = vunpack.c.l.b16 %v3172
      %v4448 = vunpack.c.h.b16 %v3172
      %v4449 = vunpack.c.l.b16 %v3173
      %v4450 = vunpack.c.h.b16 %v3173
      %v4451 = vunpack.c.l.b16 %v3174
      %v4452 = vunpack.c.h.b16 %v3174
      %v4453 = vunpack.c.l.b16 %v3175
      %v4454 = vunpack.c.h.b16 %v3175
      %v4455 = vunpack.c.l.b16 %v3176
      %v4456 = vunpack.c.h.b16 %v3176
      %v4457 = vunpack.c.l.b16 %v3177
      %v4458 = vunpack.c.h.b16 %v3177
      %v4459 = vunpack.c.l.b16 %v3178
      %v4460 = vunpack.c.h.b16 %v3178
      %v4461 = vunpack.c.l.b16 %v3179
      %v4462 = vunpack.c.h.b16 %v3179
      %v4463 = vunpack.c.l.b16 %v3180
      %v4464 = vunpack.c.h.b16 %v3180
      %v4465 = vunpack.c.l.b16 %v3181
      %v4466 = vunpack.c.h.b16 %v3181
      %v4467 = vunpack.c.l.b16 %v3182
      %v4468 = vunpack.c.h.b16 %v3182
      %v4469 = vunpack.c.l.b16 %v3183
      %v4470 = vunpack.c.h.b16 %v3183
      %v4471 = vunpack.c.l.b16 %v3184
      %v4472 = vunpack.c.h.b16 %v3184
      %v4473 = vunpack.c.l.b16 %v3185
      %v4474 = vunpack.c.h.b16 %v3185
      %v4475 = vunpack.c.l.b16 %v3186
      %v4476 = vunpack.c.h.b16 %v3186
      %v4477 = vunpack.c.l.b16 %v3187
      %v4478 = vunpack.c.h.b16 %v3187
      %v4479 = vunpack.c.l.b16 %v3188
      %v4480 = vunpack.c.h.b16 %v3188
      %v4481 = vunpack.c.l.b16 %v3189
      %v4482 = vunpack.c.h.b16 %v3189
      %v4483 = vunpack.c.l.b16 %v3190
      %v4484 = vunpack.c.h.b16 %v3190
      %v4485 = vunpack.c.l.b16 %v3191
      %v4486 = vunpack.c.h.b16 %v3191
      %v4487 = vunpack.c.l.b16 %v3192
      %v4488 = vunpack.c.h.b16 %v3192
      %v4489 = vunpack.c.l.b16 %v3193
      %v4490 = vunpack.c.h.b16 %v3193
      %v4491 = vunpack.c.l.b16 %v3194
      %v4492 = vunpack.c.h.b16 %v3194
      %v4493 = vunpack.c.l.b16 %v3195
      %v4494 = vunpack.c.h.b16 %v3195
      %v4495 = vunpack.c.l.b16 %v3196
      %v4496 = vunpack.c.h.b16 %v3196
      %v4497 = vunpack.c.l.b16 %v3197
      %v4498 = vunpack.c.h.b16 %v3197
      %v4499 = vunpack.c.l.b16 %v3198
      %v4500 = vunpack.c.h.b16 %v3198
      %v4501 = vunpack.c.l.b16 %v3199
      %v4502 = vunpack.c.h.b16 %v3199
      %v4503 = vunpack.c.l.b16 %v3200
      %v4504 = vunpack.c.h.b16 %v3200
      %v4505 = vunpack.c.l.b16 %v3201
      %v4506 = vunpack.c.h.b16 %v3201
      %v4507 = vunpack.c.l.b16 %v3202
      %v4508 = vunpack.c.h.b16 %v3202
      %v4509 = vunpack.c.l.b16 %v3203
      %v4510 = vunpack.c.h.b16 %v3203
      %v4511 = vunpack.c.l.b16 %v3204
      %v4512 = vunpack.c.h.b16 %v3204
      %v4513 = vunpack.c.l.b16 %v3205
      %v4514 = vunpack.c.h.b16 %v3205
      %v4515 = vunpack.c.l.b16 %v3206
      %v4516 = vunpack.c.h.b16 %v3206
      %v4517 = vunpack.c.l.b16 %v3207
      %v4518 = vunpack.c.h.b16 %v3207
      %v4519 = vunpack.c.l.b16 %v3208
      %v4520 = vunpack.c.h.b16 %v3208
      %v4521 = vunpack.c.l.b16 %v3209
      %v4522 = vunpack.c.h.b16 %v3209
      %v4523 = vunpack.c.l.b16 %v3210
      %v4524 = vunpack.c.h.b16 %v3210
      %v4525 = vunpack.c.l.b16 %v3211
      %v4526 = vunpack.c.h.b16 %v3211
      %v4527 = vunpack.c.l.b16 %v3212
      %v4528 = vunpack.c.h.b16 %v3212
      %v4529 = vunpack.c.l.b16 %v3213
      %v4530 = vunpack.c.h.b16 %v3213
      %v4531 = vunpack.c.l.b16 %v3214
      %v4532 = vunpack.c.h.b16 %v3214
      %v4533 = vunpack.c.l.b16 %v3215
      %v4534 = vunpack.c.h.b16 %v3215
      %v4535 = vunpack.c.l.b16 %v3216
      %v4536 = vunpack.c.h.b16 %v3216
      %v4537 = vunpack.c.l.b16 %v3217
      %v4538 = vunpack.c.h.b16 %v3217
      %v4539 = vunpack.c.l.b16 %v3218
      %v4540 = vunpack.c.h.b16 %v3218
      %v4541 = vunpack.c.l.b16 %v3219
      %v4542 = vunpack.c.h.b16 %v3219
      %v4543 = vunpack.c.l.b16 %v3220
      %v4544 = vunpack.c.h.b16 %v3220
      %v4545 = vunpack.c.l.b16 %v3221
      %v4546 = vunpack.c.h.b16 %v3221
      %v4547 = vunpack.c.l.b16 %v3222
      %v4548 = vunpack.c.h.b16 %v3222
      %v4549 = vunpack.c.l.b16 %v3223
      %v4550 = vunpack.c.h.b16 %v3223
      %v4551 = vunpack.c.l.b16 %v3224
      %v4552 = vunpack.c.h.b16 %v3224
      %v4553 = vunpack.c.l.b16 %v3225
      %v4554 = vunpack.c.h.b16 %v3225
      %v4555 = vunpack.c.l.b16 %v3226
      %v4556 = vunpack.c.h.b16 %v3226
      %v4557 = vunpack.c.l.b16 %v3227
      %v4558 = vunpack.c.h.b16 %v3227
      %v4559 = vunpack.c.l.b16 %v3228
      %v4560 = vunpack.c.h.b16 %v3228
      %v4561 = vunpack.c.l.b16 %v3229
      %v4562 = vunpack.c.h.b16 %v3229
      %v4563 = vunpack.c.l.b16 %v3230
      %v4564 = vunpack.c.h.b16 %v3230
      %v4565 = vunpack.c.l.b16 %v3231
      %v4566 = vunpack.c.h.b16 %v3231
      %v4567 = vunpack.c.l.b16 %v3232
      %v4568 = vunpack.c.h.b16 %v3232
      %v4569 = vunpack.c.l.b16 %v3233
      %v4570 = vunpack.c.h.b16 %v3233
      %v4571 = vunpack.c.l.b16 %v3234
      %v4572 = vunpack.c.h.b16 %v3234
      %v4573 = vunpack.c.l.b16 %v3235
      %v4574 = vunpack.c.h.b16 %v3235
      %v4575 = vunpack.c.l.b16 %v3236
      %v4576 = vunpack.c.h.b16 %v3236
      %v4577 = vunpack.c.l.b16 %v3237
      %v4578 = vunpack.c.h.b16 %v3237
      %v4579 = vunpack.c.l.b16 %v3238
      %v4580 = vunpack.c.h.b16 %v3238
      %v4581 = vunpack.c.l.b16 %v3239
      %v4582 = vunpack.c.h.b16 %v3239
      %v4583 = vunpack.c.l.b16 %v3240
      %v4584 = vunpack.c.h.b16 %v3240
      %v4585 = vunpack.c.l.b16 %v3241
      %v4586 = vunpack.c.h.b16 %v3241
      %v4587 = vunpack.c.l.b16 %v3242
      %v4588 = vunpack.c.h.b16 %v3242
      %v4589 = vunpack.c.l.b16 %v3243
      %v4590 = vunpack.c.h.b16 %v3243
      %v4591 = vunpack.c.l.b16 %v3244
      %v4592 = vunpack.c.h.b16 %v3244
      %v4593 = vunpack.c.l.b16 %v3245
      %v4594 = vunpack.c.h.b16 %v3245
      %v4595 = vunpack.c.l.b16 %v3246
      %v4596 = vunpack.c.h.b16 %v3246
      %v4597 = vunpack.c.l.b16 %v3247
      %v4598 = vunpack.c.h.b16 %v3247
      %v4599 = vunpack.c.l.b16 %v3248
      %v4600 = vunpack.c.h.b16 %v3248
      %v4601 = vunpack.c.l.b16 %v3249
      %v4602 = vunpack.c.h.b16 %v3249
      %v4603 = vunpack.c.l.b16 %v3250
      %v4604 = vunpack.c.h.b16 %v3250
      %v4605 = vunpack.c.l.b16 %v3251
      %v4606 = vunpack.c.h.b16 %v3251
      %v4607 = vunpack.c.l.b16 %v3252
      %v4608 = vunpack.c.h.b16 %v3252
      %v4609 = vunpack.c.l.b16 %v3253
      %v4610 = vunpack.c.h.b16 %v3253
      %v4611 = vunpack.c.l.b16 %v3254
      %v4612 = vunpack.c.h.b16 %v3254
      %v4613 = vunpack.c.l.b16 %v3255
      %v4614 = vunpack.c.h.b16 %v3255
      %v4615 = vunpack.c.l.b16 %v3256
      %v4616 = vunpack.c.h.b16 %v3256
      %v4617 = vunpack.c.l.b16 %v3257
      %v4618 = vunpack.c.h.b16 %v3257
      %v4619 = vunpack.c.l.b16 %v3258
      %v4620 = vunpack.c.h.b16 %v3258
      %v4621 = vunpack.c.l.b16 %v3259
      %v4622 = vunpack.c.h.b16 %v3259
      %v4623 = vunpack.c.l.b16 %v3260
      %v4624 = vunpack.c.h.b16 %v3260
      %v4625 = vunpack.c.l.b16 %v3261
      %v4626 = vunpack.c.h.b16 %v3261
      %v4627 = vunpack.c.l.b16 %v3262
      %v4628 = vunpack.c.h.b16 %v3262
      %v4629 = vunpack.c.l.b16 %v3263
      %v4630 = vunpack.c.h.b16 %v3263
      %v4631 = vunpack.c.l.b16 %v3264
      %v4632 = vunpack.c.h.b16 %v3264
      %v4633 = vunpack.c.l.b16 %v3265
      %v4634 = vunpack.c.h.b16 %v3265
      %v4635 = vunpack.c.l.b16 %v3266
      %v4636 = vunpack.c.h.b16 %v3266
      %v4637 = vunpack.c.l.b16 %v3267
      %v4638 = vunpack.c.h.b16 %v3267
      %v4639 = vunpack.c.l.b16 %v3268
      %v4640 = vunpack.c.h.b16 %v3268
      %v4641 = vunpack.c.l.b16 %v3269
      %v4642 = vunpack.c.h.b16 %v3269
      %v4643 = vunpack.c.l.b16 %v3270
      %v4644 = vunpack.c.h.b16 %v3270
      %v4645 = vunpack.c.l.b16 %v3271
      %v4646 = vunpack.c.h.b16 %v3271
      %v4647 = vunpack.c.l.b16 %v3272
      %v4648 = vunpack.c.h.b16 %v3272
      %v4649 = vunpack.c.l.b16 %v3273
      %v4650 = vunpack.c.h.b16 %v3273
      %v4651 = vunpack.c.l.b16 %v3274
      %v4652 = vunpack.c.h.b16 %v3274
      %v4653 = vunpack.c.l.b16 %v3275
      %v4654 = vunpack.c.h.b16 %v3275
      %v4655 = vunpack.c.l.b16 %v3276
      %v4656 = vunpack.c.h.b16 %v3276
      %v4657 = vunpack.c.l.b16 %v3277
      %v4658 = vunpack.c.h.b16 %v3277
      %v4659 = vunpack.c.l.b16 %v3278
      %v4660 = vunpack.c.h.b16 %v3278
      %v4661 = vunpack.c.l.b16 %v3279
      %v4662 = vunpack.c.h.b16 %v3279
      %v4663 = vunpack.c.l.b16 %v3280
      %v4664 = vunpack.c.h.b16 %v3280
      %v4665 = vunpack.c.l.b16 %v3281
      %v4666 = vunpack.c.h.b16 %v3281
      %v4667 = vunpack.c.l.b16 %v3282
      %v4668 = vunpack.c.h.b16 %v3282
      %v4669 = vunpack.c.l.b16 %v3283
      %v4670 = vunpack.c.h.b16 %v3283
      %v4671 = vunpack.c.l.b16 %v3284
      %v4672 = vunpack.c.h.b16 %v3284
      %v4673 = vunpack.c.l.b16 %v3285
      %v4674 = vunpack.c.h.b16 %v3285
      %v4675 = vunpack.c.l.b16 %v3286
      %v4676 = vunpack.c.h.b16 %v3286
      %v4677 = vunpack.c.l.b16 %v3287
      %v4678 = vunpack.c.h.b16 %v3287
      %v4679 = vunpack.c.l.b16 %v3288
      %v4680 = vunpack.c.h.b16 %v3288
      %v4681 = vunpack.c.l.b16 %v3289
      %v4682 = vunpack.c.h.b16 %v3289
      %v4683 = vunpack.c.l.b16 %v3290
      %v4684 = vunpack.c.h.b16 %v3290
      %v4685 = vunpack.c.l.b16 %v3291
      %v4686 = vunpack.c.h.b16 %v3291
      %v4687 = vunpack.c.l.b16 %v3292
      %v4688 = vunpack.c.h.b16 %v3292
      %v4689 = vunpack.c.l.b16 %v3293
      %v4690 = vunpack.c.h.b16 %v3293
      %v4691 = vunpack.c.l.b16 %v3294
      %v4692 = vunpack.c.h.b16 %v3294
      %v4693 = vunpack.c.l.b16 %v3295
      %v4694 = vunpack.c.h.b16 %v3295
      %v4695 = vunpack.c.l.b16 %v3296
      %v4696 = vunpack.c.h.b16 %v3296
      %v4697 = vunpack.c.l.b16 %v3297
      %v4698 = vunpack.c.h.b16 %v3297
      %v4699 = vunpack.c.l.b16 %v3298
      %v4700 = vunpack.c.h.b16 %v3298
      %v4701 = vunpack.c.l.b16 %v3299
      %v4702 = vunpack.c.h.b16 %v3299
      %v4703 = vunpack.c.l.b16 %v3300
      %v4704 = vunpack.c.h.b16 %v3300
      %v4705 = vunpack.c.l.b16 %v3301
      %v4706 = vunpack.c.h.b16 %v3301
      %v4707 = vunpack.c.l.b16 %v3302
      %v4708 = vunpack.c.h.b16 %v3302
      %v4709 = vunpack.c.l.b16 %v3303
      %v4710 = vunpack.c.h.b16 %v3303
      %v4711 = vunpack.c.l.b16 %v3304
      %v4712 = vunpack.c.h.b16 %v3304
      %v4713 = vunpack.c.l.b16 %v3305
      %v4714 = vunpack.c.h.b16 %v3305
      %v4715 = vunpack.c.l.b16 %v3306
      %v4716 = vunpack.c.h.b16 %v3306
      %v4717 = vunpack.c.l.b16 %v3307
      %v4718 = vunpack.c.h.b16 %v3307
      %v4719 = vunpack.c.l.b16 %v3308
      %v4720 = vunpack.c.h.b16 %v3308
      %v4721 = vunpack.c.l.b16 %v3309
      %v4722 = vunpack.c.h.b16 %v3309
      %v4723 = vunpack.c.l.b16 %v3310
      %v4724 = vunpack.c.h.b16 %v3310
      %v4725 = vunpack.c.l.b16 %v3311
      %v4726 = vunpack.c.h.b16 %v3311
      %v4727 = vunpack.c.l.b16 %v3312
      %v4728 = vunpack.c.h.b16 %v3312
      %v4729 = vunpack.c.l.b16 %v3313
      %v4730 = vunpack.c.h.b16 %v3313
      %v4731 = vunpack.c.l.b16 %v3314
      %v4732 = vunpack.c.h.b16 %v3314
      %v4733 = vunpack.c.l.b16 %v3315
      %v4734 = vunpack.c.h.b16 %v3315
      %v4735 = vunpack.c.l.b16 %v3316
      %v4736 = vunpack.c.h.b16 %v3316
      %v4737 = vunpack.c.l.b16 %v3317
      %v4738 = vunpack.c.h.b16 %v3317
      %v4739 = vunpack.c.l.b16 %v3318
      %v4740 = vunpack.c.h.b16 %v3318
      %v4741 = vunpack.c.l.b16 %v3319
      %v4742 = vunpack.c.h.b16 %v3319
      %v4743 = vunpack.c.l.b16 %v3320
      %v4744 = vunpack.c.h.b16 %v3320
      %v4745 = vunpack.c.l.b16 %v3321
      %v4746 = vunpack.c.h.b16 %v3321
      %v4747 = vunpack.c.l.b16 %v3322
      %v4748 = vunpack.c.h.b16 %v3322
      %v4749 = vunpack.c.l.b16 %v3323
      %v4750 = vunpack.c.h.b16 %v3323
      %v4751 = vunpack.c.l.b16 %v3324
      %v4752 = vunpack.c.h.b16 %v3324
      %v4753 = vunpack.c.l.b16 %v3325
      %v4754 = vunpack.c.h.b16 %v3325
      %v4755 = vunpack.c.l.b16 %v3326
      %v4756 = vunpack.c.h.b16 %v3326
      %v4757 = vunpack.c.l.b16 %v3327
      %v4758 = vunpack.c.h.b16 %v3327
      %v4759 = vunpack.c.l.b16 %v3328
      %v4760 = vunpack.c.h.b16 %v3328
      %v4761 = vunpack.c.l.b16 %v3329
      %v4762 = vunpack.c.h.b16 %v3329
      %v4763 = vunpack.c.l.b16 %v3330
      %v4764 = vunpack.c.h.b16 %v3330
      %v4765 = vunpack.c.l.b16 %v3331
      %v4766 = vunpack.c.h.b16 %v3331
      %v4767 = vunpack.c.l.b16 %v3332
      %v4768 = vunpack.c.h.b16 %v3332
      %v4769 = vunpack.c.l.b16 %v3333
      %v4770 = vunpack.c.h.b16 %v3333
      %v4771 = vunpack.c.l.b16 %v3334
      %v4772 = vunpack.c.h.b16 %v3334
      %v4773 = vunpack.c.l.b16 %v3335
      %v4774 = vunpack.c.h.b16 %v3335
      %v4775 = vunpack.c.l.b16 %v3336
      %v4776 = vunpack.c.h.b16 %v3336
      %v4777 = vunpack.c.l.b16 %v3337
      %v4778 = vunpack.c.h.b16 %v3337
      %v4779 = vunpack.c.l.b16 %v3338
      %v4780 = vunpack.c.h.b16 %v3338
      %v4781 = vunpack.c.l.b16 %v3339
      %v4782 = vunpack.c.h.b16 %v3339
      %v4783 = vunpack.c.l.b16 %v3340
      %v4784 = vunpack.c.h.b16 %v3340
      %v4785 = vunpack.c.l.b16 %v3341
      %v4786 = vunpack.c.h.b16 %v3341
      %v4787 = vunpack.c.l.b16 %v3342
      %v4788 = vunpack.c.h.b16 %v3342
      %v4789 = vunpack.c.l.b16 %v3343
      %v4790 = vunpack.c.h.b16 %v3343
      %v4791 = vunpack.c.l.b16 %v3344
      %v4792 = vunpack.c.h.b16 %v3344
      %v4793 = vunpack.c.l.b16 %v3345
      %v4794 = vunpack.c.h.b16 %v3345
      %v4795 = vunpack.c.l.b16 %v3346
      %v4796 = vunpack.c.h.b16 %v3346
      %v4797 = vunpack.c.l.b16 %v3347
      %v4798 = vunpack.c.h.b16 %v3347
      %v4799 = vunpack.c.l.b16 %v3348
      %v4800 = vunpack.c.h.b16 %v3348
      %v4801 = vunpack.c.l.b16 %v3349
      %v4802 = vunpack.c.h.b16 %v3349
      %v4803 = vunpack.c.l.b16 %v3350
      %v4804 = vunpack.c.h.b16 %v3350
      %v4805 = vunpack.c.l.b16 %v3351
      %v4806 = vunpack.c.h.b16 %v3351
      %v4807 = vunpack.c.l.b16 %v3352
      %v4808 = vunpack.c.h.b16 %v3352
      %v4809 = vunpack.c.l.b16 %v3353
      %v4810 = vunpack.c.h.b16 %v3353
      %v4811 = vunpack.c.l.b16 %v3354
      %v4812 = vunpack.c.h.b16 %v3354
      %v4813 = vunpack.c.l.b16 %v3355
      %v4814 = vunpack.c.h.b16 %v3355
      %v4815 = vunpack.c.l.b16 %v3356
      %v4816 = vunpack.c.h.b16 %v3356
      %v4817 = vunpack.c.l.b16 %v3357
      %v4818 = vunpack.c.h.b16 %v3357
      %v4819 = vunpack.c.l.b16 %v3358
      %v4820 = vunpack.c.h.b16 %v3358
      %v4821 = vunpack.c.l.b16 %v3359
      %v4822 = vunpack.c.h.b16 %v3359
      %v4823 = vunpack.c.l.b16 %v3360
      %v4824 = vunpack.c.h.b16 %v3360
      %v4825 = vunpack.c.l.b16 %v3361
      %v4826 = vunpack.c.h.b16 %v3361
      %v4827 = vunpack.c.l.b16 %v3362
      %v4828 = vunpack.c.h.b16 %v3362
      %v4829 = vunpack.c.l.b16 %v3363
      %v4830 = vunpack.c.h.b16 %v3363
      %v4831 = vunpack.c.l.b16 %v3364
      %v4832 = vunpack.c.h.b16 %v3364
      %v4833 = vunpack.c.l.b16 %v3365
      %v4834 = vunpack.c.h.b16 %v3365
      %v4835 = vunpack.c.l.b16 %v3366
      %v4836 = vunpack.c.h.b16 %v3366
      %v4837 = vunpack.c.l.b16 %v3367
      %v4838 = vunpack.c.h.b16 %v3367
      %v4839 = vunpack.c.l.b16 %v3368
      %v4840 = vunpack.c.h.b16 %v3368
      %v4841 = vunpack.c.l.b16 %v3369
      %v4842 = vunpack.c.h.b16 %v3369
      %v4843 = vunpack.c.l.b16 %v3370
      %v4844 = vunpack.c.h.b16 %v3370
      %v4845 = vunpack.c.l.b16 %v3371
      %v4846 = vunpack.c.h.b16 %v3371
      %v4847 = vunpack.c.l.b16 %v3372
      %v4848 = vunpack.c.h.b16 %v3372
      %v4849 = vunpack.c.l.b16 %v3373
      %v4850 = vunpack.c.h.b16 %v3373
      %v4851 = vunpack.c.l.b16 %v3374
      %v4852 = vunpack.c.h.b16 %v3374
      %v4853 = vunpack.c.l.b16 %v3375
      %v4854 = vunpack.c.h.b16 %v3375
      %v4855 = vunpack.c.l.b16 %v3376
      %v4856 = vunpack.c.h.b16 %v3376
      %v4857 = vunpack.c.l.b16 %v3377
      %v4858 = vunpack.c.h.b16 %v3377
      %v4859 = vunpack.c.l.b16 %v3378
      %v4860 = vunpack.c.h.b16 %v3378
      %v4861 = vunpack.c.l.b16 %v3379
      %v4862 = vunpack.c.h.b16 %v3379
      %v4863 = vunpack.c.l.b16 %v3380
      %v4864 = vunpack.c.h.b16 %v3380
      %v4865 = vunpack.c.l.b16 %v3381
      %v4866 = vunpack.c.h.b16 %v3381
      %v4867 = vunpack.c.l.b16 %v3382
      %v4868 = vunpack.c.h.b16 %v3382
      %v4869 = vunpack.c.l.b16 %v3383
      %v4870 = vunpack.c.h.b16 %v3383
      %v4871 = vunpack.c.l.b16 %v3384
      %v4872 = vunpack.c.h.b16 %v3384
      %v4873 = vunpack.c.l.b16 %v3385
      %v4874 = vunpack.c.h.b16 %v3385
      %v4875 = vunpack.c.l.b16 %v3386
      %v4876 = vunpack.c.h.b16 %v3386
      %v4877 = vunpack.c.l.b16 %v3387
      %v4878 = vunpack.c.h.b16 %v3387
      %v4879 = vunpack.c.l.b16 %v3388
      %v4880 = vunpack.c.h.b16 %v3388
      %v4881 = vunpack.c.l.b16 %v3389
      %v4882 = vunpack.c.h.b16 %v3389
      %v4883 = vunpack.c.l.b16 %v3390
      %v4884 = vunpack.c.h.b16 %v3390
      %v4885 = vunpack.c.l.b16 %v3391
      %v4886 = vunpack.c.h.b16 %v3391
      %v4887 = vunpack.c.l.b16 %v3392
      %v4888 = vunpack.c.h.b16 %v3392
      %v4889 = vunpack.c.l.b16 %v3393
      %v4890 = vunpack.c.h.b16 %v3393
      %v4891 = vunpack.c.l.b16 %v3394
      %v4892 = vunpack.c.h.b16 %v3394
      %v4893 = vunpack.c.l.b16 %v3395
      %v4894 = vunpack.c.h.b16 %v3395
      %v4895 = vunpack.c.l.b16 %v3396
      %v4896 = vunpack.c.h.b16 %v3396
      %v4897 = vunpack.c.l.b16 %v3397
      %v4898 = vunpack.c.h.b16 %v3397
      %v4899 = vunpack.c.l.b16 %v3398
      %v4900 = vunpack.c.h.b16 %v3398
      %v4901 = vunpack.c.l.b16 %v3399
      %v4902 = vunpack.c.h.b16 %v3399
      %v4903 = vunpack.c.l.b16 %v3400
      %v4904 = vunpack.c.h.b16 %v3400
      %v4905 = vunpack.c.l.b16 %v3401
      %v4906 = vunpack.c.h.b16 %v3401
      %v4907 = vunpack.c.l.b16 %v3402
      %v4908 = vunpack.c.h.b16 %v3402
      %v4909 = vunpack.c.l.b16 %v3403
      %v4910 = vunpack.c.h.b16 %v3403
      %v4911 = vunpack.c.l.b16 %v3404
      %v4912 = vunpack.c.h.b16 %v3404
      %v4913 = vunpack.c.l.b16 %v3405
      %v4914 = vunpack.c.h.b16 %v3405
      %v4915 = vunpack.c.l.b16 %v3406
      %v4916 = vunpack.c.h.b16 %v3406
      %v4917 = vunpack.c.l.b16 %v3407
      %v4918 = vunpack.c.h.b16 %v3407
      %v4919 = vunpack.c.l.b16 %v3408
      %v4920 = vunpack.c.h.b16 %v3408
      %v4921 = vunpack.c.l.b16 %v3409
      %v4922 = vunpack.c.h.b16 %v3409
      %v4923 = vunpack.c.l.b16 %v3410
      %v4924 = vunpack.c.h.b16 %v3410
      %v4925 = vunpack.c.l.b16 %v3411
      %v4926 = vunpack.c.h.b16 %v3411
      %v4927 = vunpack.c.l.b16 %v3412
      %v4928 = vunpack.c.h.b16 %v3412
      %v4929 = vunpack.c.l.b16 %v3413
      %v4930 = vunpack.c.h.b16 %v3413
      %v4931 = vunpack.c.l.b16 %v3414
      %v4932 = vunpack.c.h.b16 %v3414
      %v4933 = vunpack.c.l.b16 %v3415
      %v4934 = vunpack.c.h.b16 %v3415
      %v4935 = vunpack.c.l.b16 %v3416
      %v4936 = vunpack.c.h.b16 %v3416
      %v4937 = vunpack.c.l.b16 %v3417
      %v4938 = vunpack.c.h.b16 %v3417
      %v4939 = vunpack.c.l.b16 %v3418
      %v4940 = vunpack.c.h.b16 %v3418
      %v4941 = vunpack.c.l.b16 %v3419
      %v4942 = vunpack.c.h.b16 %v3419
      %v4943 = vunpack.c.l.b16 %v3420
      %v4944 = vunpack.c.h.b16 %v3420
      %v4945 = vunpack.c.l.b16 %v3421
      %v4946 = vunpack.c.h.b16 %v3421
      %v4947 = vunpack.c.l.b16 %v3422
      %v4948 = vunpack.c.h.b16 %v3422
      %v4949 = vunpack.c.l.b16 %v3423
      %v4950 = vunpack.c.h.b16 %v3423
      %v4951 = vunpack.c.l.b16 %v3424
      %v4952 = vunpack.c.h.b16 %v3424
      %v4953 = vunpack.c.l.b16 %v3425
      %v4954 = vunpack.c.h.b16 %v3425
      %v4955 = vunpack.c.l.b16 %v3426
      %v4956 = vunpack.c.h.b16 %v3426
      %v4957 = vunpack.c.l.b16 %v3427
      %v4958 = vunpack.c.h.b16 %v3427
      %v4959 = vunpack.c.l.b16 %v3428
      %v4960 = vunpack.c.h.b16 %v3428
      %v4961 = vunpack.c.l.b16 %v3429
      %v4962 = vunpack.c.h.b16 %v3429
      %v4963 = vunpack.c.l.b16 %v3430
      %v4964 = vunpack.c.h.b16 %v3430
      %v4965 = vunpack.c.l.b16 %v3431
      %v4966 = vunpack.c.h.b16 %v3431
      %v4967 = vunpack.c.l.b16 %v3432
      %v4968 = vunpack.c.h.b16 %v3432
      %v4969 = vunpack.c.l.b16 %v3433
      %v4970 = vunpack.c.h.b16 %v3433
      %v4971 = vpack.c.b16 %v3955, %v3947
      %v4972 = vpack.c.b16 %v3956, %v3948
      %v4973 = vpack.c.b16 %v3957, %v3949
      %v4974 = vpack.c.b16 %v3958, %v3950
      %v4975 = vpack.c.b16 %v3959, %v3951
      %v4976 = vpack.c.b16 %v3960, %v3952
      %v4977 = vpack.c.b16 %v3961, %v3953
      %v4978 = vpack.c.b16 %v3962, %v3954
      %v4979 = vpack.c.b16 %v3971, %v3963
      %v4980 = vpack.c.b16 %v3972, %v3964
      %v4981 = vpack.c.b16 %v3973, %v3965
      %v4982 = vpack.c.b16 %v3974, %v3966
      %v4983 = vpack.c.b16 %v3975, %v3967
      %v4984 = vpack.c.b16 %v3976, %v3968
      %v4985 = vpack.c.b16 %v3977, %v3969
      %v4986 = vpack.c.b16 %v3978, %v3970
      %v4987 = vpack.c.b16 %v3987, %v3979
      %v4988 = vpack.c.b16 %v3988, %v3980
      %v4989 = vpack.c.b16 %v3989, %v3981
      %v4990 = vpack.c.b16 %v3990, %v3982
      %v4991 = vpack.c.b16 %v3991, %v3983
      %v4992 = vpack.c.b16 %v3992, %v3984
      %v4993 = vpack.c.b16 %v3993, %v3985
      %v4994 = vpack.c.b16 %v3994, %v3986
      %v4995 = vpack.c.b16 %v4003, %v3995
      %v4996 = vpack.c.b16 %v4004, %v3996
      %v4997 = vpack.c.b16 %v4005, %v3997
      %v4998 = vpack.c.b16 %v4006, %v3998
      %v4999 = vpack.c.b16 %v4007, %v3999
      %v5000 = vpack.c.b16 %v4008, %v4000
      %v5001 = vpack.c.b16 %v4009, %v4001
      %v5002 = vpack.c.b16 %v4010, %v4002
      %v5003 = vpack.c.b16 %v4019, %v4011
      %v5004 = vpack.c.b16 %v4020, %v4012
      %v5005 = vpack.c.b16 %v4021, %v4013
      %v5006 = vpack.c.b16 %v4022, %v4014
      %v5007 = vpack.c.b16 %v4023, %v4015
      %v5008 = vpack.c.b16 %v4024, %v4016
      %v5009 = vpack.c.b16 %v4025, %v4017
      %v5010 = vpack.c.b16 %v4026, %v4018
      %v5011 = vpack.c.b16 %v4035, %v4027
      %v5012 = vpack.c.b16 %v4036, %v4028
      %v5013 = vpack.c.b16 %v4037, %v4029
      %v5014 = vpack.c.b16 %v4038, %v4030
      %v5015 = vpack.c.b16 %v4039, %v4031
      %v5016 = vpack.c.b16 %v4040, %v4032
      %v5017 = vpack.c.b16 %v4041, %v4033
      %v5018 = vpack.c.b16 %v4042, %v4034
      %v5019 = vpack.c.b16 %v4051, %v4043
      %v5020 = vpack.c.b16 %v4052, %v4044
      %v5021 = vpack.c.b16 %v4053, %v4045
      %v5022 = vpack.c.b16 %v4054, %v4046
      %v5023 = vpack.c.b16 %v4055, %v4047
      %v5024 = vpack.c.b16 %v4056, %v4048
      %v5025 = vpack.c.b16 %v4057, %v4049
      %v5026 = vpack.c.b16 %v4058, %v4050
      %v5027 = vpack.c.b16 %v4067, %v4059
      %v5028 = vpack.c.b16 %v4068, %v4060
      %v5029 = vpack.c.b16 %v4069, %v4061
      %v5030 = vpack.c.b16 %v4070, %v4062
      %v5031 = vpack.c.b16 %v4071, %v4063
      %v5032 = vpack.c.b16 %v4072, %v4064
      %v5033 = vpack.c.b16 %v4073, %v4065
      %v5034 = vpack.c.b16 %v4074, %v4066
      %v5035 = vpack.c.b16 %v4083, %v4075
      %v5036 = vpack.c.b16 %v4084, %v4076
      %v5037 = vpack.c.b16 %v4085, %v4077
      %v5038 = vpack.c.b16 %v4086, %v4078
      %v5039 = vpack.c.b16 %v4087, %v4079
      %v5040 = vpack.c.b16 %v4088, %v4080
      %v5041 = vpack.c.b16 %v4089, %v4081
      %v5042 = vpack.c.b16 %v4090, %v4082
      %v5043 = vpack.c.b16 %v4099, %v4091
      %v5044 = vpack.c.b16 %v4100, %v4092
      %v5045 = vpack.c.b16 %v4101, %v4093
      %v5046 = vpack.c.b16 %v4102, %v4094
      %v5047 = vpack.c.b16 %v4103, %v4095
      %v5048 = vpack.c.b16 %v4104, %v4096
      %v5049 = vpack.c.b16 %v4105, %v4097
      %v5050 = vpack.c.b16 %v4106, %v4098
      %v5051 = vpack.c.b16 %v4115, %v4107
      %v5052 = vpack.c.b16 %v4116, %v4108
      %v5053 = vpack.c.b16 %v4117, %v4109
      %v5054 = vpack.c.b16 %v4118, %v4110
      %v5055 = vpack.c.b16 %v4119, %v4111
      %v5056 = vpack.c.b16 %v4120, %v4112
      %v5057 = vpack.c.b16 %v4121, %v4113
      %v5058 = vpack.c.b16 %v4122, %v4114
      %v5059 = vpack.c.b16 %v4131, %v4123
      %v5060 = vpack.c.b16 %v4132, %v4124
      %v5061 = vpack.c.b16 %v4133, %v4125
      %v5062 = vpack.c.b16 %v4134, %v4126
      %v5063 = vpack.c.b16 %v4135, %v4127
      %v5064 = vpack.c.b16 %v4136, %v4128
      %v5065 = vpack.c.b16 %v4137, %v4129
      %v5066 = vpack.c.b16 %v4138, %v4130
      %v5067 = vpack.c.b16 %v4147, %v4139
      %v5068 = vpack.c.b16 %v4148, %v4140
      %v5069 = vpack.c.b16 %v4149, %v4141
      %v5070 = vpack.c.b16 %v4150, %v4142
      %v5071 = vpack.c.b16 %v4151, %v4143
      %v5072 = vpack.c.b16 %v4152, %v4144
      %v5073 = vpack.c.b16 %v4153, %v4145
      %v5074 = vpack.c.b16 %v4154, %v4146
      %v5075 = vpack.c.b16 %v4163, %v4155
      %v5076 = vpack.c.b16 %v4164, %v4156
      %v5077 = vpack.c.b16 %v4165, %v4157
      %v5078 = vpack.c.b16 %v4166, %v4158
      %v5079 = vpack.c.b16 %v4167, %v4159
      %v5080 = vpack.c.b16 %v4168, %v4160
      %v5081 = vpack.c.b16 %v4169, %v4161
      %v5082 = vpack.c.b16 %v4170, %v4162
      %v5083 = vpack.c.b16 %v4179, %v4171
      %v5084 = vpack.c.b16 %v4180, %v4172
      %v5085 = vpack.c.b16 %v4181, %v4173
      %v5086 = vpack.c.b16 %v4182, %v4174
      %v5087 = vpack.c.b16 %v4183, %v4175
      %v5088 = vpack.c.b16 %v4184, %v4176
      %v5089 = vpack.c.b16 %v4185, %v4177
      %v5090 = vpack.c.b16 %v4186, %v4178
      %v5091 = vpack.c.b16 %v4195, %v4187
      %v5092 = vpack.c.b16 %v4196, %v4188
      %v5093 = vpack.c.b16 %v4197, %v4189
      %v5094 = vpack.c.b16 %v4198, %v4190
      %v5095 = vpack.c.b16 %v4199, %v4191
      %v5096 = vpack.c.b16 %v4200, %v4192
      %v5097 = vpack.c.b16 %v4201, %v4193
      %v5098 = vpack.c.b16 %v4202, %v4194
      %v5099 = vpack.c.b16 %v4211, %v4203
      %v5100 = vpack.c.b16 %v4212, %v4204
      %v5101 = vpack.c.b16 %v4213, %v4205
      %v5102 = vpack.c.b16 %v4214, %v4206
      %v5103 = vpack.c.b16 %v4215, %v4207
      %v5104 = vpack.c.b16 %v4216, %v4208
      %v5105 = vpack.c.b16 %v4217, %v4209
      %v5106 = vpack.c.b16 %v4218, %v4210
      %v5107 = vpack.c.b16 %v4227, %v4219
      %v5108 = vpack.c.b16 %v4228, %v4220
      %v5109 = vpack.c.b16 %v4229, %v4221
      %v5110 = vpack.c.b16 %v4230, %v4222
      %v5111 = vpack.c.b16 %v4231, %v4223
      %v5112 = vpack.c.b16 %v4232, %v4224
      %v5113 = vpack.c.b16 %v4233, %v4225
      %v5114 = vpack.c.b16 %v4234, %v4226
      %v5115 = vpack.c.b16 %v4243, %v4235
      %v5116 = vpack.c.b16 %v4244, %v4236
      %v5117 = vpack.c.b16 %v4245, %v4237
      %v5118 = vpack.c.b16 %v4246, %v4238
      %v5119 = vpack.c.b16 %v4247, %v4239
      %v5120 = vpack.c.b16 %v4248, %v4240
      %v5121 = vpack.c.b16 %v4249, %v4241
      %v5122 = vpack.c.b16 %v4250, %v4242
      %v5123 = vpack.c.b16 %v4259, %v4251
      %v5124 = vpack.c.b16 %v4260, %v4252
      %v5125 = vpack.c.b16 %v4261, %v4253
      %v5126 = vpack.c.b16 %v4262, %v4254
      %v5127 = vpack.c.b16 %v4263, %v4255
      %v5128 = vpack.c.b16 %v4264, %v4256
      %v5129 = vpack.c.b16 %v4265, %v4257
      %v5130 = vpack.c.b16 %v4266, %v4258
      %v5131 = vpack.c.b16 %v4275, %v4267
      %v5132 = vpack.c.b16 %v4276, %v4268
      %v5133 = vpack.c.b16 %v4277, %v4269
      %v5134 = vpack.c.b16 %v4278, %v4270
      %v5135 = vpack.c.b16 %v4279, %v4271
      %v5136 = vpack.c.b16 %v4280, %v4272
      %v5137 = vpack.c.b16 %v4281, %v4273
      %v5138 = vpack.c.b16 %v4282, %v4274
      %v5139 = vpack.c.b16 %v4291, %v4283
      %v5140 = vpack.c.b16 %v4292, %v4284
      %v5141 = vpack.c.b16 %v4293, %v4285
      %v5142 = vpack.c.b16 %v4294, %v4286
      %v5143 = vpack.c.b16 %v4295, %v4287
      %v5144 = vpack.c.b16 %v4296, %v4288
      %v5145 = vpack.c.b16 %v4297, %v4289
      %v5146 = vpack.c.b16 %v4298, %v4290
      %v5147 = vpack.c.b16 %v4307, %v4299
      %v5148 = vpack.c.b16 %v4308, %v4300
      %v5149 = vpack.c.b16 %v4309, %v4301
      %v5150 = vpack.c.b16 %v4310, %v4302
      %v5151 = vpack.c.b16 %v4311, %v4303
      %v5152 = vpack.c.b16 %v4312, %v4304
      %v5153 = vpack.c.b16 %v4313, %v4305
      %v5154 = vpack.c.b16 %v4314, %v4306
      %v5155 = vpack.c.b16 %v4323, %v4315
      %v5156 = vpack.c.b16 %v4324, %v4316
      %v5157 = vpack.c.b16 %v4325, %v4317
      %v5158 = vpack.c.b16 %v4326, %v4318
      %v5159 = vpack.c.b16 %v4327, %v4319
      %v5160 = vpack.c.b16 %v4328, %v4320
      %v5161 = vpack.c.b16 %v4329, %v4321
      %v5162 = vpack.c.b16 %v4330, %v4322
      %v5163 = vpack.c.b16 %v4339, %v4331
      %v5164 = vpack.c.b16 %v4340, %v4332
      %v5165 = vpack.c.b16 %v4341, %v4333
      %v5166 = vpack.c.b16 %v4342, %v4334
      %v5167 = vpack.c.b16 %v4343, %v4335
      %v5168 = vpack.c.b16 %v4344, %v4336
      %v5169 = vpack.c.b16 %v4345, %v4337
      %v5170 = vpack.c.b16 %v4346, %v4338
      %v5171 = vpack.c.b16 %v4355, %v4347
      %v5172 = vpack.c.b16 %v4356, %v4348
      %v5173 = vpack.c.b16 %v4357, %v4349
      %v5174 = vpack.c.b16 %v4358, %v4350
      %v5175 = vpack.c.b16 %v4359, %v4351
      %v5176 = vpack.c.b16 %v4360, %v4352
      %v5177 = vpack.c.b16 %v4361, %v4353
      %v5178 = vpack.c.b16 %v4362, %v4354
      %v5179 = vpack.c.b16 %v4371, %v4363
      %v5180 = vpack.c.b16 %v4372, %v4364
      %v5181 = vpack.c.b16 %v4373, %v4365
      %v5182 = vpack.c.b16 %v4374, %v4366
      %v5183 = vpack.c.b16 %v4375, %v4367
      %v5184 = vpack.c.b16 %v4376, %v4368
      %v5185 = vpack.c.b16 %v4377, %v4369
      %v5186 = vpack.c.b16 %v4378, %v4370
      %v5187 = vpack.c.b16 %v4387, %v4379
      %v5188 = vpack.c.b16 %v4388, %v4380
      %v5189 = vpack.c.b16 %v4389, %v4381
      %v5190 = vpack.c.b16 %v4390, %v4382
      %v5191 = vpack.c.b16 %v4391, %v4383
      %v5192 = vpack.c.b16 %v4392, %v4384
      %v5193 = vpack.c.b16 %v4393, %v4385
      %v5194 = vpack.c.b16 %v4394, %v4386
      %v5195 = vpack.c.b16 %v4403, %v4395
      %v5196 = vpack.c.b16 %v4404, %v4396
      %v5197 = vpack.c.b16 %v4405, %v4397
      %v5198 = vpack.c.b16 %v4406, %v4398
      %v5199 = vpack.c.b16 %v4407, %v4399
      %v5200 = vpack.c.b16 %v4408, %v4400
      %v5201 = vpack.c.b16 %v4409, %v4401
      %v5202 = vpack.c.b16 %v4410, %v4402
      %v5203 = vpack.c.b16 %v4419, %v4411
      %v5204 = vpack.c.b16 %v4420, %v4412
      %v5205 = vpack.c.b16 %v4421, %v4413
      %v5206 = vpack.c.b16 %v4422, %v4414
      %v5207 = vpack.c.b16 %v4423, %v4415
      %v5208 = vpack.c.b16 %v4424, %v4416
      %v5209 = vpack.c.b16 %v4425, %v4417
      %v5210 = vpack.c.b16 %v4426, %v4418
      %v5211 = vpack.c.b16 %v4435, %v4427
      %v5212 = vpack.c.b16 %v4436, %v4428
      %v5213 = vpack.c.b16 %v4437, %v4429
      %v5214 = vpack.c.b16 %v4438, %v4430
      %v5215 = vpack.c.b16 %v4439, %v4431
      %v5216 = vpack.c.b16 %v4440, %v4432
      %v5217 = vpack.c.b16 %v4441, %v4433
      %v5218 = vpack.c.b16 %v4442, %v4434
      %v5219 = vpack.c.b16 %v4451, %v4443
      %v5220 = vpack.c.b16 %v4452, %v4444
      %v5221 = vpack.c.b16 %v4453, %v4445
      %v5222 = vpack.c.b16 %v4454, %v4446
      %v5223 = vpack.c.b16 %v4455, %v4447
      %v5224 = vpack.c.b16 %v4456, %v4448
      %v5225 = vpack.c.b16 %v4457, %v4449
      %v5226 = vpack.c.b16 %v4458, %v4450
      %v5227 = vpack.c.b16 %v4467, %v4459
      %v5228 = vpack.c.b16 %v4468, %v4460
      %v5229 = vpack.c.b16 %v4469, %v4461
      %v5230 = vpack.c.b16 %v4470, %v4462
      %v5231 = vpack.c.b16 %v4471, %v4463
      %v5232 = vpack.c.b16 %v4472, %v4464
      %v5233 = vpack.c.b16 %v4473, %v4465
      %v5234 = vpack.c.b16 %v4474, %v4466
      %v5235 = vpack.c.b16 %v4483, %v4475
      %v5236 = vpack.c.b16 %v4484, %v4476
      %v5237 = vpack.c.b16 %v4485, %v4477
      %v5238 = vpack.c.b16 %v4486, %v4478
      %v5239 = vpack.c.b16 %v4487, %v4479
      %v5240 = vpack.c.b16 %v4488, %v4480
      %v5241 = vpack.c.b16 %v4489, %v4481
      %v5242 = vpack.c.b16 %v4490, %v4482
      %v5243 = vpack.c.b16 %v4499, %v4491
      %v5244 = vpack.c.b16 %v4500, %v4492
      %v5245 = vpack.c.b16 %v4501, %v4493
      %v5246 = vpack.c.b16 %v4502, %v4494
      %v5247 = vpack.c.b16 %v4503, %v4495
      %v5248 = vpack.c.b16 %v4504, %v4496
      %v5249 = vpack.c.b16 %v4505, %v4497
      %v5250 = vpack.c.b16 %v4506, %v4498
      %v5251 = vpack.c.b16 %v4515, %v4507
      %v5252 = vpack.c.b16 %v4516, %v4508
      %v5253 = vpack.c.b16 %v4517, %v4509
      %v5254 = vpack.c.b16 %v4518, %v4510
      %v5255 = vpack.c.b16 %v4519, %v4511
      %v5256 = vpack.c.b16 %v4520, %v4512
      %v5257 = vpack.c.b16 %v4521, %v4513
      %v5258 = vpack.c.b16 %v4522, %v4514
      %v5259 = vpack.c.b16 %v4531, %v4523
      %v5260 = vpack.c.b16 %v4532, %v4524
      %v5261 = vpack.c.b16 %v4533, %v4525
      %v5262 = vpack.c.b16 %v4534, %v4526
      %v5263 = vpack.c.b16 %v4535, %v4527
      %v5264 = vpack.c.b16 %v4536, %v4528
      %v5265 = vpack.c.b16 %v4537, %v4529
      %v5266 = vpack.c.b16 %v4538, %v4530
      %v5267 = vpack.c.b16 %v4547, %v4539
      %v5268 = vpack.c.b16 %v4548, %v4540
      %v5269 = vpack.c.b16 %v4549, %v4541
      %v5270 = vpack.c.b16 %v4550, %v4542
      %v5271 = vpack.c.b16 %v4551, %v4543
      %v5272 = vpack.c.b16 %v4552, %v4544
      %v5273 = vpack.c.b16 %v4553, %v4545
      %v5274 = vpack.c.b16 %v4554, %v4546
      %v5275 = vpack.c.b16 %v4563, %v4555
      %v5276 = vpack.c.b16 %v4564, %v4556
      %v5277 = vpack.c.b16 %v4565, %v4557
      %v5278 = vpack.c.b16 %v4566, %v4558
      %v5279 = vpack.c.b16 %v4567, %v4559
      %v5280 = vpack.c.b16 %v4568, %v4560
      %v5281 = vpack.c.b16 %v4569, %v4561
      %v5282 = vpack.c.b16 %v4570, %v4562
      %v5283 = vpack.c.b16 %v4579, %v4571
      %v5284 = vpack.c.b16 %v4580, %v4572
      %v5285 = vpack.c.b16 %v4581, %v4573
      %v5286 = vpack.c.b16 %v4582, %v4574
      %v5287 = vpack.c.b16 %v4583, %v4575
      %v5288 = vpack.c.b16 %v4584, %v4576
      %v5289 = vpack.c.b16 %v4585, %v4577
      %v5290 = vpack.c.b16 %v4586, %v4578
      %v5291 = vpack.c.b16 %v4595, %v4587
      %v5292 = vpack.c.b16 %v4596, %v4588
      %v5293 = vpack.c.b16 %v4597, %v4589
      %v5294 = vpack.c.b16 %v4598, %v4590
      %v5295 = vpack.c.b16 %v4599, %v4591
      %v5296 = vpack.c.b16 %v4600, %v4592
      %v5297 = vpack.c.b16 %v4601, %v4593
      %v5298 = vpack.c.b16 %v4602, %v4594
      %v5299 = vpack.c.b16 %v4611, %v4603
      %v5300 = vpack.c.b16 %v4612, %v4604
      %v5301 = vpack.c.b16 %v4613, %v4605
      %v5302 = vpack.c.b16 %v4614, %v4606
      %v5303 = vpack.c.b16 %v4615, %v4607
      %v5304 = vpack.c.b16 %v4616, %v4608
      %v5305 = vpack.c.b16 %v4617, %v4609
      %v5306 = vpack.c.b16 %v4618, %v4610
      %v5307 = vpack.c.b16 %v4627, %v4619
      %v5308 = vpack.c.b16 %v4628, %v4620
      %v5309 = vpack.c.b16 %v4629, %v4621
      %v5310 = vpack.c.b16 %v4630, %v4622
      %v5311 = vpack.c.b16 %v4631, %v4623
      %v5312 = vpack.c.b16 %v4632, %v4624
      %v5313 = vpack.c.b16 %v4633, %v4625
      %v5314 = vpack.c.b16 %v4634, %v4626
      %v5315 = vpack.c.b16 %v4643, %v4635
      %v5316 = vpack.c.b16 %v4644, %v4636
      %v5317 = vpack.c.b16 %v4645, %v4637
      %v5318 = vpack.c.b16 %v4646, %v4638
      %v5319 = vpack.c.b16 %v4647, %v4639
      %v5320 = vpack.c.b16 %v4648, %v4640
      %v5321 = vpack.c.b16 %v4649, %v4641
      %v5322 = vpack.c.b16 %v4650, %v4642
      %v5323 = vpack.c.b16 %v4659, %v4651
      %v5324 = vpack.c.b16 %v4660, %v4652
      %v5325 = vpack.c.b16 %v4661, %v4653
      %v5326 = vpack.c.b16 %v4662, %v4654
      %v5327 = vpack.c.b16 %v4663, %v4655
      %v5328 = vpack.c.b16 %v4664, %v4656
      %v5329 = vpack.c.b16 %v4665, %v4657
      %v5330 = vpack.c.b16 %v4666, %v4658
      %v5331 = vpack.c.b16 %v4675, %v4667
      %v5332 = vpack.c.b16 %v4676, %v4668
      %v5333 = vpack.c.b16 %v4677, %v4669
      %v5334 = vpack.c.b16 %v4678, %v4670
      %v5335 = vpack.c.b16 %v4679, %v4671
      %v5336 = vpack.c.b16 %v4680, %v4672
      %v5337 = vpack.c.b16 %v4681, %v4673
      %v5338 = vpack.c.b16 %v4682, %v4674
      %v5339 = vpack.c.b16 %v4691, %v4683
      %v5340 = vpack.c.b16 %v4692, %v4684
      %v5341 = vpack.c.b16 %v4693, %v4685
      %v5342 = vpack.c.b16 %v4694, %v4686
      %v5343 = vpack.c.b16 %v4695, %v4687
      %v5344 = vpack.c.b16 %v4696, %v4688
      %v5345 = vpack.c.b16 %v4697, %v4689
      %v5346 = vpack.c.b16 %v4698, %v4690
      %v5347 = vpack.c.b16 %v4707, %v4699
      %v5348 = vpack.c.b16 %v4708, %v4700
      %v5349 = vpack.c.b16 %v4709, %v4701
      %v5350 = vpack.c.b16 %v4710, %v4702
      %v5351 = vpack.c.b16 %v4711, %v4703
      %v5352 = vpack.c.b16 %v4712, %v4704
      %v5353 = vpack.c.b16 %v4713, %v4705
      %v5354 = vpack.c.b16 %v4714, %v4706
      %v5355 = vpack.c.b16 %v4723, %v4715
      %v5356 = vpack.c.b16 %v4724, %v4716
      %v5357 = vpack.c.b16 %v4725, %v4717
      %v5358 = vpack.c.b16 %v4726, %v4718
      %v5359 = vpack.c.b16 %v4727, %v4719
      %v5360 = vpack.c.b16 %v4728, %v4720
      %v5361 = vpack.c.b16 %v4729, %v4721
      %v5362 = vpack.c.b16 %v4730, %v4722
      %v5363 = vpack.c.b16 %v4739, %v4731
      %v5364 = vpack.c.b16 %v4740, %v4732
      %v5365 = vpack.c.b16 %v4741, %v4733
      %v5366 = vpack.c.b16 %v4742, %v4734
      %v5367 = vpack.c.b16 %v4743, %v4735
      %v5368 = vpack.c.b16 %v4744, %v4736
      %v5369 = vpack.c.b16 %v4745, %v4737
      %v5370 = vpack.c.b16 %v4746, %v4738
      %v5371 = vpack.c.b16 %v4755, %v4747
      %v5372 = vpack.c.b16 %v4756, %v4748
      %v5373 = vpack.c.b16 %v4757, %v4749
      %v5374 = vpack.c.b16 %v4758, %v4750
      %v5375 = vpack.c.b16 %v4759, %v4751
      %v5376 = vpack.c.b16 %v4760, %v4752
      %v5377 = vpack.c.b16 %v4761, %v4753
      %v5378 = vpack.c.b16 %v4762, %v4754
      %v5379 = vpack.c.b16 %v4771, %v4763
      %v5380 = vpack.c.b16 %v4772, %v4764
      %v5381 = vpack.c.b16 %v4773, %v4765
      %v5382 = vpack.c.b16 %v4774, %v4766
      %v5383 = vpack.c.b16 %v4775, %v4767
      %v5384 = vpack.c.b16 %v4776, %v4768
      %v5385 = vpack.c.b16 %v4777, %v4769
      %v5386 = vpack.c.b16 %v4778, %v4770
      %v5387 = vpack.c.b16 %v4787, %v4779
      %v5388 = vpack.c.b16 %v4788, %v4780
      %v5389 = vpack.c.b16 %v4789, %v4781
      %v5390 = vpack.c.b16 %v4790, %v4782
      %v5391 = vpack.c.b16 %v4791, %v4783
      %v5392 = vpack.c.b16 %v4792, %v4784
      %v5393 = vpack.c.b16 %v4793, %v4785
      %v5394 = vpack.c.b16 %v4794, %v4786
      %v5395 = vpack.c.b16 %v4803, %v4795
      %v5396 = vpack.c.b16 %v4804, %v4796
      %v5397 = vpack.c.b16 %v4805, %v4797
      %v5398 = vpack.c.b16 %v4806, %v4798
      %v5399 = vpack.c.b16 %v4807, %v4799
      %v5400 = vpack.c.b16 %v4808, %v4800
      %v5401 = vpack.c.b16 %v4809, %v4801
      %v5402 = vpack.c.b16 %v4810, %v4802
      %v5403 = vpack.c.b16 %v4819, %v4811
      %v5404 = vpack.c.b16 %v4820, %v4812
      %v5405 = vpack.c.b16 %v4821, %v4813
      %v5406 = vpack.c.b16 %v4822, %v4814
      %v5407 = vpack.c.b16 %v4823, %v4815
      %v5408 = vpack.c.b16 %v4824, %v4816
      %v5409 = vpack.c.b16 %v4825, %v4817
      %v5410 = vpack.c.b16 %v4826, %v4818
      %v5411 = vpack.c.b16 %v4835, %v4827
      %v5412 = vpack.c.b16 %v4836, %v4828
      %v5413 = vpack.c.b16 %v4837, %v4829
      %v5414 = vpack.c.b16 %v4838, %v4830
      %v5415 = vpack.c.b16 %v4839, %v4831
      %v5416 = vpack.c.b16 %v4840, %v4832
      %v5417 = vpack.c.b16 %v4841, %v4833
      %v5418 = vpack.c.b16 %v4842, %v4834
      %v5419 = vpack.c.b16 %v4851, %v4843
      %v5420 = vpack.c.b16 %v4852, %v4844
      %v5421 = vpack.c.b16 %v4853, %v4845
      %v5422 = vpack.c.b16 %v4854, %v4846
      %v5423 = vpack.c.b16 %v4855, %v4847
      %v5424 = vpack.c.b16 %v4856, %v4848
      %v5425 = vpack.c.b16 %v4857, %v4849
      %v5426 = vpack.c.b16 %v4858, %v4850
      %v5427 = vpack.c.b16 %v4867, %v4859
      %v5428 = vpack.c.b16 %v4868, %v4860
      %v5429 = vpack.c.b16 %v4869, %v4861
      %v5430 = vpack.c.b16 %v4870, %v4862
      %v5431 = vpack.c.b16 %v4871, %v4863
      %v5432 = vpack.c.b16 %v4872, %v4864
      %v5433 = vpack.c.b16 %v4873, %v4865
      %v5434 = vpack.c.b16 %v4874, %v4866
      %v5435 = vpack.c.b16 %v4883, %v4875
      %v5436 = vpack.c.b16 %v4884, %v4876
      %v5437 = vpack.c.b16 %v4885, %v4877
      %v5438 = vpack.c.b16 %v4886, %v4878
      %v5439 = vpack.c.b16 %v4887, %v4879
      %v5440 = vpack.c.b16 %v4888, %v4880
      %v5441 = vpack.c.b16 %v4889, %v4881
      %v5442 = vpack.c.b16 %v4890, %v4882
      %v5443 = vpack.c.b16 %v4899, %v4891
      %v5444 = vpack.c.b16 %v4900, %v4892
      %v5445 = vpack.c.b16 %v4901, %v4893
      %v5446 = vpack.c.b16 %v4902, %v4894
      %v5447 = vpack.c.b16 %v4903, %v4895
      %v5448 = vpack.c.b16 %v4904, %v4896
      %v5449 = vpack.c.b16 %v4905, %v4897
      %v5450 = vpack.c.b16 %v4906, %v4898
      %v5451 = vpack.c.b16 %v4915, %v4907
      %v5452 = vpack.c.b16 %v4916, %v4908
      %v5453 = vpack.c.b16 %v4917, %v4909
      %v5454 = vpack.c.b16 %v4918, %v4910
      %v5455 = vpack.c.b16 %v4919, %v4911
      %v5456 = vpack.c.b16 %v4920, %v4912
      %v5457 = vpack.c.b16 %v4921, %v4913
      %v5458 = vpack.c.b16 %v4922, %v4914
      %v5459 = vpack.c.b16 %v4931, %v4923
      %v5460 = vpack.c.b16 %v4932, %v4924
      %v5461 = vpack.c.b16 %v4933, %v4925
      %v5462 = vpack.c.b16 %v4934, %v4926
      %v5463 = vpack.c.b16 %v4935, %v4927
      %v5464 = vpack.c.b16 %v4936, %v4928
      %v5465 = vpack.c.b16 %v4937, %v4929
      %v5466 = vpack.c.b16 %v4938, %v4930
      %v5467 = vpack.c.b16 %v4947, %v4939
      %v5468 = vpack.c.b16 %v4948, %v4940
      %v5469 = vpack.c.b16 %v4949, %v4941
      %v5470 = vpack.c.b16 %v4950, %v4942
      %v5471 = vpack.c.b16 %v4951, %v4943
      %v5472 = vpack.c.b16 %v4952, %v4944
      %v5473 = vpack.c.b16 %v4953, %v4945
      %v5474 = vpack.c.b16 %v4954, %v4946
      %v5475 = vpack.c.b16 %v4963, %v4955
      %v5476 = vpack.c.b16 %v4964, %v4956
      %v5477 = vpack.c.b16 %v4965, %v4957
      %v5478 = vpack.c.b16 %v4966, %v4958
      %v5479 = vpack.c.b16 %v4967, %v4959
      %v5480 = vpack.c.b16 %v4968, %v4960
      %v5481 = vpack.c.b16 %v4969, %v4961
      %v5482 = vpack.c.b16 %v4970, %v4962
      %v5996 = vlaneseq
      %v5997 = vshrl.u32 %v5996, 7
      %v5998 = vsub.s32 0, %v5997
      %v5999 = vrot.slane %v3434, %v5998
      %v6000 = vlaneseq
      %v6001 = vshrl.u32 %v6000, 7
      %v6002 = vsub.s32 1, %v6001
      %v6003 = vrot.slane %v3434, %v6002
      %v6004 = vlaneseq
      %v6005 = vshrl.u32 %v6004, 7
      %v6006 = vsub.s32 2, %v6005
      %v6007 = vrot.slane %v3434, %v6006
      %v6008 = vlaneseq
      %v6009 = vshrl.u32 %v6008, 7
      %v6010 = vsub.s32 3, %v6009
      %v6011 = vrot.slane %v3434, %v6010
      %v6012 = vlaneseq
      %v6013 = vshrl.u32 %v6012, 7
      %v6014 = vsub.s32 4, %v6013
      %v6015 = vrot.slane %v3434, %v6014
      %v6016 = vlaneseq
      %v6017 = vshrl.u32 %v6016, 7
      %v6018 = vsub.s32 5, %v6017
      %v6019 = vrot.slane %v3434, %v6018
      %v6020 = vlaneseq
      %v6021 = vshrl.u32 %v6020, 7
      %v6022 = vsub.s32 6, %v6021
      %v6023 = vrot.slane %v3434, %v6022
      %v6024 = vlaneseq
      %v6025 = vshrl.u32 %v6024, 7
      %v6026 = vsub.s32 7, %v6025
      %v6027 = vrot.slane %v3434, %v6026
      %6036 = vmatprep.subr.bf16.mxu0 %v5028
      %6037 = vmatpush1.bf16.msra.mxu0 %v5027
      %6038 = vmatprep.subr.bf16.mxu0 %v5020
      %6039 = vmatpush1.bf16.msra.mxu0 %v5019
      %6040 = vmatprep.subr.bf16.mxu0 %v5012
      %6041 = vmatpush1.bf16.msra.mxu0 %v5011
      %6042 = vmatprep.subr.bf16.mxu0 %v5004
      %6043 = vmatpush1.bf16.msra.mxu0 %v5003
      %6044 = vmatprep.subr.bf16.mxu0 %v4996
      %6045 = vmatpush1.bf16.msra.mxu0 %v4995
      %6046 = vmatprep.subr.bf16.mxu0 %v4988
      %6047 = vmatpush1.bf16.msra.mxu0 %v4987
      %6048 = vmatprep.subr.bf16.mxu0 %v4980
      %6049 = vmatpush1.bf16.msra.mxu0 %v4979
      %6050 = vmatprep.subr.bf16.mxu0 %v4972
      %6051 = vmatpush1.bf16.msra.mxu0 %v4971
      %6052 = vmatprep.subr.bf16.mxu0 %v5092
      %6053 = vmatpush2.bf16.msra.mxu0 %v5091
      %6054 = vmatprep.subr.bf16.mxu0 %v5084
      %6055 = vmatpush2.bf16.msra.mxu0 %v5083
      %6056 = vmatprep.subr.bf16.mxu0 %v5076
      %6057 = vmatpush2.bf16.msra.mxu0 %v5075
      %6058 = vmatprep.subr.bf16.mxu0 %v5068
      %6059 = vmatpush2.bf16.msra.mxu0 %v5067
      %6060 = vmatprep.subr.bf16.mxu0 %v5060
      %6061 = vmatpush2.bf16.msra.mxu0 %v5059
      %6062 = vmatprep.subr.bf16.mxu0 %v5052
      %6063 = vmatpush2.bf16.msra.mxu0 %v5051
      %6064 = vmatprep.subr.bf16.mxu0 %v5044
      %6065 = vmatpush2.bf16.msra.mxu0 %v5043
      %6066 = vmatprep.subr.bf16.mxu0 %v5036
      %6067 = vmatpush2.bf16.msra.mxu0 %v5035
      %6068 = vmatprep.mubr.bf16.mxu0 %v2915
      %6069 = vmatmul.mubr.bf16.gmra.mxu0 %v2914
      %v6070 = vpop.f32.mrf.mxu0
      %v6071 = vadd.f32 %v5999, %v6070
      %v6072 = vpop.f32.mrf.mxu0
      %v6073 = vadd.f32 %v6003, %v6072
      %v6074 = vpop.f32.mrf.mxu0
      %v6075 = vpop.f32.mrf.mxu0
      %6076 = vdwg.mxu0
      %6077 = vmatprep.subr.bf16.mxu0 %v5156
      %6078 = vmatpush1.bf16.msra.mxu0 %v5155
      %6079 = vmatprep.subr.bf16.mxu0 %v5148
      %6080 = vmatpush1.bf16.msra.mxu0 %v5147
      %6081 = vmatprep.subr.bf16.mxu0 %v5140
      %6082 = vmatpush1.bf16.msra.mxu0 %v5139
      %6083 = vmatprep.subr.bf16.mxu0 %v5132
      %6084 = vmatpush1.bf16.msra.mxu0 %v5131
      %6085 = vmatprep.subr.bf16.mxu0 %v5124
      %6086 = vmatpush1.bf16.msra.mxu0 %v5123
      %6087 = vmatprep.subr.bf16.mxu0 %v5116
      %6088 = vmatpush1.bf16.msra.mxu0 %v5115
      %6089 = vmatprep.subr.bf16.mxu0 %v5108
      %6090 = vmatpush1.bf16.msra.mxu0 %v5107
      %6091 = vmatprep.subr.bf16.mxu0 %v5100
      %6092 = vmatpush1.bf16.msra.mxu0 %v5099
      %6093 = vmatprep.subr.bf16.mxu0 %v5220
      %6094 = vmatpush2.bf16.msra.mxu0 %v5219
      %6095 = vmatprep.subr.bf16.mxu0 %v5212
      %6096 = vmatpush2.bf16.msra.mxu0 %v5211
      %6097 = vmatprep.subr.bf16.mxu0 %v5204
      %6098 = vmatpush2.bf16.msra.mxu0 %v5203
      %6099 = vmatprep.subr.bf16.mxu0 %v5196
      %6100 = vmatpush2.bf16.msra.mxu0 %v5195
      %6101 = vmatprep.subr.bf16.mxu0 %v5188
      %6102 = vmatpush2.bf16.msra.mxu0 %v5187
      %6103 = vmatprep.subr.bf16.mxu0 %v5180
      %6104 = vmatpush2.bf16.msra.mxu0 %v5179
      %6105 = vmatprep.subr.bf16.mxu0 %v5172
      %6106 = vmatpush2.bf16.msra.mxu0 %v5171
      %6107 = vmatprep.subr.bf16.mxu0 %v5164
      %6108 = vmatpush2.bf16.msra.mxu0 %v5163
      %6109 = vmatprep.mubr.bf16.mxu0 %v2917
      %6110 = vmatmul.mubr.bf16.gmra.mxu0 %v2916
      %v6111 = vpop.f32.mrf.mxu0
      %v6112 = vadd.f32 %v6071, %v6111
      %v6113 = vpop.f32.mrf.mxu0
      %v6114 = vadd.f32 %v6073, %v6113
      %v6115 = vpop.f32.mrf.mxu0
      %v6116 = vpop.f32.mrf.mxu0
      %6117 = vdwg.mxu0
      %6118 = vmatprep.subr.bf16.mxu0 %v5284
      %6119 = vmatpush1.bf16.msra.mxu0 %v5283
      %6120 = vmatprep.subr.bf16.mxu0 %v5276
      %6121 = vmatpush1.bf16.msra.mxu0 %v5275
      %6122 = vmatprep.subr.bf16.mxu0 %v5268
      %6123 = vmatpush1.bf16.msra.mxu0 %v5267
      %6124 = vmatprep.subr.bf16.mxu0 %v5260
      %6125 = vmatpush1.bf16.msra.mxu0 %v5259
      %6126 = vmatprep.subr.bf16.mxu0 %v5252
      %6127 = vmatpush1.bf16.msra.mxu0 %v5251
      %6128 = vmatprep.subr.bf16.mxu0 %v5244
      %6129 = vmatpush1.bf16.msra.mxu0 %v5243
      %6130 = vmatprep.subr.bf16.mxu0 %v5236
      %6131 = vmatpush1.bf16.msra.mxu0 %v5235
      %6132 = vmatprep.subr.bf16.mxu0 %v5228
      %6133 = vmatpush1.bf16.msra.mxu0 %v5227
      %6134 = vmatprep.subr.bf16.mxu0 %v5348
      %6135 = vmatpush2.bf16.msra.mxu0 %v5347
      %6136 = vmatprep.subr.bf16.mxu0 %v5340
      %6137 = vmatpush2.bf16.msra.mxu0 %v5339
      %6138 = vmatprep.subr.bf16.mxu0 %v5332
      %6139 = vmatpush2.bf16.msra.mxu0 %v5331
      %6140 = vmatprep.subr.bf16.mxu0 %v5324
      %6141 = vmatpush2.bf16.msra.mxu0 %v5323
      %6142 = vmatprep.subr.bf16.mxu0 %v5316
      %6143 = vmatpush2.bf16.msra.mxu0 %v5315
      %6144 = vmatprep.subr.bf16.mxu0 %v5308
      %6145 = vmatpush2.bf16.msra.mxu0 %v5307
      %6146 = vmatprep.subr.bf16.mxu0 %v5300
      %6147 = vmatpush2.bf16.msra.mxu0 %v5299
      %6148 = vmatprep.subr.bf16.mxu0 %v5292
      %6149 = vmatpush2.bf16.msra.mxu0 %v5291
      %6150 = vmatprep.mubr.bf16.mxu0 %v2919
      %6151 = vmatmul.mubr.bf16.gmra.mxu0 %v2918
      %v6152 = vpop.f32.mrf.mxu0
      %v6153 = vadd.f32 %v6112, %v6152
      %v6154 = vpop.f32.mrf.mxu0
      %v6155 = vadd.f32 %v6114, %v6154
      %v6156 = vpop.f32.mrf.mxu0
      %v6157 = vpop.f32.mrf.mxu0
      %6158 = vdwg.mxu0
      %6159 = vmatprep.subr.bf16.mxu0 %v5412
      %6160 = vmatpush1.bf16.msra.mxu0 %v5411
      %6161 = vmatprep.subr.bf16.mxu0 %v5404
      %6162 = vmatpush1.bf16.msra.mxu0 %v5403
      %6163 = vmatprep.subr.bf16.mxu0 %v5396
      %6164 = vmatpush1.bf16.msra.mxu0 %v5395
      %6165 = vmatprep.subr.bf16.mxu0 %v5388
      %6166 = vmatpush1.bf16.msra.mxu0 %v5387
      %6167 = vmatprep.subr.bf16.mxu0 %v5380
      %6168 = vmatpush1.bf16.msra.mxu0 %v5379
      %6169 = vmatprep.subr.bf16.mxu0 %v5372
      %6170 = vmatpush1.bf16.msra.mxu0 %v5371
      %6171 = vmatprep.subr.bf16.mxu0 %v5364
      %6172 = vmatpush1.bf16.msra.mxu0 %v5363
      %6173 = vmatprep.subr.bf16.mxu0 %v5356
      %6174 = vmatpush1.bf16.msra.mxu0 %v5355
      %6175 = vmatprep.subr.bf16.mxu0 %v5476
      %6176 = vmatpush2.bf16.msra.mxu0 %v5475
      %6177 = vmatprep.subr.bf16.mxu0 %v5468
      %6178 = vmatpush2.bf16.msra.mxu0 %v5467
      %6179 = vmatprep.subr.bf16.mxu0 %v5460
      %6180 = vmatpush2.bf16.msra.mxu0 %v5459
      %6181 = vmatprep.subr.bf16.mxu0 %v5452
      %6182 = vmatpush2.bf16.msra.mxu0 %v5451
      %6183 = vmatprep.subr.bf16.mxu0 %v5444
      %6184 = vmatpush2.bf16.msra.mxu0 %v5443
      %6185 = vmatprep.subr.bf16.mxu0 %v5436
      %6186 = vmatpush2.bf16.msra.mxu0 %v5435
      %6187 = vmatprep.subr.bf16.mxu0 %v5428
      %6188 = vmatpush2.bf16.msra.mxu0 %v5427
      %6189 = vmatprep.subr.bf16.mxu0 %v5420
      %6190 = vmatpush2.bf16.msra.mxu0 %v5419
      %6191 = vmatprep.mubr.bf16.mxu0 %v2921
      %6192 = vmatmul.mubr.bf16.gmra.mxu0 %v2920
      %v6193 = vpop.f32.mrf.mxu0
      %v6194 = vadd.f32 %v6153, %v6193
      %v6195 = vpop.f32.mrf.mxu0
      %v6196 = vadd.f32 %v6155, %v6195
      %v6197 = vpop.f32.mrf.mxu0
      %v6198 = vpop.f32.mrf.mxu0
      %6199 = vdwg.mxu0
      %6200 = vmatprep.subr.bf16.mxu0 %v5030
      %6201 = vmatpush1.bf16.msra.mxu0 %v5029
      %6202 = vmatprep.subr.bf16.mxu0 %v5022
      %6203 = vmatpush1.bf16.msra.mxu0 %v5021
      %6204 = vmatprep.subr.bf16.mxu0 %v5014
      %6205 = vmatpush1.bf16.msra.mxu0 %v5013
      %6206 = vmatprep.subr.bf16.mxu0 %v5006
      %6207 = vmatpush1.bf16.msra.mxu0 %v5005
      %6208 = vmatprep.subr.bf16.mxu0 %v4998
      %6209 = vmatpush1.bf16.msra.mxu0 %v4997
      %6210 = vmatprep.subr.bf16.mxu0 %v4990
      %6211 = vmatpush1.bf16.msra.mxu0 %v4989
      %6212 = vmatprep.subr.bf16.mxu0 %v4982
      %6213 = vmatpush1.bf16.msra.mxu0 %v4981
      %6214 = vmatprep.subr.bf16.mxu0 %v4974
      %6215 = vmatpush1.bf16.msra.mxu0 %v4973
      %6216 = vmatprep.subr.bf16.mxu0 %v5094
      %6217 = vmatpush2.bf16.msra.mxu0 %v5093
      %6218 = vmatprep.subr.bf16.mxu0 %v5086
      %6219 = vmatpush2.bf16.msra.mxu0 %v5085
      %6220 = vmatprep.subr.bf16.mxu0 %v5078
      %6221 = vmatpush2.bf16.msra.mxu0 %v5077
      %6222 = vmatprep.subr.bf16.mxu0 %v5070
      %6223 = vmatpush2.bf16.msra.mxu0 %v5069
      %6224 = vmatprep.subr.bf16.mxu0 %v5062
      %6225 = vmatpush2.bf16.msra.mxu0 %v5061
      %6226 = vmatprep.subr.bf16.mxu0 %v5054
      %6227 = vmatpush2.bf16.msra.mxu0 %v5053
      %6228 = vmatprep.subr.bf16.mxu0 %v5046
      %6229 = vmatpush2.bf16.msra.mxu0 %v5045
      %6230 = vmatprep.subr.bf16.mxu0 %v5038
      %6231 = vmatpush2.bf16.msra.mxu0 %v5037
      %6232 = vmatprep.mubr.bf16.mxu0 %v2915
      %6233 = vmatmul.mubr.bf16.gmra.mxu0 %v2914
      %v6234 = vpop.f32.mrf.mxu0
      %v6235 = vadd.f32 %v6007, %v6234
      %v6236 = vpop.f32.mrf.mxu0
      %v6237 = vadd.f32 %v6011, %v6236
      %v6238 = vpop.f32.mrf.mxu0
      %v6239 = vpop.f32.mrf.mxu0
      %6240 = vdwg.mxu0
      %6241 = vmatprep.subr.bf16.mxu0 %v5158
      %6242 = vmatpush1.bf16.msra.mxu0 %v5157
      %6243 = vmatprep.subr.bf16.mxu0 %v5150
      %6244 = vmatpush1.bf16.msra.mxu0 %v5149
      %6245 = vmatprep.subr.bf16.mxu0 %v5142
      %6246 = vmatpush1.bf16.msra.mxu0 %v5141
      %6247 = vmatprep.subr.bf16.mxu0 %v5134
      %6248 = vmatpush1.bf16.msra.mxu0 %v5133
      %6249 = vmatprep.subr.bf16.mxu0 %v5126
      %6250 = vmatpush1.bf16.msra.mxu0 %v5125
      %6251 = vmatprep.subr.bf16.mxu0 %v5118
      %6252 = vmatpush1.bf16.msra.mxu0 %v5117
      %6253 = vmatprep.subr.bf16.mxu0 %v5110
      %6254 = vmatpush1.bf16.msra.mxu0 %v5109
      %6255 = vmatprep.subr.bf16.mxu0 %v5102
      %6256 = vmatpush1.bf16.msra.mxu0 %v5101
      %6257 = vmatprep.subr.bf16.mxu0 %v5222
      %6258 = vmatpush2.bf16.msra.mxu0 %v5221
      %6259 = vmatprep.subr.bf16.mxu0 %v5214
      %6260 = vmatpush2.bf16.msra.mxu0 %v5213
      %6261 = vmatprep.subr.bf16.mxu0 %v5206
      %6262 = vmatpush2.bf16.msra.mxu0 %v5205
      %6263 = vmatprep.subr.bf16.mxu0 %v5198
      %6264 = vmatpush2.bf16.msra.mxu0 %v5197
      %6265 = vmatprep.subr.bf16.mxu0 %v5190
      %6266 = vmatpush2.bf16.msra.mxu0 %v5189
      %6267 = vmatprep.subr.bf16.mxu0 %v5182
      %6268 = vmatpush2.bf16.msra.mxu0 %v5181
      %6269 = vmatprep.subr.bf16.mxu0 %v5174
      %6270 = vmatpush2.bf16.msra.mxu0 %v5173
      %6271 = vmatprep.subr.bf16.mxu0 %v5166
      %6272 = vmatpush2.bf16.msra.mxu0 %v5165
      %6273 = vmatprep.mubr.bf16.mxu0 %v2917
      %6274 = vmatmul.mubr.bf16.gmra.mxu0 %v2916
      %v6275 = vpop.f32.mrf.mxu0
      %v6276 = vadd.f32 %v6235, %v6275
      %v6277 = vpop.f32.mrf.mxu0
      %v6278 = vadd.f32 %v6237, %v6277
      %v6279 = vpop.f32.mrf.mxu0
      %v6280 = vpop.f32.mrf.mxu0
      %6281 = vdwg.mxu0
      %6282 = vmatprep.subr.bf16.mxu0 %v5286
      %6283 = vmatpush1.bf16.msra.mxu0 %v5285
      %6284 = vmatprep.subr.bf16.mxu0 %v5278
      %6285 = vmatpush1.bf16.msra.mxu0 %v5277
      %6286 = vmatprep.subr.bf16.mxu0 %v5270
      %6287 = vmatpush1.bf16.msra.mxu0 %v5269
      %6288 = vmatprep.subr.bf16.mxu0 %v5262
      %6289 = vmatpush1.bf16.msra.mxu0 %v5261
      %6290 = vmatprep.subr.bf16.mxu0 %v5254
      %6291 = vmatpush1.bf16.msra.mxu0 %v5253
      %6292 = vmatprep.subr.bf16.mxu0 %v5246
      %6293 = vmatpush1.bf16.msra.mxu0 %v5245
      %6294 = vmatprep.subr.bf16.mxu0 %v5238
      %6295 = vmatpush1.bf16.msra.mxu0 %v5237
      %6296 = vmatprep.subr.bf16.mxu0 %v5230
      %6297 = vmatpush1.bf16.msra.mxu0 %v5229
      %6298 = vmatprep.subr.bf16.mxu0 %v5350
      %6299 = vmatpush2.bf16.msra.mxu0 %v5349
      %6300 = vmatprep.subr.bf16.mxu0 %v5342
      %6301 = vmatpush2.bf16.msra.mxu0 %v5341
      %6302 = vmatprep.subr.bf16.mxu0 %v5334
      %6303 = vmatpush2.bf16.msra.mxu0 %v5333
      %6304 = vmatprep.subr.bf16.mxu0 %v5326
      %6305 = vmatpush2.bf16.msra.mxu0 %v5325
      %6306 = vmatprep.subr.bf16.mxu0 %v5318
      %6307 = vmatpush2.bf16.msra.mxu0 %v5317
      %6308 = vmatprep.subr.bf16.mxu0 %v5310
      %6309 = vmatpush2.bf16.msra.mxu0 %v5309
      %6310 = vmatprep.subr.bf16.mxu0 %v5302
      %6311 = vmatpush2.bf16.msra.mxu0 %v5301
      %6312 = vmatprep.subr.bf16.mxu0 %v5294
      %6313 = vmatpush2.bf16.msra.mxu0 %v5293
      %6314 = vmatprep.mubr.bf16.mxu0 %v2919
      %6315 = vmatmul.mubr.bf16.gmra.mxu0 %v2918
      %v6316 = vpop.f32.mrf.mxu0
      %v6317 = vadd.f32 %v6276, %v6316
      %v6318 = vpop.f32.mrf.mxu0
      %v6319 = vadd.f32 %v6278, %v6318
      %v6320 = vpop.f32.mrf.mxu0
      %v6321 = vpop.f32.mrf.mxu0
      %6322 = vdwg.mxu0
      %6323 = vmatprep.subr.bf16.mxu0 %v5414
      %6324 = vmatpush1.bf16.msra.mxu0 %v5413
      %6325 = vmatprep.subr.bf16.mxu0 %v5406
      %6326 = vmatpush1.bf16.msra.mxu0 %v5405
      %6327 = vmatprep.subr.bf16.mxu0 %v5398
      %6328 = vmatpush1.bf16.msra.mxu0 %v5397
      %6329 = vmatprep.subr.bf16.mxu0 %v5390
      %6330 = vmatpush1.bf16.msra.mxu0 %v5389
      %6331 = vmatprep.subr.bf16.mxu0 %v5382
      %6332 = vmatpush1.bf16.msra.mxu0 %v5381
      %6333 = vmatprep.subr.bf16.mxu0 %v5374
      %6334 = vmatpush1.bf16.msra.mxu0 %v5373
      %6335 = vmatprep.subr.bf16.mxu0 %v5366
      %6336 = vmatpush1.bf16.msra.mxu0 %v5365
      %6337 = vmatprep.subr.bf16.mxu0 %v5358
      %6338 = vmatpush1.bf16.msra.mxu0 %v5357
      %6339 = vmatprep.subr.bf16.mxu0 %v5478
      %6340 = vmatpush2.bf16.msra.mxu0 %v5477
      %6341 = vmatprep.subr.bf16.mxu0 %v5470
      %6342 = vmatpush2.bf16.msra.mxu0 %v5469
      %6343 = vmatprep.subr.bf16.mxu0 %v5462
      %6344 = vmatpush2.bf16.msra.mxu0 %v5461
      %6345 = vmatprep.subr.bf16.mxu0 %v5454
      %6346 = vmatpush2.bf16.msra.mxu0 %v5453
      %6347 = vmatprep.subr.bf16.mxu0 %v5446
      %6348 = vmatpush2.bf16.msra.mxu0 %v5445
      %6349 = vmatprep.subr.bf16.mxu0 %v5438
      %6350 = vmatpush2.bf16.msra.mxu0 %v5437
      %6351 = vmatprep.subr.bf16.mxu0 %v5430
      %6352 = vmatpush2.bf16.msra.mxu0 %v5429
      %6353 = vmatprep.subr.bf16.mxu0 %v5422
      %6354 = vmatpush2.bf16.msra.mxu0 %v5421
      %6355 = vmatprep.mubr.bf16.mxu0 %v2921
      %6356 = vmatmul.mubr.bf16.gmra.mxu0 %v2920
      %v6357 = vpop.f32.mrf.mxu0
      %v6358 = vadd.f32 %v6317, %v6357
      %v6359 = vpop.f32.mrf.mxu0
      %v6360 = vadd.f32 %v6319, %v6359
      %v6361 = vpop.f32.mrf.mxu0
      %v6362 = vpop.f32.mrf.mxu0
      %6363 = vdwg.mxu0
      %6364 = vmatprep.subr.bf16.mxu0 %v5032
      %6365 = vmatpush1.bf16.msra.mxu0 %v5031
      %6366 = vmatprep.subr.bf16.mxu0 %v5024
      %6367 = vmatpush1.bf16.msra.mxu0 %v5023
      %6368 = vmatprep.subr.bf16.mxu0 %v5016
      %6369 = vmatpush1.bf16.msra.mxu0 %v5015
      %6370 = vmatprep.subr.bf16.mxu0 %v5008
      %6371 = vmatpush1.bf16.msra.mxu0 %v5007
      %6372 = vmatprep.subr.bf16.mxu0 %v5000
      %6373 = vmatpush1.bf16.msra.mxu0 %v4999
      %6374 = vmatprep.subr.bf16.mxu0 %v4992
      %6375 = vmatpush1.bf16.msra.mxu0 %v4991
      %6376 = vmatprep.subr.bf16.mxu0 %v4984
      %6377 = vmatpush1.bf16.msra.mxu0 %v4983
      %6378 = vmatprep.subr.bf16.mxu0 %v4976
      %6379 = vmatpush1.bf16.msra.mxu0 %v4975
      %6380 = vmatprep.subr.bf16.mxu0 %v5096
      %6381 = vmatpush2.bf16.msra.mxu0 %v5095
      %6382 = vmatprep.subr.bf16.mxu0 %v5088
      %6383 = vmatpush2.bf16.msra.mxu0 %v5087
      %6384 = vmatprep.subr.bf16.mxu0 %v5080
      %6385 = vmatpush2.bf16.msra.mxu0 %v5079
      %6386 = vmatprep.subr.bf16.mxu0 %v5072
      %6387 = vmatpush2.bf16.msra.mxu0 %v5071
      %6388 = vmatprep.subr.bf16.mxu0 %v5064
      %6389 = vmatpush2.bf16.msra.mxu0 %v5063
      %6390 = vmatprep.subr.bf16.mxu0 %v5056
      %6391 = vmatpush2.bf16.msra.mxu0 %v5055
      %6392 = vmatprep.subr.bf16.mxu0 %v5048
      %6393 = vmatpush2.bf16.msra.mxu0 %v5047
      %6394 = vmatprep.subr.bf16.mxu0 %v5040
      %6395 = vmatpush2.bf16.msra.mxu0 %v5039
      %6396 = vmatprep.mubr.bf16.mxu0 %v2915
      %6397 = vmatmul.mubr.bf16.gmra.mxu0 %v2914
      %v6398 = vpop.f32.mrf.mxu0
      %v6399 = vadd.f32 %v6015, %v6398
      %v6400 = vpop.f32.mrf.mxu0
      %v6401 = vadd.f32 %v6019, %v6400
      %v6402 = vpop.f32.mrf.mxu0
      %v6403 = vpop.f32.mrf.mxu0
      %6404 = vdwg.mxu0
      %6405 = vmatprep.subr.bf16.mxu0 %v5160
      %6406 = vmatpush1.bf16.msra.mxu0 %v5159
      %6407 = vmatprep.subr.bf16.mxu0 %v5152
      %6408 = vmatpush1.bf16.msra.mxu0 %v5151
      %6409 = vmatprep.subr.bf16.mxu0 %v5144
      %6410 = vmatpush1.bf16.msra.mxu0 %v5143
      %6411 = vmatprep.subr.bf16.mxu0 %v5136
      %6412 = vmatpush1.bf16.msra.mxu0 %v5135
      %6413 = vmatprep.subr.bf16.mxu0 %v5128
      %6414 = vmatpush1.bf16.msra.mxu0 %v5127
      %6415 = vmatprep.subr.bf16.mxu0 %v5120
      %6416 = vmatpush1.bf16.msra.mxu0 %v5119
      %6417 = vmatprep.subr.bf16.mxu0 %v5112
      %6418 = vmatpush1.bf16.msra.mxu0 %v5111
      %6419 = vmatprep.subr.bf16.mxu0 %v5104
      %6420 = vmatpush1.bf16.msra.mxu0 %v5103
      %6421 = vmatprep.subr.bf16.mxu0 %v5224
      %6422 = vmatpush2.bf16.msra.mxu0 %v5223
      %6423 = vmatprep.subr.bf16.mxu0 %v5216
      %6424 = vmatpush2.bf16.msra.mxu0 %v5215
      %6425 = vmatprep.subr.bf16.mxu0 %v5208
      %6426 = vmatpush2.bf16.msra.mxu0 %v5207
      %6427 = vmatprep.subr.bf16.mxu0 %v5200
      %6428 = vmatpush2.bf16.msra.mxu0 %v5199
      %6429 = vmatprep.subr.bf16.mxu0 %v5192
      %6430 = vmatpush2.bf16.msra.mxu0 %v5191
      %6431 = vmatprep.subr.bf16.mxu0 %v5184
      %6432 = vmatpush2.bf16.msra.mxu0 %v5183
      %6433 = vmatprep.subr.bf16.mxu0 %v5176
      %6434 = vmatpush2.bf16.msra.mxu0 %v5175
      %6435 = vmatprep.subr.bf16.mxu0 %v5168
      %6436 = vmatpush2.bf16.msra.mxu0 %v5167
      %6437 = vmatprep.mubr.bf16.mxu0 %v2917
      %6438 = vmatmul.mubr.bf16.gmra.mxu0 %v2916
      %v6439 = vpop.f32.mrf.mxu0
      %v6440 = vadd.f32 %v6399, %v6439
      %v6441 = vpop.f32.mrf.mxu0
      %v6442 = vadd.f32 %v6401, %v6441
      %v6443 = vpop.f32.mrf.mxu0
      %v6444 = vpop.f32.mrf.mxu0
      %6445 = vdwg.mxu0
      %6446 = vmatprep.subr.bf16.mxu0 %v5288
      %6447 = vmatpush1.bf16.msra.mxu0 %v5287
      %6448 = vmatprep.subr.bf16.mxu0 %v5280
      %6449 = vmatpush1.bf16.msra.mxu0 %v5279
      %6450 = vmatprep.subr.bf16.mxu0 %v5272
      %6451 = vmatpush1.bf16.msra.mxu0 %v5271
      %6452 = vmatprep.subr.bf16.mxu0 %v5264
      %6453 = vmatpush1.bf16.msra.mxu0 %v5263
      %6454 = vmatprep.subr.bf16.mxu0 %v5256
      %6455 = vmatpush1.bf16.msra.mxu0 %v5255
      %6456 = vmatprep.subr.bf16.mxu0 %v5248
      %6457 = vmatpush1.bf16.msra.mxu0 %v5247
      %6458 = vmatprep.subr.bf16.mxu0 %v5240
      %6459 = vmatpush1.bf16.msra.mxu0 %v5239
      %6460 = vmatprep.subr.bf16.mxu0 %v5232
      %6461 = vmatpush1.bf16.msra.mxu0 %v5231
      %6462 = vmatprep.subr.bf16.mxu0 %v5352
      %6463 = vmatpush2.bf16.msra.mxu0 %v5351
      %6464 = vmatprep.subr.bf16.mxu0 %v5344
      %6465 = vmatpush2.bf16.msra.mxu0 %v5343
      %6466 = vmatprep.subr.bf16.mxu0 %v5336
      %6467 = vmatpush2.bf16.msra.mxu0 %v5335
      %6468 = vmatprep.subr.bf16.mxu0 %v5328
      %6469 = vmatpush2.bf16.msra.mxu0 %v5327
      %6470 = vmatprep.subr.bf16.mxu0 %v5320
      %6471 = vmatpush2.bf16.msra.mxu0 %v5319
      %6472 = vmatprep.subr.bf16.mxu0 %v5312
      %6473 = vmatpush2.bf16.msra.mxu0 %v5311
      %6474 = vmatprep.subr.bf16.mxu0 %v5304
      %6475 = vmatpush2.bf16.msra.mxu0 %v5303
      %6476 = vmatprep.subr.bf16.mxu0 %v5296
      %6477 = vmatpush2.bf16.msra.mxu0 %v5295
      %6478 = vmatprep.mubr.bf16.mxu0 %v2919
      %6479 = vmatmul.mubr.bf16.gmra.mxu0 %v2918
      %v6480 = vpop.f32.mrf.mxu0
      %v6481 = vadd.f32 %v6440, %v6480
      %v6482 = vpop.f32.mrf.mxu0
      %v6483 = vadd.f32 %v6442, %v6482
      %v6484 = vpop.f32.mrf.mxu0
      %v6485 = vpop.f32.mrf.mxu0
      %6486 = vdwg.mxu0
      %6487 = vmatprep.subr.bf16.mxu0 %v5416
      %6488 = vmatpush1.bf16.msra.mxu0 %v5415
      %6489 = vmatprep.subr.bf16.mxu0 %v5408
      %6490 = vmatpush1.bf16.msra.mxu0 %v5407
      %6491 = vmatprep.subr.bf16.mxu0 %v5400
      %6492 = vmatpush1.bf16.msra.mxu0 %v5399
      %6493 = vmatprep.subr.bf16.mxu0 %v5392
      %6494 = vmatpush1.bf16.msra.mxu0 %v5391
      %6495 = vmatprep.subr.bf16.mxu0 %v5384
      %6496 = vmatpush1.bf16.msra.mxu0 %v5383
      %6497 = vmatprep.subr.bf16.mxu0 %v5376
      %6498 = vmatpush1.bf16.msra.mxu0 %v5375
      %6499 = vmatprep.subr.bf16.mxu0 %v5368
      %6500 = vmatpush1.bf16.msra.mxu0 %v5367
      %6501 = vmatprep.subr.bf16.mxu0 %v5360
      %6502 = vmatpush1.bf16.msra.mxu0 %v5359
      %6503 = vmatprep.subr.bf16.mxu0 %v5480
      %6504 = vmatpush2.bf16.msra.mxu0 %v5479
      %6505 = vmatprep.subr.bf16.mxu0 %v5472
      %6506 = vmatpush2.bf16.msra.mxu0 %v5471
      %6507 = vmatprep.subr.bf16.mxu0 %v5464
      %6508 = vmatpush2.bf16.msra.mxu0 %v5463
      %6509 = vmatprep.subr.bf16.mxu0 %v5456
      %6510 = vmatpush2.bf16.msra.mxu0 %v5455
      %6511 = vmatprep.subr.bf16.mxu0 %v5448
      %6512 = vmatpush2.bf16.msra.mxu0 %v5447
      %6513 = vmatprep.subr.bf16.mxu0 %v5440
      %6514 = vmatpush2.bf16.msra.mxu0 %v5439
      %6515 = vmatprep.subr.bf16.mxu0 %v5432
      %6516 = vmatpush2.bf16.msra.mxu0 %v5431
      %6517 = vmatprep.subr.bf16.mxu0 %v5424
      %6518 = vmatpush2.bf16.msra.mxu0 %v5423
      %6519 = vmatprep.mubr.bf16.mxu0 %v2921
      %6520 = vmatmul.mubr.bf16.gmra.mxu0 %v2920
      %v6521 = vpop.f32.mrf.mxu0
      %v6522 = vadd.f32 %v6481, %v6521
      %v6523 = vpop.f32.mrf.mxu0
      %v6524 = vadd.f32 %v6483, %v6523
      %v6525 = vpop.f32.mrf.mxu0
      %v6526 = vpop.f32.mrf.mxu0
      %6527 = vdwg.mxu0
      %6528 = vmatprep.subr.bf16.mxu0 %v5034
      %6529 = vmatpush1.bf16.msra.mxu0 %v5033
      %6530 = vmatprep.subr.bf16.mxu0 %v5026
      %6531 = vmatpush1.bf16.msra.mxu0 %v5025
      %6532 = vmatprep.subr.bf16.mxu0 %v5018
      %6533 = vmatpush1.bf16.msra.mxu0 %v5017
      %6534 = vmatprep.subr.bf16.mxu0 %v5010
      %6535 = vmatpush1.bf16.msra.mxu0 %v5009
      %6536 = vmatprep.subr.bf16.mxu0 %v5002
      %6537 = vmatpush1.bf16.msra.mxu0 %v5001
      %6538 = vmatprep.subr.bf16.mxu0 %v4994
      %6539 = vmatpush1.bf16.msra.mxu0 %v4993
      %6540 = vmatprep.subr.bf16.mxu0 %v4986
      %6541 = vmatpush1.bf16.msra.mxu0 %v4985
      %6542 = vmatprep.subr.bf16.mxu0 %v4978
      %6543 = vmatpush1.bf16.msra.mxu0 %v4977
      %6544 = vmatprep.subr.bf16.mxu0 %v5098
      %6545 = vmatpush2.bf16.msra.mxu0 %v5097
      %6546 = vmatprep.subr.bf16.mxu0 %v5090
      %6547 = vmatpush2.bf16.msra.mxu0 %v5089
      %6548 = vmatprep.subr.bf16.mxu0 %v5082
      %6549 = vmatpush2.bf16.msra.mxu0 %v5081
      %6550 = vmatprep.subr.bf16.mxu0 %v5074
      %6551 = vmatpush2.bf16.msra.mxu0 %v5073
      %6552 = vmatprep.subr.bf16.mxu0 %v5066
      %6553 = vmatpush2.bf16.msra.mxu0 %v5065
      %6554 = vmatprep.subr.bf16.mxu0 %v5058
      %6555 = vmatpush2.bf16.msra.mxu0 %v5057
      %6556 = vmatprep.subr.bf16.mxu0 %v5050
      %6557 = vmatpush2.bf16.msra.mxu0 %v5049
      %6558 = vmatprep.subr.bf16.mxu0 %v5042
      %6559 = vmatpush2.bf16.msra.mxu0 %v5041
      %6560 = vmatprep.mubr.bf16.mxu0 %v2915
      %6561 = vmatmul.mubr.bf16.gmra.mxu0 %v2914
      %v6562 = vpop.f32.mrf.mxu0
      %v6563 = vadd.f32 %v6023, %v6562
      %v6564 = vpop.f32.mrf.mxu0
      %v6565 = vadd.f32 %v6027, %v6564
      %v6566 = vpop.f32.mrf.mxu0
      %v6567 = vpop.f32.mrf.mxu0
      %6568 = vdwg.mxu0
      %6569 = vmatprep.subr.bf16.mxu0 %v5162
      %6570 = vmatpush1.bf16.msra.mxu0 %v5161
      %6571 = vmatprep.subr.bf16.mxu0 %v5154
      %6572 = vmatpush1.bf16.msra.mxu0 %v5153
      %6573 = vmatprep.subr.bf16.mxu0 %v5146
      %6574 = vmatpush1.bf16.msra.mxu0 %v5145
      %6575 = vmatprep.subr.bf16.mxu0 %v5138
      %6576 = vmatpush1.bf16.msra.mxu0 %v5137
      %6577 = vmatprep.subr.bf16.mxu0 %v5130
      %6578 = vmatpush1.bf16.msra.mxu0 %v5129
      %6579 = vmatprep.subr.bf16.mxu0 %v5122
      %6580 = vmatpush1.bf16.msra.mxu0 %v5121
      %6581 = vmatprep.subr.bf16.mxu0 %v5114
      %6582 = vmatpush1.bf16.msra.mxu0 %v5113
      %6583 = vmatprep.subr.bf16.mxu0 %v5106
      %6584 = vmatpush1.bf16.msra.mxu0 %v5105
      %6585 = vmatprep.subr.bf16.mxu0 %v5226
      %6586 = vmatpush2.bf16.msra.mxu0 %v5225
      %6587 = vmatprep.subr.bf16.mxu0 %v5218
      %6588 = vmatpush2.bf16.msra.mxu0 %v5217
      %6589 = vmatprep.subr.bf16.mxu0 %v5210
      %6590 = vmatpush2.bf16.msra.mxu0 %v5209
      %6591 = vmatprep.subr.bf16.mxu0 %v5202
      %6592 = vmatpush2.bf16.msra.mxu0 %v5201
      %6593 = vmatprep.subr.bf16.mxu0 %v5194
      %6594 = vmatpush2.bf16.msra.mxu0 %v5193
      %6595 = vmatprep.subr.bf16.mxu0 %v5186
      %6596 = vmatpush2.bf16.msra.mxu0 %v5185
      %6597 = vmatprep.subr.bf16.mxu0 %v5178
      %6598 = vmatpush2.bf16.msra.mxu0 %v5177
      %6599 = vmatprep.subr.bf16.mxu0 %v5170
      %6600 = vmatpush2.bf16.msra.mxu0 %v5169
      %6601 = vmatprep.mubr.bf16.mxu0 %v2917
      %6602 = vmatmul.mubr.bf16.gmra.mxu0 %v2916
      %v6603 = vpop.f32.mrf.mxu0
      %v6604 = vadd.f32 %v6563, %v6603
      %v6605 = vpop.f32.mrf.mxu0
      %v6606 = vadd.f32 %v6565, %v6605
      %v6607 = vpop.f32.mrf.mxu0
      %v6608 = vpop.f32.mrf.mxu0
      %6609 = vdwg.mxu0
      %6610 = vmatprep.subr.bf16.mxu0 %v5290
      %6611 = vmatpush1.bf16.msra.mxu0 %v5289
      %6612 = vmatprep.subr.bf16.mxu0 %v5282
      %6613 = vmatpush1.bf16.msra.mxu0 %v5281
      %6614 = vmatprep.subr.bf16.mxu0 %v5274
      %6615 = vmatpush1.bf16.msra.mxu0 %v5273
      %6616 = vmatprep.subr.bf16.mxu0 %v5266
      %6617 = vmatpush1.bf16.msra.mxu0 %v5265
      %6618 = vmatprep.subr.bf16.mxu0 %v5258
      %6619 = vmatpush1.bf16.msra.mxu0 %v5257
      %6620 = vmatprep.subr.bf16.mxu0 %v5250
      %6621 = vmatpush1.bf16.msra.mxu0 %v5249
      %6622 = vmatprep.subr.bf16.mxu0 %v5242
      %6623 = vmatpush1.bf16.msra.mxu0 %v5241
      %6624 = vmatprep.subr.bf16.mxu0 %v5234
      %6625 = vmatpush1.bf16.msra.mxu0 %v5233
      %6626 = vmatprep.subr.bf16.mxu0 %v5354
      %6627 = vmatpush2.bf16.msra.mxu0 %v5353
      %6628 = vmatprep.subr.bf16.mxu0 %v5346
      %6629 = vmatpush2.bf16.msra.mxu0 %v5345
      %6630 = vmatprep.subr.bf16.mxu0 %v5338
      %6631 = vmatpush2.bf16.msra.mxu0 %v5337
      %6632 = vmatprep.subr.bf16.mxu0 %v5330
      %6633 = vmatpush2.bf16.msra.mxu0 %v5329
      %6634 = vmatprep.subr.bf16.mxu0 %v5322
      %6635 = vmatpush2.bf16.msra.mxu0 %v5321
      %6636 = vmatprep.subr.bf16.mxu0 %v5314
      %6637 = vmatpush2.bf16.msra.mxu0 %v5313
      %6638 = vmatprep.subr.bf16.mxu0 %v5306
      %6639 = vmatpush2.bf16.msra.mxu0 %v5305
      %6640 = vmatprep.subr.bf16.mxu0 %v5298
      %6641 = vmatpush2.bf16.msra.mxu0 %v5297
      %6642 = vmatprep.mubr.bf16.mxu0 %v2919
      %6643 = vmatmul.mubr.bf16.gmra.mxu0 %v2918
      %v6644 = vpop.f32.mrf.mxu0
      %v6645 = vadd.f32 %v6604, %v6644
      %v6646 = vpop.f32.mrf.mxu0
      %v6647 = vadd.f32 %v6606, %v6646
      %v6648 = vpop.f32.mrf.mxu0
      %v6649 = vpop.f32.mrf.mxu0
      %6650 = vdwg.mxu0
      %6651 = vmatprep.subr.bf16.mxu0 %v5418
      %6652 = vmatpush1.bf16.msra.mxu0 %v5417
      %6653 = vmatprep.subr.bf16.mxu0 %v5410
      %6654 = vmatpush1.bf16.msra.mxu0 %v5409
      %6655 = vmatprep.subr.bf16.mxu0 %v5402
      %6656 = vmatpush1.bf16.msra.mxu0 %v5401
      %6657 = vmatprep.subr.bf16.mxu0 %v5394
      %6658 = vmatpush1.bf16.msra.mxu0 %v5393
      %6659 = vmatprep.subr.bf16.mxu0 %v5386
      %6660 = vmatpush1.bf16.msra.mxu0 %v5385
      %6661 = vmatprep.subr.bf16.mxu0 %v5378
      %6662 = vmatpush1.bf16.msra.mxu0 %v5377
      %6663 = vmatprep.subr.bf16.mxu0 %v5370
      %6664 = vmatpush1.bf16.msra.mxu0 %v5369
      %6665 = vmatprep.subr.bf16.mxu0 %v5362
      %6666 = vmatpush1.bf16.msra.mxu0 %v5361
      %6667 = vmatprep.subr.bf16.mxu0 %v5482
      %6668 = vmatpush2.bf16.msra.mxu0 %v5481
      %6669 = vmatprep.subr.bf16.mxu0 %v5474
      %6670 = vmatpush2.bf16.msra.mxu0 %v5473
      %6671 = vmatprep.subr.bf16.mxu0 %v5466
      %6672 = vmatpush2.bf16.msra.mxu0 %v5465
      %6673 = vmatprep.subr.bf16.mxu0 %v5458
      %6674 = vmatpush2.bf16.msra.mxu0 %v5457
      %6675 = vmatprep.subr.bf16.mxu0 %v5450
      %6676 = vmatpush2.bf16.msra.mxu0 %v5449
      %6677 = vmatprep.subr.bf16.mxu0 %v5442
      %6678 = vmatpush2.bf16.msra.mxu0 %v5441
      %6679 = vmatprep.subr.bf16.mxu0 %v5434
      %6680 = vmatpush2.bf16.msra.mxu0 %v5433
      %6681 = vmatprep.subr.bf16.mxu0 %v5426
      %6682 = vmatpush2.bf16.msra.mxu0 %v5425
      %6683 = vmatprep.mubr.bf16.mxu0 %v2921
      %6684 = vmatmul.mubr.bf16.gmra.mxu0 %v2920
      %v6685 = vpop.f32.mrf.mxu0
      %v6686 = vadd.f32 %v6645, %v6685
      %v6687 = vpop.f32.mrf.mxu0
      %v6688 = vadd.f32 %v6647, %v6687
      %v6689 = vpop.f32.mrf.mxu0
      %v6690 = vpop.f32.mrf.mxu0
      %6691 = vdwg.mxu0
      %v6692 = vmax.f32 %v6194, 0.0
      %v6693 = vmax.f32 %v6196, 0.0
      %v6694 = vmax.f32 %v6358, 0.0
      %v6695 = vmax.f32 %v6360, 0.0
      %v6696 = vmax.f32 %v6522, 0.0
      %v6697 = vmax.f32 %v6524, 0.0
      %v6698 = vmax.f32 %v6686, 0.0
      %v6699 = vmax.f32 %v6688, 0.0
      %v6700 = vpack.c.bf16 %v6692, %v6692
      %v6701 = vpack.c.bf16 %v6693, %v6693
      %v6702 = vpack.c.bf16 %v6694, %v6694
      %v6703 = vpack.c.bf16 %v6695, %v6695
      %v6704 = vpack.c.bf16 %v6696, %v6696
      %v6705 = vpack.c.bf16 %v6697, %v6697
      %v6706 = vpack.c.bf16 %v6698, %v6698
      %v6707 = vpack.c.bf16 %v6699, %v6699
      %v6708 = vld [vmem:[%s26] sm:$0xf]
      %v6709 = vld [vmem:[%s26 + $0x4] sm:$0xf]
      %v6710 = vld [vmem:[%s26 + $0x8] sm:$0xf]
      %v6711 = vld [vmem:[%s26 + $0xc] sm:$0xf]
      %v6712 = vld [vmem:[%s26 + $0x10] sm:$0xf]
      %v6713 = vld [vmem:[%s26 + $0x14] sm:$0xf]
      %v6714 = vld [vmem:[%s26 + $0x18] sm:$0xf]
      %v6715 = vld [vmem:[%s26 + $0x1c] sm:$0xf]
      %v6716 = vld [vmem:[%s26 + $0x20] sm:$0xf]
      %v6717 = vld [vmem:[%s26 + $0x24] sm:$0xf]
      %v6718 = vld [vmem:[%s26 + $0x28] sm:$0xf]
      %v6719 = vld [vmem:[%s26 + $0x2c] sm:$0xf]
      %v6720 = vld [vmem:[%s26 + $0x30] sm:$0xf]
      %v6721 = vld [vmem:[%s26 + $0x34] sm:$0xf]
      %v6722 = vld [vmem:[%s26 + $0x38] sm:$0xf]
      %v6723 = vld [vmem:[%s26 + $0x3c] sm:$0xf]
      %v6724 = vld [vmem:[%s26 + $0x40] sm:$0xf]
      %v6725 = vld [vmem:[%s26 + $0x44] sm:$0xf]
      %v6726 = vld [vmem:[%s26 + $0x48] sm:$0xf]
      %v6727 = vld [vmem:[%s26 + $0x4c] sm:$0xf]
      %v6728 = vld [vmem:[%s26 + $0x50] sm:$0xf]
      %v6729 = vld [vmem:[%s26 + $0x54] sm:$0xf]
      %v6730 = vld [vmem:[%s26 + $0x58] sm:$0xf]
      %v6731 = vld [vmem:[%s26 + $0x5c] sm:$0xf]
      %v6732 = vld [vmem:[%s26 + $0x60] sm:$0xf]
      %v6733 = vld [vmem:[%s26 + $0x64] sm:$0xf]
      %v6734 = vld [vmem:[%s26 + $0x68] sm:$0xf]
      %v6735 = vld [vmem:[%s26 + $0x6c] sm:$0xf]
      %v6736 = vld [vmem:[%s26 + $0x70] sm:$0xf]
      %v6737 = vld [vmem:[%s26 + $0x74] sm:$0xf]
      %v6738 = vld [vmem:[%s26 + $0x78] sm:$0xf]
      %v6739 = vld [vmem:[%s26 + $0x7c] sm:$0xf]
      %v6740 = vld [vmem:[%s26 + $0x80] sm:$0xf]
      %v6741 = vld [vmem:[%s26 + $0x84] sm:$0xf]
      %v6742 = vld [vmem:[%s26 + $0x88] sm:$0xf]
      %v6743 = vld [vmem:[%s26 + $0x8c] sm:$0xf]
      %v6744 = vld [vmem:[%s26 + $0x90] sm:$0xf]
      %v6745 = vld [vmem:[%s26 + $0x94] sm:$0xf]
      %v6746 = vld [vmem:[%s26 + $0x98] sm:$0xf]
      %v6747 = vld [vmem:[%s26 + $0x9c] sm:$0xf]
      %v6748 = vld [vmem:[%s26 + $0xa0] sm:$0xf]
      %v6749 = vld [vmem:[%s26 + $0xa4] sm:$0xf]
      %v6750 = vld [vmem:[%s26 + $0xa8] sm:$0xf]
      %v6751 = vld [vmem:[%s26 + $0xac] sm:$0xf]
      %v6752 = vld [vmem:[%s26 + $0xb0] sm:$0xf]
      %v6753 = vld [vmem:[%s26 + $0xb4] sm:$0xf]
      %v6754 = vld [vmem:[%s26 + $0xb8] sm:$0xf]
      %v6755 = vld [vmem:[%s26 + $0xbc] sm:$0xf]
      %v6756 = vld [vmem:[%s26 + $0xc0] sm:$0xf]
      %v6757 = vld [vmem:[%s26 + $0xc4] sm:$0xf]
      %v6758 = vld [vmem:[%s26 + $0xc8] sm:$0xf]
      %v6759 = vld [vmem:[%s26 + $0xcc] sm:$0xf]
      %v6760 = vld [vmem:[%s26 + $0xd0] sm:$0xf]
      %v6761 = vld [vmem:[%s26 + $0xd4] sm:$0xf]
      %v6762 = vld [vmem:[%s26 + $0xd8] sm:$0xf]
      %v6763 = vld [vmem:[%s26 + $0xdc] sm:$0xf]
      %v6764 = vld [vmem:[%s26 + $0xe0] sm:$0xf]
      %v6765 = vld [vmem:[%s26 + $0xe4] sm:$0xf]
      %v6766 = vld [vmem:[%s26 + $0xe8] sm:$0xf]
      %v6767 = vld [vmem:[%s26 + $0xec] sm:$0xf]
      %v6768 = vld [vmem:[%s26 + $0xf0] sm:$0xf]
      %v6769 = vld [vmem:[%s26 + $0xf4] sm:$0xf]
      %v6770 = vld [vmem:[%s26 + $0xf8] sm:$0xf]
      %v6771 = vld [vmem:[%s26 + $0xfc] sm:$0xf]
      %v6772 = vld [vmem:[%s26 + $0x100] sm:$0xf]
      %v6773 = vld [vmem:[%s26 + $0x104] sm:$0xf]
      %v6774 = vld [vmem:[%s26 + $0x108] sm:$0xf]
      %v6775 = vld [vmem:[%s26 + $0x10c] sm:$0xf]
      %v6776 = vld [vmem:[%s26 + $0x110] sm:$0xf]
      %v6777 = vld [vmem:[%s26 + $0x114] sm:$0xf]
      %v6778 = vld [vmem:[%s26 + $0x118] sm:$0xf]
      %v6779 = vld [vmem:[%s26 + $0x11c] sm:$0xf]
      %v6780 = vld [vmem:[%s26 + $0x120] sm:$0xf]
      %v6781 = vld [vmem:[%s26 + $0x124] sm:$0xf]
      %v6782 = vld [vmem:[%s26 + $0x128] sm:$0xf]
      %v6783 = vld [vmem:[%s26 + $0x12c] sm:$0xf]
      %v6784 = vld [vmem:[%s26 + $0x130] sm:$0xf]
      %v6785 = vld [vmem:[%s26 + $0x134] sm:$0xf]
      %v6786 = vld [vmem:[%s26 + $0x138] sm:$0xf]
      %v6787 = vld [vmem:[%s26 + $0x13c] sm:$0xf]
      %v6788 = vld [vmem:[%s26 + $0x140] sm:$0xf]
      %v6789 = vld [vmem:[%s26 + $0x144] sm:$0xf]
      %v6790 = vld [vmem:[%s26 + $0x148] sm:$0xf]
      %v6791 = vld [vmem:[%s26 + $0x14c] sm:$0xf]
      %v6792 = vld [vmem:[%s26 + $0x150] sm:$0xf]
      %v6793 = vld [vmem:[%s26 + $0x154] sm:$0xf]
      %v6794 = vld [vmem:[%s26 + $0x158] sm:$0xf]
      %v6795 = vld [vmem:[%s26 + $0x15c] sm:$0xf]
      %v6796 = vld [vmem:[%s26 + $0x160] sm:$0xf]
      %v6797 = vld [vmem:[%s26 + $0x164] sm:$0xf]
      %v6798 = vld [vmem:[%s26 + $0x168] sm:$0xf]
      %v6799 = vld [vmem:[%s26 + $0x16c] sm:$0xf]
      %v6800 = vld [vmem:[%s26 + $0x170] sm:$0xf]
      %v6801 = vld [vmem:[%s26 + $0x174] sm:$0xf]
      %v6802 = vld [vmem:[%s26 + $0x178] sm:$0xf]
      %v6803 = vld [vmem:[%s26 + $0x17c] sm:$0xf]
      %v6804 = vld [vmem:[%s26 + $0x180] sm:$0xf]
      %v6805 = vld [vmem:[%s26 + $0x184] sm:$0xf]
      %v6806 = vld [vmem:[%s26 + $0x188] sm:$0xf]
      %v6807 = vld [vmem:[%s26 + $0x18c] sm:$0xf]
      %v6808 = vld [vmem:[%s26 + $0x190] sm:$0xf]
      %v6809 = vld [vmem:[%s26 + $0x194] sm:$0xf]
      %v6810 = vld [vmem:[%s26 + $0x198] sm:$0xf]
      %v6811 = vld [vmem:[%s26 + $0x19c] sm:$0xf]
      %v6812 = vld [vmem:[%s26 + $0x1a0] sm:$0xf]
      %v6813 = vld [vmem:[%s26 + $0x1a4] sm:$0xf]
      %v6814 = vld [vmem:[%s26 + $0x1a8] sm:$0xf]
      %v6815 = vld [vmem:[%s26 + $0x1ac] sm:$0xf]
      %v6816 = vld [vmem:[%s26 + $0x1b0] sm:$0xf]
      %v6817 = vld [vmem:[%s26 + $0x1b4] sm:$0xf]
      %v6818 = vld [vmem:[%s26 + $0x1b8] sm:$0xf]
      %v6819 = vld [vmem:[%s26 + $0x1bc] sm:$0xf]
      %v6820 = vld [vmem:[%s26 + $0x1c0] sm:$0xf]
      %v6821 = vld [vmem:[%s26 + $0x1c4] sm:$0xf]
      %v6822 = vld [vmem:[%s26 + $0x1c8] sm:$0xf]
      %v6823 = vld [vmem:[%s26 + $0x1cc] sm:$0xf]
      %v6824 = vld [vmem:[%s26 + $0x1d0] sm:$0xf]
      %v6825 = vld [vmem:[%s26 + $0x1d4] sm:$0xf]
      %v6826 = vld [vmem:[%s26 + $0x1d8] sm:$0xf]
      %v6827 = vld [vmem:[%s26 + $0x1dc] sm:$0xf]
      %v6828 = vld [vmem:[%s26 + $0x1e0] sm:$0xf]
      %v6829 = vld [vmem:[%s26 + $0x1e4] sm:$0xf]
      %v6830 = vld [vmem:[%s26 + $0x1e8] sm:$0xf]
      %v6831 = vld [vmem:[%s26 + $0x1ec] sm:$0xf]
      %v6832 = vld [vmem:[%s26 + $0x1f0] sm:$0xf]
      %v6833 = vld [vmem:[%s26 + $0x1f4] sm:$0xf]
      %v6834 = vld [vmem:[%s26 + $0x1f8] sm:$0xf]
      %v6835 = vld [vmem:[%s26 + $0x1fc] sm:$0xf]
      %v6836 = vld [vmem:[%s27] sm:$0x1]
      %v6965 = vunpack.c.l.b16 %v6708
      %v6966 = vunpack.c.l.b16 %v6709
      %v6967 = vunpack.c.l.b16 %v6710
      %v6968 = vunpack.c.l.b16 %v6711
      %v6969 = vunpack.c.l.b16 %v6712
      %v6970 = vunpack.c.l.b16 %v6713
      %v6971 = vunpack.c.l.b16 %v6714
      %v6972 = vunpack.c.l.b16 %v6715
      %v6973 = vunpack.c.l.b16 %v6716
      %v6974 = vunpack.c.l.b16 %v6717
      %v6975 = vunpack.c.l.b16 %v6718
      %v6976 = vunpack.c.l.b16 %v6719
      %v6977 = vunpack.c.l.b16 %v6720
      %v6978 = vunpack.c.l.b16 %v6721
      %v6979 = vunpack.c.l.b16 %v6722
      %v6980 = vunpack.c.l.b16 %v6723
      %v6981 = vunpack.c.l.b16 %v6724
      %v6982 = vunpack.c.l.b16 %v6725
      %v6983 = vunpack.c.l.b16 %v6726
      %v6984 = vunpack.c.l.b16 %v6727
      %v6985 = vunpack.c.l.b16 %v6728
      %v6986 = vunpack.c.l.b16 %v6729
      %v6987 = vunpack.c.l.b16 %v6730
      %v6988 = vunpack.c.l.b16 %v6731
      %v6989 = vunpack.c.l.b16 %v6732
      %v6990 = vunpack.c.l.b16 %v6733
      %v6991 = vunpack.c.l.b16 %v6734
      %v6992 = vunpack.c.l.b16 %v6735
      %v6993 = vunpack.c.l.b16 %v6736
      %v6994 = vunpack.c.l.b16 %v6737
      %v6995 = vunpack.c.l.b16 %v6738
      %v6996 = vunpack.c.l.b16 %v6739
      %v6997 = vunpack.c.l.b16 %v6740
      %v6998 = vunpack.c.l.b16 %v6741
      %v6999 = vunpack.c.l.b16 %v6742
      %v7000 = vunpack.c.l.b16 %v6743
      %v7001 = vunpack.c.l.b16 %v6744
      %v7002 = vunpack.c.l.b16 %v6745
      %v7003 = vunpack.c.l.b16 %v6746
      %v7004 = vunpack.c.l.b16 %v6747
      %v7005 = vunpack.c.l.b16 %v6748
      %v7006 = vunpack.c.l.b16 %v6749
      %v7007 = vunpack.c.l.b16 %v6750
      %v7008 = vunpack.c.l.b16 %v6751
      %v7009 = vunpack.c.l.b16 %v6752
      %v7010 = vunpack.c.l.b16 %v6753
      %v7011 = vunpack.c.l.b16 %v6754
      %v7012 = vunpack.c.l.b16 %v6755
      %v7013 = vunpack.c.l.b16 %v6756
      %v7014 = vunpack.c.l.b16 %v6757
      %v7015 = vunpack.c.l.b16 %v6758
      %v7016 = vunpack.c.l.b16 %v6759
      %v7017 = vunpack.c.l.b16 %v6760
      %v7018 = vunpack.c.l.b16 %v6761
      %v7019 = vunpack.c.l.b16 %v6762
      %v7020 = vunpack.c.l.b16 %v6763
      %v7021 = vunpack.c.l.b16 %v6764
      %v7022 = vunpack.c.l.b16 %v6765
      %v7023 = vunpack.c.l.b16 %v6766
      %v7024 = vunpack.c.l.b16 %v6767
      %v7025 = vunpack.c.l.b16 %v6768
      %v7026 = vunpack.c.l.b16 %v6769
      %v7027 = vunpack.c.l.b16 %v6770
      %v7028 = vunpack.c.l.b16 %v6771
      %v7029 = vunpack.c.l.b16 %v6772
      %v7030 = vunpack.c.l.b16 %v6773
      %v7031 = vunpack.c.l.b16 %v6774
      %v7032 = vunpack.c.l.b16 %v6775
      %v7033 = vunpack.c.l.b16 %v6776
      %v7034 = vunpack.c.l.b16 %v6777
      %v7035 = vunpack.c.l.b16 %v6778
      %v7036 = vunpack.c.l.b16 %v6779
      %v7037 = vunpack.c.l.b16 %v6780
      %v7038 = vunpack.c.l.b16 %v6781
      %v7039 = vunpack.c.l.b16 %v6782
      %v7040 = vunpack.c.l.b16 %v6783
      %v7041 = vunpack.c.l.b16 %v6784
      %v7042 = vunpack.c.l.b16 %v6785
      %v7043 = vunpack.c.l.b16 %v6786
      %v7044 = vunpack.c.l.b16 %v6787
      %v7045 = vunpack.c.l.b16 %v6788
      %v7046 = vunpack.c.l.b16 %v6789
      %v7047 = vunpack.c.l.b16 %v6790
      %v7048 = vunpack.c.l.b16 %v6791
      %v7049 = vunpack.c.l.b16 %v6792
      %v7050 = vunpack.c.l.b16 %v6793
      %v7051 = vunpack.c.l.b16 %v6794
      %v7052 = vunpack.c.l.b16 %v6795
      %v7053 = vunpack.c.l.b16 %v6796
      %v7054 = vunpack.c.l.b16 %v6797
      %v7055 = vunpack.c.l.b16 %v6798
      %v7056 = vunpack.c.l.b16 %v6799
      %v7057 = vunpack.c.l.b16 %v6800
      %v7058 = vunpack.c.l.b16 %v6801
      %v7059 = vunpack.c.l.b16 %v6802
      %v7060 = vunpack.c.l.b16 %v6803
      %v7061 = vunpack.c.l.b16 %v6804
      %v7062 = vunpack.c.l.b16 %v6805
      %v7063 = vunpack.c.l.b16 %v6806
      %v7064 = vunpack.c.l.b16 %v6807
      %v7065 = vunpack.c.l.b16 %v6808
      %v7066 = vunpack.c.l.b16 %v6809
      %v7067 = vunpack.c.l.b16 %v6810
      %v7068 = vunpack.c.l.b16 %v6811
      %v7069 = vunpack.c.l.b16 %v6812
      %v7070 = vunpack.c.l.b16 %v6813
      %v7071 = vunpack.c.l.b16 %v6814
      %v7072 = vunpack.c.l.b16 %v6815
      %v7073 = vunpack.c.l.b16 %v6816
      %v7074 = vunpack.c.l.b16 %v6817
      %v7075 = vunpack.c.l.b16 %v6818
      %v7076 = vunpack.c.l.b16 %v6819
      %v7077 = vunpack.c.l.b16 %v6820
      %v7078 = vunpack.c.l.b16 %v6821
      %v7079 = vunpack.c.l.b16 %v6822
      %v7080 = vunpack.c.l.b16 %v6823
      %v7081 = vunpack.c.l.b16 %v6824
      %v7082 = vunpack.c.l.b16 %v6825
      %v7083 = vunpack.c.l.b16 %v6826
      %v7084 = vunpack.c.l.b16 %v6827
      %v7085 = vunpack.c.l.b16 %v6828
      %v7086 = vunpack.c.l.b16 %v6829
      %v7087 = vunpack.c.l.b16 %v6830
      %v7088 = vunpack.c.l.b16 %v6831
      %v7089 = vunpack.c.l.b16 %v6832
      %v7090 = vunpack.c.l.b16 %v6833
      %v7091 = vunpack.c.l.b16 %v6834
      %v7092 = vunpack.c.l.b16 %v6835
      %v7093 = vpack.c.b16 %v6966, %v6965
      %v7094 = vpack.c.b16 %v6968, %v6967
      %v7095 = vpack.c.b16 %v6970, %v6969
      %v7096 = vpack.c.b16 %v6972, %v6971
      %v7097 = vpack.c.b16 %v6974, %v6973
      %v7098 = vpack.c.b16 %v6976, %v6975
      %v7099 = vpack.c.b16 %v6978, %v6977
      %v7100 = vpack.c.b16 %v6980, %v6979
      %v7101 = vpack.c.b16 %v6982, %v6981
      %v7102 = vpack.c.b16 %v6984, %v6983
      %v7103 = vpack.c.b16 %v6986, %v6985
      %v7104 = vpack.c.b16 %v6988, %v6987
      %v7105 = vpack.c.b16 %v6990, %v6989
      %v7106 = vpack.c.b16 %v6992, %v6991
      %v7107 = vpack.c.b16 %v6994, %v6993
      %v7108 = vpack.c.b16 %v6996, %v6995
      %v7109 = vpack.c.b16 %v6998, %v6997
      %v7110 = vpack.c.b16 %v7000, %v6999
      %v7111 = vpack.c.b16 %v7002, %v7001
      %v7112 = vpack.c.b16 %v7004, %v7003
      %v7113 = vpack.c.b16 %v7006, %v7005
      %v7114 = vpack.c.b16 %v7008, %v7007
      %v7115 = vpack.c.b16 %v7010, %v7009
      %v7116 = vpack.c.b16 %v7012, %v7011
      %v7117 = vpack.c.b16 %v7014, %v7013
      %v7118 = vpack.c.b16 %v7016, %v7015
      %v7119 = vpack.c.b16 %v7018, %v7017
      %v7120 = vpack.c.b16 %v7020, %v7019
      %v7121 = vpack.c.b16 %v7022, %v7021
      %v7122 = vpack.c.b16 %v7024, %v7023
      %v7123 = vpack.c.b16 %v7026, %v7025
      %v7124 = vpack.c.b16 %v7028, %v7027
      %v7125 = vpack.c.b16 %v7030, %v7029
      %v7126 = vpack.c.b16 %v7032, %v7031
      %v7127 = vpack.c.b16 %v7034, %v7033
      %v7128 = vpack.c.b16 %v7036, %v7035
      %v7129 = vpack.c.b16 %v7038, %v7037
      %v7130 = vpack.c.b16 %v7040, %v7039
      %v7131 = vpack.c.b16 %v7042, %v7041
      %v7132 = vpack.c.b16 %v7044, %v7043
      %v7133 = vpack.c.b16 %v7046, %v7045
      %v7134 = vpack.c.b16 %v7048, %v7047
      %v7135 = vpack.c.b16 %v7050, %v7049
      %v7136 = vpack.c.b16 %v7052, %v7051
      %v7137 = vpack.c.b16 %v7054, %v7053
      %v7138 = vpack.c.b16 %v7056, %v7055
      %v7139 = vpack.c.b16 %v7058, %v7057
      %v7140 = vpack.c.b16 %v7060, %v7059
      %v7141 = vpack.c.b16 %v7062, %v7061
      %v7142 = vpack.c.b16 %v7064, %v7063
      %v7143 = vpack.c.b16 %v7066, %v7065
      %v7144 = vpack.c.b16 %v7068, %v7067
      %v7145 = vpack.c.b16 %v7070, %v7069
      %v7146 = vpack.c.b16 %v7072, %v7071
      %v7147 = vpack.c.b16 %v7074, %v7073
      %v7148 = vpack.c.b16 %v7076, %v7075
      %v7149 = vpack.c.b16 %v7078, %v7077
      %v7150 = vpack.c.b16 %v7080, %v7079
      %v7151 = vpack.c.b16 %v7082, %v7081
      %v7152 = vpack.c.b16 %v7084, %v7083
      %v7153 = vpack.c.b16 %v7086, %v7085
      %v7154 = vpack.c.b16 %v7088, %v7087
      %v7155 = vpack.c.b16 %v7090, %v7089
      %v7156 = vpack.c.b16 %v7092, %v7091
      %7221 = vmatprep.subr.bf16.mxu0 0
      %7222 = vmatpush1.bf16.msra.mxu0 %v7100
      %7223 = vmatprep.subr.bf16.mxu0 0
      %7224 = vmatpush1.bf16.msra.mxu0 %v7099
      %7225 = vmatprep.subr.bf16.mxu0 0
      %7226 = vmatpush1.bf16.msra.mxu0 %v7098
      %7227 = vmatprep.subr.bf16.mxu0 0
      %7228 = vmatpush1.bf16.msra.mxu0 %v7097
      %7229 = vmatprep.subr.bf16.mxu0 0
      %7230 = vmatpush1.bf16.msra.mxu0 %v7096
      %7231 = vmatprep.subr.bf16.mxu0 0
      %7232 = vmatpush1.bf16.msra.mxu0 %v7095
      %7233 = vmatprep.subr.bf16.mxu0 0
      %7234 = vmatpush1.bf16.msra.mxu0 %v7094
      %7235 = vmatprep.subr.bf16.mxu0 0
      %7236 = vmatpush1.bf16.msra.mxu0 %v7093
      %7237 = vmatprep.subr.bf16.mxu0 0
      %7238 = vmatpush2.bf16.msra.mxu0 %v7108
      %7239 = vmatprep.subr.bf16.mxu0 0
      %7240 = vmatpush2.bf16.msra.mxu0 %v7107
      %7241 = vmatprep.subr.bf16.mxu0 0
      %7242 = vmatpush2.bf16.msra.mxu0 %v7106
      %7243 = vmatprep.subr.bf16.mxu0 0
      %7244 = vmatpush2.bf16.msra.mxu0 %v7105
      %7245 = vmatprep.subr.bf16.mxu0 0
      %7246 = vmatpush2.bf16.msra.mxu0 %v7104
      %7247 = vmatprep.subr.bf16.mxu0 0
      %7248 = vmatpush2.bf16.msra.mxu0 %v7103
      %7249 = vmatprep.subr.bf16.mxu0 0
      %7250 = vmatpush2.bf16.msra.mxu0 %v7102
      %7251 = vmatprep.subr.bf16.mxu0 0
      %7252 = vmatpush2.bf16.msra.mxu0 %v7101
      %7253 = vmatprep.mubr.bf16.mxu0 %v6701
      %7254 = vmatmul.mubr.bf16.gmra.mxu0 %v6700
      %v7255 = vpop.f32.mrf.mxu0
      %v7256 = vadd.f32 %v6836, %v7255
      %v7257 = vpop.f32.mrf.mxu0
      %v7258 = vpop.f32.mrf.mxu0
      %v7259 = vpop.f32.mrf.mxu0
      %7260 = vdwg.mxu0
      %7261 = vmatprep.subr.bf16.mxu0 0
      %7262 = vmatpush1.bf16.msra.mxu0 %v7116
      %7263 = vmatprep.subr.bf16.mxu0 0
      %7264 = vmatpush1.bf16.msra.mxu0 %v7115
      %7265 = vmatprep.subr.bf16.mxu0 0
      %7266 = vmatpush1.bf16.msra.mxu0 %v7114
      %7267 = vmatprep.subr.bf16.mxu0 0
      %7268 = vmatpush1.bf16.msra.mxu0 %v7113
      %7269 = vmatprep.subr.bf16.mxu0 0
      %7270 = vmatpush1.bf16.msra.mxu0 %v7112
      %7271 = vmatprep.subr.bf16.mxu0 0
      %7272 = vmatpush1.bf16.msra.mxu0 %v7111
      %7273 = vmatprep.subr.bf16.mxu0 0
      %7274 = vmatpush1.bf16.msra.mxu0 %v7110
      %7275 = vmatprep.subr.bf16.mxu0 0
      %7276 = vmatpush1.bf16.msra.mxu0 %v7109
      %7277 = vmatprep.subr.bf16.mxu0 0
      %7278 = vmatpush2.bf16.msra.mxu0 %v7124
      %7279 = vmatprep.subr.bf16.mxu0 0
      %7280 = vmatpush2.bf16.msra.mxu0 %v7123
      %7281 = vmatprep.subr.bf16.mxu0 0
      %7282 = vmatpush2.bf16.msra.mxu0 %v7122
      %7283 = vmatprep.subr.bf16.mxu0 0
      %7284 = vmatpush2.bf16.msra.mxu0 %v7121
      %7285 = vmatprep.subr.bf16.mxu0 0
      %7286 = vmatpush2.bf16.msra.mxu0 %v7120
      %7287 = vmatprep.subr.bf16.mxu0 0
      %7288 = vmatpush2.bf16.msra.mxu0 %v7119
      %7289 = vmatprep.subr.bf16.mxu0 0
      %7290 = vmatpush2.bf16.msra.mxu0 %v7118
      %7291 = vmatprep.subr.bf16.mxu0 0
      %7292 = vmatpush2.bf16.msra.mxu0 %v7117
      %7293 = vmatprep.mubr.bf16.mxu0 %v6703
      %7294 = vmatmul.mubr.bf16.gmra.mxu0 %v6702
      %v7295 = vpop.f32.mrf.mxu0
      %v7296 = vadd.f32 %v7256, %v7295
      %v7297 = vpop.f32.mrf.mxu0
      %v7298 = vpop.f32.mrf.mxu0
      %v7299 = vpop.f32.mrf.mxu0
      %7300 = vdwg.mxu0
      %7301 = vmatprep.subr.bf16.mxu0 0
      %7302 = vmatpush1.bf16.msra.mxu0 %v7132
      %7303 = vmatprep.subr.bf16.mxu0 0
      %7304 = vmatpush1.bf16.msra.mxu0 %v7131
      %7305 = vmatprep.subr.bf16.mxu0 0
      %7306 = vmatpush1.bf16.msra.mxu0 %v7130
      %7307 = vmatprep.subr.bf16.mxu0 0
      %7308 = vmatpush1.bf16.msra.mxu0 %v7129
      %7309 = vmatprep.subr.bf16.mxu0 0
      %7310 = vmatpush1.bf16.msra.mxu0 %v7128
      %7311 = vmatprep.subr.bf16.mxu0 0
      %7312 = vmatpush1.bf16.msra.mxu0 %v7127
      %7313 = vmatprep.subr.bf16.mxu0 0
      %7314 = vmatpush1.bf16.msra.mxu0 %v7126
      %7315 = vmatprep.subr.bf16.mxu0 0
      %7316 = vmatpush1.bf16.msra.mxu0 %v7125
      %7317 = vmatprep.subr.bf16.mxu0 0
      %7318 = vmatpush2.bf16.msra.mxu0 %v7140
      %7319 = vmatprep.subr.bf16.mxu0 0
      %7320 = vmatpush2.bf16.msra.mxu0 %v7139
      %7321 = vmatprep.subr.bf16.mxu0 0
      %7322 = vmatpush2.bf16.msra.mxu0 %v7138
      %7323 = vmatprep.subr.bf16.mxu0 0
      %7324 = vmatpush2.bf16.msra.mxu0 %v7137
      %7325 = vmatprep.subr.bf16.mxu0 0
      %7326 = vmatpush2.bf16.msra.mxu0 %v7136
      %7327 = vmatprep.subr.bf16.mxu0 0
      %7328 = vmatpush2.bf16.msra.mxu0 %v7135
      %7329 = vmatprep.subr.bf16.mxu0 0
      %7330 = vmatpush2.bf16.msra.mxu0 %v7134
      %7331 = vmatprep.subr.bf16.mxu0 0
      %7332 = vmatpush2.bf16.msra.mxu0 %v7133
      %7333 = vmatprep.mubr.bf16.mxu0 %v6705
      %7334 = vmatmul.mubr.bf16.gmra.mxu0 %v6704
      %v7335 = vpop.f32.mrf.mxu0
      %v7336 = vadd.f32 %v7296, %v7335
      %v7337 = vpop.f32.mrf.mxu0
      %v7338 = vpop.f32.mrf.mxu0
      %v7339 = vpop.f32.mrf.mxu0
      %7340 = vdwg.mxu0
      %7341 = vmatprep.subr.bf16.mxu0 0
      %7342 = vmatpush1.bf16.msra.mxu0 %v7148
      %7343 = vmatprep.subr.bf16.mxu0 0
      %7344 = vmatpush1.bf16.msra.mxu0 %v7147
      %7345 = vmatprep.subr.bf16.mxu0 0
      %7346 = vmatpush1.bf16.msra.mxu0 %v7146
      %7347 = vmatprep.subr.bf16.mxu0 0
      %7348 = vmatpush1.bf16.msra.mxu0 %v7145
      %7349 = vmatprep.subr.bf16.mxu0 0
      %7350 = vmatpush1.bf16.msra.mxu0 %v7144
      %7351 = vmatprep.subr.bf16.mxu0 0
      %7352 = vmatpush1.bf16.msra.mxu0 %v7143
      %7353 = vmatprep.subr.bf16.mxu0 0
      %7354 = vmatpush1.bf16.msra.mxu0 %v7142
      %7355 = vmatprep.subr.bf16.mxu0 0
      %7356 = vmatpush1.bf16.msra.mxu0 %v7141
      %7357 = vmatprep.subr.bf16.mxu0 0
      %7358 = vmatpush2.bf16.msra.mxu0 %v7156
      %7359 = vmatprep.subr.bf16.mxu0 0
      %7360 = vmatpush2.bf16.msra.mxu0 %v7155
      %7361 = vmatprep.subr.bf16.mxu0 0
      %7362 = vmatpush2.bf16.msra.mxu0 %v7154
      %7363 = vmatprep.subr.bf16.mxu0 0
      %7364 = vmatpush2.bf16.msra.mxu0 %v7153
      %7365 = vmatprep.subr.bf16.mxu0 0
      %7366 = vmatpush2.bf16.msra.mxu0 %v7152
      %7367 = vmatprep.subr.bf16.mxu0 0
      %7368 = vmatpush2.bf16.msra.mxu0 %v7151
      %7369 = vmatprep.subr.bf16.mxu0 0
      %7370 = vmatpush2.bf16.msra.mxu0 %v7150
      %7371 = vmatprep.subr.bf16.mxu0 0
      %7372 = vmatpush2.bf16.msra.mxu0 %v7149
      %7373 = vmatprep.mubr.bf16.mxu0 %v6707
      %7374 = vmatmul.mubr.bf16.gmra.mxu0 %v6706
      %v7375 = vpop.f32.mrf.mxu0
      %v7376 = vadd.f32 %v7336, %v7375
      %v7377 = vpop.f32.mrf.mxu0
      %v7378 = vpop.f32.mrf.mxu0
      %v7379 = vpop.f32.mrf.mxu0
      %7380 = vdwg.mxu0
      %7381 = vst [vmem:[%s841] sm:$0x1] %v7376
      %p7382 = scmp.lt.s32.totalorder %s39, 1
      %s7383 = scalar_select %p7382, %s39, 1
      %s7384 = scalar_lea.vmem %s28, %s7383
      // Predicated region
      $region133: #{fcvit_forward.1} parent=131 // pred_check
        %p7385 = pneg %p650
      $region134: #{fcvit_forward.1} parent=131 // pred_check_branch
        %7387 = sbr.rel (%p7385) target = $region136
      $region135: #{fcvit_forward.1} parent=131 // pred_region
        _
      $region136: #{fcvit_forward.1} parent=131 // pred_fallthru
        _
    $region132: #{fcvit_forward.1} parent=5 // pred_fallthru
      _
    %p7388 = scmp.le.s32.totalorder 2, %s34
    // Predicated region
    $region137: #{fcvit_forward.1} parent=5 // pred_check
      %p7389 = pneg %p7388
    $region138: #{fcvit_forward.1} parent=5 // pred_check_branch
      %7391 = sbr.rel (%p7389) target = $region140
    $region139: #{fcvit_forward.1} parent=5 // pred_region
      %s7392 = ssub.s32 %s34, 2
      // Predicated region
      $region141: #{fcvit_forward.1} parent=139 // pred_check
        %p7393 = pneg %p656
      $region142: #{fcvit_forward.1} parent=139 // pred_check_branch
        %7395 = sbr.rel (%p7393) target = $region144
      $region143: #{fcvit_forward.1} parent=139 // pred_region
        %p7396 = scmp.lt.s32.totalorder %s40, 1
        %s7397 = scalar_select %p7396, %s40, 1
        %s7398 = scalar_lea.vmem %s28, %s7397
      $region144: #{fcvit_forward.1} parent=139 // pred_fallthru
        _
    $region140: #{fcvit_forward.1} parent=5 // pred_fallthru
      _
  $region6: #{fcvit_forward.1} parent=0 // loop_footer
    %s38 = sadd.s32 1, %s34
  $region7: #{fcvit_forward.1} parent=0 // loop_footer_branch
    %33 = sbr.rel target = $region3
  $region8: #{fcvit_forward.1} parent=0 // loop_exit
    _

</llo_original>
